<compile_context>
chip_gen: v7x
topology: tpu7x:2x2x1
jax: 0.10.0
libtpu: 0.0.40
codegen_flags: <defaults>
</compile_context>

<pallas_src>
import functools

import jax
import jax.numpy as jnp
from jax.experimental import pallas as pl
from jax.experimental.pallas import tpu as pltpu

STAGE = 5                 # number of ResnetBlocks
N_CONV = 2 * STAGE + 1    # 2 convs per ResnetBlock + 1 conv in ConvBlock = 11
N_PRELU = STAGE + 1       # one shared PReLU per ResnetBlock + one for ConvBlock
CP = 8                    # channels padded to one sublane tile


def _rnet_b_kernel(w_ref, b_ref, a_ref, m_ref, x_ref, o_ref, patch_ref, *, wpad):
    """Whole RNet_B forward for one batch tile (grid axis 0 = batch tiles).

    w_ref:     (N_CONV, 3, CP, 3*CP)  per-row conv weights [co, dx*CP+ci], VMEM
    b_ref:     (N_CONV, CP, 1)        conv biases (zero for padded chans), VMEM
    a_ref:     (N_PRELU,)             PReLU slopes (single param each), SMEM
    m_ref:     (CP, L)                interior mask (nonzero on real pixels), VMEM
    x_ref:     (1, CP, L)             padded-flat channel-first activations, VMEM
    o_ref:     (1, CP, L)             output, same layout, VMEM
    patch_ref: (3*CP, L)              persistent scratch for column-rolled taps
    with L = B_TILE * PF (images of one batch tile concatenated along lanes).
    """
    lanes = m_ref.shape[1]
    interior = m_ref[...] != 0.0               # bool (CP, L), computed once

    cur = x_ref[0].astype(jnp.float32)         # (CP, L)

    def conv3x3(inp, li, masked=True):
        # Stage the 3 column-shifted copies of `inp` (dx = -1, 0, +1) once.
        pd = patch_ref.dtype
        patch_ref[0 * CP:1 * CP, :] = pltpu.roll(inp, 1, axis=1).astype(pd)
        patch_ref[1 * CP:2 * CP, :] = inp.astype(pd)
        patch_ref[2 * CP:3 * CP, :] = pltpu.roll(inp, lanes - 1, axis=1).astype(pd)
        patches = patch_ref[...]               # (3*CP, L)

        w = w_ref[li]                          # (3, CP, 3*CP)
        # One MXU dot per kernel row dy; roll the dy=0/2 partials by -/+WP rows.
        y0 = jnp.dot(w[0], patches, preferred_element_type=jnp.float32)
        y1 = jnp.dot(w[1], patches, preferred_element_type=jnp.float32)
        y2 = jnp.dot(w[2], patches, preferred_element_type=jnp.float32)
        y = (pltpu.roll(y0, wpad, axis=1) + y1
             + pltpu.roll(y2, lanes - wpad, axis=1) + b_ref[li])
        if masked:
            # Re-zero halo / lane-pad positions so the next conv's implicit
            # zero padding (and the residual add) stay correct; circular rolls
            # only ever contaminate these masked-off positions.
            y = jnp.where(interior, y, 0.0)
        return y

    def prelu(v, a):
        # torch.nn.PReLU with a single learnable slope `a`
        return jnp.where(v >= 0, v, a * v)

    # 5 ResnetBlocks: out = act(conv2(act(conv1(x))) + x)   (shared PReLU)
    for blk in range(STAGE):
        a = a_ref[blk]
        t = prelu(conv3x3(cur, 2 * blk), a)
        t = conv3x3(t, 2 * blk + 1) + cur
        cur = prelu(t, a)

    # Trailing ConvBlock: out = act(conv(x)).  Halo/pad lanes are cropped by
    # the wrapper and never re-read, so no mask here.
    cur = prelu(conv3x3(cur, 2 * STAGE, masked=False), a_ref[STAGE])

    o_ref[...] = cur[None].astype(o_ref.dtype)


def pack_rnet_b_params(weights, biases, mxu_bf16=False):
    """One-time repack of conv params (hoisted out of the per-call hot path).

    weights: (N_CONV, 3, 3, C, C) HWIO     biases: (N_CONV, C)
    returns  w2: (N_CONV, 3, CP, 3*CP)      b2: (N_CONV, CP, 1)
    """
    c = weights.shape[-1]
    wpk = jnp.pad(weights, ((0, 0), (0, 0), (0, 0), (0, CP - c), (0, CP - c)))
    # (li, dy, dx, ci, co) -> (li, dy, co, dx, ci): rows = co, cols = dx*CP + ci
    w2 = jnp.transpose(wpk, (0, 1, 4, 2, 3)).reshape(N_CONV, 3, CP, 3 * CP)
    if mxu_bf16:   # bf16 MXU operands: use on v6e/v7x, keep f32 on v5e
        w2 = w2.astype(jnp.bfloat16)
    b2 = jnp.pad(biases, ((0, 0), (0, CP - c))).reshape(N_CONV, CP, 1)
    return w2, b2


def _pick_b_tile(n):
    # Bigger tiles amortize per-step overhead / tiny DMAs (best on 1-TC v5e/v6e);
    # keep >= 2 grid steps when possible so v7x's two TensorCores both get work.
    for bt in (8, 4, 2, 1):
        if n % bt == 0 and n // bt >= 2:
            return bt
    return n


@functools.partial(jax.jit, static_argnames=("b_tile",))
def rnet_b_pallas(x_nchw, w2, b2, prelu_a, b_tile=None):
    n, c, h, w = x_nchw.shape
    hp, wp = h + 2, w + 2
    pf_raw = hp * wp
    pf = ((pf_raw + 127) // 128) * 128          # lane-padded per-image slab
    # Circular rolls may only touch zeroed halo / lane-pad positions: the max
    # tap shift (WP+1) must fit in the per-slab pad slack (batch-lane packing
    # relies on this so rolls never reach a neighboring image's interior).
    assert pf - pf_raw >= wp + 1, "lane-pad slack too small for 3x3 rolls"

    bt = _pick_b_tile(n) if b_tile is None else b_tile
    assert n % bt == 0
    t = n // bt
    lanes = bt * pf

    # --- activations: NCHW -> channel-first, zero-padded, flattened; images of
    #     one batch tile concatenated along lanes: (T, CP, B_TILE*PF)
    xp = jnp.pad(x_nchw, ((0, 0), (0, CP - c), (1, 1), (1, 1)))   # (N,CP,HP,WP)
    xp = jnp.pad(xp.reshape(n, CP, pf_raw), ((0, 0), (0, 0), (0, pf - pf_raw)))
    xp = xp.reshape(t, bt, CP, pf).transpose(0, 2, 1, 3).reshape(t, CP, lanes)
    # TODO(synk): for repeated calls, keep activations in this packed layout
    # between kernels (or fold pack/crop into the kernel) to drop two HBM passes.

    # --- interior mask over one slab, tiled across the batch tile
    idx = jnp.arange(pf)
    row, col = idx // wp, idx % wp
    valid = (idx < pf_raw) & (row >= 1) & (row <= h) & (col >= 1) & (col <= w)
    mask = jnp.broadcast_to(jnp.tile(valid.astype(jnp.float32), bt), (CP, lanes))

    kernel = functools.partial(_rnet_b_kernel, wpad=wp)
    out = pl.pallas_call(
        kernel,
        out_shape=jax.ShapeDtypeStruct((t, CP, lanes), x_nchw.dtype),
        grid_spec=pltpu.PrefetchScalarGridSpec(
            num_scalar_prefetch=0,
            grid=(t,),
            in_specs=[
                # grid-invariant operands (constant index_map -> no re-DMA)
                pl.BlockSpec((N_CONV, 3, CP, 3 * CP), lambda i: (0, 0, 0, 0)),
                pl.BlockSpec((N_CONV, CP, 1), lambda i: (0, 0, 0)),
                pl.BlockSpec(memory_space=pltpu.MemorySpace.SMEM),
                pl.BlockSpec((CP, lanes), lambda i: (0, 0)),
                # per-step batch tile
                pl.BlockSpec((1, CP, lanes), lambda i: (i, 0, 0)),
            ],
            out_specs=pl.BlockSpec((1, CP, lanes), lambda i: (i, 0, 0)),
            scratch_shapes=[pltpu.VMEM((3 * CP, lanes), w2.dtype)],
        ),
        compiler_params=pltpu.CompilerParams(
            dimension_semantics=("parallel",)),
    )(w2, b2, prelu_a, mask, xp)

    # unpack: de-interleave the batch tile, drop pad channels / lane pad / halo
    out = out.reshape(t, CP, bt, pf).transpose(0, 2, 1, 3).reshape(n, CP, pf)
    out = out[:, :c, :pf_raw].reshape(n, c, hp, wp)
    return out[:, :, 1:h + 1, 1:w + 1]


def rnet_b_ref(x_nchw, weights, biases, prelu_a):
    """Pure-JAX reference (same math) for a correctness check."""
    x = jnp.transpose(x_nchw, (0, 2, 3, 1))

    def conv(v, li):
        return jax.lax.conv_general_dilated(
            v, weights[li], window_strides=(1, 1), padding="SAME",
            dimension_numbers=("NHWC", "HWIO", "NHWC")) + biases[li]

    def prelu(v, a):
        return jnp.where(v >= 0, v, a * v)

    cur = x
    for blk in range(STAGE):
        a = prelu_a[blk]
        out = prelu(conv(cur, 2 * blk), a)
        out = conv(out, 2 * blk + 1) + cur
        cur = prelu(out, a)
    cur = prelu(conv(cur, 2 * STAGE), prelu_a[STAGE])
    return jnp.transpose(cur, (0, 3, 1, 2))


if __name__ == "__main__":
    N, C, H, W = 2, 4, 16, 16          # base_2_channels = 4
    key = jax.random.PRNGKey(0)
    kx, kw, kb = jax.random.split(key, 3)

    x = jax.random.normal(kx, (N, C, H, W), jnp.float32)
    # Deterministic synthetic params (shapes follow the torch module, HWIO).
    weights = 0.1 * jax.random.normal(kw, (N_CONV, 3, 3, C, C), jnp.float32)
    biases = 0.01 * jax.random.normal(kb, (N_CONV, C), jnp.float32)
    prelu_a = jnp.full((N_PRELU,), 0.25, jnp.float32)  # nn.PReLU default init

    # Param repack is done once (not in the per-call hot path).
    w2, b2 = pack_rnet_b_params(weights, biases, mxu_bf16=False)

    out = jax.block_until_ready(rnet_b_pallas(x, w2, b2, prelu_a))
    ref = rnet_b_ref(x, weights, biases, prelu_a)

    assert out.shape == (N, C, H, W)
    err = float(jnp.max(jnp.abs(out - ref)))
    assert jnp.allclose(out, ref, atol=1e-3, rtol=1e-3), err
    print("KERNEL_OK")
</pallas_src>

<mosaic_0001>
module attributes {stable_mosaic.version = 11 : i64} {
  func.func @_rnet_b_kernel(%arg0: i32, %arg1: memref<11x3x8x24xf32, #tpu.memory_space<vmem>>, %arg2: memref<11x8x1xf32, #tpu.memory_space<vmem>>, %arg3: memref<6xf32, #tpu.memory_space<smem>>, %arg4: memref<8x384xf32, #tpu.memory_space<vmem>>, %arg5: memref<1x8x384xf32, #tpu.memory_space<vmem>>, %arg6: memref<1x8x384xf32, #tpu.memory_space<vmem>>, %arg7: memref<24x384xf32, #tpu.memory_space<vmem>>) attributes {dimension_semantics = [#tpu.dimension_semantics<parallel>], iteration_bounds = array<i64: 2>, scalar_prefetch = 0 : i64, scratch_operands = 1 : i64, tpu.core_type = #tpu.core_type<tc>, window_params = [{pipeline_mode = #tpu.pipeline_mode<synchronous>, transform_indices = @transform_0, window_bounds = array<i64: 11, 3, 8, 24>}, {pipeline_mode = #tpu.pipeline_mode<synchronous>, transform_indices = @transform_1, window_bounds = array<i64: 11, 8, 1>}, {transform_indices = @transform_2, window_bounds = array<i64: 6>}, {pipeline_mode = #tpu.pipeline_mode<synchronous>, transform_indices = @transform_3, window_bounds = array<i64: 8, 384>}, {transform_indices = @transform_4, window_bounds = array<i64: 1, 8, 384>}, {transform_indices = @transform_5, window_bounds = array<i64: 1, 8, 384>}]} {
    %c0 = arith.constant 0 : index
    %c0_0 = arith.constant 0 : index
    %0 = vector.load %arg4[%c0, %c0_0] : memref<8x384xf32, #tpu.memory_space<vmem>>, vector<8x384xf32>
    %cst = arith.constant 0.000000e+00 : f32
    %1 = vector.broadcast %cst : f32 to vector<8x384xf32>
    %2 = arith.cmpf one, %0, %1 : vector<8x384xf32>
    %c0_1 = arith.constant 0 : index
    %c0_2 = arith.constant 0 : index
    %c0_3 = arith.constant 0 : index
    %3 = vector.load %arg5[%c0_1, %c0_2, %c0_3] : memref<1x8x384xf32, #tpu.memory_space<vmem>>, vector<1x8x384xf32>
    %4 = vector.shape_cast %3 : vector<1x8x384xf32> to vector<8x384xf32>
    %c0_4 = arith.constant 0 : index
    %5 = memref.load %arg3[%c0_4] : memref<6xf32, #tpu.memory_space<smem>>
    %c1_i32 = arith.constant 1 : i32
    %6 = tpu.dynamic_rotate %4 by %c1_i32 dim 1 : vector<8x384xf32>, i32 -> vector<8x384xf32>
    %c0_5 = arith.constant 0 : index
    %c0_6 = arith.constant 0 : index
    %7 = vector.load %arg7[%c0_5, %c0_6] : memref<24x384xf32, #tpu.memory_space<vmem>>, vector<8x384xf32>
    tpu.vector_store %arg7[%c0_5, %c0_6], %6 {strides = array<i32>} : memref<24x384xf32, #tpu.memory_space<vmem>>, vector<8x384xf32>,
    %c8 = arith.constant 8 : index
    %c0_7 = arith.constant 0 : index
    %8 = vector.load %arg7[%c8, %c0_7] : memref<24x384xf32, #tpu.memory_space<vmem>>, vector<8x384xf32>
    tpu.vector_store %arg7[%c8, %c0_7], %4 {strides = array<i32>} : memref<24x384xf32, #tpu.memory_space<vmem>>, vector<8x384xf32>,
    %c383_i32 = arith.constant 383 : i32
    %9 = tpu.dynamic_rotate %4 by %c383_i32 dim 1 : vector<8x384xf32>, i32 -> vector<8x384xf32>
    %c16 = arith.constant 16 : index
    %c0_8 = arith.constant 0 : index
    %10 = vector.load %arg7[%c16, %c0_8] : memref<24x384xf32, #tpu.memory_space<vmem>>, vector<8x384xf32>
    tpu.vector_store %arg7[%c16, %c0_8], %9 {strides = array<i32>} : memref<24x384xf32, #tpu.memory_space<vmem>>, vector<8x384xf32>,
    %c0_9 = arith.constant 0 : index
    %c0_10 = arith.constant 0 : index
    %11 = vector.load %arg7[%c0_9, %c0_10] : memref<24x384xf32, #tpu.memory_space<vmem>>, vector<24x384xf32>
    %c0_11 = arith.constant 0 : index
    %c0_12 = arith.constant 0 : index
    %c0_13 = arith.constant 0 : index
    %c0_14 = arith.constant 0 : index
    %12 = vector.load %arg1[%c0_11, %c0_12, %c0_13, %c0_14] : memref<11x3x8x24xf32, #tpu.memory_space<vmem>>, vector<1x3x8x24xf32>
    %13 = vector.shape_cast %12 : vector<1x3x8x24xf32> to vector<3x8x24xf32>
    %14 = vector.extract_strided_slice %13 {offsets = [0, 0, 0], sizes = [1, 8, 24], strides = [1, 1, 1]} : vector<3x8x24xf32> to vector<1x8x24xf32>
    %15 = vector.shape_cast %14 : vector<1x8x24xf32> to vector<8x24xf32>
    %cst_15 = arith.constant dense<0.000000e+00> : vector<8x384xf32>
    %16 = tpu.matmul %15, %11, %cst_15 {dimension_numbers = #tpu.dot_dimension_numbers<[1], [0], [0], [1], [0, 0, 1, 1], [], []>} : vector<8x24xf32>, vector<24x384xf32>, vector<8x384xf32> -> vector<8x384xf32>
    %17 = vector.extract_strided_slice %13 {offsets = [1, 0, 0], sizes = [1, 8, 24], strides = [1, 1, 1]} : vector<3x8x24xf32> to vector<1x8x24xf32>
    %18 = vector.shape_cast %17 : vector<1x8x24xf32> to vector<8x24xf32>
    %cst_16 = arith.constant dense<0.000000e+00> : vector<8x384xf32>
    %19 = tpu.matmul %18, %11, %cst_16 {dimension_numbers = #tpu.dot_dimension_numbers<[1], [0], [0], [1], [0, 0, 1, 1], [], []>} : vector<8x24xf32>, vector<24x384xf32>, vector<8x384xf32> -> vector<8x384xf32>
    %20 = vector.extract_strided_slice %13 {offsets = [2, 0, 0], sizes = [1, 8, 24], strides = [1, 1, 1]} : vector<3x8x24xf32> to vector<1x8x24xf32>
    %21 = vector.shape_cast %20 : vector<1x8x24xf32> to vector<8x24xf32>
    %cst_17 = arith.constant dense<0.000000e+00> : vector<8x384xf32>
    %22 = tpu.matmul %21, %11, %cst_17 {dimension_numbers = #tpu.dot_dimension_numbers<[1], [0], [0], [1], [0, 0, 1, 1], [], []>} : vector<8x24xf32>, vector<24x384xf32>, vector<8x384xf32> -> vector<8x384xf32>
    %c18_i32 = arith.constant 18 : i32
    %23 = tpu.dynamic_rotate %16 by %c18_i32 dim 1 : vector<8x384xf32>, i32 -> vector<8x384xf32>
    %24 = arith.addf %23, %19 : vector<8x384xf32>
    %c366_i32 = arith.constant 366 : i32
    %25 = tpu.dynamic_rotate %22 by %c366_i32 dim 1 : vector<8x384xf32>, i32 -> vector<8x384xf32>
    %26 = arith.addf %24, %25 : vector<8x384xf32>
    %c0_18 = arith.constant 0 : index
    %c0_19 = arith.constant 0 : index
    %c0_20 = arith.constant 0 : index
    %27 = vector.load %arg2[%c0_18, %c0_19, %c0_20] : memref<11x8x1xf32, #tpu.memory_space<vmem>>, vector<1x8x1xf32>
    %28 = vector.shape_cast %27 : vector<1x8x1xf32> to vector<8x1xf32>
    %29 = vector.broadcast %28 : vector<8x1xf32> to vector<8x384xf32>
    %30 = arith.addf %26, %29 : vector<8x384xf32>
    %cst_21 = arith.constant 0.000000e+00 : f32
    %31 = vector.broadcast %cst_21 : f32 to vector<8x384xf32>
    %32 = arith.select %2, %30, %31 : vector<8x384xi1>, vector<8x384xf32>
    %cst_22 = arith.constant 0.000000e+00 : f32
    %33 = vector.broadcast %cst_22 : f32 to vector<8x384xf32>
    %34 = arith.cmpf oge, %32, %33 : vector<8x384xf32>
    %35 = vector.broadcast %5 : f32 to vector<8x384xf32>
    %36 = arith.mulf %35, %32 : vector<8x384xf32>
    %37 = arith.select %34, %32, %36 : vector<8x384xi1>, vector<8x384xf32>
    %c1_i32_23 = arith.constant 1 : i32
    %38 = tpu.dynamic_rotate %37 by %c1_i32_23 dim 1 : vector<8x384xf32>, i32 -> vector<8x384xf32>
    %c0_24 = arith.constant 0 : index
    %c0_25 = arith.constant 0 : index
    %39 = vector.load %arg7[%c0_24, %c0_25] : memref<24x384xf32, #tpu.memory_space<vmem>>, vector<8x384xf32>
    tpu.vector_store %arg7[%c0_24, %c0_25], %38 {strides = array<i32>} : memref<24x384xf32, #tpu.memory_space<vmem>>, vector<8x384xf32>,
    %c8_26 = arith.constant 8 : index
    %c0_27 = arith.constant 0 : index
    %40 = vector.load %arg7[%c8_26, %c0_27] : memref<24x384xf32, #tpu.memory_space<vmem>>, vector<8x384xf32>
    tpu.vector_store %arg7[%c8_26, %c0_27], %37 {strides = array<i32>} : memref<24x384xf32, #tpu.memory_space<vmem>>, vector<8x384xf32>,
    %c383_i32_28 = arith.constant 383 : i32
    %41 = tpu.dynamic_rotate %37 by %c383_i32_28 dim 1 : vector<8x384xf32>, i32 -> vector<8x384xf32>
    %c16_29 = arith.constant 16 : index
    %c0_30 = arith.constant 0 : index
    %42 = vector.load %arg7[%c16_29, %c0_30] : memref<24x384xf32, #tpu.memory_space<vmem>>, vector<8x384xf32>
    tpu.vector_store %arg7[%c16_29, %c0_30], %41 {strides = array<i32>} : memref<24x384xf32, #tpu.memory_space<vmem>>, vector<8x384xf32>,
    %c0_31 = arith.constant 0 : index
    %c0_32 = arith.constant 0 : index
    %43 = vector.load %arg7[%c0_31, %c0_32] : memref<24x384xf32, #tpu.memory_space<vmem>>, vector<24x384xf32>
    %c1 = arith.constant 1 : index
    %c0_33 = arith.constant 0 : index
    %c0_34 = arith.constant 0 : index
    %c0_35 = arith.constant 0 : index
    %44 = vector.load %arg1[%c1, %c0_33, %c0_34, %c0_35] : memref<11x3x8x24xf32, #tpu.memory_space<vmem>>, vector<1x3x8x24xf32>
    %45 = vector.shape_cast %44 : vector<1x3x8x24xf32> to vector<3x8x24xf32>
    %46 = vector.extract_strided_slice %45 {offsets = [0, 0, 0], sizes = [1, 8, 24], strides = [1, 1, 1]} : vector<3x8x24xf32> to vector<1x8x24xf32>
    %47 = vector.shape_cast %46 : vector<1x8x24xf32> to vector<8x24xf32>
    %cst_36 = arith.constant dense<0.000000e+00> : vector<8x384xf32>
    %48 = tpu.matmul %47, %43, %cst_36 {dimension_numbers = #tpu.dot_dimension_numbers<[1], [0], [0], [1], [0, 0, 1, 1], [], []>} : vector<8x24xf32>, vector<24x384xf32>, vector<8x384xf32> -> vector<8x384xf32>
    %49 = vector.extract_strided_slice %45 {offsets = [1, 0, 0], sizes = [1, 8, 24], strides = [1, 1, 1]} : vector<3x8x24xf32> to vector<1x8x24xf32>
    %50 = vector.shape_cast %49 : vector<1x8x24xf32> to vector<8x24xf32>
    %cst_37 = arith.constant dense<0.000000e+00> : vector<8x384xf32>
    %51 = tpu.matmul %50, %43, %cst_37 {dimension_numbers = #tpu.dot_dimension_numbers<[1], [0], [0], [1], [0, 0, 1, 1], [], []>} : vector<8x24xf32>, vector<24x384xf32>, vector<8x384xf32> -> vector<8x384xf32>
    %52 = vector.extract_strided_slice %45 {offsets = [2, 0, 0], sizes = [1, 8, 24], strides = [1, 1, 1]} : vector<3x8x24xf32> to vector<1x8x24xf32>
    %53 = vector.shape_cast %52 : vector<1x8x24xf32> to vector<8x24xf32>
    %cst_38 = arith.constant dense<0.000000e+00> : vector<8x384xf32>
    %54 = tpu.matmul %53, %43, %cst_38 {dimension_numbers = #tpu.dot_dimension_numbers<[1], [0], [0], [1], [0, 0, 1, 1], [], []>} : vector<8x24xf32>, vector<24x384xf32>, vector<8x384xf32> -> vector<8x384xf32>
    %c18_i32_39 = arith.constant 18 : i32
    %55 = tpu.dynamic_rotate %48 by %c18_i32_39 dim 1 : vector<8x384xf32>, i32 -> vector<8x384xf32>
    %56 = arith.addf %55, %51 : vector<8x384xf32>
    %c366_i32_40 = arith.constant 366 : i32
    %57 = tpu.dynamic_rotate %54 by %c366_i32_40 dim 1 : vector<8x384xf32>, i32 -> vector<8x384xf32>
    %58 = arith.addf %56, %57 : vector<8x384xf32>
    %c1_41 = arith.constant 1 : index
    %c0_42 = arith.constant 0 : index
    %c0_43 = arith.constant 0 : index
    %59 = vector.load %arg2[%c1_41, %c0_42, %c0_43] : memref<11x8x1xf32, #tpu.memory_space<vmem>>, vector<1x8x1xf32>
    %60 = vector.shape_cast %59 : vector<1x8x1xf32> to vector<8x1xf32>
    %61 = vector.broadcast %60 : vector<8x1xf32> to vector<8x384xf32>
    %62 = arith.addf %58, %61 : vector<8x384xf32>
    %cst_44 = arith.constant 0.000000e+00 : f32
    %63 = vector.broadcast %cst_44 : f32 to vector<8x384xf32>
    %64 = arith.select %2, %62, %63 : vector<8x384xi1>, vector<8x384xf32>
    %65 = arith.addf %64, %4 : vector<8x384xf32>
    %cst_45 = arith.constant 0.000000e+00 : f32
    %66 = vector.broadcast %cst_45 : f32 to vector<8x384xf32>
    %67 = arith.cmpf oge, %65, %66 : vector<8x384xf32>
    %68 = vector.broadcast %5 : f32 to vector<8x384xf32>
    %69 = arith.mulf %68, %65 : vector<8x384xf32>
    %70 = arith.select %67, %65, %69 : vector<8x384xi1>, vector<8x384xf32>
    %c1_46 = arith.constant 1 : index
    %71 = memref.load %arg3[%c1_46] : memref<6xf32, #tpu.memory_space<smem>>
    %c1_i32_47 = arith.constant 1 : i32
    %72 = tpu.dynamic_rotate %70 by %c1_i32_47 dim 1 : vector<8x384xf32>, i32 -> vector<8x384xf32>
    %c0_48 = arith.constant 0 : index
    %c0_49 = arith.constant 0 : index
    %73 = vector.load %arg7[%c0_48, %c0_49] : memref<24x384xf32, #tpu.memory_space<vmem>>, vector<8x384xf32>
    tpu.vector_store %arg7[%c0_48, %c0_49], %72 {strides = array<i32>} : memref<24x384xf32, #tpu.memory_space<vmem>>, vector<8x384xf32>,
    %c8_50 = arith.constant 8 : index
    %c0_51 = arith.constant 0 : index
    %74 = vector.load %arg7[%c8_50, %c0_51] : memref<24x384xf32, #tpu.memory_space<vmem>>, vector<8x384xf32>
    tpu.vector_store %arg7[%c8_50, %c0_51], %70 {strides = array<i32>} : memref<24x384xf32, #tpu.memory_space<vmem>>, vector<8x384xf32>,
    %c383_i32_52 = arith.constant 383 : i32
    %75 = tpu.dynamic_rotate %70 by %c383_i32_52 dim 1 : vector<8x384xf32>, i32 -> vector<8x384xf32>
    %c16_53 = arith.constant 16 : index
    %c0_54 = arith.constant 0 : index
    %76 = vector.load %arg7[%c16_53, %c0_54] : memref<24x384xf32, #tpu.memory_space<vmem>>, vector<8x384xf32>
    tpu.vector_store %arg7[%c16_53, %c0_54], %75 {strides = array<i32>} : memref<24x384xf32, #tpu.memory_space<vmem>>, vector<8x384xf32>,
    %c0_55 = arith.constant 0 : index
    %c0_56 = arith.constant 0 : index
    %77 = vector.load %arg7[%c0_55, %c0_56] : memref<24x384xf32, #tpu.memory_space<vmem>>, vector<24x384xf32>
    %c2 = arith.constant 2 : index
    %c0_57 = arith.constant 0 : index
    %c0_58 = arith.constant 0 : index
    %c0_59 = arith.constant 0 : index
    %78 = vector.load %arg1[%c2, %c0_57, %c0_58, %c0_59] : memref<11x3x8x24xf32, #tpu.memory_space<vmem>>, vector<1x3x8x24xf32>
    %79 = vector.shape_cast %78 : vector<1x3x8x24xf32> to vector<3x8x24xf32>
    %80 = vector.extract_strided_slice %79 {offsets = [0, 0, 0], sizes = [1, 8, 24], strides = [1, 1, 1]} : vector<3x8x24xf32> to vector<1x8x24xf32>
    %81 = vector.shape_cast %80 : vector<1x8x24xf32> to vector<8x24xf32>
    %cst_60 = arith.constant dense<0.000000e+00> : vector<8x384xf32>
    %82 = tpu.matmul %81, %77, %cst_60 {dimension_numbers = #tpu.dot_dimension_numbers<[1], [0], [0], [1], [0, 0, 1, 1], [], []>} : vector<8x24xf32>, vector<24x384xf32>, vector<8x384xf32> -> vector<8x384xf32>
    %83 = vector.extract_strided_slice %79 {offsets = [1, 0, 0], sizes = [1, 8, 24], strides = [1, 1, 1]} : vector<3x8x24xf32> to vector<1x8x24xf32>
    %84 = vector.shape_cast %83 : vector<1x8x24xf32> to vector<8x24xf32>
    %cst_61 = arith.constant dense<0.000000e+00> : vector<8x384xf32>
    %85 = tpu.matmul %84, %77, %cst_61 {dimension_numbers = #tpu.dot_dimension_numbers<[1], [0], [0], [1], [0, 0, 1, 1], [], []>} : vector<8x24xf32>, vector<24x384xf32>, vector<8x384xf32> -> vector<8x384xf32>
    %86 = vector.extract_strided_slice %79 {offsets = [2, 0, 0], sizes = [1, 8, 24], strides = [1, 1, 1]} : vector<3x8x24xf32> to vector<1x8x24xf32>
    %87 = vector.shape_cast %86 : vector<1x8x24xf32> to vector<8x24xf32>
    %cst_62 = arith.constant dense<0.000000e+00> : vector<8x384xf32>
    %88 = tpu.matmul %87, %77, %cst_62 {dimension_numbers = #tpu.dot_dimension_numbers<[1], [0], [0], [1], [0, 0, 1, 1], [], []>} : vector<8x24xf32>, vector<24x384xf32>, vector<8x384xf32> -> vector<8x384xf32>
    %c18_i32_63 = arith.constant 18 : i32
    %89 = tpu.dynamic_rotate %82 by %c18_i32_63 dim 1 : vector<8x384xf32>, i32 -> vector<8x384xf32>
    %90 = arith.addf %89, %85 : vector<8x384xf32>
    %c366_i32_64 = arith.constant 366 : i32
    %91 = tpu.dynamic_rotate %88 by %c366_i32_64 dim 1 : vector<8x384xf32>, i32 -> vector<8x384xf32>
    %92 = arith.addf %90, %91 : vector<8x384xf32>
    %c2_65 = arith.constant 2 : index
    %c0_66 = arith.constant 0 : index
    %c0_67 = arith.constant 0 : index
    %93 = vector.load %arg2[%c2_65, %c0_66, %c0_67] : memref<11x8x1xf32, #tpu.memory_space<vmem>>, vector<1x8x1xf32>
    %94 = vector.shape_cast %93 : vector<1x8x1xf32> to vector<8x1xf32>
    %95 = vector.broadcast %94 : vector<8x1xf32> to vector<8x384xf32>
    %96 = arith.addf %92, %95 : vector<8x384xf32>
    %cst_68 = arith.constant 0.000000e+00 : f32
    %97 = vector.broadcast %cst_68 : f32 to vector<8x384xf32>
    %98 = arith.select %2, %96, %97 : vector<8x384xi1>, vector<8x384xf32>
    %cst_69 = arith.constant 0.000000e+00 : f32
    %99 = vector.broadcast %cst_69 : f32 to vector<8x384xf32>
    %100 = arith.cmpf oge, %98, %99 : vector<8x384xf32>
    %101 = vector.broadcast %71 : f32 to vector<8x384xf32>
    %102 = arith.mulf %101, %98 : vector<8x384xf32>
    %103 = arith.select %100, %98, %102 : vector<8x384xi1>, vector<8x384xf32>
    %c1_i32_70 = arith.constant 1 : i32
    %104 = tpu.dynamic_rotate %103 by %c1_i32_70 dim 1 : vector<8x384xf32>, i32 -> vector<8x384xf32>
    %c0_71 = arith.constant 0 : index
    %c0_72 = arith.constant 0 : index
    %105 = vector.load %arg7[%c0_71, %c0_72] : memref<24x384xf32, #tpu.memory_space<vmem>>, vector<8x384xf32>
    tpu.vector_store %arg7[%c0_71, %c0_72], %104 {strides = array<i32>} : memref<24x384xf32, #tpu.memory_space<vmem>>, vector<8x384xf32>,
    %c8_73 = arith.constant 8 : index
    %c0_74 = arith.constant 0 : index
    %106 = vector.load %arg7[%c8_73, %c0_74] : memref<24x384xf32, #tpu.memory_space<vmem>>, vector<8x384xf32>
    tpu.vector_store %arg7[%c8_73, %c0_74], %103 {strides = array<i32>} : memref<24x384xf32, #tpu.memory_space<vmem>>, vector<8x384xf32>,
    %c383_i32_75 = arith.constant 383 : i32
    %107 = tpu.dynamic_rotate %103 by %c383_i32_75 dim 1 : vector<8x384xf32>, i32 -> vector<8x384xf32>
    %c16_76 = arith.constant 16 : index
    %c0_77 = arith.constant 0 : index
    %108 = vector.load %arg7[%c16_76, %c0_77] : memref<24x384xf32, #tpu.memory_space<vmem>>, vector<8x384xf32>
    tpu.vector_store %arg7[%c16_76, %c0_77], %107 {strides = array<i32>} : memref<24x384xf32, #tpu.memory_space<vmem>>, vector<8x384xf32>,
    %c0_78 = arith.constant 0 : index
    %c0_79 = arith.constant 0 : index
    %109 = vector.load %arg7[%c0_78, %c0_79] : memref<24x384xf32, #tpu.memory_space<vmem>>, vector<24x384xf32>
    %c3 = arith.constant 3 : index
    %c0_80 = arith.constant 0 : index
    %c0_81 = arith.constant 0 : index
    %c0_82 = arith.constant 0 : index
    %110 = vector.load %arg1[%c3, %c0_80, %c0_81, %c0_82] : memref<11x3x8x24xf32, #tpu.memory_space<vmem>>, vector<1x3x8x24xf32>
    %111 = vector.shape_cast %110 : vector<1x3x8x24xf32> to vector<3x8x24xf32>
    %112 = vector.extract_strided_slice %111 {offsets = [0, 0, 0], sizes = [1, 8, 24], strides = [1, 1, 1]} : vector<3x8x24xf32> to vector<1x8x24xf32>
    %113 = vector.shape_cast %112 : vector<1x8x24xf32> to vector<8x24xf32>
    %cst_83 = arith.constant dense<0.000000e+00> : vector<8x384xf32>
    %114 = tpu.matmul %113, %109, %cst_83 {dimension_numbers = #tpu.dot_dimension_numbers<[1], [0], [0], [1], [0, 0, 1, 1], [], []>} : vector<8x24xf32>, vector<24x384xf32>, vector<8x384xf32> -> vector<8x384xf32>
    %115 = vector.extract_strided_slice %111 {offsets = [1, 0, 0], sizes = [1, 8, 24], strides = [1, 1, 1]} : vector<3x8x24xf32> to vector<1x8x24xf32>
    %116 = vector.shape_cast %115 : vector<1x8x24xf32> to vector<8x24xf32>
    %cst_84 = arith.constant dense<0.000000e+00> : vector<8x384xf32>
    %117 = tpu.matmul %116, %109, %cst_84 {dimension_numbers = #tpu.dot_dimension_numbers<[1], [0], [0], [1], [0, 0, 1, 1], [], []>} : vector<8x24xf32>, vector<24x384xf32>, vector<8x384xf32> -> vector<8x384xf32>
    %118 = vector.extract_strided_slice %111 {offsets = [2, 0, 0], sizes = [1, 8, 24], strides = [1, 1, 1]} : vector<3x8x24xf32> to vector<1x8x24xf32>
    %119 = vector.shape_cast %118 : vector<1x8x24xf32> to vector<8x24xf32>
    %cst_85 = arith.constant dense<0.000000e+00> : vector<8x384xf32>
    %120 = tpu.matmul %119, %109, %cst_85 {dimension_numbers = #tpu.dot_dimension_numbers<[1], [0], [0], [1], [0, 0, 1, 1], [], []>} : vector<8x24xf32>, vector<24x384xf32>, vector<8x384xf32> -> vector<8x384xf32>
    %c18_i32_86 = arith.constant 18 : i32
    %121 = tpu.dynamic_rotate %114 by %c18_i32_86 dim 1 : vector<8x384xf32>, i32 -> vector<8x384xf32>
    %122 = arith.addf %121, %117 : vector<8x384xf32>
    %c366_i32_87 = arith.constant 366 : i32
    %123 = tpu.dynamic_rotate %120 by %c366_i32_87 dim 1 : vector<8x384xf32>, i32 -> vector<8x384xf32>
    %124 = arith.addf %122, %123 : vector<8x384xf32>
    %c3_88 = arith.constant 3 : index
    %c0_89 = arith.constant 0 : index
    %c0_90 = arith.constant 0 : index
    %125 = vector.load %arg2[%c3_88, %c0_89, %c0_90] : memref<11x8x1xf32, #tpu.memory_space<vmem>>, vector<1x8x1xf32>
    %126 = vector.shape_cast %125 : vector<1x8x1xf32> to vector<8x1xf32>
    %127 = vector.broadcast %126 : vector<8x1xf32> to vector<8x384xf32>
    %128 = arith.addf %124, %127 : vector<8x384xf32>
    %cst_91 = arith.constant 0.000000e+00 : f32
    %129 = vector.broadcast %cst_91 : f32 to vector<8x384xf32>
    %130 = arith.select %2, %128, %129 : vector<8x384xi1>, vector<8x384xf32>
    %131 = arith.addf %130, %70 : vector<8x384xf32>
    %cst_92 = arith.constant 0.000000e+00 : f32
    %132 = vector.broadcast %cst_92 : f32 to vector<8x384xf32>
    %133 = arith.cmpf oge, %131, %132 : vector<8x384xf32>
    %134 = vector.broadcast %71 : f32 to vector<8x384xf32>
    %135 = arith.mulf %134, %131 : vector<8x384xf32>
    %136 = arith.select %133, %131, %135 : vector<8x384xi1>, vector<8x384xf32>
    %c2_93 = arith.constant 2 : index
    %137 = memref.load %arg3[%c2_93] : memref<6xf32, #tpu.memory_space<smem>>
    %c1_i32_94 = arith.constant 1 : i32
    %138 = tpu.dynamic_rotate %136 by %c1_i32_94 dim 1 : vector<8x384xf32>, i32 -> vector<8x384xf32>
    %c0_95 = arith.constant 0 : index
    %c0_96 = arith.constant 0 : index
    %139 = vector.load %arg7[%c0_95, %c0_96] : memref<24x384xf32, #tpu.memory_space<vmem>>, vector<8x384xf32>
    tpu.vector_store %arg7[%c0_95, %c0_96], %138 {strides = array<i32>} : memref<24x384xf32, #tpu.memory_space<vmem>>, vector<8x384xf32>,
    %c8_97 = arith.constant 8 : index
    %c0_98 = arith.constant 0 : index
    %140 = vector.load %arg7[%c8_97, %c0_98] : memref<24x384xf32, #tpu.memory_space<vmem>>, vector<8x384xf32>
    tpu.vector_store %arg7[%c8_97, %c0_98], %136 {strides = array<i32>} : memref<24x384xf32, #tpu.memory_space<vmem>>, vector<8x384xf32>,
    %c383_i32_99 = arith.constant 383 : i32
    %141 = tpu.dynamic_rotate %136 by %c383_i32_99 dim 1 : vector<8x384xf32>, i32 -> vector<8x384xf32>
    %c16_100 = arith.constant 16 : index
    %c0_101 = arith.constant 0 : index
    %142 = vector.load %arg7[%c16_100, %c0_101] : memref<24x384xf32, #tpu.memory_space<vmem>>, vector<8x384xf32>
    tpu.vector_store %arg7[%c16_100, %c0_101], %141 {strides = array<i32>} : memref<24x384xf32, #tpu.memory_space<vmem>>, vector<8x384xf32>,
    %c0_102 = arith.constant 0 : index
    %c0_103 = arith.constant 0 : index
    %143 = vector.load %arg7[%c0_102, %c0_103] : memref<24x384xf32, #tpu.memory_space<vmem>>, vector<24x384xf32>
    %c4 = arith.constant 4 : index
    %c0_104 = arith.constant 0 : index
    %c0_105 = arith.constant 0 : index
    %c0_106 = arith.constant 0 : index
    %144 = vector.load %arg1[%c4, %c0_104, %c0_105, %c0_106] : memref<11x3x8x24xf32, #tpu.memory_space<vmem>>, vector<1x3x8x24xf32>
    %145 = vector.shape_cast %144 : vector<1x3x8x24xf32> to vector<3x8x24xf32>
    %146 = vector.extract_strided_slice %145 {offsets = [0, 0, 0], sizes = [1, 8, 24], strides = [1, 1, 1]} : vector<3x8x24xf32> to vector<1x8x24xf32>
    %147 = vector.shape_cast %146 : vector<1x8x24xf32> to vector<8x24xf32>
    %cst_107 = arith.constant dense<0.000000e+00> : vector<8x384xf32>
    %148 = tpu.matmul %147, %143, %cst_107 {dimension_numbers = #tpu.dot_dimension_numbers<[1], [0], [0], [1], [0, 0, 1, 1], [], []>} : vector<8x24xf32>, vector<24x384xf32>, vector<8x384xf32> -> vector<8x384xf32>
    %149 = vector.extract_strided_slice %145 {offsets = [1, 0, 0], sizes = [1, 8, 24], strides = [1, 1, 1]} : vector<3x8x24xf32> to vector<1x8x24xf32>
    %150 = vector.shape_cast %149 : vector<1x8x24xf32> to vector<8x24xf32>
    %cst_108 = arith.constant dense<0.000000e+00> : vector<8x384xf32>
    %151 = tpu.matmul %150, %143, %cst_108 {dimension_numbers = #tpu.dot_dimension_numbers<[1], [0], [0], [1], [0, 0, 1, 1], [], []>} : vector<8x24xf32>, vector<24x384xf32>, vector<8x384xf32> -> vector<8x384xf32>
    %152 = vector.extract_strided_slice %145 {offsets = [2, 0, 0], sizes = [1, 8, 24], strides = [1, 1, 1]} : vector<3x8x24xf32> to vector<1x8x24xf32>
    %153 = vector.shape_cast %152 : vector<1x8x24xf32> to vector<8x24xf32>
    %cst_109 = arith.constant dense<0.000000e+00> : vector<8x384xf32>
    %154 = tpu.matmul %153, %143, %cst_109 {dimension_numbers = #tpu.dot_dimension_numbers<[1], [0], [0], [1], [0, 0, 1, 1], [], []>} : vector<8x24xf32>, vector<24x384xf32>, vector<8x384xf32> -> vector<8x384xf32>
    %c18_i32_110 = arith.constant 18 : i32
    %155 = tpu.dynamic_rotate %148 by %c18_i32_110 dim 1 : vector<8x384xf32>, i32 -> vector<8x384xf32>
    %156 = arith.addf %155, %151 : vector<8x384xf32>
    %c366_i32_111 = arith.constant 366 : i32
    %157 = tpu.dynamic_rotate %154 by %c366_i32_111 dim 1 : vector<8x384xf32>, i32 -> vector<8x384xf32>
    %158 = arith.addf %156, %157 : vector<8x384xf32>
    %c4_112 = arith.constant 4 : index
    %c0_113 = arith.constant 0 : index
    %c0_114 = arith.constant 0 : index
    %159 = vector.load %arg2[%c4_112, %c0_113, %c0_114] : memref<11x8x1xf32, #tpu.memory_space<vmem>>, vector<1x8x1xf32>
    %160 = vector.shape_cast %159 : vector<1x8x1xf32> to vector<8x1xf32>
    %161 = vector.broadcast %160 : vector<8x1xf32> to vector<8x384xf32>
    %162 = arith.addf %158, %161 : vector<8x384xf32>
    %cst_115 = arith.constant 0.000000e+00 : f32
    %163 = vector.broadcast %cst_115 : f32 to vector<8x384xf32>
    %164 = arith.select %2, %162, %163 : vector<8x384xi1>, vector<8x384xf32>
    %cst_116 = arith.constant 0.000000e+00 : f32
    %165 = vector.broadcast %cst_116 : f32 to vector<8x384xf32>
    %166 = arith.cmpf oge, %164, %165 : vector<8x384xf32>
    %167 = vector.broadcast %137 : f32 to vector<8x384xf32>
    %168 = arith.mulf %167, %164 : vector<8x384xf32>
    %169 = arith.select %166, %164, %168 : vector<8x384xi1>, vector<8x384xf32>
    %c1_i32_117 = arith.constant 1 : i32
    %170 = tpu.dynamic_rotate %169 by %c1_i32_117 dim 1 : vector<8x384xf32>, i32 -> vector<8x384xf32>
    %c0_118 = arith.constant 0 : index
    %c0_119 = arith.constant 0 : index
    %171 = vector.load %arg7[%c0_118, %c0_119] : memref<24x384xf32, #tpu.memory_space<vmem>>, vector<8x384xf32>
    tpu.vector_store %arg7[%c0_118, %c0_119], %170 {strides = array<i32>} : memref<24x384xf32, #tpu.memory_space<vmem>>, vector<8x384xf32>,
    %c8_120 = arith.constant 8 : index
    %c0_121 = arith.constant 0 : index
    %172 = vector.load %arg7[%c8_120, %c0_121] : memref<24x384xf32, #tpu.memory_space<vmem>>, vector<8x384xf32>
    tpu.vector_store %arg7[%c8_120, %c0_121], %169 {strides = array<i32>} : memref<24x384xf32, #tpu.memory_space<vmem>>, vector<8x384xf32>,
    %c383_i32_122 = arith.constant 383 : i32
    %173 = tpu.dynamic_rotate %169 by %c383_i32_122 dim 1 : vector<8x384xf32>, i32 -> vector<8x384xf32>
    %c16_123 = arith.constant 16 : index
    %c0_124 = arith.constant 0 : index
    %174 = vector.load %arg7[%c16_123, %c0_124] : memref<24x384xf32, #tpu.memory_space<vmem>>, vector<8x384xf32>
    tpu.vector_store %arg7[%c16_123, %c0_124], %173 {strides = array<i32>} : memref<24x384xf32, #tpu.memory_space<vmem>>, vector<8x384xf32>,
    %c0_125 = arith.constant 0 : index
    %c0_126 = arith.constant 0 : index
    %175 = vector.load %arg7[%c0_125, %c0_126] : memref<24x384xf32, #tpu.memory_space<vmem>>, vector<24x384xf32>
    %c5 = arith.constant 5 : index
    %c0_127 = arith.constant 0 : index
    %c0_128 = arith.constant 0 : index
    %c0_129 = arith.constant 0 : index
    %176 = vector.load %arg1[%c5, %c0_127, %c0_128, %c0_129] : memref<11x3x8x24xf32, #tpu.memory_space<vmem>>, vector<1x3x8x24xf32>
    %177 = vector.shape_cast %176 : vector<1x3x8x24xf32> to vector<3x8x24xf32>
    %178 = vector.extract_strided_slice %177 {offsets = [0, 0, 0], sizes = [1, 8, 24], strides = [1, 1, 1]} : vector<3x8x24xf32> to vector<1x8x24xf32>
    %179 = vector.shape_cast %178 : vector<1x8x24xf32> to vector<8x24xf32>
    %cst_130 = arith.constant dense<0.000000e+00> : vector<8x384xf32>
    %180 = tpu.matmul %179, %175, %cst_130 {dimension_numbers = #tpu.dot_dimension_numbers<[1], [0], [0], [1], [0, 0, 1, 1], [], []>} : vector<8x24xf32>, vector<24x384xf32>, vector<8x384xf32> -> vector<8x384xf32>
    %181 = vector.extract_strided_slice %177 {offsets = [1, 0, 0], sizes = [1, 8, 24], strides = [1, 1, 1]} : vector<3x8x24xf32> to vector<1x8x24xf32>
    %182 = vector.shape_cast %181 : vector<1x8x24xf32> to vector<8x24xf32>
    %cst_131 = arith.constant dense<0.000000e+00> : vector<8x384xf32>
    %183 = tpu.matmul %182, %175, %cst_131 {dimension_numbers = #tpu.dot_dimension_numbers<[1], [0], [0], [1], [0, 0, 1, 1], [], []>} : vector<8x24xf32>, vector<24x384xf32>, vector<8x384xf32> -> vector<8x384xf32>
    %184 = vector.extract_strided_slice %177 {offsets = [2, 0, 0], sizes = [1, 8, 24], strides = [1, 1, 1]} : vector<3x8x24xf32> to vector<1x8x24xf32>
    %185 = vector.shape_cast %184 : vector<1x8x24xf32> to vector<8x24xf32>
    %cst_132 = arith.constant dense<0.000000e+00> : vector<8x384xf32>
    %186 = tpu.matmul %185, %175, %cst_132 {dimension_numbers = #tpu.dot_dimension_numbers<[1], [0], [0], [1], [0, 0, 1, 1], [], []>} : vector<8x24xf32>, vector<24x384xf32>, vector<8x384xf32> -> vector<8x384xf32>
    %c18_i32_133 = arith.constant 18 : i32
    %187 = tpu.dynamic_rotate %180 by %c18_i32_133 dim 1 : vector<8x384xf32>, i32 -> vector<8x384xf32>
    %188 = arith.addf %187, %183 : vector<8x384xf32>
    %c366_i32_134 = arith.constant 366 : i32
    %189 = tpu.dynamic_rotate %186 by %c366_i32_134 dim 1 : vector<8x384xf32>, i32 -> vector<8x384xf32>
    %190 = arith.addf %188, %189 : vector<8x384xf32>
    %c5_135 = arith.constant 5 : index
    %c0_136 = arith.constant 0 : index
    %c0_137 = arith.constant 0 : index
    %191 = vector.load %arg2[%c5_135, %c0_136, %c0_137] : memref<11x8x1xf32, #tpu.memory_space<vmem>>, vector<1x8x1xf32>
    %192 = vector.shape_cast %191 : vector<1x8x1xf32> to vector<8x1xf32>
    %193 = vector.broadcast %192 : vector<8x1xf32> to vector<8x384xf32>
    %194 = arith.addf %190, %193 : vector<8x384xf32>
    %cst_138 = arith.constant 0.000000e+00 : f32
    %195 = vector.broadcast %cst_138 : f32 to vector<8x384xf32>
    %196 = arith.select %2, %194, %195 : vector<8x384xi1>, vector<8x384xf32>
    %197 = arith.addf %196, %136 : vector<8x384xf32>
    %cst_139 = arith.constant 0.000000e+00 : f32
    %198 = vector.broadcast %cst_139 : f32 to vector<8x384xf32>
    %199 = arith.cmpf oge, %197, %198 : vector<8x384xf32>
    %200 = vector.broadcast %137 : f32 to vector<8x384xf32>
    %201 = arith.mulf %200, %197 : vector<8x384xf32>
    %202 = arith.select %199, %197, %201 : vector<8x384xi1>, vector<8x384xf32>
    %c3_140 = arith.constant 3 : index
    %203 = memref.load %arg3[%c3_140] : memref<6xf32, #tpu.memory_space<smem>>
    %c1_i32_141 = arith.constant 1 : i32
    %204 = tpu.dynamic_rotate %202 by %c1_i32_141 dim 1 : vector<8x384xf32>, i32 -> vector<8x384xf32>
    %c0_142 = arith.constant 0 : index
    %c0_143 = arith.constant 0 : index
    %205 = vector.load %arg7[%c0_142, %c0_143] : memref<24x384xf32, #tpu.memory_space<vmem>>, vector<8x384xf32>
    tpu.vector_store %arg7[%c0_142, %c0_143], %204 {strides = array<i32>} : memref<24x384xf32, #tpu.memory_space<vmem>>, vector<8x384xf32>,
    %c8_144 = arith.constant 8 : index
    %c0_145 = arith.constant 0 : index
    %206 = vector.load %arg7[%c8_144, %c0_145] : memref<24x384xf32, #tpu.memory_space<vmem>>, vector<8x384xf32>
    tpu.vector_store %arg7[%c8_144, %c0_145], %202 {strides = array<i32>} : memref<24x384xf32, #tpu.memory_space<vmem>>, vector<8x384xf32>,
    %c383_i32_146 = arith.constant 383 : i32
    %207 = tpu.dynamic_rotate %202 by %c383_i32_146 dim 1 : vector<8x384xf32>, i32 -> vector<8x384xf32>
    %c16_147 = arith.constant 16 : index
    %c0_148 = arith.constant 0 : index
    %208 = vector.load %arg7[%c16_147, %c0_148] : memref<24x384xf32, #tpu.memory_space<vmem>>, vector<8x384xf32>
    tpu.vector_store %arg7[%c16_147, %c0_148], %207 {strides = array<i32>} : memref<24x384xf32, #tpu.memory_space<vmem>>, vector<8x384xf32>,
    %c0_149 = arith.constant 0 : index
    %c0_150 = arith.constant 0 : index
    %209 = vector.load %arg7[%c0_149, %c0_150] : memref<24x384xf32, #tpu.memory_space<vmem>>, vector<24x384xf32>
    %c6 = arith.constant 6 : index
    %c0_151 = arith.constant 0 : index
    %c0_152 = arith.constant 0 : index
    %c0_153 = arith.constant 0 : index
    %210 = vector.load %arg1[%c6, %c0_151, %c0_152, %c0_153] : memref<11x3x8x24xf32, #tpu.memory_space<vmem>>, vector<1x3x8x24xf32>
    %211 = vector.shape_cast %210 : vector<1x3x8x24xf32> to vector<3x8x24xf32>
    %212 = vector.extract_strided_slice %211 {offsets = [0, 0, 0], sizes = [1, 8, 24], strides = [1, 1, 1]} : vector<3x8x24xf32> to vector<1x8x24xf32>
    %213 = vector.shape_cast %212 : vector<1x8x24xf32> to vector<8x24xf32>
    %cst_154 = arith.constant dense<0.000000e+00> : vector<8x384xf32>
    %214 = tpu.matmul %213, %209, %cst_154 {dimension_numbers = #tpu.dot_dimension_numbers<[1], [0], [0], [1], [0, 0, 1, 1], [], []>} : vector<8x24xf32>, vector<24x384xf32>, vector<8x384xf32> -> vector<8x384xf32>
    %215 = vector.extract_strided_slice %211 {offsets = [1, 0, 0], sizes = [1, 8, 24], strides = [1, 1, 1]} : vector<3x8x24xf32> to vector<1x8x24xf32>
    %216 = vector.shape_cast %215 : vector<1x8x24xf32> to vector<8x24xf32>
    %cst_155 = arith.constant dense<0.000000e+00> : vector<8x384xf32>
    %217 = tpu.matmul %216, %209, %cst_155 {dimension_numbers = #tpu.dot_dimension_numbers<[1], [0], [0], [1], [0, 0, 1, 1], [], []>} : vector<8x24xf32>, vector<24x384xf32>, vector<8x384xf32> -> vector<8x384xf32>
    %218 = vector.extract_strided_slice %211 {offsets = [2, 0, 0], sizes = [1, 8, 24], strides = [1, 1, 1]} : vector<3x8x24xf32> to vector<1x8x24xf32>
    %219 = vector.shape_cast %218 : vector<1x8x24xf32> to vector<8x24xf32>
    %cst_156 = arith.constant dense<0.000000e+00> : vector<8x384xf32>
    %220 = tpu.matmul %219, %209, %cst_156 {dimension_numbers = #tpu.dot_dimension_numbers<[1], [0], [0], [1], [0, 0, 1, 1], [], []>} : vector<8x24xf32>, vector<24x384xf32>, vector<8x384xf32> -> vector<8x384xf32>
    %c18_i32_157 = arith.constant 18 : i32
    %221 = tpu.dynamic_rotate %214 by %c18_i32_157 dim 1 : vector<8x384xf32>, i32 -> vector<8x384xf32>
    %222 = arith.addf %221, %217 : vector<8x384xf32>
    %c366_i32_158 = arith.constant 366 : i32
    %223 = tpu.dynamic_rotate %220 by %c366_i32_158 dim 1 : vector<8x384xf32>, i32 -> vector<8x384xf32>
    %224 = arith.addf %222, %223 : vector<8x384xf32>
    %c6_159 = arith.constant 6 : index
    %c0_160 = arith.constant 0 : index
    %c0_161 = arith.constant 0 : index
    %225 = vector.load %arg2[%c6_159, %c0_160, %c0_161] : memref<11x8x1xf32, #tpu.memory_space<vmem>>, vector<1x8x1xf32>
    %226 = vector.shape_cast %225 : vector<1x8x1xf32> to vector<8x1xf32>
    %227 = vector.broadcast %226 : vector<8x1xf32> to vector<8x384xf32>
    %228 = arith.addf %224, %227 : vector<8x384xf32>
    %cst_162 = arith.constant 0.000000e+00 : f32
    %229 = vector.broadcast %cst_162 : f32 to vector<8x384xf32>
    %230 = arith.select %2, %228, %229 : vector<8x384xi1>, vector<8x384xf32>
    %cst_163 = arith.constant 0.000000e+00 : f32
    %231 = vector.broadcast %cst_163 : f32 to vector<8x384xf32>
    %232 = arith.cmpf oge, %230, %231 : vector<8x384xf32>
    %233 = vector.broadcast %203 : f32 to vector<8x384xf32>
    %234 = arith.mulf %233, %230 : vector<8x384xf32>
    %235 = arith.select %232, %230, %234 : vector<8x384xi1>, vector<8x384xf32>
    %c1_i32_164 = arith.constant 1 : i32
    %236 = tpu.dynamic_rotate %235 by %c1_i32_164 dim 1 : vector<8x384xf32>, i32 -> vector<8x384xf32>
    %c0_165 = arith.constant 0 : index
    %c0_166 = arith.constant 0 : index
    %237 = vector.load %arg7[%c0_165, %c0_166] : memref<24x384xf32, #tpu.memory_space<vmem>>, vector<8x384xf32>
    tpu.vector_store %arg7[%c0_165, %c0_166], %236 {strides = array<i32>} : memref<24x384xf32, #tpu.memory_space<vmem>>, vector<8x384xf32>,
    %c8_167 = arith.constant 8 : index
    %c0_168 = arith.constant 0 : index
    %238 = vector.load %arg7[%c8_167, %c0_168] : memref<24x384xf32, #tpu.memory_space<vmem>>, vector<8x384xf32>
    tpu.vector_store %arg7[%c8_167, %c0_168], %235 {strides = array<i32>} : memref<24x384xf32, #tpu.memory_space<vmem>>, vector<8x384xf32>,
    %c383_i32_169 = arith.constant 383 : i32
    %239 = tpu.dynamic_rotate %235 by %c383_i32_169 dim 1 : vector<8x384xf32>, i32 -> vector<8x384xf32>
    %c16_170 = arith.constant 16 : index
    %c0_171 = arith.constant 0 : index
    %240 = vector.load %arg7[%c16_170, %c0_171] : memref<24x384xf32, #tpu.memory_space<vmem>>, vector<8x384xf32>
    tpu.vector_store %arg7[%c16_170, %c0_171], %239 {strides = array<i32>} : memref<24x384xf32, #tpu.memory_space<vmem>>, vector<8x384xf32>,
    %c0_172 = arith.constant 0 : index
    %c0_173 = arith.constant 0 : index
    %241 = vector.load %arg7[%c0_172, %c0_173] : memref<24x384xf32, #tpu.memory_space<vmem>>, vector<24x384xf32>
    %c7 = arith.constant 7 : index
    %c0_174 = arith.constant 0 : index
    %c0_175 = arith.constant 0 : index
    %c0_176 = arith.constant 0 : index
    %242 = vector.load %arg1[%c7, %c0_174, %c0_175, %c0_176] : memref<11x3x8x24xf32, #tpu.memory_space<vmem>>, vector<1x3x8x24xf32>
    %243 = vector.shape_cast %242 : vector<1x3x8x24xf32> to vector<3x8x24xf32>
    %244 = vector.extract_strided_slice %243 {offsets = [0, 0, 0], sizes = [1, 8, 24], strides = [1, 1, 1]} : vector<3x8x24xf32> to vector<1x8x24xf32>
    %245 = vector.shape_cast %244 : vector<1x8x24xf32> to vector<8x24xf32>
    %cst_177 = arith.constant dense<0.000000e+00> : vector<8x384xf32>
    %246 = tpu.matmul %245, %241, %cst_177 {dimension_numbers = #tpu.dot_dimension_numbers<[1], [0], [0], [1], [0, 0, 1, 1], [], []>} : vector<8x24xf32>, vector<24x384xf32>, vector<8x384xf32> -> vector<8x384xf32>
    %247 = vector.extract_strided_slice %243 {offsets = [1, 0, 0], sizes = [1, 8, 24], strides = [1, 1, 1]} : vector<3x8x24xf32> to vector<1x8x24xf32>
    %248 = vector.shape_cast %247 : vector<1x8x24xf32> to vector<8x24xf32>
    %cst_178 = arith.constant dense<0.000000e+00> : vector<8x384xf32>
    %249 = tpu.matmul %248, %241, %cst_178 {dimension_numbers = #tpu.dot_dimension_numbers<[1], [0], [0], [1], [0, 0, 1, 1], [], []>} : vector<8x24xf32>, vector<24x384xf32>, vector<8x384xf32> -> vector<8x384xf32>
    %250 = vector.extract_strided_slice %243 {offsets = [2, 0, 0], sizes = [1, 8, 24], strides = [1, 1, 1]} : vector<3x8x24xf32> to vector<1x8x24xf32>
    %251 = vector.shape_cast %250 : vector<1x8x24xf32> to vector<8x24xf32>
    %cst_179 = arith.constant dense<0.000000e+00> : vector<8x384xf32>
    %252 = tpu.matmul %251, %241, %cst_179 {dimension_numbers = #tpu.dot_dimension_numbers<[1], [0], [0], [1], [0, 0, 1, 1], [], []>} : vector<8x24xf32>, vector<24x384xf32>, vector<8x384xf32> -> vector<8x384xf32>
    %c18_i32_180 = arith.constant 18 : i32
    %253 = tpu.dynamic_rotate %246 by %c18_i32_180 dim 1 : vector<8x384xf32>, i32 -> vector<8x384xf32>
    %254 = arith.addf %253, %249 : vector<8x384xf32>
    %c366_i32_181 = arith.constant 366 : i32
    %255 = tpu.dynamic_rotate %252 by %c366_i32_181 dim 1 : vector<8x384xf32>, i32 -> vector<8x384xf32>
    %256 = arith.addf %254, %255 : vector<8x384xf32>
    %c7_182 = arith.constant 7 : index
    %c0_183 = arith.constant 0 : index
    %c0_184 = arith.constant 0 : index
    %257 = vector.load %arg2[%c7_182, %c0_183, %c0_184] : memref<11x8x1xf32, #tpu.memory_space<vmem>>, vector<1x8x1xf32>
    %258 = vector.shape_cast %257 : vector<1x8x1xf32> to vector<8x1xf32>
    %259 = vector.broadcast %258 : vector<8x1xf32> to vector<8x384xf32>
    %260 = arith.addf %256, %259 : vector<8x384xf32>
    %cst_185 = arith.constant 0.000000e+00 : f32
    %261 = vector.broadcast %cst_185 : f32 to vector<8x384xf32>
    %262 = arith.select %2, %260, %261 : vector<8x384xi1>, vector<8x384xf32>
    %263 = arith.addf %262, %202 : vector<8x384xf32>
    %cst_186 = arith.constant 0.000000e+00 : f32
    %264 = vector.broadcast %cst_186 : f32 to vector<8x384xf32>
    %265 = arith.cmpf oge, %263, %264 : vector<8x384xf32>
    %266 = vector.broadcast %203 : f32 to vector<8x384xf32>
    %267 = arith.mulf %266, %263 : vector<8x384xf32>
    %268 = arith.select %265, %263, %267 : vector<8x384xi1>, vector<8x384xf32>
    %c4_187 = arith.constant 4 : index
    %269 = memref.load %arg3[%c4_187] : memref<6xf32, #tpu.memory_space<smem>>
    %c1_i32_188 = arith.constant 1 : i32
    %270 = tpu.dynamic_rotate %268 by %c1_i32_188 dim 1 : vector<8x384xf32>, i32 -> vector<8x384xf32>
    %c0_189 = arith.constant 0 : index
    %c0_190 = arith.constant 0 : index
    %271 = vector.load %arg7[%c0_189, %c0_190] : memref<24x384xf32, #tpu.memory_space<vmem>>, vector<8x384xf32>
    tpu.vector_store %arg7[%c0_189, %c0_190], %270 {strides = array<i32>} : memref<24x384xf32, #tpu.memory_space<vmem>>, vector<8x384xf32>,
    %c8_191 = arith.constant 8 : index
    %c0_192 = arith.constant 0 : index
    %272 = vector.load %arg7[%c8_191, %c0_192] : memref<24x384xf32, #tpu.memory_space<vmem>>, vector<8x384xf32>
    tpu.vector_store %arg7[%c8_191, %c0_192], %268 {strides = array<i32>} : memref<24x384xf32, #tpu.memory_space<vmem>>, vector<8x384xf32>,
    %c383_i32_193 = arith.constant 383 : i32
    %273 = tpu.dynamic_rotate %268 by %c383_i32_193 dim 1 : vector<8x384xf32>, i32 -> vector<8x384xf32>
    %c16_194 = arith.constant 16 : index
    %c0_195 = arith.constant 0 : index
    %274 = vector.load %arg7[%c16_194, %c0_195] : memref<24x384xf32, #tpu.memory_space<vmem>>, vector<8x384xf32>
    tpu.vector_store %arg7[%c16_194, %c0_195], %273 {strides = array<i32>} : memref<24x384xf32, #tpu.memory_space<vmem>>, vector<8x384xf32>,
    %c0_196 = arith.constant 0 : index
    %c0_197 = arith.constant 0 : index
    %275 = vector.load %arg7[%c0_196, %c0_197] : memref<24x384xf32, #tpu.memory_space<vmem>>, vector<24x384xf32>
    %c8_198 = arith.constant 8 : index
    %c0_199 = arith.constant 0 : index
    %c0_200 = arith.constant 0 : index
    %c0_201 = arith.constant 0 : index
    %276 = vector.load %arg1[%c8_198, %c0_199, %c0_200, %c0_201] : memref<11x3x8x24xf32, #tpu.memory_space<vmem>>, vector<1x3x8x24xf32>
    %277 = vector.shape_cast %276 : vector<1x3x8x24xf32> to vector<3x8x24xf32>
    %278 = vector.extract_strided_slice %277 {offsets = [0, 0, 0], sizes = [1, 8, 24], strides = [1, 1, 1]} : vector<3x8x24xf32> to vector<1x8x24xf32>
    %279 = vector.shape_cast %278 : vector<1x8x24xf32> to vector<8x24xf32>
    %cst_202 = arith.constant dense<0.000000e+00> : vector<8x384xf32>
    %280 = tpu.matmul %279, %275, %cst_202 {dimension_numbers = #tpu.dot_dimension_numbers<[1], [0], [0], [1], [0, 0, 1, 1], [], []>} : vector<8x24xf32>, vector<24x384xf32>, vector<8x384xf32> -> vector<8x384xf32>
    %281 = vector.extract_strided_slice %277 {offsets = [1, 0, 0], sizes = [1, 8, 24], strides = [1, 1, 1]} : vector<3x8x24xf32> to vector<1x8x24xf32>
    %282 = vector.shape_cast %281 : vector<1x8x24xf32> to vector<8x24xf32>
    %cst_203 = arith.constant dense<0.000000e+00> : vector<8x384xf32>
    %283 = tpu.matmul %282, %275, %cst_203 {dimension_numbers = #tpu.dot_dimension_numbers<[1], [0], [0], [1], [0, 0, 1, 1], [], []>} : vector<8x24xf32>, vector<24x384xf32>, vector<8x384xf32> -> vector<8x384xf32>
    %284 = vector.extract_strided_slice %277 {offsets = [2, 0, 0], sizes = [1, 8, 24], strides = [1, 1, 1]} : vector<3x8x24xf32> to vector<1x8x24xf32>
    %285 = vector.shape_cast %284 : vector<1x8x24xf32> to vector<8x24xf32>
    %cst_204 = arith.constant dense<0.000000e+00> : vector<8x384xf32>
    %286 = tpu.matmul %285, %275, %cst_204 {dimension_numbers = #tpu.dot_dimension_numbers<[1], [0], [0], [1], [0, 0, 1, 1], [], []>} : vector<8x24xf32>, vector<24x384xf32>, vector<8x384xf32> -> vector<8x384xf32>
    %c18_i32_205 = arith.constant 18 : i32
    %287 = tpu.dynamic_rotate %280 by %c18_i32_205 dim 1 : vector<8x384xf32>, i32 -> vector<8x384xf32>
    %288 = arith.addf %287, %283 : vector<8x384xf32>
    %c366_i32_206 = arith.constant 366 : i32
    %289 = tpu.dynamic_rotate %286 by %c366_i32_206 dim 1 : vector<8x384xf32>, i32 -> vector<8x384xf32>
    %290 = arith.addf %288, %289 : vector<8x384xf32>
    %c8_207 = arith.constant 8 : index
    %c0_208 = arith.constant 0 : index
    %c0_209 = arith.constant 0 : index
    %291 = vector.load %arg2[%c8_207, %c0_208, %c0_209] : memref<11x8x1xf32, #tpu.memory_space<vmem>>, vector<1x8x1xf32>
    %292 = vector.shape_cast %291 : vector<1x8x1xf32> to vector<8x1xf32>
    %293 = vector.broadcast %292 : vector<8x1xf32> to vector<8x384xf32>
    %294 = arith.addf %290, %293 : vector<8x384xf32>
    %cst_210 = arith.constant 0.000000e+00 : f32
    %295 = vector.broadcast %cst_210 : f32 to vector<8x384xf32>
    %296 = arith.select %2, %294, %295 : vector<8x384xi1>, vector<8x384xf32>
    %cst_211 = arith.constant 0.000000e+00 : f32
    %297 = vector.broadcast %cst_211 : f32 to vector<8x384xf32>
    %298 = arith.cmpf oge, %296, %297 : vector<8x384xf32>
    %299 = vector.broadcast %269 : f32 to vector<8x384xf32>
    %300 = arith.mulf %299, %296 : vector<8x384xf32>
    %301 = arith.select %298, %296, %300 : vector<8x384xi1>, vector<8x384xf32>
    %c1_i32_212 = arith.constant 1 : i32
    %302 = tpu.dynamic_rotate %301 by %c1_i32_212 dim 1 : vector<8x384xf32>, i32 -> vector<8x384xf32>
    %c0_213 = arith.constant 0 : index
    %c0_214 = arith.constant 0 : index
    %303 = vector.load %arg7[%c0_213, %c0_214] : memref<24x384xf32, #tpu.memory_space<vmem>>, vector<8x384xf32>
    tpu.vector_store %arg7[%c0_213, %c0_214], %302 {strides = array<i32>} : memref<24x384xf32, #tpu.memory_space<vmem>>, vector<8x384xf32>,
    %c8_215 = arith.constant 8 : index
    %c0_216 = arith.constant 0 : index
    %304 = vector.load %arg7[%c8_215, %c0_216] : memref<24x384xf32, #tpu.memory_space<vmem>>, vector<8x384xf32>
    tpu.vector_store %arg7[%c8_215, %c0_216], %301 {strides = array<i32>} : memref<24x384xf32, #tpu.memory_space<vmem>>, vector<8x384xf32>,
    %c383_i32_217 = arith.constant 383 : i32
    %305 = tpu.dynamic_rotate %301 by %c383_i32_217 dim 1 : vector<8x384xf32>, i32 -> vector<8x384xf32>
    %c16_218 = arith.constant 16 : index
    %c0_219 = arith.constant 0 : index
    %306 = vector.load %arg7[%c16_218, %c0_219] : memref<24x384xf32, #tpu.memory_space<vmem>>, vector<8x384xf32>
    tpu.vector_store %arg7[%c16_218, %c0_219], %305 {strides = array<i32>} : memref<24x384xf32, #tpu.memory_space<vmem>>, vector<8x384xf32>,
    %c0_220 = arith.constant 0 : index
    %c0_221 = arith.constant 0 : index
    %307 = vector.load %arg7[%c0_220, %c0_221] : memref<24x384xf32, #tpu.memory_space<vmem>>, vector<24x384xf32>
    %c9 = arith.constant 9 : index
    %c0_222 = arith.constant 0 : index
    %c0_223 = arith.constant 0 : index
    %c0_224 = arith.constant 0 : index
    %308 = vector.load %arg1[%c9, %c0_222, %c0_223, %c0_224] : memref<11x3x8x24xf32, #tpu.memory_space<vmem>>, vector<1x3x8x24xf32>
    %309 = vector.shape_cast %308 : vector<1x3x8x24xf32> to vector<3x8x24xf32>
    %310 = vector.extract_strided_slice %309 {offsets = [0, 0, 0], sizes = [1, 8, 24], strides = [1, 1, 1]} : vector<3x8x24xf32> to vector<1x8x24xf32>
    %311 = vector.shape_cast %310 : vector<1x8x24xf32> to vector<8x24xf32>
    %cst_225 = arith.constant dense<0.000000e+00> : vector<8x384xf32>
    %312 = tpu.matmul %311, %307, %cst_225 {dimension_numbers = #tpu.dot_dimension_numbers<[1], [0], [0], [1], [0, 0, 1, 1], [], []>} : vector<8x24xf32>, vector<24x384xf32>, vector<8x384xf32> -> vector<8x384xf32>
    %313 = vector.extract_strided_slice %309 {offsets = [1, 0, 0], sizes = [1, 8, 24], strides = [1, 1, 1]} : vector<3x8x24xf32> to vector<1x8x24xf32>
    %314 = vector.shape_cast %313 : vector<1x8x24xf32> to vector<8x24xf32>
    %cst_226 = arith.constant dense<0.000000e+00> : vector<8x384xf32>
    %315 = tpu.matmul %314, %307, %cst_226 {dimension_numbers = #tpu.dot_dimension_numbers<[1], [0], [0], [1], [0, 0, 1, 1], [], []>} : vector<8x24xf32>, vector<24x384xf32>, vector<8x384xf32> -> vector<8x384xf32>
    %316 = vector.extract_strided_slice %309 {offsets = [2, 0, 0], sizes = [1, 8, 24], strides = [1, 1, 1]} : vector<3x8x24xf32> to vector<1x8x24xf32>
    %317 = vector.shape_cast %316 : vector<1x8x24xf32> to vector<8x24xf32>
    %cst_227 = arith.constant dense<0.000000e+00> : vector<8x384xf32>
    %318 = tpu.matmul %317, %307, %cst_227 {dimension_numbers = #tpu.dot_dimension_numbers<[1], [0], [0], [1], [0, 0, 1, 1], [], []>} : vector<8x24xf32>, vector<24x384xf32>, vector<8x384xf32> -> vector<8x384xf32>
    %c18_i32_228 = arith.constant 18 : i32
    %319 = tpu.dynamic_rotate %312 by %c18_i32_228 dim 1 : vector<8x384xf32>, i32 -> vector<8x384xf32>
    %320 = arith.addf %319, %315 : vector<8x384xf32>
    %c366_i32_229 = arith.constant 366 : i32
    %321 = tpu.dynamic_rotate %318 by %c366_i32_229 dim 1 : vector<8x384xf32>, i32 -> vector<8x384xf32>
    %322 = arith.addf %320, %321 : vector<8x384xf32>
    %c9_230 = arith.constant 9 : index
    %c0_231 = arith.constant 0 : index
    %c0_232 = arith.constant 0 : index
    %323 = vector.load %arg2[%c9_230, %c0_231, %c0_232] : memref<11x8x1xf32, #tpu.memory_space<vmem>>, vector<1x8x1xf32>
    %324 = vector.shape_cast %323 : vector<1x8x1xf32> to vector<8x1xf32>
    %325 = vector.broadcast %324 : vector<8x1xf32> to vector<8x384xf32>
    %326 = arith.addf %322, %325 : vector<8x384xf32>
    %cst_233 = arith.constant 0.000000e+00 : f32
    %327 = vector.broadcast %cst_233 : f32 to vector<8x384xf32>
    %328 = arith.select %2, %326, %327 : vector<8x384xi1>, vector<8x384xf32>
    %329 = arith.addf %328, %268 : vector<8x384xf32>
    %cst_234 = arith.constant 0.000000e+00 : f32
    %330 = vector.broadcast %cst_234 : f32 to vector<8x384xf32>
    %331 = arith.cmpf oge, %329, %330 : vector<8x384xf32>
    %332 = vector.broadcast %269 : f32 to vector<8x384xf32>
    %333 = arith.mulf %332, %329 : vector<8x384xf32>
    %334 = arith.select %331, %329, %333 : vector<8x384xi1>, vector<8x384xf32>
    %c1_i32_235 = arith.constant 1 : i32
    %335 = tpu.dynamic_rotate %334 by %c1_i32_235 dim 1 : vector<8x384xf32>, i32 -> vector<8x384xf32>
    %c0_236 = arith.constant 0 : index
    %c0_237 = arith.constant 0 : index
    %336 = vector.load %arg7[%c0_236, %c0_237] : memref<24x384xf32, #tpu.memory_space<vmem>>, vector<8x384xf32>
    tpu.vector_store %arg7[%c0_236, %c0_237], %335 {strides = array<i32>} : memref<24x384xf32, #tpu.memory_space<vmem>>, vector<8x384xf32>,
    %c8_238 = arith.constant 8 : index
    %c0_239 = arith.constant 0 : index
    %337 = vector.load %arg7[%c8_238, %c0_239] : memref<24x384xf32, #tpu.memory_space<vmem>>, vector<8x384xf32>
    tpu.vector_store %arg7[%c8_238, %c0_239], %334 {strides = array<i32>} : memref<24x384xf32, #tpu.memory_space<vmem>>, vector<8x384xf32>,
    %c383_i32_240 = arith.constant 383 : i32
    %338 = tpu.dynamic_rotate %334 by %c383_i32_240 dim 1 : vector<8x384xf32>, i32 -> vector<8x384xf32>
    %c16_241 = arith.constant 16 : index
    %c0_242 = arith.constant 0 : index
    %339 = vector.load %arg7[%c16_241, %c0_242] : memref<24x384xf32, #tpu.memory_space<vmem>>, vector<8x384xf32>
    tpu.vector_store %arg7[%c16_241, %c0_242], %338 {strides = array<i32>} : memref<24x384xf32, #tpu.memory_space<vmem>>, vector<8x384xf32>,
    %c0_243 = arith.constant 0 : index
    %c0_244 = arith.constant 0 : index
    %340 = vector.load %arg7[%c0_243, %c0_244] : memref<24x384xf32, #tpu.memory_space<vmem>>, vector<24x384xf32>
    %c10 = arith.constant 10 : index
    %c0_245 = arith.constant 0 : index
    %c0_246 = arith.constant 0 : index
    %c0_247 = arith.constant 0 : index
    %341 = vector.load %arg1[%c10, %c0_245, %c0_246, %c0_247] : memref<11x3x8x24xf32, #tpu.memory_space<vmem>>, vector<1x3x8x24xf32>
    %342 = vector.shape_cast %341 : vector<1x3x8x24xf32> to vector<3x8x24xf32>
    %343 = vector.extract_strided_slice %342 {offsets = [0, 0, 0], sizes = [1, 8, 24], strides = [1, 1, 1]} : vector<3x8x24xf32> to vector<1x8x24xf32>
    %344 = vector.shape_cast %343 : vector<1x8x24xf32> to vector<8x24xf32>
    %cst_248 = arith.constant dense<0.000000e+00> : vector<8x384xf32>
    %345 = tpu.matmul %344, %340, %cst_248 {dimension_numbers = #tpu.dot_dimension_numbers<[1], [0], [0], [1], [0, 0, 1, 1], [], []>} : vector<8x24xf32>, vector<24x384xf32>, vector<8x384xf32> -> vector<8x384xf32>
    %346 = vector.extract_strided_slice %342 {offsets = [1, 0, 0], sizes = [1, 8, 24], strides = [1, 1, 1]} : vector<3x8x24xf32> to vector<1x8x24xf32>
    %347 = vector.shape_cast %346 : vector<1x8x24xf32> to vector<8x24xf32>
    %cst_249 = arith.constant dense<0.000000e+00> : vector<8x384xf32>
    %348 = tpu.matmul %347, %340, %cst_249 {dimension_numbers = #tpu.dot_dimension_numbers<[1], [0], [0], [1], [0, 0, 1, 1], [], []>} : vector<8x24xf32>, vector<24x384xf32>, vector<8x384xf32> -> vector<8x384xf32>
    %349 = vector.extract_strided_slice %342 {offsets = [2, 0, 0], sizes = [1, 8, 24], strides = [1, 1, 1]} : vector<3x8x24xf32> to vector<1x8x24xf32>
    %350 = vector.shape_cast %349 : vector<1x8x24xf32> to vector<8x24xf32>
    %cst_250 = arith.constant dense<0.000000e+00> : vector<8x384xf32>
    %351 = tpu.matmul %350, %340, %cst_250 {dimension_numbers = #tpu.dot_dimension_numbers<[1], [0], [0], [1], [0, 0, 1, 1], [], []>} : vector<8x24xf32>, vector<24x384xf32>, vector<8x384xf32> -> vector<8x384xf32>
    %c18_i32_251 = arith.constant 18 : i32
    %352 = tpu.dynamic_rotate %345 by %c18_i32_251 dim 1 : vector<8x384xf32>, i32 -> vector<8x384xf32>
    %353 = arith.addf %352, %348 : vector<8x384xf32>
    %c366_i32_252 = arith.constant 366 : i32
    %354 = tpu.dynamic_rotate %351 by %c366_i32_252 dim 1 : vector<8x384xf32>, i32 -> vector<8x384xf32>
    %355 = arith.addf %353, %354 : vector<8x384xf32>
    %c10_253 = arith.constant 10 : index
    %c0_254 = arith.constant 0 : index
    %c0_255 = arith.constant 0 : index
    %356 = vector.load %arg2[%c10_253, %c0_254, %c0_255] : memref<11x8x1xf32, #tpu.memory_space<vmem>>, vector<1x8x1xf32>
    %357 = vector.shape_cast %356 : vector<1x8x1xf32> to vector<8x1xf32>
    %358 = vector.broadcast %357 : vector<8x1xf32> to vector<8x384xf32>
    %359 = arith.addf %355, %358 : vector<8x384xf32>
    %c5_256 = arith.constant 5 : index
    %360 = memref.load %arg3[%c5_256] : memref<6xf32, #tpu.memory_space<smem>>
    %cst_257 = arith.constant 0.000000e+00 : f32
    %361 = vector.broadcast %cst_257 : f32 to vector<8x384xf32>
    %362 = arith.cmpf oge, %359, %361 : vector<8x384xf32>
    %363 = vector.broadcast %360 : f32 to vector<8x384xf32>
    %364 = arith.mulf %363, %359 : vector<8x384xf32>
    %365 = arith.select %362, %359, %364 : vector<8x384xi1>, vector<8x384xf32>
    %366 = vector.shape_cast %365 : vector<8x384xf32> to vector<1x8x384xf32>
    %c0_258 = arith.constant 0 : index
    %c0_259 = arith.constant 0 : index
    %c0_260 = arith.constant 0 : index
    %367 = vector.load %arg6[%c0_258, %c0_259, %c0_260] : memref<1x8x384xf32, #tpu.memory_space<vmem>>, vector<1x8x384xf32>
    tpu.vector_store %arg6[%c0_258, %c0_259, %c0_260], %366 {strides = array<i32>} : memref<1x8x384xf32, #tpu.memory_space<vmem>>, vector<1x8x384xf32>,
    return
  }
  func.func @transform_0(%arg0: i32) -> (i32, i32, i32, i32) {
    %c0_i32 = arith.constant 0 : i32
    %c0_i32_0 = arith.constant 0 : i32
    %c0_i32_1 = arith.constant 0 : i32
    %c0_i32_2 = arith.constant 0 : i32
    %c0_i32_3 = arith.constant 0 : i32
    return %c0_i32, %c0_i32_0, %c0_i32_1, %c0_i32_2 : i32, i32, i32, i32
  }
  func.func @transform_1(%arg0: i32) -> (i32, i32, i32) {
    %c0_i32 = arith.constant 0 : i32
    %c0_i32_0 = arith.constant 0 : i32
    %c0_i32_1 = arith.constant 0 : i32
    %c0_i32_2 = arith.constant 0 : i32
    return %c0_i32, %c0_i32_0, %c0_i32_1 : i32, i32, i32
  }
  func.func @transform_2(%arg0: i32) -> i32 {
    %c0_i32 = arith.constant 0 : i32
    %c0_i32_0 = arith.constant 0 : i32
    return %c0_i32 : i32
  }
  func.func @transform_3(%arg0: i32) -> (i32, i32) {
    %c0_i32 = arith.constant 0 : i32
    %c0_i32_0 = arith.constant 0 : i32
    %c0_i32_1 = arith.constant 0 : i32
    return %c0_i32, %c0_i32_0 : i32, i32
  }
  func.func @transform_4(%arg0: i32) -> (i32, i32, i32) {
    %c0_i32 = arith.constant 0 : i32
    %c0_i32_0 = arith.constant 0 : i32
    %c0_i32_1 = arith.constant 0 : i32
    return %arg0, %c0_i32, %c0_i32_0 : i32, i32, i32
  }
  func.func @transform_5(%arg0: i32) -> (i32, i32, i32) {
    %c0_i32 = arith.constant 0 : i32
    %c0_i32_0 = arith.constant 0 : i32
    %c0_i32_1 = arith.constant 0 : i32
    return %arg0, %c0_i32, %c0_i32_0 : i32, i32, i32
  }
}

</mosaic_0001>

<llo_original>
// kernel: rnet_b_pallas.1
$region0: #{rnet_b_pallas.1}
  #allocation0 [shape = 'u32[]', space=smem, size = 0x4, offset = 0x4, fixed_abs, tag = 'smem constant byte address 0x4 - core index']
  #allocation1 [shape = 'u32[144,128]{1,0:T(1,128)}', space=vmem, size = 0x12000, scoped, tag = 'internal scratch']
  #allocation2 [shape = 'f32[24,384]{1,0:T(8,128)}', space=vmem, size = 0x9000, scoped, tag = 'scratch operand']
  %s0 = inlined_call_operand.vmem [shape: f32[11,3,8,24], index: 0, kind: input, shape index: {}]
  %s1 = inlined_call_operand.vmem [shape: f32[11,8,1], index: 1, kind: input, shape index: {}]
  %s2 = inlined_call_operand.vmem [shape: f32[6], index: 2, kind: input, shape index: {}]
  %s3 = inlined_call_operand.vmem [shape: f32[8,384], index: 3, kind: input, shape index: {}]
  %s4 = inlined_call_operand.vmem [shape: f32[2,8,384], index: 4, kind: input, shape index: {}]
  %s5 = inlined_call_operand.vmem [shape: f32[2,8,384], index: 5, kind: output, shape index: {}]
  %s6 = sld [smem:[#allocation0]]
  $region57: #{rnet_b_pallas.1} parent=0
    _
  %s8 = ssub.s32 1, %s6
  %s9 = scalar_select 0, %s8, %s6
  $region1: #{rnet_b_pallas.1} parent=0
    #allocation3 [shape = 'u8[512]{0}', space=smem, size = 0x200, scoped, tag = 'input window, operand 2, single buffered']
    #allocation4 [shape = 's32[2]{0}', space=sflag, size = 0x8, scoped, tag = 'scoped memory for rnet_b_pallas.1']
    %10 = vsyncpa [#allocation4], 0
    loop: start=0, step=1, limit=4
    $region2: #{rnet_b_pallas.1} parent=1 // loop_pre_header
      _
    $region3: #{rnet_b_pallas.1} parent=1 // loop_header
      %s12 = sphi 0, %s16
      %p13 = scmp.ge.s32.totalorder %s12, 4
      %s20 = sphi 0, %s20
      %s22 = sphi 0, %s20
      %s23 = sphi 0, %s22
      %s37 = sphi 0, %s23
      %s41 = sphi 0, %s41
      %s43 = sphi 0, %s41
      %s44 = sphi 0, %s43
      %s58 = sphi 0, %s44
      %s62 = sphi 0, %s62
      %s64 = sphi 0, %s62
      %s65 = sphi 0, %s64
      %s79 = sphi 0, %s65
      %s83 = sphi 0, %s83
      %s85 = sphi 0, %s83
      %s86 = sphi 0, %s85
      %s100 = sphi 0, %s86
      %s106 = sphi 0, %s108
      %s109 = sphi 0, %s106
      %s110 = sphi 0, %s109
      %s126 = sphi 0, %s110
      %s132 = sphi 0, %s134
      %s135 = sphi 0, %s132
      %s136 = sphi 0, %s135
      %s152 = sphi 0, %s136
    $region4: #{rnet_b_pallas.1} parent=1 // loop_header_branch
      %15 = sbr.rel (%p13) target = $region8
    $region5: #{rnet_b_pallas.1} parent=1 // loop_body
      %s17 = ssub.s32 %s12, 1
      %s18 = ssub.s32 %s12, 2
      %s19 = sadd.s32 %s12, 1
      %s21 = sadd.s32 %s20, 1
      %p24 = scmp.eq.s32.totalorder %s12, 1
      %p25 = scmp.ne.s32.totalorder %s20, %s22
      %p26 = scmp.eq.s32.totalorder %s12, 0
      %p27 = por %p25, %p26
      %p28 = scmp.ne.s32.totalorder %s20, %s22
      %p29 = scmp.eq.s32.totalorder %s17, 1
      %p30 = por %p28, %p29
      %p31 = scmp.ne.s32.totalorder %s22, %s23
      %p32 = scmp.eq.s32.totalorder %s17, 0
      %p33 = por %p31, %p32
      %p34 = scmp.ne.s32.totalorder %s22, %s23
      %p35 = scmp.eq.s32.totalorder %s18, 1
      %p36 = por %p34, %p35
      %p38 = scmp.ne.s32.totalorder %s23, %s37
      %p39 = scmp.eq.s32.totalorder %s18, 0
      %p40 = por %p38, %p39
      %s42 = sadd.s32 %s41, 1
      %p45 = scmp.eq.s32.totalorder %s12, 1
      %p46 = scmp.ne.s32.totalorder %s41, %s43
      %p47 = scmp.eq.s32.totalorder %s12, 0
      %p48 = por %p46, %p47
      %p49 = scmp.ne.s32.totalorder %s41, %s43
      %p50 = scmp.eq.s32.totalorder %s17, 1
      %p51 = por %p49, %p50
      %p52 = scmp.ne.s32.totalorder %s43, %s44
      %p53 = scmp.eq.s32.totalorder %s17, 0
      %p54 = por %p52, %p53
      %p55 = scmp.ne.s32.totalorder %s43, %s44
      %p56 = scmp.eq.s32.totalorder %s18, 1
      %p57 = por %p55, %p56
      %p59 = scmp.ne.s32.totalorder %s44, %s58
      %p60 = scmp.eq.s32.totalorder %s18, 0
      %p61 = por %p59, %p60
      %s63 = sadd.s32 %s62, 1
      %p66 = scmp.eq.s32.totalorder %s12, 1
      %p67 = scmp.ne.s32.totalorder %s62, %s64
      %p68 = scmp.eq.s32.totalorder %s12, 0
      %p69 = por %p67, %p68
      %p70 = scmp.ne.s32.totalorder %s62, %s64
      %p71 = scmp.eq.s32.totalorder %s17, 1
      %p72 = por %p70, %p71
      %p73 = scmp.ne.s32.totalorder %s64, %s65
      %p74 = scmp.eq.s32.totalorder %s17, 0
      %p75 = por %p73, %p74
      %p76 = scmp.ne.s32.totalorder %s64, %s65
      %p77 = scmp.eq.s32.totalorder %s18, 1
      %p78 = por %p76, %p77
      %p80 = scmp.ne.s32.totalorder %s65, %s79
      %p81 = scmp.eq.s32.totalorder %s18, 0
      %p82 = por %p80, %p81
      %s84 = sadd.s32 %s83, 1
      %p87 = scmp.eq.s32.totalorder %s12, 1
      %p88 = scmp.ne.s32.totalorder %s83, %s85
      %p89 = scmp.eq.s32.totalorder %s12, 0
      %p90 = por %p88, %p89
      %p91 = scmp.ne.s32.totalorder %s83, %s85
      %p92 = scmp.eq.s32.totalorder %s17, 1
      %p93 = por %p91, %p92
      %p94 = scmp.ne.s32.totalorder %s85, %s86
      %p95 = scmp.eq.s32.totalorder %s17, 0
      %p96 = por %p94, %p95
      %p97 = scmp.ne.s32.totalorder %s85, %s86
      %p98 = scmp.eq.s32.totalorder %s18, 1
      %p99 = por %p97, %p98
      %p101 = scmp.ne.s32.totalorder %s86, %s100
      %p102 = scmp.eq.s32.totalorder %s18, 0
      %p103 = por %p101, %p102
      %s104 = ssub.s32 %s12, %s19
      %p105 = scmp.eq.s32.totalorder %s104, 0
      %s107 = sadd.s32 %s106, 1
      %s108 = scalar_select %p105, %s106, %s107
      %p111 = pneg %p105
      %p112 = scmp.eq.s32.totalorder %s12, 1
      %p113 = por %p111, %p112
      %p114 = scmp.ne.s32.totalorder %s106, %s109
      %p115 = scmp.eq.s32.totalorder %s12, 0
      %p116 = por %p114, %p115
      %p117 = scmp.ne.s32.totalorder %s106, %s109
      %p118 = scmp.eq.s32.totalorder %s17, 1
      %p119 = por %p117, %p118
      %p120 = scmp.ne.s32.totalorder %s109, %s110
      %p121 = scmp.eq.s32.totalorder %s17, 0
      %p122 = por %p120, %p121
      %p123 = scmp.ne.s32.totalorder %s109, %s110
      %p124 = scmp.eq.s32.totalorder %s18, 1
      %p125 = por %p123, %p124
      %p127 = scmp.ne.s32.totalorder %s110, %s126
      %p128 = scmp.eq.s32.totalorder %s18, 0
      %p129 = por %p127, %p128
      %s130 = ssub.s32 %s12, %s19
      %p131 = scmp.eq.s32.totalorder %s130, 0
      %s133 = sadd.s32 %s132, 1
      %s134 = scalar_select %p131, %s132, %s133
      %p137 = pneg %p131
      %p138 = scmp.eq.s32.totalorder %s12, 1
      %p139 = por %p137, %p138
      %p140 = scmp.ne.s32.totalorder %s132, %s135
      %p141 = scmp.eq.s32.totalorder %s12, 0
      %p142 = por %p140, %p141
      %p143 = scmp.ne.s32.totalorder %s132, %s135
      %p144 = scmp.eq.s32.totalorder %s17, 1
      %p145 = por %p143, %p144
      %p146 = scmp.ne.s32.totalorder %s135, %s136
      %p147 = scmp.eq.s32.totalorder %s17, 0
      %p148 = por %p146, %p147
      %p149 = scmp.ne.s32.totalorder %s135, %s136
      %p150 = scmp.eq.s32.totalorder %s18, 1
      %p151 = por %p149, %p150
      %p153 = scmp.ne.s32.totalorder %s136, %s152
      %p154 = scmp.eq.s32.totalorder %s18, 0
      %p155 = por %p153, %p154
      %p156 = scmp.le.s32.totalorder 1, %s12
      %p157 = scmp.lt.s32.totalorder %s12, 3
      %p158 = pnand %p156, %p157
      %p159 = pneg %p158
      // Predicated region
      $region9: #{rnet_b_pallas.1} parent=5 // pred_check
        _
      $region10: #{rnet_b_pallas.1} parent=5 // pred_check_branch
        %161 = sbr.rel (%p158) target = $region12
      $region11: #{rnet_b_pallas.1} parent=5 // pred_region
        %s162 = ssub.s32 %s12, 1
        // Predicated region
        $region13: #{rnet_b_pallas.1} parent=11 // pred_check
          %p163 = pneg %p33
        $region14: #{rnet_b_pallas.1} parent=11 // pred_check_branch
          %165 = sbr.rel (%p163) target = $region16
        $region15: #{rnet_b_pallas.1} parent=11 // pred_region
          _
        $region16: #{rnet_b_pallas.1} parent=11 // pred_fallthru
          _
        // Predicated region
        $region17: #{rnet_b_pallas.1} parent=11 // pred_check
          %p166 = pneg %p54
        $region18: #{rnet_b_pallas.1} parent=11 // pred_check_branch
          %168 = sbr.rel (%p166) target = $region20
        $region19: #{rnet_b_pallas.1} parent=11 // pred_region
          _
        $region20: #{rnet_b_pallas.1} parent=11 // pred_fallthru
          _
        // Predicated region
        $region21: #{rnet_b_pallas.1} parent=11 // pred_check
          %p169 = pneg %p75
        $region22: #{rnet_b_pallas.1} parent=11 // pred_check_branch
          %171 = sbr.rel (%p169) target = $region24
        $region23: #{rnet_b_pallas.1} parent=11 // pred_region
          %s173 = ssub.s32 16, 16
          %174 = vsyncadd [#allocation4], %s173
          %s176 = sshll.u32 %s2, 4
          %s177 = int_to_ptr.vmem [resolvable:$true] %s176
          %179 = dma.vmem_to_smem %s177, 16, [#allocation3], [#allocation4]
        $region24: #{rnet_b_pallas.1} parent=11 // pred_fallthru
          _
        // Predicated region
        $region25: #{rnet_b_pallas.1} parent=11 // pred_check
          %p180 = pneg %p96
        $region26: #{rnet_b_pallas.1} parent=11 // pred_check_branch
          %182 = sbr.rel (%p180) target = $region28
        $region27: #{rnet_b_pallas.1} parent=11 // pred_region
          _
        $region28: #{rnet_b_pallas.1} parent=11 // pred_fallthru
          _
      $region12: #{rnet_b_pallas.1} parent=5 // pred_fallthru
        _
      %p183 = scmp.lt.s32.totalorder %s12, 2
      // Predicated region
      $region29: #{rnet_b_pallas.1} parent=5 // pred_check
        %p184 = pneg %p183
      $region30: #{rnet_b_pallas.1} parent=5 // pred_check_branch
        %186 = sbr.rel (%p184) target = $region32
      $region31: #{rnet_b_pallas.1} parent=5 // pred_region
        // Predicated region
        $region33: #{rnet_b_pallas.1} parent=31 // pred_check
          %p187 = pneg %p116
        $region34: #{rnet_b_pallas.1} parent=31 // pred_check_branch
          %189 = sbr.rel (%p187) target = $region36
        $region35: #{rnet_b_pallas.1} parent=31 // pred_region
          %p190 = scmp.lt.s32.totalorder %s12, 1
          %s191 = scalar_select %p190, %s12, 1
          %s192 = smul.addr %s191, 3
          %s193 = smul.addr %s192, 8
          %s194 = scalar_lea.vmem %s4, %s193
        $region36: #{rnet_b_pallas.1} parent=31 // pred_fallthru
          _
      $region32: #{rnet_b_pallas.1} parent=5 // pred_fallthru
        _
      %p195 = scmp.le.s32.totalorder 1, %s12
      %p196 = scmp.lt.s32.totalorder %s12, 3
      %p197 = pnand %p195, %p196
      %p198 = pneg %p197
      // Predicated region
      $region37: #{rnet_b_pallas.1} parent=5 // pred_check
        _
      $region38: #{rnet_b_pallas.1} parent=5 // pred_check_branch
        %200 = sbr.rel (%p197) target = $region40
      $region39: #{rnet_b_pallas.1} parent=5 // pred_region
        %s201 = ssub.s32 %s12, 1
        // Predicated region
        $region41: #{rnet_b_pallas.1} parent=39 // pred_check
          %p202 = pneg %p75
        $region42: #{rnet_b_pallas.1} parent=39 // pred_check_branch
          %204 = sbr.rel (%p202) target = $region44
        $region43: #{rnet_b_pallas.1} parent=39 // pred_region
          %205 = dma.done [#allocation4], 16
        $region44: #{rnet_b_pallas.1} parent=39 // pred_fallthru
          _
        %206 = sfence
        %p207 = pneg %p33
        %p208 = pneg %p30
        %p209 = pneg %p54
        %p210 = pneg %p51
        %p211 = pneg %p75
        %p212 = pneg %p72
        %p213 = pneg %p96
        %p214 = pneg %p93
        %p215 = scmp.lt.s32.totalorder %s17, 1
        %s216 = scalar_select %p215, %s17, 1
        %s217 = smul.addr %s216, 3
        %s218 = smul.addr %s217, 8
        %s219 = scalar_lea.vmem %s4, %s218
        %p220 = pneg %p122
        %p221 = pneg %p119
        %p222 = pneg %p148
        %p223 = pneg %p145
        %p224 = scmp.lt.s32.totalorder %s17, 1
        %s225 = scalar_select %p224, %s17, 1
        %s226 = smul.addr %s225, 3
        %s227 = smul.addr %s226, 8
        %s228 = scalar_lea.vmem %s5, %s227
        %p229 = scmp.lt.s32.totalorder %s17, 1
        %s230 = scalar_select %p229, %s17, 1
        %s231 = smul.addr %s230, 3
        %s232 = smul.addr %s231, 8
        %s233 = scalar_lea.vmem %s4, %s232
        %p234 = scmp.lt.s32.totalorder %s17, 1
        %s235 = scalar_select %p234, %s17, 1
        %s236 = smul.addr %s235, 3
        %s237 = smul.addr %s236, 8
        %s238 = scalar_lea.vmem %s5, %s237
        %v239 = vld [vmem:[%s3] sm:$0xff]
        %v240 = vld [vmem:[%s3 + $0x8] sm:$0xff]
        %v241 = vld [vmem:[%s3 + $0x10] sm:$0xff]
        %vm242 = vcmp.ne.f32.partialorder %v239, 0.0
        %vm243 = vcmp.ne.f32.partialorder %v240, 0.0
        %vm244 = vcmp.ne.f32.partialorder %v241, 0.0
        %v245 = vld [vmem:[%s233] sm:$0xff]
        %v246 = vld [vmem:[%s233 + $0x8] sm:$0xff]
        %v247 = vld [vmem:[%s233 + $0x10] sm:$0xff]
        %s248 = sld [smem:[#allocation3]]
        %249 = vrot.lane.b32.xlu0 %v245, 1
        %v250 = vpop.permute.xlu0 %249
        %251 = vrot.lane.b32.xlu0 %v246, 1
        %v252 = vpop.permute.xlu0 %251
        %253 = vrot.lane.b32.xlu0 %v247, 1
        %v254 = vpop.permute.xlu0 %253
        %v255 = vlaneseq
        %v256 = vand.u32 %v255, 127
        %vm257 = vcmp.lt.s32.totalorder %v256, 1
        %v258 = vsel %vm257, %v252, %v254
        %v259 = vsel %vm257, %v250, %v252
        %v260 = vsel %vm257, %v254, %v250
        %261 = vst [vmem:[#allocation2] sm:$0xff] %v260
        %262 = vst [vmem:[#allocation2 + $0x8] sm:$0xff] %v259
        %263 = vst [vmem:[#allocation2 + $0x10] sm:$0xff] %v258
        %264 = vst [vmem:[#allocation2 + $0x18] sm:$0xff] %v245
        %265 = vst [vmem:[#allocation2 + $0x20] sm:$0xff] %v246
        %266 = vst [vmem:[#allocation2 + $0x28] sm:$0xff] %v247
        %267 = vrot.lane.b32.xlu0 %v245, 127
        %v268 = vpop.permute.xlu0 %267
        %269 = vrot.lane.b32.xlu0 %v246, 127
        %v270 = vpop.permute.xlu0 %269
        %271 = vrot.lane.b32.xlu0 %v247, 127
        %v272 = vpop.permute.xlu0 %271
        %vm273 = vcmp.lt.s32.totalorder %v256, 127
        %v274 = vsel %vm273, %v270, %v272
        %v275 = vsel %vm273, %v268, %v270
        %v276 = vsel %vm273, %v272, %v268
        %277 = vst [vmem:[#allocation2 + $0x30] sm:$0xff] %v275
        %278 = vst [vmem:[#allocation2 + $0x38] sm:$0xff] %v274
        %279 = vst [vmem:[#allocation2 + $0x40] sm:$0xff] %v276
        %v280 = vld [vmem:[#allocation2] sm:$0xff]
        %v281 = vld [vmem:[#allocation2 + $0x8] sm:$0xff]
        %v282 = vld [vmem:[#allocation2 + $0x10] sm:$0xff]
        %v283 = vld [vmem:[#allocation2 + $0x18] sm:$0xff]
        %v284 = vld [vmem:[#allocation2 + $0x20] sm:$0xff]
        %v285 = vld [vmem:[#allocation2 + $0x28] sm:$0xff]
        %v286 = vld [vmem:[#allocation2 + $0x30] sm:$0xff]
        %v287 = vld [vmem:[#allocation2 + $0x38] sm:$0xff]
        %v288 = vld [vmem:[#allocation2 + $0x40] sm:$0xff]
        %v289 = vld [vmem:[%s0] sm:$0xff]
        %v290 = vld [vmem:[%s0 + $0x8] sm:$0xff]
        %v291 = vld [vmem:[%s0 + $0x10] sm:$0xff]
        %vm292 = vcmask 195584
        %v294 = vsel %vm292, %v289, 0
        %296 = vmatprep.subr.mxu0 %v281
        %297 = vmatpush1.msra.mxu0 %v280
        %298 = vmatprep.subr.mxu0 %v284
        %299 = vmatpush1.msra.mxu0 %v283
        %300 = vmatprep.subr.mxu0 %v287
        %301 = vmatpush1.msra.mxu0 %v286
        %302 = vmatprep.subr.mxu0 0.0
        %303 = vmatpush1.msra.mxu0 0.0
        %304 = vmatprep.subr.mxu0 0.0
        %305 = vmatpush1.msra.mxu0 0.0
        %306 = vmatprep.subr.mxu0 0.0
        %307 = vmatpush1.msra.mxu0 0.0
        %308 = vmatprep.subr.mxu0 0.0
        %309 = vmatpush1.msra.mxu0 0.0
        %310 = vmatprep.subr.mxu0 0.0
        %311 = vmatpush1.msra.mxu0 0.0
        %312 = vmatprep.subr.mxu0 0.0
        %313 = vmatpush1.msra.mxu0 0.0
        %314 = vmatprep.subr.mxu0 0.0
        %315 = vmatpush1.msra.mxu0 0.0
        %316 = vmatprep.subr.mxu0 0.0
        %317 = vmatpush1.msra.mxu0 0.0
        %318 = vmatprep.subr.mxu0 0.0
        %319 = vmatpush1.msra.mxu0 0.0
        %320 = vmatprep.subr.mxu0 0.0
        %321 = vmatpush1.msra.mxu0 0.0
        %322 = vmatprep.subr.mxu0 0.0
        %323 = vmatpush1.msra.mxu0 0.0
        %324 = vmatprep.subr.mxu0 0.0
        %325 = vmatpush1.msra.mxu0 0.0
        %326 = vmatprep.subr.mxu0 0.0
        %327 = vmatpush1.msra.mxu0 0.0
        %328 = vmatprep.subr.mxu0 0.0
        %329 = vmatpush1.msra.mxu0 0.0
        %330 = vmatprep.subr.mxu0 0.0
        %331 = vmatpush1.msra.mxu0 0.0
        %332 = vmatprep.subr.mxu0 0.0
        %333 = vmatpush1.msra.mxu0 0.0
        %334 = vmatprep.subr.mxu0 0.0
        %335 = vmatpush1.msra.mxu0 0.0
        %336 = vmatprep.subr.mxu0 0.0
        %337 = vmatpush1.msra.mxu0 0.0
        %338 = vmatprep.subr.mxu0 0.0
        %339 = vmatpush1.msra.mxu0 0.0
        %340 = vmatprep.subr.mxu0 0.0
        %341 = vmatpush1.msra.mxu0 0.0
        %342 = vmatprep.subr.mxu0 0.0
        %343 = vmatpush1.msra.mxu0 0.0
        %344 = vmatprep.subr.mxu0 0.0
        %345 = vmatpush1.msra.mxu0 0.0
        %346 = vmatprep.subr.mxu0 0.0
        %347 = vmatpush1.msra.mxu0 0.0
        %348 = vmatprep.subr.mxu0 0.0
        %349 = vmatpush1.msra.mxu0 0.0
        %350 = vmatprep.subr.mxu0 0.0
        %351 = vmatpush1.msra.mxu0 0.0
        %352 = vmatprep.subr.mxu0 0.0
        %353 = vmatpush1.msra.mxu0 0.0
        %354 = vmatprep.subr.mxu0 0.0
        %355 = vmatpush1.msra.mxu0 0.0
        %356 = vmatprep.subr.mxu0 0.0
        %357 = vmatpush1.msra.mxu0 0.0
        %358 = vmatprep.subr.mxu0 0.0
        %359 = vmatpush1.msra.mxu0 0.0
        %360 = vmatprep.mubr.f32.mxu0 0.0
        %361 = vmatmul.mubr.f32.gmra.mrb[0].mxu0 %v294
        %v362 = vpop.f32.mrb[0].mxu0
        %v363 = vadd.f32 0.0, %v362
        %v364 = vpop.f32.mrb[0].mxu0
        %v365 = vadd.f32 0.0, %v364
        %366 = vdwg.mxu0
        %367 = vmatprep.subr.mxu0 0.0
        %368 = vmatpush1.msra.mxu0 %v282
        %369 = vmatprep.subr.mxu0 0.0
        %370 = vmatpush1.msra.mxu0 %v285
        %371 = vmatprep.subr.mxu0 0.0
        %372 = vmatpush1.msra.mxu0 %v288
        %373 = vmatprep.subr.mxu0 0.0
        %374 = vmatpush1.msra.mxu0 0.0
        %375 = vmatprep.subr.mxu0 0.0
        %376 = vmatpush1.msra.mxu0 0.0
        %377 = vmatprep.subr.mxu0 0.0
        %378 = vmatpush1.msra.mxu0 0.0
        %379 = vmatprep.subr.mxu0 0.0
        %380 = vmatpush1.msra.mxu0 0.0
        %381 = vmatprep.subr.mxu0 0.0
        %382 = vmatpush1.msra.mxu0 0.0
        %383 = vmatprep.subr.mxu0 0.0
        %384 = vmatpush1.msra.mxu0 0.0
        %385 = vmatprep.subr.mxu0 0.0
        %386 = vmatpush1.msra.mxu0 0.0
        %387 = vmatprep.subr.mxu0 0.0
        %388 = vmatpush1.msra.mxu0 0.0
        %389 = vmatprep.subr.mxu0 0.0
        %390 = vmatpush1.msra.mxu0 0.0
        %391 = vmatprep.subr.mxu0 0.0
        %392 = vmatpush1.msra.mxu0 0.0
        %393 = vmatprep.subr.mxu0 0.0
        %394 = vmatpush1.msra.mxu0 0.0
        %395 = vmatprep.subr.mxu0 0.0
        %396 = vmatpush1.msra.mxu0 0.0
        %397 = vmatprep.subr.mxu0 0.0
        %398 = vmatpush1.msra.mxu0 0.0
        %399 = vmatprep.subr.mxu0 0.0
        %400 = vmatpush1.msra.mxu0 0.0
        %401 = vmatprep.subr.mxu0 0.0
        %402 = vmatpush1.msra.mxu0 0.0
        %403 = vmatprep.subr.mxu0 0.0
        %404 = vmatpush1.msra.mxu0 0.0
        %405 = vmatprep.subr.mxu0 0.0
        %406 = vmatpush1.msra.mxu0 0.0
        %407 = vmatprep.subr.mxu0 0.0
        %408 = vmatpush1.msra.mxu0 0.0
        %409 = vmatprep.subr.mxu0 0.0
        %410 = vmatpush1.msra.mxu0 0.0
        %411 = vmatprep.subr.mxu0 0.0
        %412 = vmatpush1.msra.mxu0 0.0
        %413 = vmatprep.subr.mxu0 0.0
        %414 = vmatpush1.msra.mxu0 0.0
        %415 = vmatprep.subr.mxu0 0.0
        %416 = vmatpush1.msra.mxu0 0.0
        %417 = vmatprep.subr.mxu0 0.0
        %418 = vmatpush1.msra.mxu0 0.0
        %419 = vmatprep.subr.mxu0 0.0
        %420 = vmatpush1.msra.mxu0 0.0
        %421 = vmatprep.subr.mxu0 0.0
        %422 = vmatpush1.msra.mxu0 0.0
        %423 = vmatprep.subr.mxu0 0.0
        %424 = vmatpush1.msra.mxu0 0.0
        %425 = vmatprep.subr.mxu0 0.0
        %426 = vmatpush1.msra.mxu0 0.0
        %427 = vmatprep.subr.mxu0 0.0
        %428 = vmatpush1.msra.mxu0 0.0
        %429 = vmatprep.subr.mxu0 0.0
        %430 = vmatpush1.msra.mxu0 0.0
        %431 = vmatprep.mubr.f32.mxu0 0.0
        %432 = vmatmul.mubr.f32.gmra.mrb[0].mxu0 %v294
        %v433 = vpop.f32.mrb[0].mxu0
        %v434 = vadd.f32 0.0, %v433
        %v435 = vpop.f32.mrb[0].mxu0
        %436 = vdwg.mxu0
        %v438 = vsel %vm292, %v290, 0
        %440 = vmatprep.subr.mxu0 %v281
        %441 = vmatpush1.msra.mxu0 %v280
        %442 = vmatprep.subr.mxu0 %v284
        %443 = vmatpush1.msra.mxu0 %v283
        %444 = vmatprep.subr.mxu0 %v287
        %445 = vmatpush1.msra.mxu0 %v286
        %446 = vmatprep.subr.mxu0 0.0
        %447 = vmatpush1.msra.mxu0 0.0
        %448 = vmatprep.subr.mxu0 0.0
        %449 = vmatpush1.msra.mxu0 0.0
        %450 = vmatprep.subr.mxu0 0.0
        %451 = vmatpush1.msra.mxu0 0.0
        %452 = vmatprep.subr.mxu0 0.0
        %453 = vmatpush1.msra.mxu0 0.0
        %454 = vmatprep.subr.mxu0 0.0
        %455 = vmatpush1.msra.mxu0 0.0
        %456 = vmatprep.subr.mxu0 0.0
        %457 = vmatpush1.msra.mxu0 0.0
        %458 = vmatprep.subr.mxu0 0.0
        %459 = vmatpush1.msra.mxu0 0.0
        %460 = vmatprep.subr.mxu0 0.0
        %461 = vmatpush1.msra.mxu0 0.0
        %462 = vmatprep.subr.mxu0 0.0
        %463 = vmatpush1.msra.mxu0 0.0
        %464 = vmatprep.subr.mxu0 0.0
        %465 = vmatpush1.msra.mxu0 0.0
        %466 = vmatprep.subr.mxu0 0.0
        %467 = vmatpush1.msra.mxu0 0.0
        %468 = vmatprep.subr.mxu0 0.0
        %469 = vmatpush1.msra.mxu0 0.0
        %470 = vmatprep.subr.mxu0 0.0
        %471 = vmatpush1.msra.mxu0 0.0
        %472 = vmatprep.subr.mxu0 0.0
        %473 = vmatpush1.msra.mxu0 0.0
        %474 = vmatprep.subr.mxu0 0.0
        %475 = vmatpush1.msra.mxu0 0.0
        %476 = vmatprep.subr.mxu0 0.0
        %477 = vmatpush1.msra.mxu0 0.0
        %478 = vmatprep.subr.mxu0 0.0
        %479 = vmatpush1.msra.mxu0 0.0
        %480 = vmatprep.subr.mxu0 0.0
        %481 = vmatpush1.msra.mxu0 0.0
        %482 = vmatprep.subr.mxu0 0.0
        %483 = vmatpush1.msra.mxu0 0.0
        %484 = vmatprep.subr.mxu0 0.0
        %485 = vmatpush1.msra.mxu0 0.0
        %486 = vmatprep.subr.mxu0 0.0
        %487 = vmatpush1.msra.mxu0 0.0
        %488 = vmatprep.subr.mxu0 0.0
        %489 = vmatpush1.msra.mxu0 0.0
        %490 = vmatprep.subr.mxu0 0.0
        %491 = vmatpush1.msra.mxu0 0.0
        %492 = vmatprep.subr.mxu0 0.0
        %493 = vmatpush1.msra.mxu0 0.0
        %494 = vmatprep.subr.mxu0 0.0
        %495 = vmatpush1.msra.mxu0 0.0
        %496 = vmatprep.subr.mxu0 0.0
        %497 = vmatpush1.msra.mxu0 0.0
        %498 = vmatprep.subr.mxu0 0.0
        %499 = vmatpush1.msra.mxu0 0.0
        %500 = vmatprep.subr.mxu0 0.0
        %501 = vmatpush1.msra.mxu0 0.0
        %502 = vmatprep.subr.mxu0 0.0
        %503 = vmatpush1.msra.mxu0 0.0
        %504 = vmatprep.mubr.f32.mxu0 0.0
        %505 = vmatmul.mubr.f32.gmra.mrb[0].mxu0 %v438
        %v506 = vpop.f32.mrb[0].mxu0
        %v507 = vadd.f32 0.0, %v506
        %v508 = vpop.f32.mrb[0].mxu0
        %v509 = vadd.f32 0.0, %v508
        %510 = vdwg.mxu0
        %511 = vmatprep.subr.mxu0 0.0
        %512 = vmatpush1.msra.mxu0 %v282
        %513 = vmatprep.subr.mxu0 0.0
        %514 = vmatpush1.msra.mxu0 %v285
        %515 = vmatprep.subr.mxu0 0.0
        %516 = vmatpush1.msra.mxu0 %v288
        %517 = vmatprep.subr.mxu0 0.0
        %518 = vmatpush1.msra.mxu0 0.0
        %519 = vmatprep.subr.mxu0 0.0
        %520 = vmatpush1.msra.mxu0 0.0
        %521 = vmatprep.subr.mxu0 0.0
        %522 = vmatpush1.msra.mxu0 0.0
        %523 = vmatprep.subr.mxu0 0.0
        %524 = vmatpush1.msra.mxu0 0.0
        %525 = vmatprep.subr.mxu0 0.0
        %526 = vmatpush1.msra.mxu0 0.0
        %527 = vmatprep.subr.mxu0 0.0
        %528 = vmatpush1.msra.mxu0 0.0
        %529 = vmatprep.subr.mxu0 0.0
        %530 = vmatpush1.msra.mxu0 0.0
        %531 = vmatprep.subr.mxu0 0.0
        %532 = vmatpush1.msra.mxu0 0.0
        %533 = vmatprep.subr.mxu0 0.0
        %534 = vmatpush1.msra.mxu0 0.0
        %535 = vmatprep.subr.mxu0 0.0
        %536 = vmatpush1.msra.mxu0 0.0
        %537 = vmatprep.subr.mxu0 0.0
        %538 = vmatpush1.msra.mxu0 0.0
        %539 = vmatprep.subr.mxu0 0.0
        %540 = vmatpush1.msra.mxu0 0.0
        %541 = vmatprep.subr.mxu0 0.0
        %542 = vmatpush1.msra.mxu0 0.0
        %543 = vmatprep.subr.mxu0 0.0
        %544 = vmatpush1.msra.mxu0 0.0
        %545 = vmatprep.subr.mxu0 0.0
        %546 = vmatpush1.msra.mxu0 0.0
        %547 = vmatprep.subr.mxu0 0.0
        %548 = vmatpush1.msra.mxu0 0.0
        %549 = vmatprep.subr.mxu0 0.0
        %550 = vmatpush1.msra.mxu0 0.0
        %551 = vmatprep.subr.mxu0 0.0
        %552 = vmatpush1.msra.mxu0 0.0
        %553 = vmatprep.subr.mxu0 0.0
        %554 = vmatpush1.msra.mxu0 0.0
        %555 = vmatprep.subr.mxu0 0.0
        %556 = vmatpush1.msra.mxu0 0.0
        %557 = vmatprep.subr.mxu0 0.0
        %558 = vmatpush1.msra.mxu0 0.0
        %559 = vmatprep.subr.mxu0 0.0
        %560 = vmatpush1.msra.mxu0 0.0
        %561 = vmatprep.subr.mxu0 0.0
        %562 = vmatpush1.msra.mxu0 0.0
        %563 = vmatprep.subr.mxu0 0.0
        %564 = vmatpush1.msra.mxu0 0.0
        %565 = vmatprep.subr.mxu0 0.0
        %566 = vmatpush1.msra.mxu0 0.0
        %567 = vmatprep.subr.mxu0 0.0
        %568 = vmatpush1.msra.mxu0 0.0
        %569 = vmatprep.subr.mxu0 0.0
        %570 = vmatpush1.msra.mxu0 0.0
        %571 = vmatprep.subr.mxu0 0.0
        %572 = vmatpush1.msra.mxu0 0.0
        %573 = vmatprep.subr.mxu0 0.0
        %574 = vmatpush1.msra.mxu0 0.0
        %575 = vmatprep.mubr.f32.mxu0 0.0
        %576 = vmatmul.mubr.f32.gmra.mrb[0].mxu0 %v438
        %v577 = vpop.f32.mrb[0].mxu0
        %v578 = vadd.f32 0.0, %v577
        %v579 = vpop.f32.mrb[0].mxu0
        %580 = vdwg.mxu0
        %v582 = vsel %vm292, %v291, 0
        %584 = vmatprep.subr.mxu0 %v281
        %585 = vmatpush1.msra.mxu0 %v280
        %586 = vmatprep.subr.mxu0 %v284
        %587 = vmatpush1.msra.mxu0 %v283
        %588 = vmatprep.subr.mxu0 %v287
        %589 = vmatpush1.msra.mxu0 %v286
        %590 = vmatprep.subr.mxu0 0.0
        %591 = vmatpush1.msra.mxu0 0.0
        %592 = vmatprep.subr.mxu0 0.0
        %593 = vmatpush1.msra.mxu0 0.0
        %594 = vmatprep.subr.mxu0 0.0
        %595 = vmatpush1.msra.mxu0 0.0
        %596 = vmatprep.subr.mxu0 0.0
        %597 = vmatpush1.msra.mxu0 0.0
        %598 = vmatprep.subr.mxu0 0.0
        %599 = vmatpush1.msra.mxu0 0.0
        %600 = vmatprep.subr.mxu0 0.0
        %601 = vmatpush1.msra.mxu0 0.0
        %602 = vmatprep.subr.mxu0 0.0
        %603 = vmatpush1.msra.mxu0 0.0
        %604 = vmatprep.subr.mxu0 0.0
        %605 = vmatpush1.msra.mxu0 0.0
        %606 = vmatprep.subr.mxu0 0.0
        %607 = vmatpush1.msra.mxu0 0.0
        %608 = vmatprep.subr.mxu0 0.0
        %609 = vmatpush1.msra.mxu0 0.0
        %610 = vmatprep.subr.mxu0 0.0
        %611 = vmatpush1.msra.mxu0 0.0
        %612 = vmatprep.subr.mxu0 0.0
        %613 = vmatpush1.msra.mxu0 0.0
        %614 = vmatprep.subr.mxu0 0.0
        %615 = vmatpush1.msra.mxu0 0.0
        %616 = vmatprep.subr.mxu0 0.0
        %617 = vmatpush1.msra.mxu0 0.0
        %618 = vmatprep.subr.mxu0 0.0
        %619 = vmatpush1.msra.mxu0 0.0
        %620 = vmatprep.subr.mxu0 0.0
        %621 = vmatpush1.msra.mxu0 0.0
        %622 = vmatprep.subr.mxu0 0.0
        %623 = vmatpush1.msra.mxu0 0.0
        %624 = vmatprep.subr.mxu0 0.0
        %625 = vmatpush1.msra.mxu0 0.0
        %626 = vmatprep.subr.mxu0 0.0
        %627 = vmatpush1.msra.mxu0 0.0
        %628 = vmatprep.subr.mxu0 0.0
        %629 = vmatpush1.msra.mxu0 0.0
        %630 = vmatprep.subr.mxu0 0.0
        %631 = vmatpush1.msra.mxu0 0.0
        %632 = vmatprep.subr.mxu0 0.0
        %633 = vmatpush1.msra.mxu0 0.0
        %634 = vmatprep.subr.mxu0 0.0
        %635 = vmatpush1.msra.mxu0 0.0
        %636 = vmatprep.subr.mxu0 0.0
        %637 = vmatpush1.msra.mxu0 0.0
        %638 = vmatprep.subr.mxu0 0.0
        %639 = vmatpush1.msra.mxu0 0.0
        %640 = vmatprep.subr.mxu0 0.0
        %641 = vmatpush1.msra.mxu0 0.0
        %642 = vmatprep.subr.mxu0 0.0
        %643 = vmatpush1.msra.mxu0 0.0
        %644 = vmatprep.subr.mxu0 0.0
        %645 = vmatpush1.msra.mxu0 0.0
        %646 = vmatprep.subr.mxu0 0.0
        %647 = vmatpush1.msra.mxu0 0.0
        %648 = vmatprep.mubr.f32.mxu0 0.0
        %649 = vmatmul.mubr.f32.gmra.mrb[0].mxu0 %v582
        %v650 = vpop.f32.mrb[0].mxu0
        %v651 = vadd.f32 0.0, %v650
        %v652 = vpop.f32.mrb[0].mxu0
        %v653 = vadd.f32 0.0, %v652
        %654 = vdwg.mxu0
        %655 = vmatprep.subr.mxu0 0.0
        %656 = vmatpush1.msra.mxu0 %v282
        %657 = vmatprep.subr.mxu0 0.0
        %658 = vmatpush1.msra.mxu0 %v285
        %659 = vmatprep.subr.mxu0 0.0
        %660 = vmatpush1.msra.mxu0 %v288
        %661 = vmatprep.subr.mxu0 0.0
        %662 = vmatpush1.msra.mxu0 0.0
        %663 = vmatprep.subr.mxu0 0.0
        %664 = vmatpush1.msra.mxu0 0.0
        %665 = vmatprep.subr.mxu0 0.0
        %666 = vmatpush1.msra.mxu0 0.0
        %667 = vmatprep.subr.mxu0 0.0
        %668 = vmatpush1.msra.mxu0 0.0
        %669 = vmatprep.subr.mxu0 0.0
        %670 = vmatpush1.msra.mxu0 0.0
        %671 = vmatprep.subr.mxu0 0.0
        %672 = vmatpush1.msra.mxu0 0.0
        %673 = vmatprep.subr.mxu0 0.0
        %674 = vmatpush1.msra.mxu0 0.0
        %675 = vmatprep.subr.mxu0 0.0
        %676 = vmatpush1.msra.mxu0 0.0
        %677 = vmatprep.subr.mxu0 0.0
        %678 = vmatpush1.msra.mxu0 0.0
        %679 = vmatprep.subr.mxu0 0.0
        %680 = vmatpush1.msra.mxu0 0.0
        %681 = vmatprep.subr.mxu0 0.0
        %682 = vmatpush1.msra.mxu0 0.0
        %683 = vmatprep.subr.mxu0 0.0
        %684 = vmatpush1.msra.mxu0 0.0
        %685 = vmatprep.subr.mxu0 0.0
        %686 = vmatpush1.msra.mxu0 0.0
        %687 = vmatprep.subr.mxu0 0.0
        %688 = vmatpush1.msra.mxu0 0.0
        %689 = vmatprep.subr.mxu0 0.0
        %690 = vmatpush1.msra.mxu0 0.0
        %691 = vmatprep.subr.mxu0 0.0
        %692 = vmatpush1.msra.mxu0 0.0
        %693 = vmatprep.subr.mxu0 0.0
        %694 = vmatpush1.msra.mxu0 0.0
        %695 = vmatprep.subr.mxu0 0.0
        %696 = vmatpush1.msra.mxu0 0.0
        %697 = vmatprep.subr.mxu0 0.0
        %698 = vmatpush1.msra.mxu0 0.0
        %699 = vmatprep.subr.mxu0 0.0
        %700 = vmatpush1.msra.mxu0 0.0
        %701 = vmatprep.subr.mxu0 0.0
        %702 = vmatpush1.msra.mxu0 0.0
        %703 = vmatprep.subr.mxu0 0.0
        %704 = vmatpush1.msra.mxu0 0.0
        %705 = vmatprep.subr.mxu0 0.0
        %706 = vmatpush1.msra.mxu0 0.0
        %707 = vmatprep.subr.mxu0 0.0
        %708 = vmatpush1.msra.mxu0 0.0
        %709 = vmatprep.subr.mxu0 0.0
        %710 = vmatpush1.msra.mxu0 0.0
        %711 = vmatprep.subr.mxu0 0.0
        %712 = vmatpush1.msra.mxu0 0.0
        %713 = vmatprep.subr.mxu0 0.0
        %714 = vmatpush1.msra.mxu0 0.0
        %715 = vmatprep.subr.mxu0 0.0
        %716 = vmatpush1.msra.mxu0 0.0
        %717 = vmatprep.subr.mxu0 0.0
        %718 = vmatpush1.msra.mxu0 0.0
        %719 = vmatprep.mubr.f32.mxu0 0.0
        %720 = vmatmul.mubr.f32.gmra.mrb[0].mxu0 %v582
        %v721 = vpop.f32.mrb[0].mxu0
        %v722 = vadd.f32 0.0, %v721
        %v723 = vpop.f32.mrb[0].mxu0
        %724 = vdwg.mxu0
        %725 = vrot.lane.b32.xlu0 %v363, 18
        %v726 = vpop.permute.xlu0 %725
        %727 = vrot.lane.b32.xlu0 %v365, 18
        %v728 = vpop.permute.xlu0 %727
        %729 = vrot.lane.b32.xlu0 %v434, 18
        %v730 = vpop.permute.xlu0 %729
        %vm731 = vcmp.lt.s32.totalorder %v256, 18
        %v732 = vsel %vm731, %v728, %v730
        %v733 = vsel %vm731, %v726, %v728
        %v734 = vsel %vm731, %v730, %v726
        %v735 = vadd.f32 %v734, %v507
        %v736 = vadd.f32 %v733, %v509
        %v737 = vadd.f32 %v732, %v578
        %738 = vrot.lane.b32.xlu0 %v651, 110
        %v739 = vpop.permute.xlu0 %738
        %740 = vrot.lane.b32.xlu0 %v653, 110
        %v741 = vpop.permute.xlu0 %740
        %742 = vrot.lane.b32.xlu0 %v722, 110
        %v743 = vpop.permute.xlu0 %742
        %vm744 = vcmp.lt.s32.totalorder %v256, 110
        %v745 = vsel %vm744, %v741, %v743
        %v746 = vsel %vm744, %v739, %v741
        %v747 = vsel %vm744, %v743, %v739
        %v748 = vadd.f32 %v735, %v746
        %v749 = vadd.f32 %v736, %v745
        %v750 = vadd.f32 %v737, %v747
        %v751 = vld [vmem:[%s1] sm:$0xff]
        %753 = vset.pattern.permute.xlu0 0
        %754 = vperm.xlu0 %753, %v751
        %v755 = vpop.permute.xlu0 %754
        %v757 = vadd.f32 %v748, %v755
        %v758 = vadd.f32 %v749, %v755
        %v759 = vadd.f32 %v750, %v755
        %v760 = vsel %vm242, %v757, 0.0
        %v761 = vsel %vm243, %v758, 0.0
        %v762 = vsel %vm244, %v759, 0.0
        %vm763 = vcmp.ge.f32.partialorder %v760, 0.0
        %vm764 = vcmp.ge.f32.partialorder %v761, 0.0
        %vm765 = vcmp.ge.f32.partialorder %v762, 0.0
        %v766 = vstv %s248
        %v767 = vmul.f32 %v766, %v760
        %v768 = vmul.f32 %v766, %v761
        %v769 = vmul.f32 %v766, %v762
        %v770 = vsel %vm763, %v760, %v767
        %v771 = vsel %vm764, %v761, %v768
        %v772 = vsel %vm765, %v762, %v769
        %773 = vrot.lane.b32.xlu0 %v770, 1
        %v774 = vpop.permute.xlu0 %773
        %775 = vrot.lane.b32.xlu0 %v771, 1
        %v776 = vpop.permute.xlu0 %775
        %777 = vrot.lane.b32.xlu0 %v772, 1
        %v778 = vpop.permute.xlu0 %777
        %v779 = vsel %vm257, %v776, %v778
        %v780 = vsel %vm257, %v774, %v776
        %v781 = vsel %vm257, %v778, %v774
        %782 = vst [vmem:[#allocation2] sm:$0xff] %v781
        %783 = vst [vmem:[#allocation2 + $0x8] sm:$0xff] %v780
        %784 = vst [vmem:[#allocation2 + $0x10] sm:$0xff] %v779
        %785 = vst [vmem:[#allocation2 + $0x18] sm:$0xff] %v770
        %786 = vst [vmem:[#allocation2 + $0x20] sm:$0xff] %v771
        %787 = vst [vmem:[#allocation2 + $0x28] sm:$0xff] %v772
        %788 = vrot.lane.b32.xlu0 %v770, 127
        %v789 = vpop.permute.xlu0 %788
        %790 = vrot.lane.b32.xlu0 %v771, 127
        %v791 = vpop.permute.xlu0 %790
        %792 = vrot.lane.b32.xlu0 %v772, 127
        %v793 = vpop.permute.xlu0 %792
        %v794 = vsel %vm273, %v791, %v793
        %v795 = vsel %vm273, %v789, %v791
        %v796 = vsel %vm273, %v793, %v789
        %797 = vst [vmem:[#allocation2 + $0x30] sm:$0xff] %v795
        %798 = vst [vmem:[#allocation2 + $0x38] sm:$0xff] %v794
        %799 = vst [vmem:[#allocation2 + $0x40] sm:$0xff] %v796
        %v800 = vld [vmem:[#allocation2] sm:$0xff]
        %v801 = vld [vmem:[#allocation2 + $0x8] sm:$0xff]
        %v802 = vld [vmem:[#allocation2 + $0x10] sm:$0xff]
        %v803 = vld [vmem:[#allocation2 + $0x18] sm:$0xff]
        %v804 = vld [vmem:[#allocation2 + $0x20] sm:$0xff]
        %v805 = vld [vmem:[#allocation2 + $0x28] sm:$0xff]
        %v806 = vld [vmem:[#allocation2 + $0x30] sm:$0xff]
        %v807 = vld [vmem:[#allocation2 + $0x38] sm:$0xff]
        %v808 = vld [vmem:[#allocation2 + $0x40] sm:$0xff]
        %s809 = scalar_lea.vmem %s0, 24
        %v810 = vld [vmem:[%s809] sm:$0xff]
        %v811 = vld [vmem:[%s809 + $0x8] sm:$0xff]
        %v812 = vld [vmem:[%s809 + $0x10] sm:$0xff]
        %v814 = vsel %vm292, %v810, 0
        %816 = vmatprep.subr.mxu0 %v801
        %817 = vmatpush1.msra.mxu0 %v800
        %818 = vmatprep.subr.mxu0 %v804
        %819 = vmatpush1.msra.mxu0 %v803
        %820 = vmatprep.subr.mxu0 %v807
        %821 = vmatpush1.msra.mxu0 %v806
        %822 = vmatprep.subr.mxu0 0.0
        %823 = vmatpush1.msra.mxu0 0.0
        %824 = vmatprep.subr.mxu0 0.0
        %825 = vmatpush1.msra.mxu0 0.0
        %826 = vmatprep.subr.mxu0 0.0
        %827 = vmatpush1.msra.mxu0 0.0
        %828 = vmatprep.subr.mxu0 0.0
        %829 = vmatpush1.msra.mxu0 0.0
        %830 = vmatprep.subr.mxu0 0.0
        %831 = vmatpush1.msra.mxu0 0.0
        %832 = vmatprep.subr.mxu0 0.0
        %833 = vmatpush1.msra.mxu0 0.0
        %834 = vmatprep.subr.mxu0 0.0
        %835 = vmatpush1.msra.mxu0 0.0
        %836 = vmatprep.subr.mxu0 0.0
        %837 = vmatpush1.msra.mxu0 0.0
        %838 = vmatprep.subr.mxu0 0.0
        %839 = vmatpush1.msra.mxu0 0.0
        %840 = vmatprep.subr.mxu0 0.0
        %841 = vmatpush1.msra.mxu0 0.0
        %842 = vmatprep.subr.mxu0 0.0
        %843 = vmatpush1.msra.mxu0 0.0
        %844 = vmatprep.subr.mxu0 0.0
        %845 = vmatpush1.msra.mxu0 0.0
        %846 = vmatprep.subr.mxu0 0.0
        %847 = vmatpush1.msra.mxu0 0.0
        %848 = vmatprep.subr.mxu0 0.0
        %849 = vmatpush1.msra.mxu0 0.0
        %850 = vmatprep.subr.mxu0 0.0
        %851 = vmatpush1.msra.mxu0 0.0
        %852 = vmatprep.subr.mxu0 0.0
        %853 = vmatpush1.msra.mxu0 0.0
        %854 = vmatprep.subr.mxu0 0.0
        %855 = vmatpush1.msra.mxu0 0.0
        %856 = vmatprep.subr.mxu0 0.0
        %857 = vmatpush1.msra.mxu0 0.0
        %858 = vmatprep.subr.mxu0 0.0
        %859 = vmatpush1.msra.mxu0 0.0
        %860 = vmatprep.subr.mxu0 0.0
        %861 = vmatpush1.msra.mxu0 0.0
        %862 = vmatprep.subr.mxu0 0.0
        %863 = vmatpush1.msra.mxu0 0.0
        %864 = vmatprep.subr.mxu0 0.0
        %865 = vmatpush1.msra.mxu0 0.0
        %866 = vmatprep.subr.mxu0 0.0
        %867 = vmatpush1.msra.mxu0 0.0
        %868 = vmatprep.subr.mxu0 0.0
        %869 = vmatpush1.msra.mxu0 0.0
        %870 = vmatprep.subr.mxu0 0.0
        %871 = vmatpush1.msra.mxu0 0.0
        %872 = vmatprep.subr.mxu0 0.0
        %873 = vmatpush1.msra.mxu0 0.0
        %874 = vmatprep.subr.mxu0 0.0
        %875 = vmatpush1.msra.mxu0 0.0
        %876 = vmatprep.subr.mxu0 0.0
        %877 = vmatpush1.msra.mxu0 0.0
        %878 = vmatprep.subr.mxu0 0.0
        %879 = vmatpush1.msra.mxu0 0.0
        %880 = vmatprep.mubr.f32.mxu0 0.0
        %881 = vmatmul.mubr.f32.gmra.mrb[0].mxu0 %v814
        %v882 = vpop.f32.mrb[0].mxu0
        %v883 = vadd.f32 0.0, %v882
        %v884 = vpop.f32.mrb[0].mxu0
        %v885 = vadd.f32 0.0, %v884
        %886 = vdwg.mxu0
        %887 = vmatprep.subr.mxu0 0.0
        %888 = vmatpush1.msra.mxu0 %v802
        %889 = vmatprep.subr.mxu0 0.0
        %890 = vmatpush1.msra.mxu0 %v805
        %891 = vmatprep.subr.mxu0 0.0
        %892 = vmatpush1.msra.mxu0 %v808
        %893 = vmatprep.subr.mxu0 0.0
        %894 = vmatpush1.msra.mxu0 0.0
        %895 = vmatprep.subr.mxu0 0.0
        %896 = vmatpush1.msra.mxu0 0.0
        %897 = vmatprep.subr.mxu0 0.0
        %898 = vmatpush1.msra.mxu0 0.0
        %899 = vmatprep.subr.mxu0 0.0
        %900 = vmatpush1.msra.mxu0 0.0
        %901 = vmatprep.subr.mxu0 0.0
        %902 = vmatpush1.msra.mxu0 0.0
        %903 = vmatprep.subr.mxu0 0.0
        %904 = vmatpush1.msra.mxu0 0.0
        %905 = vmatprep.subr.mxu0 0.0
        %906 = vmatpush1.msra.mxu0 0.0
        %907 = vmatprep.subr.mxu0 0.0
        %908 = vmatpush1.msra.mxu0 0.0
        %909 = vmatprep.subr.mxu0 0.0
        %910 = vmatpush1.msra.mxu0 0.0
        %911 = vmatprep.subr.mxu0 0.0
        %912 = vmatpush1.msra.mxu0 0.0
        %913 = vmatprep.subr.mxu0 0.0
        %914 = vmatpush1.msra.mxu0 0.0
        %915 = vmatprep.subr.mxu0 0.0
        %916 = vmatpush1.msra.mxu0 0.0
        %917 = vmatprep.subr.mxu0 0.0
        %918 = vmatpush1.msra.mxu0 0.0
        %919 = vmatprep.subr.mxu0 0.0
        %920 = vmatpush1.msra.mxu0 0.0
        %921 = vmatprep.subr.mxu0 0.0
        %922 = vmatpush1.msra.mxu0 0.0
        %923 = vmatprep.subr.mxu0 0.0
        %924 = vmatpush1.msra.mxu0 0.0
        %925 = vmatprep.subr.mxu0 0.0
        %926 = vmatpush1.msra.mxu0 0.0
        %927 = vmatprep.subr.mxu0 0.0
        %928 = vmatpush1.msra.mxu0 0.0
        %929 = vmatprep.subr.mxu0 0.0
        %930 = vmatpush1.msra.mxu0 0.0
        %931 = vmatprep.subr.mxu0 0.0
        %932 = vmatpush1.msra.mxu0 0.0
        %933 = vmatprep.subr.mxu0 0.0
        %934 = vmatpush1.msra.mxu0 0.0
        %935 = vmatprep.subr.mxu0 0.0
        %936 = vmatpush1.msra.mxu0 0.0
        %937 = vmatprep.subr.mxu0 0.0
        %938 = vmatpush1.msra.mxu0 0.0
        %939 = vmatprep.subr.mxu0 0.0
        %940 = vmatpush1.msra.mxu0 0.0
        %941 = vmatprep.subr.mxu0 0.0
        %942 = vmatpush1.msra.mxu0 0.0
        %943 = vmatprep.subr.mxu0 0.0
        %944 = vmatpush1.msra.mxu0 0.0
        %945 = vmatprep.subr.mxu0 0.0
        %946 = vmatpush1.msra.mxu0 0.0
        %947 = vmatprep.subr.mxu0 0.0
        %948 = vmatpush1.msra.mxu0 0.0
        %949 = vmatprep.subr.mxu0 0.0
        %950 = vmatpush1.msra.mxu0 0.0
        %951 = vmatprep.mubr.f32.mxu0 0.0
        %952 = vmatmul.mubr.f32.gmra.mrb[0].mxu0 %v814
        %v953 = vpop.f32.mrb[0].mxu0
        %v954 = vadd.f32 0.0, %v953
        %v955 = vpop.f32.mrb[0].mxu0
        %956 = vdwg.mxu0
        %v958 = vsel %vm292, %v811, 0
        %960 = vmatprep.subr.mxu0 %v801
        %961 = vmatpush1.msra.mxu0 %v800
        %962 = vmatprep.subr.mxu0 %v804
        %963 = vmatpush1.msra.mxu0 %v803
        %964 = vmatprep.subr.mxu0 %v807
        %965 = vmatpush1.msra.mxu0 %v806
        %966 = vmatprep.subr.mxu0 0.0
        %967 = vmatpush1.msra.mxu0 0.0
        %968 = vmatprep.subr.mxu0 0.0
        %969 = vmatpush1.msra.mxu0 0.0
        %970 = vmatprep.subr.mxu0 0.0
        %971 = vmatpush1.msra.mxu0 0.0
        %972 = vmatprep.subr.mxu0 0.0
        %973 = vmatpush1.msra.mxu0 0.0
        %974 = vmatprep.subr.mxu0 0.0
        %975 = vmatpush1.msra.mxu0 0.0
        %976 = vmatprep.subr.mxu0 0.0
        %977 = vmatpush1.msra.mxu0 0.0
        %978 = vmatprep.subr.mxu0 0.0
        %979 = vmatpush1.msra.mxu0 0.0
        %980 = vmatprep.subr.mxu0 0.0
        %981 = vmatpush1.msra.mxu0 0.0
        %982 = vmatprep.subr.mxu0 0.0
        %983 = vmatpush1.msra.mxu0 0.0
        %984 = vmatprep.subr.mxu0 0.0
        %985 = vmatpush1.msra.mxu0 0.0
        %986 = vmatprep.subr.mxu0 0.0
        %987 = vmatpush1.msra.mxu0 0.0
        %988 = vmatprep.subr.mxu0 0.0
        %989 = vmatpush1.msra.mxu0 0.0
        %990 = vmatprep.subr.mxu0 0.0
        %991 = vmatpush1.msra.mxu0 0.0
        %992 = vmatprep.subr.mxu0 0.0
        %993 = vmatpush1.msra.mxu0 0.0
        %994 = vmatprep.subr.mxu0 0.0
        %995 = vmatpush1.msra.mxu0 0.0
        %996 = vmatprep.subr.mxu0 0.0
        %997 = vmatpush1.msra.mxu0 0.0
        %998 = vmatprep.subr.mxu0 0.0
        %999 = vmatpush1.msra.mxu0 0.0
        %1000 = vmatprep.subr.mxu0 0.0
        %1001 = vmatpush1.msra.mxu0 0.0
        %1002 = vmatprep.subr.mxu0 0.0
        %1003 = vmatpush1.msra.mxu0 0.0
        %1004 = vmatprep.subr.mxu0 0.0
        %1005 = vmatpush1.msra.mxu0 0.0
        %1006 = vmatprep.subr.mxu0 0.0
        %1007 = vmatpush1.msra.mxu0 0.0
        %1008 = vmatprep.subr.mxu0 0.0
        %1009 = vmatpush1.msra.mxu0 0.0
        %1010 = vmatprep.subr.mxu0 0.0
        %1011 = vmatpush1.msra.mxu0 0.0
        %1012 = vmatprep.subr.mxu0 0.0
        %1013 = vmatpush1.msra.mxu0 0.0
        %1014 = vmatprep.subr.mxu0 0.0
        %1015 = vmatpush1.msra.mxu0 0.0
        %1016 = vmatprep.subr.mxu0 0.0
        %1017 = vmatpush1.msra.mxu0 0.0
        %1018 = vmatprep.subr.mxu0 0.0
        %1019 = vmatpush1.msra.mxu0 0.0
        %1020 = vmatprep.subr.mxu0 0.0
        %1021 = vmatpush1.msra.mxu0 0.0
        %1022 = vmatprep.subr.mxu0 0.0
        %1023 = vmatpush1.msra.mxu0 0.0
        %1024 = vmatprep.mubr.f32.mxu0 0.0
        %1025 = vmatmul.mubr.f32.gmra.mrb[0].mxu0 %v958
        %v1026 = vpop.f32.mrb[0].mxu0
        %v1027 = vadd.f32 0.0, %v1026
        %v1028 = vpop.f32.mrb[0].mxu0
        %v1029 = vadd.f32 0.0, %v1028
        %1030 = vdwg.mxu0
        %1031 = vmatprep.subr.mxu0 0.0
        %1032 = vmatpush1.msra.mxu0 %v802
        %1033 = vmatprep.subr.mxu0 0.0
        %1034 = vmatpush1.msra.mxu0 %v805
        %1035 = vmatprep.subr.mxu0 0.0
        %1036 = vmatpush1.msra.mxu0 %v808
        %1037 = vmatprep.subr.mxu0 0.0
        %1038 = vmatpush1.msra.mxu0 0.0
        %1039 = vmatprep.subr.mxu0 0.0
        %1040 = vmatpush1.msra.mxu0 0.0
        %1041 = vmatprep.subr.mxu0 0.0
        %1042 = vmatpush1.msra.mxu0 0.0
        %1043 = vmatprep.subr.mxu0 0.0
        %1044 = vmatpush1.msra.mxu0 0.0
        %1045 = vmatprep.subr.mxu0 0.0
        %1046 = vmatpush1.msra.mxu0 0.0
        %1047 = vmatprep.subr.mxu0 0.0
        %1048 = vmatpush1.msra.mxu0 0.0
        %1049 = vmatprep.subr.mxu0 0.0
        %1050 = vmatpush1.msra.mxu0 0.0
        %1051 = vmatprep.subr.mxu0 0.0
        %1052 = vmatpush1.msra.mxu0 0.0
        %1053 = vmatprep.subr.mxu0 0.0
        %1054 = vmatpush1.msra.mxu0 0.0
        %1055 = vmatprep.subr.mxu0 0.0
        %1056 = vmatpush1.msra.mxu0 0.0
        %1057 = vmatprep.subr.mxu0 0.0
        %1058 = vmatpush1.msra.mxu0 0.0
        %1059 = vmatprep.subr.mxu0 0.0
        %1060 = vmatpush1.msra.mxu0 0.0
        %1061 = vmatprep.subr.mxu0 0.0
        %1062 = vmatpush1.msra.mxu0 0.0
        %1063 = vmatprep.subr.mxu0 0.0
        %1064 = vmatpush1.msra.mxu0 0.0
        %1065 = vmatprep.subr.mxu0 0.0
        %1066 = vmatpush1.msra.mxu0 0.0
        %1067 = vmatprep.subr.mxu0 0.0
        %1068 = vmatpush1.msra.mxu0 0.0
        %1069 = vmatprep.subr.mxu0 0.0
        %1070 = vmatpush1.msra.mxu0 0.0
        %1071 = vmatprep.subr.mxu0 0.0
        %1072 = vmatpush1.msra.mxu0 0.0
        %1073 = vmatprep.subr.mxu0 0.0
        %1074 = vmatpush1.msra.mxu0 0.0
        %1075 = vmatprep.subr.mxu0 0.0
        %1076 = vmatpush1.msra.mxu0 0.0
        %1077 = vmatprep.subr.mxu0 0.0
        %1078 = vmatpush1.msra.mxu0 0.0
        %1079 = vmatprep.subr.mxu0 0.0
        %1080 = vmatpush1.msra.mxu0 0.0
        %1081 = vmatprep.subr.mxu0 0.0
        %1082 = vmatpush1.msra.mxu0 0.0
        %1083 = vmatprep.subr.mxu0 0.0
        %1084 = vmatpush1.msra.mxu0 0.0
        %1085 = vmatprep.subr.mxu0 0.0
        %1086 = vmatpush1.msra.mxu0 0.0
        %1087 = vmatprep.subr.mxu0 0.0
        %1088 = vmatpush1.msra.mxu0 0.0
        %1089 = vmatprep.subr.mxu0 0.0
        %1090 = vmatpush1.msra.mxu0 0.0
        %1091 = vmatprep.subr.mxu0 0.0
        %1092 = vmatpush1.msra.mxu0 0.0
        %1093 = vmatprep.subr.mxu0 0.0
        %1094 = vmatpush1.msra.mxu0 0.0
        %1095 = vmatprep.mubr.f32.mxu0 0.0
        %1096 = vmatmul.mubr.f32.gmra.mrb[0].mxu0 %v958
        %v1097 = vpop.f32.mrb[0].mxu0
        %v1098 = vadd.f32 0.0, %v1097
        %v1099 = vpop.f32.mrb[0].mxu0
        %1100 = vdwg.mxu0
        %v1102 = vsel %vm292, %v812, 0
        %1104 = vmatprep.subr.mxu0 %v801
        %1105 = vmatpush1.msra.mxu0 %v800
        %1106 = vmatprep.subr.mxu0 %v804
        %1107 = vmatpush1.msra.mxu0 %v803
        %1108 = vmatprep.subr.mxu0 %v807
        %1109 = vmatpush1.msra.mxu0 %v806
        %1110 = vmatprep.subr.mxu0 0.0
        %1111 = vmatpush1.msra.mxu0 0.0
        %1112 = vmatprep.subr.mxu0 0.0
        %1113 = vmatpush1.msra.mxu0 0.0
        %1114 = vmatprep.subr.mxu0 0.0
        %1115 = vmatpush1.msra.mxu0 0.0
        %1116 = vmatprep.subr.mxu0 0.0
        %1117 = vmatpush1.msra.mxu0 0.0
        %1118 = vmatprep.subr.mxu0 0.0
        %1119 = vmatpush1.msra.mxu0 0.0
        %1120 = vmatprep.subr.mxu0 0.0
        %1121 = vmatpush1.msra.mxu0 0.0
        %1122 = vmatprep.subr.mxu0 0.0
        %1123 = vmatpush1.msra.mxu0 0.0
        %1124 = vmatprep.subr.mxu0 0.0
        %1125 = vmatpush1.msra.mxu0 0.0
        %1126 = vmatprep.subr.mxu0 0.0
        %1127 = vmatpush1.msra.mxu0 0.0
        %1128 = vmatprep.subr.mxu0 0.0
        %1129 = vmatpush1.msra.mxu0 0.0
        %1130 = vmatprep.subr.mxu0 0.0
        %1131 = vmatpush1.msra.mxu0 0.0
        %1132 = vmatprep.subr.mxu0 0.0
        %1133 = vmatpush1.msra.mxu0 0.0
        %1134 = vmatprep.subr.mxu0 0.0
        %1135 = vmatpush1.msra.mxu0 0.0
        %1136 = vmatprep.subr.mxu0 0.0
        %1137 = vmatpush1.msra.mxu0 0.0
        %1138 = vmatprep.subr.mxu0 0.0
        %1139 = vmatpush1.msra.mxu0 0.0
        %1140 = vmatprep.subr.mxu0 0.0
        %1141 = vmatpush1.msra.mxu0 0.0
        %1142 = vmatprep.subr.mxu0 0.0
        %1143 = vmatpush1.msra.mxu0 0.0
        %1144 = vmatprep.subr.mxu0 0.0
        %1145 = vmatpush1.msra.mxu0 0.0
        %1146 = vmatprep.subr.mxu0 0.0
        %1147 = vmatpush1.msra.mxu0 0.0
        %1148 = vmatprep.subr.mxu0 0.0
        %1149 = vmatpush1.msra.mxu0 0.0
        %1150 = vmatprep.subr.mxu0 0.0
        %1151 = vmatpush1.msra.mxu0 0.0
        %1152 = vmatprep.subr.mxu0 0.0
        %1153 = vmatpush1.msra.mxu0 0.0
        %1154 = vmatprep.subr.mxu0 0.0
        %1155 = vmatpush1.msra.mxu0 0.0
        %1156 = vmatprep.subr.mxu0 0.0
        %1157 = vmatpush1.msra.mxu0 0.0
        %1158 = vmatprep.subr.mxu0 0.0
        %1159 = vmatpush1.msra.mxu0 0.0
        %1160 = vmatprep.subr.mxu0 0.0
        %1161 = vmatpush1.msra.mxu0 0.0
        %1162 = vmatprep.subr.mxu0 0.0
        %1163 = vmatpush1.msra.mxu0 0.0
        %1164 = vmatprep.subr.mxu0 0.0
        %1165 = vmatpush1.msra.mxu0 0.0
        %1166 = vmatprep.subr.mxu0 0.0
        %1167 = vmatpush1.msra.mxu0 0.0
        %1168 = vmatprep.mubr.f32.mxu0 0.0
        %1169 = vmatmul.mubr.f32.gmra.mrb[0].mxu0 %v1102
        %v1170 = vpop.f32.mrb[0].mxu0
        %v1171 = vadd.f32 0.0, %v1170
        %v1172 = vpop.f32.mrb[0].mxu0
        %v1173 = vadd.f32 0.0, %v1172
        %1174 = vdwg.mxu0
        %1175 = vmatprep.subr.mxu0 0.0
        %1176 = vmatpush1.msra.mxu0 %v802
        %1177 = vmatprep.subr.mxu0 0.0
        %1178 = vmatpush1.msra.mxu0 %v805
        %1179 = vmatprep.subr.mxu0 0.0
        %1180 = vmatpush1.msra.mxu0 %v808
        %1181 = vmatprep.subr.mxu0 0.0
        %1182 = vmatpush1.msra.mxu0 0.0
        %1183 = vmatprep.subr.mxu0 0.0
        %1184 = vmatpush1.msra.mxu0 0.0
        %1185 = vmatprep.subr.mxu0 0.0
        %1186 = vmatpush1.msra.mxu0 0.0
        %1187 = vmatprep.subr.mxu0 0.0
        %1188 = vmatpush1.msra.mxu0 0.0
        %1189 = vmatprep.subr.mxu0 0.0
        %1190 = vmatpush1.msra.mxu0 0.0
        %1191 = vmatprep.subr.mxu0 0.0
        %1192 = vmatpush1.msra.mxu0 0.0
        %1193 = vmatprep.subr.mxu0 0.0
        %1194 = vmatpush1.msra.mxu0 0.0
        %1195 = vmatprep.subr.mxu0 0.0
        %1196 = vmatpush1.msra.mxu0 0.0
        %1197 = vmatprep.subr.mxu0 0.0
        %1198 = vmatpush1.msra.mxu0 0.0
        %1199 = vmatprep.subr.mxu0 0.0
        %1200 = vmatpush1.msra.mxu0 0.0
        %1201 = vmatprep.subr.mxu0 0.0
        %1202 = vmatpush1.msra.mxu0 0.0
        %1203 = vmatprep.subr.mxu0 0.0
        %1204 = vmatpush1.msra.mxu0 0.0
        %1205 = vmatprep.subr.mxu0 0.0
        %1206 = vmatpush1.msra.mxu0 0.0
        %1207 = vmatprep.subr.mxu0 0.0
        %1208 = vmatpush1.msra.mxu0 0.0
        %1209 = vmatprep.subr.mxu0 0.0
        %1210 = vmatpush1.msra.mxu0 0.0
        %1211 = vmatprep.subr.mxu0 0.0
        %1212 = vmatpush1.msra.mxu0 0.0
        %1213 = vmatprep.subr.mxu0 0.0
        %1214 = vmatpush1.msra.mxu0 0.0
        %1215 = vmatprep.subr.mxu0 0.0
        %1216 = vmatpush1.msra.mxu0 0.0
        %1217 = vmatprep.subr.mxu0 0.0
        %1218 = vmatpush1.msra.mxu0 0.0
        %1219 = vmatprep.subr.mxu0 0.0
        %1220 = vmatpush1.msra.mxu0 0.0
        %1221 = vmatprep.subr.mxu0 0.0
        %1222 = vmatpush1.msra.mxu0 0.0
        %1223 = vmatprep.subr.mxu0 0.0
        %1224 = vmatpush1.msra.mxu0 0.0
        %1225 = vmatprep.subr.mxu0 0.0
        %1226 = vmatpush1.msra.mxu0 0.0
        %1227 = vmatprep.subr.mxu0 0.0
        %1228 = vmatpush1.msra.mxu0 0.0
        %1229 = vmatprep.subr.mxu0 0.0
        %1230 = vmatpush1.msra.mxu0 0.0
        %1231 = vmatprep.subr.mxu0 0.0
        %1232 = vmatpush1.msra.mxu0 0.0
        %1233 = vmatprep.subr.mxu0 0.0
        %1234 = vmatpush1.msra.mxu0 0.0
        %1235 = vmatprep.subr.mxu0 0.0
        %1236 = vmatpush1.msra.mxu0 0.0
        %1237 = vmatprep.subr.mxu0 0.0
        %1238 = vmatpush1.msra.mxu0 0.0
        %1239 = vmatprep.mubr.f32.mxu0 0.0
        %1240 = vmatmul.mubr.f32.gmra.mrb[0].mxu0 %v1102
        %v1241 = vpop.f32.mrb[0].mxu0
        %v1242 = vadd.f32 0.0, %v1241
        %v1243 = vpop.f32.mrb[0].mxu0
        %1244 = vdwg.mxu0
        %1245 = vrot.lane.b32.xlu0 %v883, 18
        %v1246 = vpop.permute.xlu0 %1245
        %1247 = vrot.lane.b32.xlu0 %v885, 18
        %v1248 = vpop.permute.xlu0 %1247
        %1249 = vrot.lane.b32.xlu0 %v954, 18
        %v1250 = vpop.permute.xlu0 %1249
        %v1251 = vsel %vm731, %v1248, %v1250
        %v1252 = vsel %vm731, %v1246, %v1248
        %v1253 = vsel %vm731, %v1250, %v1246
        %v1254 = vadd.f32 %v1253, %v1027
        %v1255 = vadd.f32 %v1252, %v1029
        %v1256 = vadd.f32 %v1251, %v1098
        %1257 = vrot.lane.b32.xlu0 %v1171, 110
        %v1258 = vpop.permute.xlu0 %1257
        %1259 = vrot.lane.b32.xlu0 %v1173, 110
        %v1260 = vpop.permute.xlu0 %1259
        %1261 = vrot.lane.b32.xlu0 %v1242, 110
        %v1262 = vpop.permute.xlu0 %1261
        %v1263 = vsel %vm744, %v1260, %v1262
        %v1264 = vsel %vm744, %v1258, %v1260
        %v1265 = vsel %vm744, %v1262, %v1258
        %v1266 = vadd.f32 %v1254, %v1264
        %v1267 = vadd.f32 %v1255, %v1263
        %v1268 = vadd.f32 %v1256, %v1265
        %s1269 = scalar_lea.vmem %s1, 8
        %v1270 = vld [vmem:[%s1269] sm:$0xff]
        %1272 = vset.pattern.permute.xlu0 0
        %1273 = vperm.xlu0 %1272, %v1270
        %v1274 = vpop.permute.xlu0 %1273
        %v1276 = vadd.f32 %v1266, %v1274
        %v1277 = vadd.f32 %v1267, %v1274
        %v1278 = vadd.f32 %v1268, %v1274
        %v1279 = vsel %vm242, %v1276, 0.0
        %v1280 = vsel %vm243, %v1277, 0.0
        %v1281 = vsel %vm244, %v1278, 0.0
        %v1282 = vadd.f32 %v1279, %v245
        %v1283 = vadd.f32 %v1280, %v246
        %v1284 = vadd.f32 %v1281, %v247
        %vm1285 = vcmp.ge.f32.partialorder %v1282, 0.0
        %vm1286 = vcmp.ge.f32.partialorder %v1283, 0.0
        %vm1287 = vcmp.ge.f32.partialorder %v1284, 0.0
        %v1288 = vmul.f32 %v766, %v1282
        %v1289 = vmul.f32 %v766, %v1283
        %v1290 = vmul.f32 %v766, %v1284
        %v1291 = vsel %vm1285, %v1282, %v1288
        %v1292 = vsel %vm1286, %v1283, %v1289
        %v1293 = vsel %vm1287, %v1284, %v1290
        %s1294 = sld [smem:[#allocation3 + $0x1]]
        %1295 = vrot.lane.b32.xlu0 %v1291, 1
        %v1296 = vpop.permute.xlu0 %1295
        %1297 = vrot.lane.b32.xlu0 %v1292, 1
        %v1298 = vpop.permute.xlu0 %1297
        %1299 = vrot.lane.b32.xlu0 %v1293, 1
        %v1300 = vpop.permute.xlu0 %1299
        %v1301 = vsel %vm257, %v1298, %v1300
        %v1302 = vsel %vm257, %v1296, %v1298
        %v1303 = vsel %vm257, %v1300, %v1296
        %1304 = vst [vmem:[#allocation2] sm:$0xff] %v1303
        %1305 = vst [vmem:[#allocation2 + $0x8] sm:$0xff] %v1302
        %1306 = vst [vmem:[#allocation2 + $0x10] sm:$0xff] %v1301
        %1307 = vst [vmem:[#allocation2 + $0x18] sm:$0xff] %v1291
        %1308 = vst [vmem:[#allocation2 + $0x20] sm:$0xff] %v1292
        %1309 = vst [vmem:[#allocation2 + $0x28] sm:$0xff] %v1293
        %1310 = vrot.lane.b32.xlu0 %v1291, 127
        %v1311 = vpop.permute.xlu0 %1310
        %1312 = vrot.lane.b32.xlu0 %v1292, 127
        %v1313 = vpop.permute.xlu0 %1312
        %1314 = vrot.lane.b32.xlu0 %v1293, 127
        %v1315 = vpop.permute.xlu0 %1314
        %v1316 = vsel %vm273, %v1313, %v1315
        %v1317 = vsel %vm273, %v1311, %v1313
        %v1318 = vsel %vm273, %v1315, %v1311
        %1319 = vst [vmem:[#allocation2 + $0x30] sm:$0xff] %v1317
        %1320 = vst [vmem:[#allocation2 + $0x38] sm:$0xff] %v1316
        %1321 = vst [vmem:[#allocation2 + $0x40] sm:$0xff] %v1318
        %v1322 = vld [vmem:[#allocation2] sm:$0xff]
        %v1323 = vld [vmem:[#allocation2 + $0x8] sm:$0xff]
        %v1324 = vld [vmem:[#allocation2 + $0x10] sm:$0xff]
        %v1325 = vld [vmem:[#allocation2 + $0x18] sm:$0xff]
        %v1326 = vld [vmem:[#allocation2 + $0x20] sm:$0xff]
        %v1327 = vld [vmem:[#allocation2 + $0x28] sm:$0xff]
        %v1328 = vld [vmem:[#allocation2 + $0x30] sm:$0xff]
        %v1329 = vld [vmem:[#allocation2 + $0x38] sm:$0xff]
        %v1330 = vld [vmem:[#allocation2 + $0x40] sm:$0xff]
        %s1331 = scalar_lea.vmem %s0, 48
        %v1332 = vld [vmem:[%s1331] sm:$0xff]
        %v1333 = vld [vmem:[%s1331 + $0x8] sm:$0xff]
        %v1334 = vld [vmem:[%s1331 + $0x10] sm:$0xff]
        %v1336 = vsel %vm292, %v1332, 0
        %1338 = vmatprep.subr.mxu0 %v1323
        %1339 = vmatpush1.msra.mxu0 %v1322
        %1340 = vmatprep.subr.mxu0 %v1326
        %1341 = vmatpush1.msra.mxu0 %v1325
        %1342 = vmatprep.subr.mxu0 %v1329
        %1343 = vmatpush1.msra.mxu0 %v1328
        %1344 = vmatprep.subr.mxu0 0.0
        %1345 = vmatpush1.msra.mxu0 0.0
        %1346 = vmatprep.subr.mxu0 0.0
        %1347 = vmatpush1.msra.mxu0 0.0
        %1348 = vmatprep.subr.mxu0 0.0
        %1349 = vmatpush1.msra.mxu0 0.0
        %1350 = vmatprep.subr.mxu0 0.0
        %1351 = vmatpush1.msra.mxu0 0.0
        %1352 = vmatprep.subr.mxu0 0.0
        %1353 = vmatpush1.msra.mxu0 0.0
        %1354 = vmatprep.subr.mxu0 0.0
        %1355 = vmatpush1.msra.mxu0 0.0
        %1356 = vmatprep.subr.mxu0 0.0
        %1357 = vmatpush1.msra.mxu0 0.0
        %1358 = vmatprep.subr.mxu0 0.0
        %1359 = vmatpush1.msra.mxu0 0.0
        %1360 = vmatprep.subr.mxu0 0.0
        %1361 = vmatpush1.msra.mxu0 0.0
        %1362 = vmatprep.subr.mxu0 0.0
        %1363 = vmatpush1.msra.mxu0 0.0
        %1364 = vmatprep.subr.mxu0 0.0
        %1365 = vmatpush1.msra.mxu0 0.0
        %1366 = vmatprep.subr.mxu0 0.0
        %1367 = vmatpush1.msra.mxu0 0.0
        %1368 = vmatprep.subr.mxu0 0.0
        %1369 = vmatpush1.msra.mxu0 0.0
        %1370 = vmatprep.subr.mxu0 0.0
        %1371 = vmatpush1.msra.mxu0 0.0
        %1372 = vmatprep.subr.mxu0 0.0
        %1373 = vmatpush1.msra.mxu0 0.0
        %1374 = vmatprep.subr.mxu0 0.0
        %1375 = vmatpush1.msra.mxu0 0.0
        %1376 = vmatprep.subr.mxu0 0.0
        %1377 = vmatpush1.msra.mxu0 0.0
        %1378 = vmatprep.subr.mxu0 0.0
        %1379 = vmatpush1.msra.mxu0 0.0
        %1380 = vmatprep.subr.mxu0 0.0
        %1381 = vmatpush1.msra.mxu0 0.0
        %1382 = vmatprep.subr.mxu0 0.0
        %1383 = vmatpush1.msra.mxu0 0.0
        %1384 = vmatprep.subr.mxu0 0.0
        %1385 = vmatpush1.msra.mxu0 0.0
        %1386 = vmatprep.subr.mxu0 0.0
        %1387 = vmatpush1.msra.mxu0 0.0
        %1388 = vmatprep.subr.mxu0 0.0
        %1389 = vmatpush1.msra.mxu0 0.0
        %1390 = vmatprep.subr.mxu0 0.0
        %1391 = vmatpush1.msra.mxu0 0.0
        %1392 = vmatprep.subr.mxu0 0.0
        %1393 = vmatpush1.msra.mxu0 0.0
        %1394 = vmatprep.subr.mxu0 0.0
        %1395 = vmatpush1.msra.mxu0 0.0
        %1396 = vmatprep.subr.mxu0 0.0
        %1397 = vmatpush1.msra.mxu0 0.0
        %1398 = vmatprep.subr.mxu0 0.0
        %1399 = vmatpush1.msra.mxu0 0.0
        %1400 = vmatprep.subr.mxu0 0.0
        %1401 = vmatpush1.msra.mxu0 0.0
        %1402 = vmatprep.mubr.f32.mxu0 0.0
        %1403 = vmatmul.mubr.f32.gmra.mrb[0].mxu0 %v1336
        %v1404 = vpop.f32.mrb[0].mxu0
        %v1405 = vadd.f32 0.0, %v1404
        %v1406 = vpop.f32.mrb[0].mxu0
        %v1407 = vadd.f32 0.0, %v1406
        %1408 = vdwg.mxu0
        %1409 = vmatprep.subr.mxu0 0.0
        %1410 = vmatpush1.msra.mxu0 %v1324
        %1411 = vmatprep.subr.mxu0 0.0
        %1412 = vmatpush1.msra.mxu0 %v1327
        %1413 = vmatprep.subr.mxu0 0.0
        %1414 = vmatpush1.msra.mxu0 %v1330
        %1415 = vmatprep.subr.mxu0 0.0
        %1416 = vmatpush1.msra.mxu0 0.0
        %1417 = vmatprep.subr.mxu0 0.0
        %1418 = vmatpush1.msra.mxu0 0.0
        %1419 = vmatprep.subr.mxu0 0.0
        %1420 = vmatpush1.msra.mxu0 0.0
        %1421 = vmatprep.subr.mxu0 0.0
        %1422 = vmatpush1.msra.mxu0 0.0
        %1423 = vmatprep.subr.mxu0 0.0
        %1424 = vmatpush1.msra.mxu0 0.0
        %1425 = vmatprep.subr.mxu0 0.0
        %1426 = vmatpush1.msra.mxu0 0.0
        %1427 = vmatprep.subr.mxu0 0.0
        %1428 = vmatpush1.msra.mxu0 0.0
        %1429 = vmatprep.subr.mxu0 0.0
        %1430 = vmatpush1.msra.mxu0 0.0
        %1431 = vmatprep.subr.mxu0 0.0
        %1432 = vmatpush1.msra.mxu0 0.0
        %1433 = vmatprep.subr.mxu0 0.0
        %1434 = vmatpush1.msra.mxu0 0.0
        %1435 = vmatprep.subr.mxu0 0.0
        %1436 = vmatpush1.msra.mxu0 0.0
        %1437 = vmatprep.subr.mxu0 0.0
        %1438 = vmatpush1.msra.mxu0 0.0
        %1439 = vmatprep.subr.mxu0 0.0
        %1440 = vmatpush1.msra.mxu0 0.0
        %1441 = vmatprep.subr.mxu0 0.0
        %1442 = vmatpush1.msra.mxu0 0.0
        %1443 = vmatprep.subr.mxu0 0.0
        %1444 = vmatpush1.msra.mxu0 0.0
        %1445 = vmatprep.subr.mxu0 0.0
        %1446 = vmatpush1.msra.mxu0 0.0
        %1447 = vmatprep.subr.mxu0 0.0
        %1448 = vmatpush1.msra.mxu0 0.0
        %1449 = vmatprep.subr.mxu0 0.0
        %1450 = vmatpush1.msra.mxu0 0.0
        %1451 = vmatprep.subr.mxu0 0.0
        %1452 = vmatpush1.msra.mxu0 0.0
        %1453 = vmatprep.subr.mxu0 0.0
        %1454 = vmatpush1.msra.mxu0 0.0
        %1455 = vmatprep.subr.mxu0 0.0
        %1456 = vmatpush1.msra.mxu0 0.0
        %1457 = vmatprep.subr.mxu0 0.0
        %1458 = vmatpush1.msra.mxu0 0.0
        %1459 = vmatprep.subr.mxu0 0.0
        %1460 = vmatpush1.msra.mxu0 0.0
        %1461 = vmatprep.subr.mxu0 0.0
        %1462 = vmatpush1.msra.mxu0 0.0
        %1463 = vmatprep.subr.mxu0 0.0
        %1464 = vmatpush1.msra.mxu0 0.0
        %1465 = vmatprep.subr.mxu0 0.0
        %1466 = vmatpush1.msra.mxu0 0.0
        %1467 = vmatprep.subr.mxu0 0.0
        %1468 = vmatpush1.msra.mxu0 0.0
        %1469 = vmatprep.subr.mxu0 0.0
        %1470 = vmatpush1.msra.mxu0 0.0
        %1471 = vmatprep.subr.mxu0 0.0
        %1472 = vmatpush1.msra.mxu0 0.0
        %1473 = vmatprep.mubr.f32.mxu0 0.0
        %1474 = vmatmul.mubr.f32.gmra.mrb[0].mxu0 %v1336
        %v1475 = vpop.f32.mrb[0].mxu0
        %v1476 = vadd.f32 0.0, %v1475
        %v1477 = vpop.f32.mrb[0].mxu0
        %1478 = vdwg.mxu0
        %v1480 = vsel %vm292, %v1333, 0
        %1482 = vmatprep.subr.mxu0 %v1323
        %1483 = vmatpush1.msra.mxu0 %v1322
        %1484 = vmatprep.subr.mxu0 %v1326
        %1485 = vmatpush1.msra.mxu0 %v1325
        %1486 = vmatprep.subr.mxu0 %v1329
        %1487 = vmatpush1.msra.mxu0 %v1328
        %1488 = vmatprep.subr.mxu0 0.0
        %1489 = vmatpush1.msra.mxu0 0.0
        %1490 = vmatprep.subr.mxu0 0.0
        %1491 = vmatpush1.msra.mxu0 0.0
        %1492 = vmatprep.subr.mxu0 0.0
        %1493 = vmatpush1.msra.mxu0 0.0
        %1494 = vmatprep.subr.mxu0 0.0
        %1495 = vmatpush1.msra.mxu0 0.0
        %1496 = vmatprep.subr.mxu0 0.0
        %1497 = vmatpush1.msra.mxu0 0.0
        %1498 = vmatprep.subr.mxu0 0.0
        %1499 = vmatpush1.msra.mxu0 0.0
        %1500 = vmatprep.subr.mxu0 0.0
        %1501 = vmatpush1.msra.mxu0 0.0
        %1502 = vmatprep.subr.mxu0 0.0
        %1503 = vmatpush1.msra.mxu0 0.0
        %1504 = vmatprep.subr.mxu0 0.0
        %1505 = vmatpush1.msra.mxu0 0.0
        %1506 = vmatprep.subr.mxu0 0.0
        %1507 = vmatpush1.msra.mxu0 0.0
        %1508 = vmatprep.subr.mxu0 0.0
        %1509 = vmatpush1.msra.mxu0 0.0
        %1510 = vmatprep.subr.mxu0 0.0
        %1511 = vmatpush1.msra.mxu0 0.0
        %1512 = vmatprep.subr.mxu0 0.0
        %1513 = vmatpush1.msra.mxu0 0.0
        %1514 = vmatprep.subr.mxu0 0.0
        %1515 = vmatpush1.msra.mxu0 0.0
        %1516 = vmatprep.subr.mxu0 0.0
        %1517 = vmatpush1.msra.mxu0 0.0
        %1518 = vmatprep.subr.mxu0 0.0
        %1519 = vmatpush1.msra.mxu0 0.0
        %1520 = vmatprep.subr.mxu0 0.0
        %1521 = vmatpush1.msra.mxu0 0.0
        %1522 = vmatprep.subr.mxu0 0.0
        %1523 = vmatpush1.msra.mxu0 0.0
        %1524 = vmatprep.subr.mxu0 0.0
        %1525 = vmatpush1.msra.mxu0 0.0
        %1526 = vmatprep.subr.mxu0 0.0
        %1527 = vmatpush1.msra.mxu0 0.0
        %1528 = vmatprep.subr.mxu0 0.0
        %1529 = vmatpush1.msra.mxu0 0.0
        %1530 = vmatprep.subr.mxu0 0.0
        %1531 = vmatpush1.msra.mxu0 0.0
        %1532 = vmatprep.subr.mxu0 0.0
        %1533 = vmatpush1.msra.mxu0 0.0
        %1534 = vmatprep.subr.mxu0 0.0
        %1535 = vmatpush1.msra.mxu0 0.0
        %1536 = vmatprep.subr.mxu0 0.0
        %1537 = vmatpush1.msra.mxu0 0.0
        %1538 = vmatprep.subr.mxu0 0.0
        %1539 = vmatpush1.msra.mxu0 0.0
        %1540 = vmatprep.subr.mxu0 0.0
        %1541 = vmatpush1.msra.mxu0 0.0
        %1542 = vmatprep.subr.mxu0 0.0
        %1543 = vmatpush1.msra.mxu0 0.0
        %1544 = vmatprep.subr.mxu0 0.0
        %1545 = vmatpush1.msra.mxu0 0.0
        %1546 = vmatprep.mubr.f32.mxu0 0.0
        %1547 = vmatmul.mubr.f32.gmra.mrb[0].mxu0 %v1480
        %v1548 = vpop.f32.mrb[0].mxu0
        %v1549 = vadd.f32 0.0, %v1548
        %v1550 = vpop.f32.mrb[0].mxu0
        %v1551 = vadd.f32 0.0, %v1550
        %1552 = vdwg.mxu0
        %1553 = vmatprep.subr.mxu0 0.0
        %1554 = vmatpush1.msra.mxu0 %v1324
        %1555 = vmatprep.subr.mxu0 0.0
        %1556 = vmatpush1.msra.mxu0 %v1327
        %1557 = vmatprep.subr.mxu0 0.0
        %1558 = vmatpush1.msra.mxu0 %v1330
        %1559 = vmatprep.subr.mxu0 0.0
        %1560 = vmatpush1.msra.mxu0 0.0
        %1561 = vmatprep.subr.mxu0 0.0
        %1562 = vmatpush1.msra.mxu0 0.0
        %1563 = vmatprep.subr.mxu0 0.0
        %1564 = vmatpush1.msra.mxu0 0.0
        %1565 = vmatprep.subr.mxu0 0.0
        %1566 = vmatpush1.msra.mxu0 0.0
        %1567 = vmatprep.subr.mxu0 0.0
        %1568 = vmatpush1.msra.mxu0 0.0
        %1569 = vmatprep.subr.mxu0 0.0
        %1570 = vmatpush1.msra.mxu0 0.0
        %1571 = vmatprep.subr.mxu0 0.0
        %1572 = vmatpush1.msra.mxu0 0.0
        %1573 = vmatprep.subr.mxu0 0.0
        %1574 = vmatpush1.msra.mxu0 0.0
        %1575 = vmatprep.subr.mxu0 0.0
        %1576 = vmatpush1.msra.mxu0 0.0
        %1577 = vmatprep.subr.mxu0 0.0
        %1578 = vmatpush1.msra.mxu0 0.0
        %1579 = vmatprep.subr.mxu0 0.0
        %1580 = vmatpush1.msra.mxu0 0.0
        %1581 = vmatprep.subr.mxu0 0.0
        %1582 = vmatpush1.msra.mxu0 0.0
        %1583 = vmatprep.subr.mxu0 0.0
        %1584 = vmatpush1.msra.mxu0 0.0
        %1585 = vmatprep.subr.mxu0 0.0
        %1586 = vmatpush1.msra.mxu0 0.0
        %1587 = vmatprep.subr.mxu0 0.0
        %1588 = vmatpush1.msra.mxu0 0.0
        %1589 = vmatprep.subr.mxu0 0.0
        %1590 = vmatpush1.msra.mxu0 0.0
        %1591 = vmatprep.subr.mxu0 0.0
        %1592 = vmatpush1.msra.mxu0 0.0
        %1593 = vmatprep.subr.mxu0 0.0
        %1594 = vmatpush1.msra.mxu0 0.0
        %1595 = vmatprep.subr.mxu0 0.0
        %1596 = vmatpush1.msra.mxu0 0.0
        %1597 = vmatprep.subr.mxu0 0.0
        %1598 = vmatpush1.msra.mxu0 0.0
        %1599 = vmatprep.subr.mxu0 0.0
        %1600 = vmatpush1.msra.mxu0 0.0
        %1601 = vmatprep.subr.mxu0 0.0
        %1602 = vmatpush1.msra.mxu0 0.0
        %1603 = vmatprep.subr.mxu0 0.0
        %1604 = vmatpush1.msra.mxu0 0.0
        %1605 = vmatprep.subr.mxu0 0.0
        %1606 = vmatpush1.msra.mxu0 0.0
        %1607 = vmatprep.subr.mxu0 0.0
        %1608 = vmatpush1.msra.mxu0 0.0
        %1609 = vmatprep.subr.mxu0 0.0
        %1610 = vmatpush1.msra.mxu0 0.0
        %1611 = vmatprep.subr.mxu0 0.0
        %1612 = vmatpush1.msra.mxu0 0.0
        %1613 = vmatprep.subr.mxu0 0.0
        %1614 = vmatpush1.msra.mxu0 0.0
        %1615 = vmatprep.subr.mxu0 0.0
        %1616 = vmatpush1.msra.mxu0 0.0
        %1617 = vmatprep.mubr.f32.mxu0 0.0
        %1618 = vmatmul.mubr.f32.gmra.mrb[0].mxu0 %v1480
        %v1619 = vpop.f32.mrb[0].mxu0
        %v1620 = vadd.f32 0.0, %v1619
        %v1621 = vpop.f32.mrb[0].mxu0
        %1622 = vdwg.mxu0
        %v1624 = vsel %vm292, %v1334, 0
        %1626 = vmatprep.subr.mxu0 %v1323
        %1627 = vmatpush1.msra.mxu0 %v1322
        %1628 = vmatprep.subr.mxu0 %v1326
        %1629 = vmatpush1.msra.mxu0 %v1325
        %1630 = vmatprep.subr.mxu0 %v1329
        %1631 = vmatpush1.msra.mxu0 %v1328
        %1632 = vmatprep.subr.mxu0 0.0
        %1633 = vmatpush1.msra.mxu0 0.0
        %1634 = vmatprep.subr.mxu0 0.0
        %1635 = vmatpush1.msra.mxu0 0.0
        %1636 = vmatprep.subr.mxu0 0.0
        %1637 = vmatpush1.msra.mxu0 0.0
        %1638 = vmatprep.subr.mxu0 0.0
        %1639 = vmatpush1.msra.mxu0 0.0
        %1640 = vmatprep.subr.mxu0 0.0
        %1641 = vmatpush1.msra.mxu0 0.0
        %1642 = vmatprep.subr.mxu0 0.0
        %1643 = vmatpush1.msra.mxu0 0.0
        %1644 = vmatprep.subr.mxu0 0.0
        %1645 = vmatpush1.msra.mxu0 0.0
        %1646 = vmatprep.subr.mxu0 0.0
        %1647 = vmatpush1.msra.mxu0 0.0
        %1648 = vmatprep.subr.mxu0 0.0
        %1649 = vmatpush1.msra.mxu0 0.0
        %1650 = vmatprep.subr.mxu0 0.0
        %1651 = vmatpush1.msra.mxu0 0.0
        %1652 = vmatprep.subr.mxu0 0.0
        %1653 = vmatpush1.msra.mxu0 0.0
        %1654 = vmatprep.subr.mxu0 0.0
        %1655 = vmatpush1.msra.mxu0 0.0
        %1656 = vmatprep.subr.mxu0 0.0
        %1657 = vmatpush1.msra.mxu0 0.0
        %1658 = vmatprep.subr.mxu0 0.0
        %1659 = vmatpush1.msra.mxu0 0.0
        %1660 = vmatprep.subr.mxu0 0.0
        %1661 = vmatpush1.msra.mxu0 0.0
        %1662 = vmatprep.subr.mxu0 0.0
        %1663 = vmatpush1.msra.mxu0 0.0
        %1664 = vmatprep.subr.mxu0 0.0
        %1665 = vmatpush1.msra.mxu0 0.0
        %1666 = vmatprep.subr.mxu0 0.0
        %1667 = vmatpush1.msra.mxu0 0.0
        %1668 = vmatprep.subr.mxu0 0.0
        %1669 = vmatpush1.msra.mxu0 0.0
        %1670 = vmatprep.subr.mxu0 0.0
        %1671 = vmatpush1.msra.mxu0 0.0
        %1672 = vmatprep.subr.mxu0 0.0
        %1673 = vmatpush1.msra.mxu0 0.0
        %1674 = vmatprep.subr.mxu0 0.0
        %1675 = vmatpush1.msra.mxu0 0.0
        %1676 = vmatprep.subr.mxu0 0.0
        %1677 = vmatpush1.msra.mxu0 0.0
        %1678 = vmatprep.subr.mxu0 0.0
        %1679 = vmatpush1.msra.mxu0 0.0
        %1680 = vmatprep.subr.mxu0 0.0
        %1681 = vmatpush1.msra.mxu0 0.0
        %1682 = vmatprep.subr.mxu0 0.0
        %1683 = vmatpush1.msra.mxu0 0.0
        %1684 = vmatprep.subr.mxu0 0.0
        %1685 = vmatpush1.msra.mxu0 0.0
        %1686 = vmatprep.subr.mxu0 0.0
        %1687 = vmatpush1.msra.mxu0 0.0
        %1688 = vmatprep.subr.mxu0 0.0
        %1689 = vmatpush1.msra.mxu0 0.0
        %1690 = vmatprep.mubr.f32.mxu0 0.0
        %1691 = vmatmul.mubr.f32.gmra.mrb[0].mxu0 %v1624
        %v1692 = vpop.f32.mrb[0].mxu0
        %v1693 = vadd.f32 0.0, %v1692
        %v1694 = vpop.f32.mrb[0].mxu0
        %v1695 = vadd.f32 0.0, %v1694
        %1696 = vdwg.mxu0
        %1697 = vmatprep.subr.mxu0 0.0
        %1698 = vmatpush1.msra.mxu0 %v1324
        %1699 = vmatprep.subr.mxu0 0.0
        %1700 = vmatpush1.msra.mxu0 %v1327
        %1701 = vmatprep.subr.mxu0 0.0
        %1702 = vmatpush1.msra.mxu0 %v1330
        %1703 = vmatprep.subr.mxu0 0.0
        %1704 = vmatpush1.msra.mxu0 0.0
        %1705 = vmatprep.subr.mxu0 0.0
        %1706 = vmatpush1.msra.mxu0 0.0
        %1707 = vmatprep.subr.mxu0 0.0
        %1708 = vmatpush1.msra.mxu0 0.0
        %1709 = vmatprep.subr.mxu0 0.0
        %1710 = vmatpush1.msra.mxu0 0.0
        %1711 = vmatprep.subr.mxu0 0.0
        %1712 = vmatpush1.msra.mxu0 0.0
        %1713 = vmatprep.subr.mxu0 0.0
        %1714 = vmatpush1.msra.mxu0 0.0
        %1715 = vmatprep.subr.mxu0 0.0
        %1716 = vmatpush1.msra.mxu0 0.0
        %1717 = vmatprep.subr.mxu0 0.0
        %1718 = vmatpush1.msra.mxu0 0.0
        %1719 = vmatprep.subr.mxu0 0.0
        %1720 = vmatpush1.msra.mxu0 0.0
        %1721 = vmatprep.subr.mxu0 0.0
        %1722 = vmatpush1.msra.mxu0 0.0
        %1723 = vmatprep.subr.mxu0 0.0
        %1724 = vmatpush1.msra.mxu0 0.0
        %1725 = vmatprep.subr.mxu0 0.0
        %1726 = vmatpush1.msra.mxu0 0.0
        %1727 = vmatprep.subr.mxu0 0.0
        %1728 = vmatpush1.msra.mxu0 0.0
        %1729 = vmatprep.subr.mxu0 0.0
        %1730 = vmatpush1.msra.mxu0 0.0
        %1731 = vmatprep.subr.mxu0 0.0
        %1732 = vmatpush1.msra.mxu0 0.0
        %1733 = vmatprep.subr.mxu0 0.0
        %1734 = vmatpush1.msra.mxu0 0.0
        %1735 = vmatprep.subr.mxu0 0.0
        %1736 = vmatpush1.msra.mxu0 0.0
        %1737 = vmatprep.subr.mxu0 0.0
        %1738 = vmatpush1.msra.mxu0 0.0
        %1739 = vmatprep.subr.mxu0 0.0
        %1740 = vmatpush1.msra.mxu0 0.0
        %1741 = vmatprep.subr.mxu0 0.0
        %1742 = vmatpush1.msra.mxu0 0.0
        %1743 = vmatprep.subr.mxu0 0.0
        %1744 = vmatpush1.msra.mxu0 0.0
        %1745 = vmatprep.subr.mxu0 0.0
        %1746 = vmatpush1.msra.mxu0 0.0
        %1747 = vmatprep.subr.mxu0 0.0
        %1748 = vmatpush1.msra.mxu0 0.0
        %1749 = vmatprep.subr.mxu0 0.0
        %1750 = vmatpush1.msra.mxu0 0.0
        %1751 = vmatprep.subr.mxu0 0.0
        %1752 = vmatpush1.msra.mxu0 0.0
        %1753 = vmatprep.subr.mxu0 0.0
        %1754 = vmatpush1.msra.mxu0 0.0
        %1755 = vmatprep.subr.mxu0 0.0
        %1756 = vmatpush1.msra.mxu0 0.0
        %1757 = vmatprep.subr.mxu0 0.0
        %1758 = vmatpush1.msra.mxu0 0.0
        %1759 = vmatprep.subr.mxu0 0.0
        %1760 = vmatpush1.msra.mxu0 0.0
        %1761 = vmatprep.mubr.f32.mxu0 0.0
        %1762 = vmatmul.mubr.f32.gmra.mrb[0].mxu0 %v1624
        %v1763 = vpop.f32.mrb[0].mxu0
        %v1764 = vadd.f32 0.0, %v1763
        %v1765 = vpop.f32.mrb[0].mxu0
        %1766 = vdwg.mxu0
        %1767 = vrot.lane.b32.xlu0 %v1405, 18
        %v1768 = vpop.permute.xlu0 %1767
        %1769 = vrot.lane.b32.xlu0 %v1407, 18
        %v1770 = vpop.permute.xlu0 %1769
        %1771 = vrot.lane.b32.xlu0 %v1476, 18
        %v1772 = vpop.permute.xlu0 %1771
        %v1773 = vsel %vm731, %v1770, %v1772
        %v1774 = vsel %vm731, %v1768, %v1770
        %v1775 = vsel %vm731, %v1772, %v1768
        %v1776 = vadd.f32 %v1775, %v1549
        %v1777 = vadd.f32 %v1774, %v1551
        %v1778 = vadd.f32 %v1773, %v1620
        %1779 = vrot.lane.b32.xlu0 %v1693, 110
        %v1780 = vpop.permute.xlu0 %1779
        %1781 = vrot.lane.b32.xlu0 %v1695, 110
        %v1782 = vpop.permute.xlu0 %1781
        %1783 = vrot.lane.b32.xlu0 %v1764, 110
        %v1784 = vpop.permute.xlu0 %1783
        %v1785 = vsel %vm744, %v1782, %v1784
        %v1786 = vsel %vm744, %v1780, %v1782
        %v1787 = vsel %vm744, %v1784, %v1780
        %v1788 = vadd.f32 %v1776, %v1786
        %v1789 = vadd.f32 %v1777, %v1785
        %v1790 = vadd.f32 %v1778, %v1787
        %s1791 = scalar_lea.vmem %s1, 16
        %v1792 = vld [vmem:[%s1791] sm:$0xff]
        %1794 = vset.pattern.permute.xlu0 0
        %1795 = vperm.xlu0 %1794, %v1792
        %v1796 = vpop.permute.xlu0 %1795
        %v1798 = vadd.f32 %v1788, %v1796
        %v1799 = vadd.f32 %v1789, %v1796
        %v1800 = vadd.f32 %v1790, %v1796
        %v1801 = vsel %vm242, %v1798, 0.0
        %v1802 = vsel %vm243, %v1799, 0.0
        %v1803 = vsel %vm244, %v1800, 0.0
        %vm1804 = vcmp.ge.f32.partialorder %v1801, 0.0
        %vm1805 = vcmp.ge.f32.partialorder %v1802, 0.0
        %vm1806 = vcmp.ge.f32.partialorder %v1803, 0.0
        %v1807 = vstv %s1294
        %v1808 = vmul.f32 %v1807, %v1801
        %v1809 = vmul.f32 %v1807, %v1802
        %v1810 = vmul.f32 %v1807, %v1803
        %v1811 = vsel %vm1804, %v1801, %v1808
        %v1812 = vsel %vm1805, %v1802, %v1809
        %v1813 = vsel %vm1806, %v1803, %v1810
        %1814 = vrot.lane.b32.xlu0 %v1811, 1
        %v1815 = vpop.permute.xlu0 %1814
        %1816 = vrot.lane.b32.xlu0 %v1812, 1
        %v1817 = vpop.permute.xlu0 %1816
        %1818 = vrot.lane.b32.xlu0 %v1813, 1
        %v1819 = vpop.permute.xlu0 %1818
        %v1820 = vsel %vm257, %v1817, %v1819
        %v1821 = vsel %vm257, %v1815, %v1817
        %v1822 = vsel %vm257, %v1819, %v1815
        %1823 = vst [vmem:[#allocation2] sm:$0xff] %v1822
        %1824 = vst [vmem:[#allocation2 + $0x8] sm:$0xff] %v1821
        %1825 = vst [vmem:[#allocation2 + $0x10] sm:$0xff] %v1820
        %1826 = vst [vmem:[#allocation2 + $0x18] sm:$0xff] %v1811
        %1827 = vst [vmem:[#allocation2 + $0x20] sm:$0xff] %v1812
        %1828 = vst [vmem:[#allocation2 + $0x28] sm:$0xff] %v1813
        %1829 = vrot.lane.b32.xlu0 %v1811, 127
        %v1830 = vpop.permute.xlu0 %1829
        %1831 = vrot.lane.b32.xlu0 %v1812, 127
        %v1832 = vpop.permute.xlu0 %1831
        %1833 = vrot.lane.b32.xlu0 %v1813, 127
        %v1834 = vpop.permute.xlu0 %1833
        %v1835 = vsel %vm273, %v1832, %v1834
        %v1836 = vsel %vm273, %v1830, %v1832
        %v1837 = vsel %vm273, %v1834, %v1830
        %1838 = vst [vmem:[#allocation2 + $0x30] sm:$0xff] %v1836
        %1839 = vst [vmem:[#allocation2 + $0x38] sm:$0xff] %v1835
        %1840 = vst [vmem:[#allocation2 + $0x40] sm:$0xff] %v1837
        %v1841 = vld [vmem:[#allocation2] sm:$0xff]
        %v1842 = vld [vmem:[#allocation2 + $0x8] sm:$0xff]
        %v1843 = vld [vmem:[#allocation2 + $0x10] sm:$0xff]
        %v1844 = vld [vmem:[#allocation2 + $0x18] sm:$0xff]
        %v1845 = vld [vmem:[#allocation2 + $0x20] sm:$0xff]
        %v1846 = vld [vmem:[#allocation2 + $0x28] sm:$0xff]
        %v1847 = vld [vmem:[#allocation2 + $0x30] sm:$0xff]
        %v1848 = vld [vmem:[#allocation2 + $0x38] sm:$0xff]
        %v1849 = vld [vmem:[#allocation2 + $0x40] sm:$0xff]
        %s1850 = scalar_lea.vmem %s0, 72
        %v1851 = vld [vmem:[%s1850] sm:$0xff]
        %v1852 = vld [vmem:[%s1850 + $0x8] sm:$0xff]
        %v1853 = vld [vmem:[%s1850 + $0x10] sm:$0xff]
        %v1855 = vsel %vm292, %v1851, 0
        %1857 = vmatprep.subr.mxu0 %v1842
        %1858 = vmatpush1.msra.mxu0 %v1841
        %1859 = vmatprep.subr.mxu0 %v1845
        %1860 = vmatpush1.msra.mxu0 %v1844
        %1861 = vmatprep.subr.mxu0 %v1848
        %1862 = vmatpush1.msra.mxu0 %v1847
        %1863 = vmatprep.subr.mxu0 0.0
        %1864 = vmatpush1.msra.mxu0 0.0
        %1865 = vmatprep.subr.mxu0 0.0
        %1866 = vmatpush1.msra.mxu0 0.0
        %1867 = vmatprep.subr.mxu0 0.0
        %1868 = vmatpush1.msra.mxu0 0.0
        %1869 = vmatprep.subr.mxu0 0.0
        %1870 = vmatpush1.msra.mxu0 0.0
        %1871 = vmatprep.subr.mxu0 0.0
        %1872 = vmatpush1.msra.mxu0 0.0
        %1873 = vmatprep.subr.mxu0 0.0
        %1874 = vmatpush1.msra.mxu0 0.0
        %1875 = vmatprep.subr.mxu0 0.0
        %1876 = vmatpush1.msra.mxu0 0.0
        %1877 = vmatprep.subr.mxu0 0.0
        %1878 = vmatpush1.msra.mxu0 0.0
        %1879 = vmatprep.subr.mxu0 0.0
        %1880 = vmatpush1.msra.mxu0 0.0
        %1881 = vmatprep.subr.mxu0 0.0
        %1882 = vmatpush1.msra.mxu0 0.0
        %1883 = vmatprep.subr.mxu0 0.0
        %1884 = vmatpush1.msra.mxu0 0.0
        %1885 = vmatprep.subr.mxu0 0.0
        %1886 = vmatpush1.msra.mxu0 0.0
        %1887 = vmatprep.subr.mxu0 0.0
        %1888 = vmatpush1.msra.mxu0 0.0
        %1889 = vmatprep.subr.mxu0 0.0
        %1890 = vmatpush1.msra.mxu0 0.0
        %1891 = vmatprep.subr.mxu0 0.0
        %1892 = vmatpush1.msra.mxu0 0.0
        %1893 = vmatprep.subr.mxu0 0.0
        %1894 = vmatpush1.msra.mxu0 0.0
        %1895 = vmatprep.subr.mxu0 0.0
        %1896 = vmatpush1.msra.mxu0 0.0
        %1897 = vmatprep.subr.mxu0 0.0
        %1898 = vmatpush1.msra.mxu0 0.0
        %1899 = vmatprep.subr.mxu0 0.0
        %1900 = vmatpush1.msra.mxu0 0.0
        %1901 = vmatprep.subr.mxu0 0.0
        %1902 = vmatpush1.msra.mxu0 0.0
        %1903 = vmatprep.subr.mxu0 0.0
        %1904 = vmatpush1.msra.mxu0 0.0
        %1905 = vmatprep.subr.mxu0 0.0
        %1906 = vmatpush1.msra.mxu0 0.0
        %1907 = vmatprep.subr.mxu0 0.0
        %1908 = vmatpush1.msra.mxu0 0.0
        %1909 = vmatprep.subr.mxu0 0.0
        %1910 = vmatpush1.msra.mxu0 0.0
        %1911 = vmatprep.subr.mxu0 0.0
        %1912 = vmatpush1.msra.mxu0 0.0
        %1913 = vmatprep.subr.mxu0 0.0
        %1914 = vmatpush1.msra.mxu0 0.0
        %1915 = vmatprep.subr.mxu0 0.0
        %1916 = vmatpush1.msra.mxu0 0.0
        %1917 = vmatprep.subr.mxu0 0.0
        %1918 = vmatpush1.msra.mxu0 0.0
        %1919 = vmatprep.subr.mxu0 0.0
        %1920 = vmatpush1.msra.mxu0 0.0
        %1921 = vmatprep.mubr.f32.mxu0 0.0
        %1922 = vmatmul.mubr.f32.gmra.mrb[0].mxu0 %v1855
        %v1923 = vpop.f32.mrb[0].mxu0
        %v1924 = vadd.f32 0.0, %v1923
        %v1925 = vpop.f32.mrb[0].mxu0
        %v1926 = vadd.f32 0.0, %v1925
        %1927 = vdwg.mxu0
        %1928 = vmatprep.subr.mxu0 0.0
        %1929 = vmatpush1.msra.mxu0 %v1843
        %1930 = vmatprep.subr.mxu0 0.0
        %1931 = vmatpush1.msra.mxu0 %v1846
        %1932 = vmatprep.subr.mxu0 0.0
        %1933 = vmatpush1.msra.mxu0 %v1849
        %1934 = vmatprep.subr.mxu0 0.0
        %1935 = vmatpush1.msra.mxu0 0.0
        %1936 = vmatprep.subr.mxu0 0.0
        %1937 = vmatpush1.msra.mxu0 0.0
        %1938 = vmatprep.subr.mxu0 0.0
        %1939 = vmatpush1.msra.mxu0 0.0
        %1940 = vmatprep.subr.mxu0 0.0
        %1941 = vmatpush1.msra.mxu0 0.0
        %1942 = vmatprep.subr.mxu0 0.0
        %1943 = vmatpush1.msra.mxu0 0.0
        %1944 = vmatprep.subr.mxu0 0.0
        %1945 = vmatpush1.msra.mxu0 0.0
        %1946 = vmatprep.subr.mxu0 0.0
        %1947 = vmatpush1.msra.mxu0 0.0
        %1948 = vmatprep.subr.mxu0 0.0
        %1949 = vmatpush1.msra.mxu0 0.0
        %1950 = vmatprep.subr.mxu0 0.0
        %1951 = vmatpush1.msra.mxu0 0.0
        %1952 = vmatprep.subr.mxu0 0.0
        %1953 = vmatpush1.msra.mxu0 0.0
        %1954 = vmatprep.subr.mxu0 0.0
        %1955 = vmatpush1.msra.mxu0 0.0
        %1956 = vmatprep.subr.mxu0 0.0
        %1957 = vmatpush1.msra.mxu0 0.0
        %1958 = vmatprep.subr.mxu0 0.0
        %1959 = vmatpush1.msra.mxu0 0.0
        %1960 = vmatprep.subr.mxu0 0.0
        %1961 = vmatpush1.msra.mxu0 0.0
        %1962 = vmatprep.subr.mxu0 0.0
        %1963 = vmatpush1.msra.mxu0 0.0
        %1964 = vmatprep.subr.mxu0 0.0
        %1965 = vmatpush1.msra.mxu0 0.0
        %1966 = vmatprep.subr.mxu0 0.0
        %1967 = vmatpush1.msra.mxu0 0.0
        %1968 = vmatprep.subr.mxu0 0.0
        %1969 = vmatpush1.msra.mxu0 0.0
        %1970 = vmatprep.subr.mxu0 0.0
        %1971 = vmatpush1.msra.mxu0 0.0
        %1972 = vmatprep.subr.mxu0 0.0
        %1973 = vmatpush1.msra.mxu0 0.0
        %1974 = vmatprep.subr.mxu0 0.0
        %1975 = vmatpush1.msra.mxu0 0.0
        %1976 = vmatprep.subr.mxu0 0.0
        %1977 = vmatpush1.msra.mxu0 0.0
        %1978 = vmatprep.subr.mxu0 0.0
        %1979 = vmatpush1.msra.mxu0 0.0
        %1980 = vmatprep.subr.mxu0 0.0
        %1981 = vmatpush1.msra.mxu0 0.0
        %1982 = vmatprep.subr.mxu0 0.0
        %1983 = vmatpush1.msra.mxu0 0.0
        %1984 = vmatprep.subr.mxu0 0.0
        %1985 = vmatpush1.msra.mxu0 0.0
        %1986 = vmatprep.subr.mxu0 0.0
        %1987 = vmatpush1.msra.mxu0 0.0
        %1988 = vmatprep.subr.mxu0 0.0
        %1989 = vmatpush1.msra.mxu0 0.0
        %1990 = vmatprep.subr.mxu0 0.0
        %1991 = vmatpush1.msra.mxu0 0.0
        %1992 = vmatprep.mubr.f32.mxu0 0.0
        %1993 = vmatmul.mubr.f32.gmra.mrb[0].mxu0 %v1855
        %v1994 = vpop.f32.mrb[0].mxu0
        %v1995 = vadd.f32 0.0, %v1994
        %v1996 = vpop.f32.mrb[0].mxu0
        %1997 = vdwg.mxu0
        %v1999 = vsel %vm292, %v1852, 0
        %2001 = vmatprep.subr.mxu0 %v1842
        %2002 = vmatpush1.msra.mxu0 %v1841
        %2003 = vmatprep.subr.mxu0 %v1845
        %2004 = vmatpush1.msra.mxu0 %v1844
        %2005 = vmatprep.subr.mxu0 %v1848
        %2006 = vmatpush1.msra.mxu0 %v1847
        %2007 = vmatprep.subr.mxu0 0.0
        %2008 = vmatpush1.msra.mxu0 0.0
        %2009 = vmatprep.subr.mxu0 0.0
        %2010 = vmatpush1.msra.mxu0 0.0
        %2011 = vmatprep.subr.mxu0 0.0
        %2012 = vmatpush1.msra.mxu0 0.0
        %2013 = vmatprep.subr.mxu0 0.0
        %2014 = vmatpush1.msra.mxu0 0.0
        %2015 = vmatprep.subr.mxu0 0.0
        %2016 = vmatpush1.msra.mxu0 0.0
        %2017 = vmatprep.subr.mxu0 0.0
        %2018 = vmatpush1.msra.mxu0 0.0
        %2019 = vmatprep.subr.mxu0 0.0
        %2020 = vmatpush1.msra.mxu0 0.0
        %2021 = vmatprep.subr.mxu0 0.0
        %2022 = vmatpush1.msra.mxu0 0.0
        %2023 = vmatprep.subr.mxu0 0.0
        %2024 = vmatpush1.msra.mxu0 0.0
        %2025 = vmatprep.subr.mxu0 0.0
        %2026 = vmatpush1.msra.mxu0 0.0
        %2027 = vmatprep.subr.mxu0 0.0
        %2028 = vmatpush1.msra.mxu0 0.0
        %2029 = vmatprep.subr.mxu0 0.0
        %2030 = vmatpush1.msra.mxu0 0.0
        %2031 = vmatprep.subr.mxu0 0.0
        %2032 = vmatpush1.msra.mxu0 0.0
        %2033 = vmatprep.subr.mxu0 0.0
        %2034 = vmatpush1.msra.mxu0 0.0
        %2035 = vmatprep.subr.mxu0 0.0
        %2036 = vmatpush1.msra.mxu0 0.0
        %2037 = vmatprep.subr.mxu0 0.0
        %2038 = vmatpush1.msra.mxu0 0.0
        %2039 = vmatprep.subr.mxu0 0.0
        %2040 = vmatpush1.msra.mxu0 0.0
        %2041 = vmatprep.subr.mxu0 0.0
        %2042 = vmatpush1.msra.mxu0 0.0
        %2043 = vmatprep.subr.mxu0 0.0
        %2044 = vmatpush1.msra.mxu0 0.0
        %2045 = vmatprep.subr.mxu0 0.0
        %2046 = vmatpush1.msra.mxu0 0.0
        %2047 = vmatprep.subr.mxu0 0.0
        %2048 = vmatpush1.msra.mxu0 0.0
        %2049 = vmatprep.subr.mxu0 0.0
        %2050 = vmatpush1.msra.mxu0 0.0
        %2051 = vmatprep.subr.mxu0 0.0
        %2052 = vmatpush1.msra.mxu0 0.0
        %2053 = vmatprep.subr.mxu0 0.0
        %2054 = vmatpush1.msra.mxu0 0.0
        %2055 = vmatprep.subr.mxu0 0.0
        %2056 = vmatpush1.msra.mxu0 0.0
        %2057 = vmatprep.subr.mxu0 0.0
        %2058 = vmatpush1.msra.mxu0 0.0
        %2059 = vmatprep.subr.mxu0 0.0
        %2060 = vmatpush1.msra.mxu0 0.0
        %2061 = vmatprep.subr.mxu0 0.0
        %2062 = vmatpush1.msra.mxu0 0.0
        %2063 = vmatprep.subr.mxu0 0.0
        %2064 = vmatpush1.msra.mxu0 0.0
        %2065 = vmatprep.mubr.f32.mxu0 0.0
        %2066 = vmatmul.mubr.f32.gmra.mrb[0].mxu0 %v1999
        %v2067 = vpop.f32.mrb[0].mxu0
        %v2068 = vadd.f32 0.0, %v2067
        %v2069 = vpop.f32.mrb[0].mxu0
        %v2070 = vadd.f32 0.0, %v2069
        %2071 = vdwg.mxu0
        %2072 = vmatprep.subr.mxu0 0.0
        %2073 = vmatpush1.msra.mxu0 %v1843
        %2074 = vmatprep.subr.mxu0 0.0
        %2075 = vmatpush1.msra.mxu0 %v1846
        %2076 = vmatprep.subr.mxu0 0.0
        %2077 = vmatpush1.msra.mxu0 %v1849
        %2078 = vmatprep.subr.mxu0 0.0
        %2079 = vmatpush1.msra.mxu0 0.0
        %2080 = vmatprep.subr.mxu0 0.0
        %2081 = vmatpush1.msra.mxu0 0.0
        %2082 = vmatprep.subr.mxu0 0.0
        %2083 = vmatpush1.msra.mxu0 0.0
        %2084 = vmatprep.subr.mxu0 0.0
        %2085 = vmatpush1.msra.mxu0 0.0
        %2086 = vmatprep.subr.mxu0 0.0
        %2087 = vmatpush1.msra.mxu0 0.0
        %2088 = vmatprep.subr.mxu0 0.0
        %2089 = vmatpush1.msra.mxu0 0.0
        %2090 = vmatprep.subr.mxu0 0.0
        %2091 = vmatpush1.msra.mxu0 0.0
        %2092 = vmatprep.subr.mxu0 0.0
        %2093 = vmatpush1.msra.mxu0 0.0
        %2094 = vmatprep.subr.mxu0 0.0
        %2095 = vmatpush1.msra.mxu0 0.0
        %2096 = vmatprep.subr.mxu0 0.0
        %2097 = vmatpush1.msra.mxu0 0.0
        %2098 = vmatprep.subr.mxu0 0.0
        %2099 = vmatpush1.msra.mxu0 0.0
        %2100 = vmatprep.subr.mxu0 0.0
        %2101 = vmatpush1.msra.mxu0 0.0
        %2102 = vmatprep.subr.mxu0 0.0
        %2103 = vmatpush1.msra.mxu0 0.0
        %2104 = vmatprep.subr.mxu0 0.0
        %2105 = vmatpush1.msra.mxu0 0.0
        %2106 = vmatprep.subr.mxu0 0.0
        %2107 = vmatpush1.msra.mxu0 0.0
        %2108 = vmatprep.subr.mxu0 0.0
        %2109 = vmatpush1.msra.mxu0 0.0
        %2110 = vmatprep.subr.mxu0 0.0
        %2111 = vmatpush1.msra.mxu0 0.0
        %2112 = vmatprep.subr.mxu0 0.0
        %2113 = vmatpush1.msra.mxu0 0.0
        %2114 = vmatprep.subr.mxu0 0.0
        %2115 = vmatpush1.msra.mxu0 0.0
        %2116 = vmatprep.subr.mxu0 0.0
        %2117 = vmatpush1.msra.mxu0 0.0
        %2118 = vmatprep.subr.mxu0 0.0
        %2119 = vmatpush1.msra.mxu0 0.0
        %2120 = vmatprep.subr.mxu0 0.0
        %2121 = vmatpush1.msra.mxu0 0.0
        %2122 = vmatprep.subr.mxu0 0.0
        %2123 = vmatpush1.msra.mxu0 0.0
        %2124 = vmatprep.subr.mxu0 0.0
        %2125 = vmatpush1.msra.mxu0 0.0
        %2126 = vmatprep.subr.mxu0 0.0
        %2127 = vmatpush1.msra.mxu0 0.0
        %2128 = vmatprep.subr.mxu0 0.0
        %2129 = vmatpush1.msra.mxu0 0.0
        %2130 = vmatprep.subr.mxu0 0.0
        %2131 = vmatpush1.msra.mxu0 0.0
        %2132 = vmatprep.subr.mxu0 0.0
        %2133 = vmatpush1.msra.mxu0 0.0
        %2134 = vmatprep.subr.mxu0 0.0
        %2135 = vmatpush1.msra.mxu0 0.0
        %2136 = vmatprep.mubr.f32.mxu0 0.0
        %2137 = vmatmul.mubr.f32.gmra.mrb[0].mxu0 %v1999
        %v2138 = vpop.f32.mrb[0].mxu0
        %v2139 = vadd.f32 0.0, %v2138
        %v2140 = vpop.f32.mrb[0].mxu0
        %2141 = vdwg.mxu0
        %v2143 = vsel %vm292, %v1853, 0
        %2145 = vmatprep.subr.mxu0 %v1842
        %2146 = vmatpush1.msra.mxu0 %v1841
        %2147 = vmatprep.subr.mxu0 %v1845
        %2148 = vmatpush1.msra.mxu0 %v1844
        %2149 = vmatprep.subr.mxu0 %v1848
        %2150 = vmatpush1.msra.mxu0 %v1847
        %2151 = vmatprep.subr.mxu0 0.0
        %2152 = vmatpush1.msra.mxu0 0.0
        %2153 = vmatprep.subr.mxu0 0.0
        %2154 = vmatpush1.msra.mxu0 0.0
        %2155 = vmatprep.subr.mxu0 0.0
        %2156 = vmatpush1.msra.mxu0 0.0
        %2157 = vmatprep.subr.mxu0 0.0
        %2158 = vmatpush1.msra.mxu0 0.0
        %2159 = vmatprep.subr.mxu0 0.0
        %2160 = vmatpush1.msra.mxu0 0.0
        %2161 = vmatprep.subr.mxu0 0.0
        %2162 = vmatpush1.msra.mxu0 0.0
        %2163 = vmatprep.subr.mxu0 0.0
        %2164 = vmatpush1.msra.mxu0 0.0
        %2165 = vmatprep.subr.mxu0 0.0
        %2166 = vmatpush1.msra.mxu0 0.0
        %2167 = vmatprep.subr.mxu0 0.0
        %2168 = vmatpush1.msra.mxu0 0.0
        %2169 = vmatprep.subr.mxu0 0.0
        %2170 = vmatpush1.msra.mxu0 0.0
        %2171 = vmatprep.subr.mxu0 0.0
        %2172 = vmatpush1.msra.mxu0 0.0
        %2173 = vmatprep.subr.mxu0 0.0
        %2174 = vmatpush1.msra.mxu0 0.0
        %2175 = vmatprep.subr.mxu0 0.0
        %2176 = vmatpush1.msra.mxu0 0.0
        %2177 = vmatprep.subr.mxu0 0.0
        %2178 = vmatpush1.msra.mxu0 0.0
        %2179 = vmatprep.subr.mxu0 0.0
        %2180 = vmatpush1.msra.mxu0 0.0
        %2181 = vmatprep.subr.mxu0 0.0
        %2182 = vmatpush1.msra.mxu0 0.0
        %2183 = vmatprep.subr.mxu0 0.0
        %2184 = vmatpush1.msra.mxu0 0.0
        %2185 = vmatprep.subr.mxu0 0.0
        %2186 = vmatpush1.msra.mxu0 0.0
        %2187 = vmatprep.subr.mxu0 0.0
        %2188 = vmatpush1.msra.mxu0 0.0
        %2189 = vmatprep.subr.mxu0 0.0
        %2190 = vmatpush1.msra.mxu0 0.0
        %2191 = vmatprep.subr.mxu0 0.0
        %2192 = vmatpush1.msra.mxu0 0.0
        %2193 = vmatprep.subr.mxu0 0.0
        %2194 = vmatpush1.msra.mxu0 0.0
        %2195 = vmatprep.subr.mxu0 0.0
        %2196 = vmatpush1.msra.mxu0 0.0
        %2197 = vmatprep.subr.mxu0 0.0
        %2198 = vmatpush1.msra.mxu0 0.0
        %2199 = vmatprep.subr.mxu0 0.0
        %2200 = vmatpush1.msra.mxu0 0.0
        %2201 = vmatprep.subr.mxu0 0.0
        %2202 = vmatpush1.msra.mxu0 0.0
        %2203 = vmatprep.subr.mxu0 0.0
        %2204 = vmatpush1.msra.mxu0 0.0
        %2205 = vmatprep.subr.mxu0 0.0
        %2206 = vmatpush1.msra.mxu0 0.0
        %2207 = vmatprep.subr.mxu0 0.0
        %2208 = vmatpush1.msra.mxu0 0.0
        %2209 = vmatprep.mubr.f32.mxu0 0.0
        %2210 = vmatmul.mubr.f32.gmra.mrb[0].mxu0 %v2143
        %v2211 = vpop.f32.mrb[0].mxu0
        %v2212 = vadd.f32 0.0, %v2211
        %v2213 = vpop.f32.mrb[0].mxu0
        %v2214 = vadd.f32 0.0, %v2213
        %2215 = vdwg.mxu0
        %2216 = vmatprep.subr.mxu0 0.0
        %2217 = vmatpush1.msra.mxu0 %v1843
        %2218 = vmatprep.subr.mxu0 0.0
        %2219 = vmatpush1.msra.mxu0 %v1846
        %2220 = vmatprep.subr.mxu0 0.0
        %2221 = vmatpush1.msra.mxu0 %v1849
        %2222 = vmatprep.subr.mxu0 0.0
        %2223 = vmatpush1.msra.mxu0 0.0
        %2224 = vmatprep.subr.mxu0 0.0
        %2225 = vmatpush1.msra.mxu0 0.0
        %2226 = vmatprep.subr.mxu0 0.0
        %2227 = vmatpush1.msra.mxu0 0.0
        %2228 = vmatprep.subr.mxu0 0.0
        %2229 = vmatpush1.msra.mxu0 0.0
        %2230 = vmatprep.subr.mxu0 0.0
        %2231 = vmatpush1.msra.mxu0 0.0
        %2232 = vmatprep.subr.mxu0 0.0
        %2233 = vmatpush1.msra.mxu0 0.0
        %2234 = vmatprep.subr.mxu0 0.0
        %2235 = vmatpush1.msra.mxu0 0.0
        %2236 = vmatprep.subr.mxu0 0.0
        %2237 = vmatpush1.msra.mxu0 0.0
        %2238 = vmatprep.subr.mxu0 0.0
        %2239 = vmatpush1.msra.mxu0 0.0
        %2240 = vmatprep.subr.mxu0 0.0
        %2241 = vmatpush1.msra.mxu0 0.0
        %2242 = vmatprep.subr.mxu0 0.0
        %2243 = vmatpush1.msra.mxu0 0.0
        %2244 = vmatprep.subr.mxu0 0.0
        %2245 = vmatpush1.msra.mxu0 0.0
        %2246 = vmatprep.subr.mxu0 0.0
        %2247 = vmatpush1.msra.mxu0 0.0
        %2248 = vmatprep.subr.mxu0 0.0
        %2249 = vmatpush1.msra.mxu0 0.0
        %2250 = vmatprep.subr.mxu0 0.0
        %2251 = vmatpush1.msra.mxu0 0.0
        %2252 = vmatprep.subr.mxu0 0.0
        %2253 = vmatpush1.msra.mxu0 0.0
        %2254 = vmatprep.subr.mxu0 0.0
        %2255 = vmatpush1.msra.mxu0 0.0
        %2256 = vmatprep.subr.mxu0 0.0
        %2257 = vmatpush1.msra.mxu0 0.0
        %2258 = vmatprep.subr.mxu0 0.0
        %2259 = vmatpush1.msra.mxu0 0.0
        %2260 = vmatprep.subr.mxu0 0.0
        %2261 = vmatpush1.msra.mxu0 0.0
        %2262 = vmatprep.subr.mxu0 0.0
        %2263 = vmatpush1.msra.mxu0 0.0
        %2264 = vmatprep.subr.mxu0 0.0
        %2265 = vmatpush1.msra.mxu0 0.0
        %2266 = vmatprep.subr.mxu0 0.0
        %2267 = vmatpush1.msra.mxu0 0.0
        %2268 = vmatprep.subr.mxu0 0.0
        %2269 = vmatpush1.msra.mxu0 0.0
        %2270 = vmatprep.subr.mxu0 0.0
        %2271 = vmatpush1.msra.mxu0 0.0
        %2272 = vmatprep.subr.mxu0 0.0
        %2273 = vmatpush1.msra.mxu0 0.0
        %2274 = vmatprep.subr.mxu0 0.0
        %2275 = vmatpush1.msra.mxu0 0.0
        %2276 = vmatprep.subr.mxu0 0.0
        %2277 = vmatpush1.msra.mxu0 0.0
        %2278 = vmatprep.subr.mxu0 0.0
        %2279 = vmatpush1.msra.mxu0 0.0
        %2280 = vmatprep.mubr.f32.mxu0 0.0
        %2281 = vmatmul.mubr.f32.gmra.mrb[0].mxu0 %v2143
        %v2282 = vpop.f32.mrb[0].mxu0
        %v2283 = vadd.f32 0.0, %v2282
        %v2284 = vpop.f32.mrb[0].mxu0
        %2285 = vdwg.mxu0
        %2286 = vrot.lane.b32.xlu0 %v1924, 18
        %v2287 = vpop.permute.xlu0 %2286
        %2288 = vrot.lane.b32.xlu0 %v1926, 18
        %v2289 = vpop.permute.xlu0 %2288
        %2290 = vrot.lane.b32.xlu0 %v1995, 18
        %v2291 = vpop.permute.xlu0 %2290
        %v2292 = vsel %vm731, %v2289, %v2291
        %v2293 = vsel %vm731, %v2287, %v2289
        %v2294 = vsel %vm731, %v2291, %v2287
        %v2295 = vadd.f32 %v2294, %v2068
        %v2296 = vadd.f32 %v2293, %v2070
        %v2297 = vadd.f32 %v2292, %v2139
        %2298 = vrot.lane.b32.xlu0 %v2212, 110
        %v2299 = vpop.permute.xlu0 %2298
        %2300 = vrot.lane.b32.xlu0 %v2214, 110
        %v2301 = vpop.permute.xlu0 %2300
        %2302 = vrot.lane.b32.xlu0 %v2283, 110
        %v2303 = vpop.permute.xlu0 %2302
        %v2304 = vsel %vm744, %v2301, %v2303
        %v2305 = vsel %vm744, %v2299, %v2301
        %v2306 = vsel %vm744, %v2303, %v2299
        %v2307 = vadd.f32 %v2295, %v2305
        %v2308 = vadd.f32 %v2296, %v2304
        %v2309 = vadd.f32 %v2297, %v2306
        %s2310 = scalar_lea.vmem %s1, 24
        %v2311 = vld [vmem:[%s2310] sm:$0xff]
        %2313 = vset.pattern.permute.xlu0 0
        %2314 = vperm.xlu0 %2313, %v2311
        %v2315 = vpop.permute.xlu0 %2314
        %v2317 = vadd.f32 %v2307, %v2315
        %v2318 = vadd.f32 %v2308, %v2315
        %v2319 = vadd.f32 %v2309, %v2315
        %v2320 = vsel %vm242, %v2317, 0.0
        %v2321 = vsel %vm243, %v2318, 0.0
        %v2322 = vsel %vm244, %v2319, 0.0
        %v2323 = vadd.f32 %v2320, %v1291
        %v2324 = vadd.f32 %v2321, %v1292
        %v2325 = vadd.f32 %v2322, %v1293
        %vm2326 = vcmp.ge.f32.partialorder %v2323, 0.0
        %vm2327 = vcmp.ge.f32.partialorder %v2324, 0.0
        %vm2328 = vcmp.ge.f32.partialorder %v2325, 0.0
        %v2329 = vmul.f32 %v1807, %v2323
        %v2330 = vmul.f32 %v1807, %v2324
        %v2331 = vmul.f32 %v1807, %v2325
        %v2332 = vsel %vm2326, %v2323, %v2329
        %v2333 = vsel %vm2327, %v2324, %v2330
        %v2334 = vsel %vm2328, %v2325, %v2331
        %s2335 = sld [smem:[#allocation3 + $0x2]]
        %2336 = vrot.lane.b32.xlu0 %v2332, 1
        %v2337 = vpop.permute.xlu0 %2336
        %2338 = vrot.lane.b32.xlu0 %v2333, 1
        %v2339 = vpop.permute.xlu0 %2338
        %2340 = vrot.lane.b32.xlu0 %v2334, 1
        %v2341 = vpop.permute.xlu0 %2340
        %v2342 = vsel %vm257, %v2339, %v2341
        %v2343 = vsel %vm257, %v2337, %v2339
        %v2344 = vsel %vm257, %v2341, %v2337
        %2345 = vst [vmem:[#allocation2] sm:$0xff] %v2344
        %2346 = vst [vmem:[#allocation2 + $0x8] sm:$0xff] %v2343
        %2347 = vst [vmem:[#allocation2 + $0x10] sm:$0xff] %v2342
        %2348 = vst [vmem:[#allocation2 + $0x18] sm:$0xff] %v2332
        %2349 = vst [vmem:[#allocation2 + $0x20] sm:$0xff] %v2333
        %2350 = vst [vmem:[#allocation2 + $0x28] sm:$0xff] %v2334
        %2351 = vrot.lane.b32.xlu0 %v2332, 127
        %v2352 = vpop.permute.xlu0 %2351
        %2353 = vrot.lane.b32.xlu0 %v2333, 127
        %v2354 = vpop.permute.xlu0 %2353
        %2355 = vrot.lane.b32.xlu0 %v2334, 127
        %v2356 = vpop.permute.xlu0 %2355
        %v2357 = vsel %vm273, %v2354, %v2356
        %v2358 = vsel %vm273, %v2352, %v2354
        %v2359 = vsel %vm273, %v2356, %v2352
        %2360 = vst [vmem:[#allocation2 + $0x30] sm:$0xff] %v2358
        %2361 = vst [vmem:[#allocation2 + $0x38] sm:$0xff] %v2357
        %2362 = vst [vmem:[#allocation2 + $0x40] sm:$0xff] %v2359
        %v2363 = vld [vmem:[#allocation2] sm:$0xff]
        %v2364 = vld [vmem:[#allocation2 + $0x8] sm:$0xff]
        %v2365 = vld [vmem:[#allocation2 + $0x10] sm:$0xff]
        %v2366 = vld [vmem:[#allocation2 + $0x18] sm:$0xff]
        %v2367 = vld [vmem:[#allocation2 + $0x20] sm:$0xff]
        %v2368 = vld [vmem:[#allocation2 + $0x28] sm:$0xff]
        %v2369 = vld [vmem:[#allocation2 + $0x30] sm:$0xff]
        %v2370 = vld [vmem:[#allocation2 + $0x38] sm:$0xff]
        %v2371 = vld [vmem:[#allocation2 + $0x40] sm:$0xff]
        %s2372 = scalar_lea.vmem %s0, 96
        %v2373 = vld [vmem:[%s2372] sm:$0xff]
        %v2374 = vld [vmem:[%s2372 + $0x8] sm:$0xff]
        %v2375 = vld [vmem:[%s2372 + $0x10] sm:$0xff]
        %v2377 = vsel %vm292, %v2373, 0
        %2379 = vmatprep.subr.mxu0 %v2364
        %2380 = vmatpush1.msra.mxu0 %v2363
        %2381 = vmatprep.subr.mxu0 %v2367
        %2382 = vmatpush1.msra.mxu0 %v2366
        %2383 = vmatprep.subr.mxu0 %v2370
        %2384 = vmatpush1.msra.mxu0 %v2369
        %2385 = vmatprep.subr.mxu0 0.0
        %2386 = vmatpush1.msra.mxu0 0.0
        %2387 = vmatprep.subr.mxu0 0.0
        %2388 = vmatpush1.msra.mxu0 0.0
        %2389 = vmatprep.subr.mxu0 0.0
        %2390 = vmatpush1.msra.mxu0 0.0
        %2391 = vmatprep.subr.mxu0 0.0
        %2392 = vmatpush1.msra.mxu0 0.0
        %2393 = vmatprep.subr.mxu0 0.0
        %2394 = vmatpush1.msra.mxu0 0.0
        %2395 = vmatprep.subr.mxu0 0.0
        %2396 = vmatpush1.msra.mxu0 0.0
        %2397 = vmatprep.subr.mxu0 0.0
        %2398 = vmatpush1.msra.mxu0 0.0
        %2399 = vmatprep.subr.mxu0 0.0
        %2400 = vmatpush1.msra.mxu0 0.0
        %2401 = vmatprep.subr.mxu0 0.0
        %2402 = vmatpush1.msra.mxu0 0.0
        %2403 = vmatprep.subr.mxu0 0.0
        %2404 = vmatpush1.msra.mxu0 0.0
        %2405 = vmatprep.subr.mxu0 0.0
        %2406 = vmatpush1.msra.mxu0 0.0
        %2407 = vmatprep.subr.mxu0 0.0
        %2408 = vmatpush1.msra.mxu0 0.0
        %2409 = vmatprep.subr.mxu0 0.0
        %2410 = vmatpush1.msra.mxu0 0.0
        %2411 = vmatprep.subr.mxu0 0.0
        %2412 = vmatpush1.msra.mxu0 0.0
        %2413 = vmatprep.subr.mxu0 0.0
        %2414 = vmatpush1.msra.mxu0 0.0
        %2415 = vmatprep.subr.mxu0 0.0
        %2416 = vmatpush1.msra.mxu0 0.0
        %2417 = vmatprep.subr.mxu0 0.0
        %2418 = vmatpush1.msra.mxu0 0.0
        %2419 = vmatprep.subr.mxu0 0.0
        %2420 = vmatpush1.msra.mxu0 0.0
        %2421 = vmatprep.subr.mxu0 0.0
        %2422 = vmatpush1.msra.mxu0 0.0
        %2423 = vmatprep.subr.mxu0 0.0
        %2424 = vmatpush1.msra.mxu0 0.0
        %2425 = vmatprep.subr.mxu0 0.0
        %2426 = vmatpush1.msra.mxu0 0.0
        %2427 = vmatprep.subr.mxu0 0.0
        %2428 = vmatpush1.msra.mxu0 0.0
        %2429 = vmatprep.subr.mxu0 0.0
        %2430 = vmatpush1.msra.mxu0 0.0
        %2431 = vmatprep.subr.mxu0 0.0
        %2432 = vmatpush1.msra.mxu0 0.0
        %2433 = vmatprep.subr.mxu0 0.0
        %2434 = vmatpush1.msra.mxu0 0.0
        %2435 = vmatprep.subr.mxu0 0.0
        %2436 = vmatpush1.msra.mxu0 0.0
        %2437 = vmatprep.subr.mxu0 0.0
        %2438 = vmatpush1.msra.mxu0 0.0
        %2439 = vmatprep.subr.mxu0 0.0
        %2440 = vmatpush1.msra.mxu0 0.0
        %2441 = vmatprep.subr.mxu0 0.0
        %2442 = vmatpush1.msra.mxu0 0.0
        %2443 = vmatprep.mubr.f32.mxu0 0.0
        %2444 = vmatmul.mubr.f32.gmra.mrb[0].mxu0 %v2377
        %v2445 = vpop.f32.mrb[0].mxu0
        %v2446 = vadd.f32 0.0, %v2445
        %v2447 = vpop.f32.mrb[0].mxu0
        %v2448 = vadd.f32 0.0, %v2447
        %2449 = vdwg.mxu0
        %2450 = vmatprep.subr.mxu0 0.0
        %2451 = vmatpush1.msra.mxu0 %v2365
        %2452 = vmatprep.subr.mxu0 0.0
        %2453 = vmatpush1.msra.mxu0 %v2368
        %2454 = vmatprep.subr.mxu0 0.0
        %2455 = vmatpush1.msra.mxu0 %v2371
        %2456 = vmatprep.subr.mxu0 0.0
        %2457 = vmatpush1.msra.mxu0 0.0
        %2458 = vmatprep.subr.mxu0 0.0
        %2459 = vmatpush1.msra.mxu0 0.0
        %2460 = vmatprep.subr.mxu0 0.0
        %2461 = vmatpush1.msra.mxu0 0.0
        %2462 = vmatprep.subr.mxu0 0.0
        %2463 = vmatpush1.msra.mxu0 0.0
        %2464 = vmatprep.subr.mxu0 0.0
        %2465 = vmatpush1.msra.mxu0 0.0
        %2466 = vmatprep.subr.mxu0 0.0
        %2467 = vmatpush1.msra.mxu0 0.0
        %2468 = vmatprep.subr.mxu0 0.0
        %2469 = vmatpush1.msra.mxu0 0.0
        %2470 = vmatprep.subr.mxu0 0.0
        %2471 = vmatpush1.msra.mxu0 0.0
        %2472 = vmatprep.subr.mxu0 0.0
        %2473 = vmatpush1.msra.mxu0 0.0
        %2474 = vmatprep.subr.mxu0 0.0
        %2475 = vmatpush1.msra.mxu0 0.0
        %2476 = vmatprep.subr.mxu0 0.0
        %2477 = vmatpush1.msra.mxu0 0.0
        %2478 = vmatprep.subr.mxu0 0.0
        %2479 = vmatpush1.msra.mxu0 0.0
        %2480 = vmatprep.subr.mxu0 0.0
        %2481 = vmatpush1.msra.mxu0 0.0
        %2482 = vmatprep.subr.mxu0 0.0
        %2483 = vmatpush1.msra.mxu0 0.0
        %2484 = vmatprep.subr.mxu0 0.0
        %2485 = vmatpush1.msra.mxu0 0.0
        %2486 = vmatprep.subr.mxu0 0.0
        %2487 = vmatpush1.msra.mxu0 0.0
        %2488 = vmatprep.subr.mxu0 0.0
        %2489 = vmatpush1.msra.mxu0 0.0
        %2490 = vmatprep.subr.mxu0 0.0
        %2491 = vmatpush1.msra.mxu0 0.0
        %2492 = vmatprep.subr.mxu0 0.0
        %2493 = vmatpush1.msra.mxu0 0.0
        %2494 = vmatprep.subr.mxu0 0.0
        %2495 = vmatpush1.msra.mxu0 0.0
        %2496 = vmatprep.subr.mxu0 0.0
        %2497 = vmatpush1.msra.mxu0 0.0
        %2498 = vmatprep.subr.mxu0 0.0
        %2499 = vmatpush1.msra.mxu0 0.0
        %2500 = vmatprep.subr.mxu0 0.0
        %2501 = vmatpush1.msra.mxu0 0.0
        %2502 = vmatprep.subr.mxu0 0.0
        %2503 = vmatpush1.msra.mxu0 0.0
        %2504 = vmatprep.subr.mxu0 0.0
        %2505 = vmatpush1.msra.mxu0 0.0
        %2506 = vmatprep.subr.mxu0 0.0
        %2507 = vmatpush1.msra.mxu0 0.0
        %2508 = vmatprep.subr.mxu0 0.0
        %2509 = vmatpush1.msra.mxu0 0.0
        %2510 = vmatprep.subr.mxu0 0.0
        %2511 = vmatpush1.msra.mxu0 0.0
        %2512 = vmatprep.subr.mxu0 0.0
        %2513 = vmatpush1.msra.mxu0 0.0
        %2514 = vmatprep.mubr.f32.mxu0 0.0
        %2515 = vmatmul.mubr.f32.gmra.mrb[0].mxu0 %v2377
        %v2516 = vpop.f32.mrb[0].mxu0
        %v2517 = vadd.f32 0.0, %v2516
        %v2518 = vpop.f32.mrb[0].mxu0
        %2519 = vdwg.mxu0
        %v2521 = vsel %vm292, %v2374, 0
        %2523 = vmatprep.subr.mxu0 %v2364
        %2524 = vmatpush1.msra.mxu0 %v2363
        %2525 = vmatprep.subr.mxu0 %v2367
        %2526 = vmatpush1.msra.mxu0 %v2366
        %2527 = vmatprep.subr.mxu0 %v2370
        %2528 = vmatpush1.msra.mxu0 %v2369
        %2529 = vmatprep.subr.mxu0 0.0
        %2530 = vmatpush1.msra.mxu0 0.0
        %2531 = vmatprep.subr.mxu0 0.0
        %2532 = vmatpush1.msra.mxu0 0.0
        %2533 = vmatprep.subr.mxu0 0.0
        %2534 = vmatpush1.msra.mxu0 0.0
        %2535 = vmatprep.subr.mxu0 0.0
        %2536 = vmatpush1.msra.mxu0 0.0
        %2537 = vmatprep.subr.mxu0 0.0
        %2538 = vmatpush1.msra.mxu0 0.0
        %2539 = vmatprep.subr.mxu0 0.0
        %2540 = vmatpush1.msra.mxu0 0.0
        %2541 = vmatprep.subr.mxu0 0.0
        %2542 = vmatpush1.msra.mxu0 0.0
        %2543 = vmatprep.subr.mxu0 0.0
        %2544 = vmatpush1.msra.mxu0 0.0
        %2545 = vmatprep.subr.mxu0 0.0
        %2546 = vmatpush1.msra.mxu0 0.0
        %2547 = vmatprep.subr.mxu0 0.0
        %2548 = vmatpush1.msra.mxu0 0.0
        %2549 = vmatprep.subr.mxu0 0.0
        %2550 = vmatpush1.msra.mxu0 0.0
        %2551 = vmatprep.subr.mxu0 0.0
        %2552 = vmatpush1.msra.mxu0 0.0
        %2553 = vmatprep.subr.mxu0 0.0
        %2554 = vmatpush1.msra.mxu0 0.0
        %2555 = vmatprep.subr.mxu0 0.0
        %2556 = vmatpush1.msra.mxu0 0.0
        %2557 = vmatprep.subr.mxu0 0.0
        %2558 = vmatpush1.msra.mxu0 0.0
        %2559 = vmatprep.subr.mxu0 0.0
        %2560 = vmatpush1.msra.mxu0 0.0
        %2561 = vmatprep.subr.mxu0 0.0
        %2562 = vmatpush1.msra.mxu0 0.0
        %2563 = vmatprep.subr.mxu0 0.0
        %2564 = vmatpush1.msra.mxu0 0.0
        %2565 = vmatprep.subr.mxu0 0.0
        %2566 = vmatpush1.msra.mxu0 0.0
        %2567 = vmatprep.subr.mxu0 0.0
        %2568 = vmatpush1.msra.mxu0 0.0
        %2569 = vmatprep.subr.mxu0 0.0
        %2570 = vmatpush1.msra.mxu0 0.0
        %2571 = vmatprep.subr.mxu0 0.0
        %2572 = vmatpush1.msra.mxu0 0.0
        %2573 = vmatprep.subr.mxu0 0.0
        %2574 = vmatpush1.msra.mxu0 0.0
        %2575 = vmatprep.subr.mxu0 0.0
        %2576 = vmatpush1.msra.mxu0 0.0
        %2577 = vmatprep.subr.mxu0 0.0
        %2578 = vmatpush1.msra.mxu0 0.0
        %2579 = vmatprep.subr.mxu0 0.0
        %2580 = vmatpush1.msra.mxu0 0.0
        %2581 = vmatprep.subr.mxu0 0.0
        %2582 = vmatpush1.msra.mxu0 0.0
        %2583 = vmatprep.subr.mxu0 0.0
        %2584 = vmatpush1.msra.mxu0 0.0
        %2585 = vmatprep.subr.mxu0 0.0
        %2586 = vmatpush1.msra.mxu0 0.0
        %2587 = vmatprep.mubr.f32.mxu0 0.0
        %2588 = vmatmul.mubr.f32.gmra.mrb[0].mxu0 %v2521
        %v2589 = vpop.f32.mrb[0].mxu0
        %v2590 = vadd.f32 0.0, %v2589
        %v2591 = vpop.f32.mrb[0].mxu0
        %v2592 = vadd.f32 0.0, %v2591
        %2593 = vdwg.mxu0
        %2594 = vmatprep.subr.mxu0 0.0
        %2595 = vmatpush1.msra.mxu0 %v2365
        %2596 = vmatprep.subr.mxu0 0.0
        %2597 = vmatpush1.msra.mxu0 %v2368
        %2598 = vmatprep.subr.mxu0 0.0
        %2599 = vmatpush1.msra.mxu0 %v2371
        %2600 = vmatprep.subr.mxu0 0.0
        %2601 = vmatpush1.msra.mxu0 0.0
        %2602 = vmatprep.subr.mxu0 0.0
        %2603 = vmatpush1.msra.mxu0 0.0
        %2604 = vmatprep.subr.mxu0 0.0
        %2605 = vmatpush1.msra.mxu0 0.0
        %2606 = vmatprep.subr.mxu0 0.0
        %2607 = vmatpush1.msra.mxu0 0.0
        %2608 = vmatprep.subr.mxu0 0.0
        %2609 = vmatpush1.msra.mxu0 0.0
        %2610 = vmatprep.subr.mxu0 0.0
        %2611 = vmatpush1.msra.mxu0 0.0
        %2612 = vmatprep.subr.mxu0 0.0
        %2613 = vmatpush1.msra.mxu0 0.0
        %2614 = vmatprep.subr.mxu0 0.0
        %2615 = vmatpush1.msra.mxu0 0.0
        %2616 = vmatprep.subr.mxu0 0.0
        %2617 = vmatpush1.msra.mxu0 0.0
        %2618 = vmatprep.subr.mxu0 0.0
        %2619 = vmatpush1.msra.mxu0 0.0
        %2620 = vmatprep.subr.mxu0 0.0
        %2621 = vmatpush1.msra.mxu0 0.0
        %2622 = vmatprep.subr.mxu0 0.0
        %2623 = vmatpush1.msra.mxu0 0.0
        %2624 = vmatprep.subr.mxu0 0.0
        %2625 = vmatpush1.msra.mxu0 0.0
        %2626 = vmatprep.subr.mxu0 0.0
        %2627 = vmatpush1.msra.mxu0 0.0
        %2628 = vmatprep.subr.mxu0 0.0
        %2629 = vmatpush1.msra.mxu0 0.0
        %2630 = vmatprep.subr.mxu0 0.0
        %2631 = vmatpush1.msra.mxu0 0.0
        %2632 = vmatprep.subr.mxu0 0.0
        %2633 = vmatpush1.msra.mxu0 0.0
        %2634 = vmatprep.subr.mxu0 0.0
        %2635 = vmatpush1.msra.mxu0 0.0
        %2636 = vmatprep.subr.mxu0 0.0
        %2637 = vmatpush1.msra.mxu0 0.0
        %2638 = vmatprep.subr.mxu0 0.0
        %2639 = vmatpush1.msra.mxu0 0.0
        %2640 = vmatprep.subr.mxu0 0.0
        %2641 = vmatpush1.msra.mxu0 0.0
        %2642 = vmatprep.subr.mxu0 0.0
        %2643 = vmatpush1.msra.mxu0 0.0
        %2644 = vmatprep.subr.mxu0 0.0
        %2645 = vmatpush1.msra.mxu0 0.0
        %2646 = vmatprep.subr.mxu0 0.0
        %2647 = vmatpush1.msra.mxu0 0.0
        %2648 = vmatprep.subr.mxu0 0.0
        %2649 = vmatpush1.msra.mxu0 0.0
        %2650 = vmatprep.subr.mxu0 0.0
        %2651 = vmatpush1.msra.mxu0 0.0
        %2652 = vmatprep.subr.mxu0 0.0
        %2653 = vmatpush1.msra.mxu0 0.0
        %2654 = vmatprep.subr.mxu0 0.0
        %2655 = vmatpush1.msra.mxu0 0.0
        %2656 = vmatprep.subr.mxu0 0.0
        %2657 = vmatpush1.msra.mxu0 0.0
        %2658 = vmatprep.mubr.f32.mxu0 0.0
        %2659 = vmatmul.mubr.f32.gmra.mrb[0].mxu0 %v2521
        %v2660 = vpop.f32.mrb[0].mxu0
        %v2661 = vadd.f32 0.0, %v2660
        %v2662 = vpop.f32.mrb[0].mxu0
        %2663 = vdwg.mxu0
        %v2665 = vsel %vm292, %v2375, 0
        %2667 = vmatprep.subr.mxu0 %v2364
        %2668 = vmatpush1.msra.mxu0 %v2363
        %2669 = vmatprep.subr.mxu0 %v2367
        %2670 = vmatpush1.msra.mxu0 %v2366
        %2671 = vmatprep.subr.mxu0 %v2370
        %2672 = vmatpush1.msra.mxu0 %v2369
        %2673 = vmatprep.subr.mxu0 0.0
        %2674 = vmatpush1.msra.mxu0 0.0
        %2675 = vmatprep.subr.mxu0 0.0
        %2676 = vmatpush1.msra.mxu0 0.0
        %2677 = vmatprep.subr.mxu0 0.0
        %2678 = vmatpush1.msra.mxu0 0.0
        %2679 = vmatprep.subr.mxu0 0.0
        %2680 = vmatpush1.msra.mxu0 0.0
        %2681 = vmatprep.subr.mxu0 0.0
        %2682 = vmatpush1.msra.mxu0 0.0
        %2683 = vmatprep.subr.mxu0 0.0
        %2684 = vmatpush1.msra.mxu0 0.0
        %2685 = vmatprep.subr.mxu0 0.0
        %2686 = vmatpush1.msra.mxu0 0.0
        %2687 = vmatprep.subr.mxu0 0.0
        %2688 = vmatpush1.msra.mxu0 0.0
        %2689 = vmatprep.subr.mxu0 0.0
        %2690 = vmatpush1.msra.mxu0 0.0
        %2691 = vmatprep.subr.mxu0 0.0
        %2692 = vmatpush1.msra.mxu0 0.0
        %2693 = vmatprep.subr.mxu0 0.0
        %2694 = vmatpush1.msra.mxu0 0.0
        %2695 = vmatprep.subr.mxu0 0.0
        %2696 = vmatpush1.msra.mxu0 0.0
        %2697 = vmatprep.subr.mxu0 0.0
        %2698 = vmatpush1.msra.mxu0 0.0
        %2699 = vmatprep.subr.mxu0 0.0
        %2700 = vmatpush1.msra.mxu0 0.0
        %2701 = vmatprep.subr.mxu0 0.0
        %2702 = vmatpush1.msra.mxu0 0.0
        %2703 = vmatprep.subr.mxu0 0.0
        %2704 = vmatpush1.msra.mxu0 0.0
        %2705 = vmatprep.subr.mxu0 0.0
        %2706 = vmatpush1.msra.mxu0 0.0
        %2707 = vmatprep.subr.mxu0 0.0
        %2708 = vmatpush1.msra.mxu0 0.0
        %2709 = vmatprep.subr.mxu0 0.0
        %2710 = vmatpush1.msra.mxu0 0.0
        %2711 = vmatprep.subr.mxu0 0.0
        %2712 = vmatpush1.msra.mxu0 0.0
        %2713 = vmatprep.subr.mxu0 0.0
        %2714 = vmatpush1.msra.mxu0 0.0
        %2715 = vmatprep.subr.mxu0 0.0
        %2716 = vmatpush1.msra.mxu0 0.0
        %2717 = vmatprep.subr.mxu0 0.0
        %2718 = vmatpush1.msra.mxu0 0.0
        %2719 = vmatprep.subr.mxu0 0.0
        %2720 = vmatpush1.msra.mxu0 0.0
        %2721 = vmatprep.subr.mxu0 0.0
        %2722 = vmatpush1.msra.mxu0 0.0
        %2723 = vmatprep.subr.mxu0 0.0
        %2724 = vmatpush1.msra.mxu0 0.0
        %2725 = vmatprep.subr.mxu0 0.0
        %2726 = vmatpush1.msra.mxu0 0.0
        %2727 = vmatprep.subr.mxu0 0.0
        %2728 = vmatpush1.msra.mxu0 0.0
        %2729 = vmatprep.subr.mxu0 0.0
        %2730 = vmatpush1.msra.mxu0 0.0
        %2731 = vmatprep.mubr.f32.mxu0 0.0
        %2732 = vmatmul.mubr.f32.gmra.mrb[0].mxu0 %v2665
        %v2733 = vpop.f32.mrb[0].mxu0
        %v2734 = vadd.f32 0.0, %v2733
        %v2735 = vpop.f32.mrb[0].mxu0
        %v2736 = vadd.f32 0.0, %v2735
        %2737 = vdwg.mxu0
        %2738 = vmatprep.subr.mxu0 0.0
        %2739 = vmatpush1.msra.mxu0 %v2365
        %2740 = vmatprep.subr.mxu0 0.0
        %2741 = vmatpush1.msra.mxu0 %v2368
        %2742 = vmatprep.subr.mxu0 0.0
        %2743 = vmatpush1.msra.mxu0 %v2371
        %2744 = vmatprep.subr.mxu0 0.0
        %2745 = vmatpush1.msra.mxu0 0.0
        %2746 = vmatprep.subr.mxu0 0.0
        %2747 = vmatpush1.msra.mxu0 0.0
        %2748 = vmatprep.subr.mxu0 0.0
        %2749 = vmatpush1.msra.mxu0 0.0
        %2750 = vmatprep.subr.mxu0 0.0
        %2751 = vmatpush1.msra.mxu0 0.0
        %2752 = vmatprep.subr.mxu0 0.0
        %2753 = vmatpush1.msra.mxu0 0.0
        %2754 = vmatprep.subr.mxu0 0.0
        %2755 = vmatpush1.msra.mxu0 0.0
        %2756 = vmatprep.subr.mxu0 0.0
        %2757 = vmatpush1.msra.mxu0 0.0
        %2758 = vmatprep.subr.mxu0 0.0
        %2759 = vmatpush1.msra.mxu0 0.0
        %2760 = vmatprep.subr.mxu0 0.0
        %2761 = vmatpush1.msra.mxu0 0.0
        %2762 = vmatprep.subr.mxu0 0.0
        %2763 = vmatpush1.msra.mxu0 0.0
        %2764 = vmatprep.subr.mxu0 0.0
        %2765 = vmatpush1.msra.mxu0 0.0
        %2766 = vmatprep.subr.mxu0 0.0
        %2767 = vmatpush1.msra.mxu0 0.0
        %2768 = vmatprep.subr.mxu0 0.0
        %2769 = vmatpush1.msra.mxu0 0.0
        %2770 = vmatprep.subr.mxu0 0.0
        %2771 = vmatpush1.msra.mxu0 0.0
        %2772 = vmatprep.subr.mxu0 0.0
        %2773 = vmatpush1.msra.mxu0 0.0
        %2774 = vmatprep.subr.mxu0 0.0
        %2775 = vmatpush1.msra.mxu0 0.0
        %2776 = vmatprep.subr.mxu0 0.0
        %2777 = vmatpush1.msra.mxu0 0.0
        %2778 = vmatprep.subr.mxu0 0.0
        %2779 = vmatpush1.msra.mxu0 0.0
        %2780 = vmatprep.subr.mxu0 0.0
        %2781 = vmatpush1.msra.mxu0 0.0
        %2782 = vmatprep.subr.mxu0 0.0
        %2783 = vmatpush1.msra.mxu0 0.0
        %2784 = vmatprep.subr.mxu0 0.0
        %2785 = vmatpush1.msra.mxu0 0.0
        %2786 = vmatprep.subr.mxu0 0.0
        %2787 = vmatpush1.msra.mxu0 0.0
        %2788 = vmatprep.subr.mxu0 0.0
        %2789 = vmatpush1.msra.mxu0 0.0
        %2790 = vmatprep.subr.mxu0 0.0
        %2791 = vmatpush1.msra.mxu0 0.0
        %2792 = vmatprep.subr.mxu0 0.0
        %2793 = vmatpush1.msra.mxu0 0.0
        %2794 = vmatprep.subr.mxu0 0.0
        %2795 = vmatpush1.msra.mxu0 0.0
        %2796 = vmatprep.subr.mxu0 0.0
        %2797 = vmatpush1.msra.mxu0 0.0
        %2798 = vmatprep.subr.mxu0 0.0
        %2799 = vmatpush1.msra.mxu0 0.0
        %2800 = vmatprep.subr.mxu0 0.0
        %2801 = vmatpush1.msra.mxu0 0.0
        %2802 = vmatprep.mubr.f32.mxu0 0.0
        %2803 = vmatmul.mubr.f32.gmra.mrb[0].mxu0 %v2665
        %v2804 = vpop.f32.mrb[0].mxu0
        %v2805 = vadd.f32 0.0, %v2804
        %v2806 = vpop.f32.mrb[0].mxu0
        %2807 = vdwg.mxu0
        %2808 = vrot.lane.b32.xlu0 %v2446, 18
        %v2809 = vpop.permute.xlu0 %2808
        %2810 = vrot.lane.b32.xlu0 %v2448, 18
        %v2811 = vpop.permute.xlu0 %2810
        %2812 = vrot.lane.b32.xlu0 %v2517, 18
        %v2813 = vpop.permute.xlu0 %2812
        %v2814 = vsel %vm731, %v2811, %v2813
        %v2815 = vsel %vm731, %v2809, %v2811
        %v2816 = vsel %vm731, %v2813, %v2809
        %v2817 = vadd.f32 %v2816, %v2590
        %v2818 = vadd.f32 %v2815, %v2592
        %v2819 = vadd.f32 %v2814, %v2661
        %2820 = vrot.lane.b32.xlu0 %v2734, 110
        %v2821 = vpop.permute.xlu0 %2820
        %2822 = vrot.lane.b32.xlu0 %v2736, 110
        %v2823 = vpop.permute.xlu0 %2822
        %2824 = vrot.lane.b32.xlu0 %v2805, 110
        %v2825 = vpop.permute.xlu0 %2824
        %v2826 = vsel %vm744, %v2823, %v2825
        %v2827 = vsel %vm744, %v2821, %v2823
        %v2828 = vsel %vm744, %v2825, %v2821
        %v2829 = vadd.f32 %v2817, %v2827
        %v2830 = vadd.f32 %v2818, %v2826
        %v2831 = vadd.f32 %v2819, %v2828
        %s2832 = scalar_lea.vmem %s1, 32
        %v2833 = vld [vmem:[%s2832] sm:$0xff]
        %2835 = vset.pattern.permute.xlu0 0
        %2836 = vperm.xlu0 %2835, %v2833
        %v2837 = vpop.permute.xlu0 %2836
        %v2839 = vadd.f32 %v2829, %v2837
        %v2840 = vadd.f32 %v2830, %v2837
        %v2841 = vadd.f32 %v2831, %v2837
        %v2842 = vsel %vm242, %v2839, 0.0
        %v2843 = vsel %vm243, %v2840, 0.0
        %v2844 = vsel %vm244, %v2841, 0.0
        %vm2845 = vcmp.ge.f32.partialorder %v2842, 0.0
        %vm2846 = vcmp.ge.f32.partialorder %v2843, 0.0
        %vm2847 = vcmp.ge.f32.partialorder %v2844, 0.0
        %v2848 = vstv %s2335
        %v2849 = vmul.f32 %v2848, %v2842
        %v2850 = vmul.f32 %v2848, %v2843
        %v2851 = vmul.f32 %v2848, %v2844
        %v2852 = vsel %vm2845, %v2842, %v2849
        %v2853 = vsel %vm2846, %v2843, %v2850
        %v2854 = vsel %vm2847, %v2844, %v2851
        %2855 = vrot.lane.b32.xlu0 %v2852, 1
        %v2856 = vpop.permute.xlu0 %2855
        %2857 = vrot.lane.b32.xlu0 %v2853, 1
        %v2858 = vpop.permute.xlu0 %2857
        %2859 = vrot.lane.b32.xlu0 %v2854, 1
        %v2860 = vpop.permute.xlu0 %2859
        %v2861 = vsel %vm257, %v2858, %v2860
        %v2862 = vsel %vm257, %v2856, %v2858
        %v2863 = vsel %vm257, %v2860, %v2856
        %2864 = vst [vmem:[#allocation2] sm:$0xff] %v2863
        %2865 = vst [vmem:[#allocation2 + $0x8] sm:$0xff] %v2862
        %2866 = vst [vmem:[#allocation2 + $0x10] sm:$0xff] %v2861
        %2867 = vst [vmem:[#allocation2 + $0x18] sm:$0xff] %v2852
        %2868 = vst [vmem:[#allocation2 + $0x20] sm:$0xff] %v2853
        %2869 = vst [vmem:[#allocation2 + $0x28] sm:$0xff] %v2854
        %2870 = vrot.lane.b32.xlu0 %v2852, 127
        %v2871 = vpop.permute.xlu0 %2870
        %2872 = vrot.lane.b32.xlu0 %v2853, 127
        %v2873 = vpop.permute.xlu0 %2872
        %2874 = vrot.lane.b32.xlu0 %v2854, 127
        %v2875 = vpop.permute.xlu0 %2874
        %v2876 = vsel %vm273, %v2873, %v2875
        %v2877 = vsel %vm273, %v2871, %v2873
        %v2878 = vsel %vm273, %v2875, %v2871
        %2879 = vst [vmem:[#allocation2 + $0x30] sm:$0xff] %v2877
        %2880 = vst [vmem:[#allocation2 + $0x38] sm:$0xff] %v2876
        %2881 = vst [vmem:[#allocation2 + $0x40] sm:$0xff] %v2878
        %v2882 = vld [vmem:[#allocation2] sm:$0xff]
        %v2883 = vld [vmem:[#allocation2 + $0x8] sm:$0xff]
        %v2884 = vld [vmem:[#allocation2 + $0x10] sm:$0xff]
        %v2885 = vld [vmem:[#allocation2 + $0x18] sm:$0xff]
        %v2886 = vld [vmem:[#allocation2 + $0x20] sm:$0xff]
        %v2887 = vld [vmem:[#allocation2 + $0x28] sm:$0xff]
        %v2888 = vld [vmem:[#allocation2 + $0x30] sm:$0xff]
        %v2889 = vld [vmem:[#allocation2 + $0x38] sm:$0xff]
        %v2890 = vld [vmem:[#allocation2 + $0x40] sm:$0xff]
        %s2891 = scalar_lea.vmem %s0, 120
        %v2892 = vld [vmem:[%s2891] sm:$0xff]
        %v2893 = vld [vmem:[%s2891 + $0x8] sm:$0xff]
        %v2894 = vld [vmem:[%s2891 + $0x10] sm:$0xff]
        %v2896 = vsel %vm292, %v2892, 0
        %2898 = vmatprep.subr.mxu0 %v2883
        %2899 = vmatpush1.msra.mxu0 %v2882
        %2900 = vmatprep.subr.mxu0 %v2886
        %2901 = vmatpush1.msra.mxu0 %v2885
        %2902 = vmatprep.subr.mxu0 %v2889
        %2903 = vmatpush1.msra.mxu0 %v2888
        %2904 = vmatprep.subr.mxu0 0.0
        %2905 = vmatpush1.msra.mxu0 0.0
        %2906 = vmatprep.subr.mxu0 0.0
        %2907 = vmatpush1.msra.mxu0 0.0
        %2908 = vmatprep.subr.mxu0 0.0
        %2909 = vmatpush1.msra.mxu0 0.0
        %2910 = vmatprep.subr.mxu0 0.0
        %2911 = vmatpush1.msra.mxu0 0.0
        %2912 = vmatprep.subr.mxu0 0.0
        %2913 = vmatpush1.msra.mxu0 0.0
        %2914 = vmatprep.subr.mxu0 0.0
        %2915 = vmatpush1.msra.mxu0 0.0
        %2916 = vmatprep.subr.mxu0 0.0
        %2917 = vmatpush1.msra.mxu0 0.0
        %2918 = vmatprep.subr.mxu0 0.0
        %2919 = vmatpush1.msra.mxu0 0.0
        %2920 = vmatprep.subr.mxu0 0.0
        %2921 = vmatpush1.msra.mxu0 0.0
        %2922 = vmatprep.subr.mxu0 0.0
        %2923 = vmatpush1.msra.mxu0 0.0
        %2924 = vmatprep.subr.mxu0 0.0
        %2925 = vmatpush1.msra.mxu0 0.0
        %2926 = vmatprep.subr.mxu0 0.0
        %2927 = vmatpush1.msra.mxu0 0.0
        %2928 = vmatprep.subr.mxu0 0.0
        %2929 = vmatpush1.msra.mxu0 0.0
        %2930 = vmatprep.subr.mxu0 0.0
        %2931 = vmatpush1.msra.mxu0 0.0
        %2932 = vmatprep.subr.mxu0 0.0
        %2933 = vmatpush1.msra.mxu0 0.0
        %2934 = vmatprep.subr.mxu0 0.0
        %2935 = vmatpush1.msra.mxu0 0.0
        %2936 = vmatprep.subr.mxu0 0.0
        %2937 = vmatpush1.msra.mxu0 0.0
        %2938 = vmatprep.subr.mxu0 0.0
        %2939 = vmatpush1.msra.mxu0 0.0
        %2940 = vmatprep.subr.mxu0 0.0
        %2941 = vmatpush1.msra.mxu0 0.0
        %2942 = vmatprep.subr.mxu0 0.0
        %2943 = vmatpush1.msra.mxu0 0.0
        %2944 = vmatprep.subr.mxu0 0.0
        %2945 = vmatpush1.msra.mxu0 0.0
        %2946 = vmatprep.subr.mxu0 0.0
        %2947 = vmatpush1.msra.mxu0 0.0
        %2948 = vmatprep.subr.mxu0 0.0
        %2949 = vmatpush1.msra.mxu0 0.0
        %2950 = vmatprep.subr.mxu0 0.0
        %2951 = vmatpush1.msra.mxu0 0.0
        %2952 = vmatprep.subr.mxu0 0.0
        %2953 = vmatpush1.msra.mxu0 0.0
        %2954 = vmatprep.subr.mxu0 0.0
        %2955 = vmatpush1.msra.mxu0 0.0
        %2956 = vmatprep.subr.mxu0 0.0
        %2957 = vmatpush1.msra.mxu0 0.0
        %2958 = vmatprep.subr.mxu0 0.0
        %2959 = vmatpush1.msra.mxu0 0.0
        %2960 = vmatprep.subr.mxu0 0.0
        %2961 = vmatpush1.msra.mxu0 0.0
        %2962 = vmatprep.mubr.f32.mxu0 0.0
        %2963 = vmatmul.mubr.f32.gmra.mrb[0].mxu0 %v2896
        %v2964 = vpop.f32.mrb[0].mxu0
        %v2965 = vadd.f32 0.0, %v2964
        %v2966 = vpop.f32.mrb[0].mxu0
        %v2967 = vadd.f32 0.0, %v2966
        %2968 = vdwg.mxu0
        %2969 = vmatprep.subr.mxu0 0.0
        %2970 = vmatpush1.msra.mxu0 %v2884
        %2971 = vmatprep.subr.mxu0 0.0
        %2972 = vmatpush1.msra.mxu0 %v2887
        %2973 = vmatprep.subr.mxu0 0.0
        %2974 = vmatpush1.msra.mxu0 %v2890
        %2975 = vmatprep.subr.mxu0 0.0
        %2976 = vmatpush1.msra.mxu0 0.0
        %2977 = vmatprep.subr.mxu0 0.0
        %2978 = vmatpush1.msra.mxu0 0.0
        %2979 = vmatprep.subr.mxu0 0.0
        %2980 = vmatpush1.msra.mxu0 0.0
        %2981 = vmatprep.subr.mxu0 0.0
        %2982 = vmatpush1.msra.mxu0 0.0
        %2983 = vmatprep.subr.mxu0 0.0
        %2984 = vmatpush1.msra.mxu0 0.0
        %2985 = vmatprep.subr.mxu0 0.0
        %2986 = vmatpush1.msra.mxu0 0.0
        %2987 = vmatprep.subr.mxu0 0.0
        %2988 = vmatpush1.msra.mxu0 0.0
        %2989 = vmatprep.subr.mxu0 0.0
        %2990 = vmatpush1.msra.mxu0 0.0
        %2991 = vmatprep.subr.mxu0 0.0
        %2992 = vmatpush1.msra.mxu0 0.0
        %2993 = vmatprep.subr.mxu0 0.0
        %2994 = vmatpush1.msra.mxu0 0.0
        %2995 = vmatprep.subr.mxu0 0.0
        %2996 = vmatpush1.msra.mxu0 0.0
        %2997 = vmatprep.subr.mxu0 0.0
        %2998 = vmatpush1.msra.mxu0 0.0
        %2999 = vmatprep.subr.mxu0 0.0
        %3000 = vmatpush1.msra.mxu0 0.0
        %3001 = vmatprep.subr.mxu0 0.0
        %3002 = vmatpush1.msra.mxu0 0.0
        %3003 = vmatprep.subr.mxu0 0.0
        %3004 = vmatpush1.msra.mxu0 0.0
        %3005 = vmatprep.subr.mxu0 0.0
        %3006 = vmatpush1.msra.mxu0 0.0
        %3007 = vmatprep.subr.mxu0 0.0
        %3008 = vmatpush1.msra.mxu0 0.0
        %3009 = vmatprep.subr.mxu0 0.0
        %3010 = vmatpush1.msra.mxu0 0.0
        %3011 = vmatprep.subr.mxu0 0.0
        %3012 = vmatpush1.msra.mxu0 0.0
        %3013 = vmatprep.subr.mxu0 0.0
        %3014 = vmatpush1.msra.mxu0 0.0
        %3015 = vmatprep.subr.mxu0 0.0
        %3016 = vmatpush1.msra.mxu0 0.0
        %3017 = vmatprep.subr.mxu0 0.0
        %3018 = vmatpush1.msra.mxu0 0.0
        %3019 = vmatprep.subr.mxu0 0.0
        %3020 = vmatpush1.msra.mxu0 0.0
        %3021 = vmatprep.subr.mxu0 0.0
        %3022 = vmatpush1.msra.mxu0 0.0
        %3023 = vmatprep.subr.mxu0 0.0
        %3024 = vmatpush1.msra.mxu0 0.0
        %3025 = vmatprep.subr.mxu0 0.0
        %3026 = vmatpush1.msra.mxu0 0.0
        %3027 = vmatprep.subr.mxu0 0.0
        %3028 = vmatpush1.msra.mxu0 0.0
        %3029 = vmatprep.subr.mxu0 0.0
        %3030 = vmatpush1.msra.mxu0 0.0
        %3031 = vmatprep.subr.mxu0 0.0
        %3032 = vmatpush1.msra.mxu0 0.0
        %3033 = vmatprep.mubr.f32.mxu0 0.0
        %3034 = vmatmul.mubr.f32.gmra.mrb[0].mxu0 %v2896
        %v3035 = vpop.f32.mrb[0].mxu0
        %v3036 = vadd.f32 0.0, %v3035
        %v3037 = vpop.f32.mrb[0].mxu0
        %3038 = vdwg.mxu0
        %v3040 = vsel %vm292, %v2893, 0
        %3042 = vmatprep.subr.mxu0 %v2883
        %3043 = vmatpush1.msra.mxu0 %v2882
        %3044 = vmatprep.subr.mxu0 %v2886
        %3045 = vmatpush1.msra.mxu0 %v2885
        %3046 = vmatprep.subr.mxu0 %v2889
        %3047 = vmatpush1.msra.mxu0 %v2888
        %3048 = vmatprep.subr.mxu0 0.0
        %3049 = vmatpush1.msra.mxu0 0.0
        %3050 = vmatprep.subr.mxu0 0.0
        %3051 = vmatpush1.msra.mxu0 0.0
        %3052 = vmatprep.subr.mxu0 0.0
        %3053 = vmatpush1.msra.mxu0 0.0
        %3054 = vmatprep.subr.mxu0 0.0
        %3055 = vmatpush1.msra.mxu0 0.0
        %3056 = vmatprep.subr.mxu0 0.0
        %3057 = vmatpush1.msra.mxu0 0.0
        %3058 = vmatprep.subr.mxu0 0.0
        %3059 = vmatpush1.msra.mxu0 0.0
        %3060 = vmatprep.subr.mxu0 0.0
        %3061 = vmatpush1.msra.mxu0 0.0
        %3062 = vmatprep.subr.mxu0 0.0
        %3063 = vmatpush1.msra.mxu0 0.0
        %3064 = vmatprep.subr.mxu0 0.0
        %3065 = vmatpush1.msra.mxu0 0.0
        %3066 = vmatprep.subr.mxu0 0.0
        %3067 = vmatpush1.msra.mxu0 0.0
        %3068 = vmatprep.subr.mxu0 0.0
        %3069 = vmatpush1.msra.mxu0 0.0
        %3070 = vmatprep.subr.mxu0 0.0
        %3071 = vmatpush1.msra.mxu0 0.0
        %3072 = vmatprep.subr.mxu0 0.0
        %3073 = vmatpush1.msra.mxu0 0.0
        %3074 = vmatprep.subr.mxu0 0.0
        %3075 = vmatpush1.msra.mxu0 0.0
        %3076 = vmatprep.subr.mxu0 0.0
        %3077 = vmatpush1.msra.mxu0 0.0
        %3078 = vmatprep.subr.mxu0 0.0
        %3079 = vmatpush1.msra.mxu0 0.0
        %3080 = vmatprep.subr.mxu0 0.0
        %3081 = vmatpush1.msra.mxu0 0.0
        %3082 = vmatprep.subr.mxu0 0.0
        %3083 = vmatpush1.msra.mxu0 0.0
        %3084 = vmatprep.subr.mxu0 0.0
        %3085 = vmatpush1.msra.mxu0 0.0
        %3086 = vmatprep.subr.mxu0 0.0
        %3087 = vmatpush1.msra.mxu0 0.0
        %3088 = vmatprep.subr.mxu0 0.0
        %3089 = vmatpush1.msra.mxu0 0.0
        %3090 = vmatprep.subr.mxu0 0.0
        %3091 = vmatpush1.msra.mxu0 0.0
        %3092 = vmatprep.subr.mxu0 0.0
        %3093 = vmatpush1.msra.mxu0 0.0
        %3094 = vmatprep.subr.mxu0 0.0
        %3095 = vmatpush1.msra.mxu0 0.0
        %3096 = vmatprep.subr.mxu0 0.0
        %3097 = vmatpush1.msra.mxu0 0.0
        %3098 = vmatprep.subr.mxu0 0.0
        %3099 = vmatpush1.msra.mxu0 0.0
        %3100 = vmatprep.subr.mxu0 0.0
        %3101 = vmatpush1.msra.mxu0 0.0
        %3102 = vmatprep.subr.mxu0 0.0
        %3103 = vmatpush1.msra.mxu0 0.0
        %3104 = vmatprep.subr.mxu0 0.0
        %3105 = vmatpush1.msra.mxu0 0.0
        %3106 = vmatprep.mubr.f32.mxu0 0.0
        %3107 = vmatmul.mubr.f32.gmra.mrb[0].mxu0 %v3040
        %v3108 = vpop.f32.mrb[0].mxu0
        %v3109 = vadd.f32 0.0, %v3108
        %v3110 = vpop.f32.mrb[0].mxu0
        %v3111 = vadd.f32 0.0, %v3110
        %3112 = vdwg.mxu0
        %3113 = vmatprep.subr.mxu0 0.0
        %3114 = vmatpush1.msra.mxu0 %v2884
        %3115 = vmatprep.subr.mxu0 0.0
        %3116 = vmatpush1.msra.mxu0 %v2887
        %3117 = vmatprep.subr.mxu0 0.0
        %3118 = vmatpush1.msra.mxu0 %v2890
        %3119 = vmatprep.subr.mxu0 0.0
        %3120 = vmatpush1.msra.mxu0 0.0
        %3121 = vmatprep.subr.mxu0 0.0
        %3122 = vmatpush1.msra.mxu0 0.0
        %3123 = vmatprep.subr.mxu0 0.0
        %3124 = vmatpush1.msra.mxu0 0.0
        %3125 = vmatprep.subr.mxu0 0.0
        %3126 = vmatpush1.msra.mxu0 0.0
        %3127 = vmatprep.subr.mxu0 0.0
        %3128 = vmatpush1.msra.mxu0 0.0
        %3129 = vmatprep.subr.mxu0 0.0
        %3130 = vmatpush1.msra.mxu0 0.0
        %3131 = vmatprep.subr.mxu0 0.0
        %3132 = vmatpush1.msra.mxu0 0.0
        %3133 = vmatprep.subr.mxu0 0.0
        %3134 = vmatpush1.msra.mxu0 0.0
        %3135 = vmatprep.subr.mxu0 0.0
        %3136 = vmatpush1.msra.mxu0 0.0
        %3137 = vmatprep.subr.mxu0 0.0
        %3138 = vmatpush1.msra.mxu0 0.0
        %3139 = vmatprep.subr.mxu0 0.0
        %3140 = vmatpush1.msra.mxu0 0.0
        %3141 = vmatprep.subr.mxu0 0.0
        %3142 = vmatpush1.msra.mxu0 0.0
        %3143 = vmatprep.subr.mxu0 0.0
        %3144 = vmatpush1.msra.mxu0 0.0
        %3145 = vmatprep.subr.mxu0 0.0
        %3146 = vmatpush1.msra.mxu0 0.0
        %3147 = vmatprep.subr.mxu0 0.0
        %3148 = vmatpush1.msra.mxu0 0.0
        %3149 = vmatprep.subr.mxu0 0.0
        %3150 = vmatpush1.msra.mxu0 0.0
        %3151 = vmatprep.subr.mxu0 0.0
        %3152 = vmatpush1.msra.mxu0 0.0
        %3153 = vmatprep.subr.mxu0 0.0
        %3154 = vmatpush1.msra.mxu0 0.0
        %3155 = vmatprep.subr.mxu0 0.0
        %3156 = vmatpush1.msra.mxu0 0.0
        %3157 = vmatprep.subr.mxu0 0.0
        %3158 = vmatpush1.msra.mxu0 0.0
        %3159 = vmatprep.subr.mxu0 0.0
        %3160 = vmatpush1.msra.mxu0 0.0
        %3161 = vmatprep.subr.mxu0 0.0
        %3162 = vmatpush1.msra.mxu0 0.0
        %3163 = vmatprep.subr.mxu0 0.0
        %3164 = vmatpush1.msra.mxu0 0.0
        %3165 = vmatprep.subr.mxu0 0.0
        %3166 = vmatpush1.msra.mxu0 0.0
        %3167 = vmatprep.subr.mxu0 0.0
        %3168 = vmatpush1.msra.mxu0 0.0
        %3169 = vmatprep.subr.mxu0 0.0
        %3170 = vmatpush1.msra.mxu0 0.0
        %3171 = vmatprep.subr.mxu0 0.0
        %3172 = vmatpush1.msra.mxu0 0.0
        %3173 = vmatprep.subr.mxu0 0.0
        %3174 = vmatpush1.msra.mxu0 0.0
        %3175 = vmatprep.subr.mxu0 0.0
        %3176 = vmatpush1.msra.mxu0 0.0
        %3177 = vmatprep.mubr.f32.mxu0 0.0
        %3178 = vmatmul.mubr.f32.gmra.mrb[0].mxu0 %v3040
        %v3179 = vpop.f32.mrb[0].mxu0
        %v3180 = vadd.f32 0.0, %v3179
        %v3181 = vpop.f32.mrb[0].mxu0
        %3182 = vdwg.mxu0
        %v3184 = vsel %vm292, %v2894, 0
        %3186 = vmatprep.subr.mxu0 %v2883
        %3187 = vmatpush1.msra.mxu0 %v2882
        %3188 = vmatprep.subr.mxu0 %v2886
        %3189 = vmatpush1.msra.mxu0 %v2885
        %3190 = vmatprep.subr.mxu0 %v2889
        %3191 = vmatpush1.msra.mxu0 %v2888
        %3192 = vmatprep.subr.mxu0 0.0
        %3193 = vmatpush1.msra.mxu0 0.0
        %3194 = vmatprep.subr.mxu0 0.0
        %3195 = vmatpush1.msra.mxu0 0.0
        %3196 = vmatprep.subr.mxu0 0.0
        %3197 = vmatpush1.msra.mxu0 0.0
        %3198 = vmatprep.subr.mxu0 0.0
        %3199 = vmatpush1.msra.mxu0 0.0
        %3200 = vmatprep.subr.mxu0 0.0
        %3201 = vmatpush1.msra.mxu0 0.0
        %3202 = vmatprep.subr.mxu0 0.0
        %3203 = vmatpush1.msra.mxu0 0.0
        %3204 = vmatprep.subr.mxu0 0.0
        %3205 = vmatpush1.msra.mxu0 0.0
        %3206 = vmatprep.subr.mxu0 0.0
        %3207 = vmatpush1.msra.mxu0 0.0
        %3208 = vmatprep.subr.mxu0 0.0
        %3209 = vmatpush1.msra.mxu0 0.0
        %3210 = vmatprep.subr.mxu0 0.0
        %3211 = vmatpush1.msra.mxu0 0.0
        %3212 = vmatprep.subr.mxu0 0.0
        %3213 = vmatpush1.msra.mxu0 0.0
        %3214 = vmatprep.subr.mxu0 0.0
        %3215 = vmatpush1.msra.mxu0 0.0
        %3216 = vmatprep.subr.mxu0 0.0
        %3217 = vmatpush1.msra.mxu0 0.0
        %3218 = vmatprep.subr.mxu0 0.0
        %3219 = vmatpush1.msra.mxu0 0.0
        %3220 = vmatprep.subr.mxu0 0.0
        %3221 = vmatpush1.msra.mxu0 0.0
        %3222 = vmatprep.subr.mxu0 0.0
        %3223 = vmatpush1.msra.mxu0 0.0
        %3224 = vmatprep.subr.mxu0 0.0
        %3225 = vmatpush1.msra.mxu0 0.0
        %3226 = vmatprep.subr.mxu0 0.0
        %3227 = vmatpush1.msra.mxu0 0.0
        %3228 = vmatprep.subr.mxu0 0.0
        %3229 = vmatpush1.msra.mxu0 0.0
        %3230 = vmatprep.subr.mxu0 0.0
        %3231 = vmatpush1.msra.mxu0 0.0
        %3232 = vmatprep.subr.mxu0 0.0
        %3233 = vmatpush1.msra.mxu0 0.0
        %3234 = vmatprep.subr.mxu0 0.0
        %3235 = vmatpush1.msra.mxu0 0.0
        %3236 = vmatprep.subr.mxu0 0.0
        %3237 = vmatpush1.msra.mxu0 0.0
        %3238 = vmatprep.subr.mxu0 0.0
        %3239 = vmatpush1.msra.mxu0 0.0
        %3240 = vmatprep.subr.mxu0 0.0
        %3241 = vmatpush1.msra.mxu0 0.0
        %3242 = vmatprep.subr.mxu0 0.0
        %3243 = vmatpush1.msra.mxu0 0.0
        %3244 = vmatprep.subr.mxu0 0.0
        %3245 = vmatpush1.msra.mxu0 0.0
        %3246 = vmatprep.subr.mxu0 0.0
        %3247 = vmatpush1.msra.mxu0 0.0
        %3248 = vmatprep.subr.mxu0 0.0
        %3249 = vmatpush1.msra.mxu0 0.0
        %3250 = vmatprep.mubr.f32.mxu0 0.0
        %3251 = vmatmul.mubr.f32.gmra.mrb[0].mxu0 %v3184
        %v3252 = vpop.f32.mrb[0].mxu0
        %v3253 = vadd.f32 0.0, %v3252
        %v3254 = vpop.f32.mrb[0].mxu0
        %v3255 = vadd.f32 0.0, %v3254
        %3256 = vdwg.mxu0
        %3257 = vmatprep.subr.mxu0 0.0
        %3258 = vmatpush1.msra.mxu0 %v2884
        %3259 = vmatprep.subr.mxu0 0.0
        %3260 = vmatpush1.msra.mxu0 %v2887
        %3261 = vmatprep.subr.mxu0 0.0
        %3262 = vmatpush1.msra.mxu0 %v2890
        %3263 = vmatprep.subr.mxu0 0.0
        %3264 = vmatpush1.msra.mxu0 0.0
        %3265 = vmatprep.subr.mxu0 0.0
        %3266 = vmatpush1.msra.mxu0 0.0
        %3267 = vmatprep.subr.mxu0 0.0
        %3268 = vmatpush1.msra.mxu0 0.0
        %3269 = vmatprep.subr.mxu0 0.0
        %3270 = vmatpush1.msra.mxu0 0.0
        %3271 = vmatprep.subr.mxu0 0.0
        %3272 = vmatpush1.msra.mxu0 0.0
        %3273 = vmatprep.subr.mxu0 0.0
        %3274 = vmatpush1.msra.mxu0 0.0
        %3275 = vmatprep.subr.mxu0 0.0
        %3276 = vmatpush1.msra.mxu0 0.0
        %3277 = vmatprep.subr.mxu0 0.0
        %3278 = vmatpush1.msra.mxu0 0.0
        %3279 = vmatprep.subr.mxu0 0.0
        %3280 = vmatpush1.msra.mxu0 0.0
        %3281 = vmatprep.subr.mxu0 0.0
        %3282 = vmatpush1.msra.mxu0 0.0
        %3283 = vmatprep.subr.mxu0 0.0
        %3284 = vmatpush1.msra.mxu0 0.0
        %3285 = vmatprep.subr.mxu0 0.0
        %3286 = vmatpush1.msra.mxu0 0.0
        %3287 = vmatprep.subr.mxu0 0.0
        %3288 = vmatpush1.msra.mxu0 0.0
        %3289 = vmatprep.subr.mxu0 0.0
        %3290 = vmatpush1.msra.mxu0 0.0
        %3291 = vmatprep.subr.mxu0 0.0
        %3292 = vmatpush1.msra.mxu0 0.0
        %3293 = vmatprep.subr.mxu0 0.0
        %3294 = vmatpush1.msra.mxu0 0.0
        %3295 = vmatprep.subr.mxu0 0.0
        %3296 = vmatpush1.msra.mxu0 0.0
        %3297 = vmatprep.subr.mxu0 0.0
        %3298 = vmatpush1.msra.mxu0 0.0
        %3299 = vmatprep.subr.mxu0 0.0
        %3300 = vmatpush1.msra.mxu0 0.0
        %3301 = vmatprep.subr.mxu0 0.0
        %3302 = vmatpush1.msra.mxu0 0.0
        %3303 = vmatprep.subr.mxu0 0.0
        %3304 = vmatpush1.msra.mxu0 0.0
        %3305 = vmatprep.subr.mxu0 0.0
        %3306 = vmatpush1.msra.mxu0 0.0
        %3307 = vmatprep.subr.mxu0 0.0
        %3308 = vmatpush1.msra.mxu0 0.0
        %3309 = vmatprep.subr.mxu0 0.0
        %3310 = vmatpush1.msra.mxu0 0.0
        %3311 = vmatprep.subr.mxu0 0.0
        %3312 = vmatpush1.msra.mxu0 0.0
        %3313 = vmatprep.subr.mxu0 0.0
        %3314 = vmatpush1.msra.mxu0 0.0
        %3315 = vmatprep.subr.mxu0 0.0
        %3316 = vmatpush1.msra.mxu0 0.0
        %3317 = vmatprep.subr.mxu0 0.0
        %3318 = vmatpush1.msra.mxu0 0.0
        %3319 = vmatprep.subr.mxu0 0.0
        %3320 = vmatpush1.msra.mxu0 0.0
        %3321 = vmatprep.mubr.f32.mxu0 0.0
        %3322 = vmatmul.mubr.f32.gmra.mrb[0].mxu0 %v3184
        %v3323 = vpop.f32.mrb[0].mxu0
        %v3324 = vadd.f32 0.0, %v3323
        %v3325 = vpop.f32.mrb[0].mxu0
        %3326 = vdwg.mxu0
        %3327 = vrot.lane.b32.xlu0 %v2965, 18
        %v3328 = vpop.permute.xlu0 %3327
        %3329 = vrot.lane.b32.xlu0 %v2967, 18
        %v3330 = vpop.permute.xlu0 %3329
        %3331 = vrot.lane.b32.xlu0 %v3036, 18
        %v3332 = vpop.permute.xlu0 %3331
        %v3333 = vsel %vm731, %v3330, %v3332
        %v3334 = vsel %vm731, %v3328, %v3330
        %v3335 = vsel %vm731, %v3332, %v3328
        %v3336 = vadd.f32 %v3335, %v3109
        %v3337 = vadd.f32 %v3334, %v3111
        %v3338 = vadd.f32 %v3333, %v3180
        %3339 = vrot.lane.b32.xlu0 %v3253, 110
        %v3340 = vpop.permute.xlu0 %3339
        %3341 = vrot.lane.b32.xlu0 %v3255, 110
        %v3342 = vpop.permute.xlu0 %3341
        %3343 = vrot.lane.b32.xlu0 %v3324, 110
        %v3344 = vpop.permute.xlu0 %3343
        %v3345 = vsel %vm744, %v3342, %v3344
        %v3346 = vsel %vm744, %v3340, %v3342
        %v3347 = vsel %vm744, %v3344, %v3340
        %v3348 = vadd.f32 %v3336, %v3346
        %v3349 = vadd.f32 %v3337, %v3345
        %v3350 = vadd.f32 %v3338, %v3347
        %s3351 = scalar_lea.vmem %s1, 40
        %v3352 = vld [vmem:[%s3351] sm:$0xff]
        %3354 = vset.pattern.permute.xlu0 0
        %3355 = vperm.xlu0 %3354, %v3352
        %v3356 = vpop.permute.xlu0 %3355
        %v3358 = vadd.f32 %v3348, %v3356
        %v3359 = vadd.f32 %v3349, %v3356
        %v3360 = vadd.f32 %v3350, %v3356
        %v3361 = vsel %vm242, %v3358, 0.0
        %v3362 = vsel %vm243, %v3359, 0.0
        %v3363 = vsel %vm244, %v3360, 0.0
        %v3364 = vadd.f32 %v3361, %v2332
        %v3365 = vadd.f32 %v3362, %v2333
        %v3366 = vadd.f32 %v3363, %v2334
        %vm3367 = vcmp.ge.f32.partialorder %v3364, 0.0
        %vm3368 = vcmp.ge.f32.partialorder %v3365, 0.0
        %vm3369 = vcmp.ge.f32.partialorder %v3366, 0.0
        %v3370 = vmul.f32 %v2848, %v3364
        %v3371 = vmul.f32 %v2848, %v3365
        %v3372 = vmul.f32 %v2848, %v3366
        %v3373 = vsel %vm3367, %v3364, %v3370
        %v3374 = vsel %vm3368, %v3365, %v3371
        %v3375 = vsel %vm3369, %v3366, %v3372
        %s3376 = sld [smem:[#allocation3 + $0x3]]
        %3377 = vrot.lane.b32.xlu0 %v3373, 1
        %v3378 = vpop.permute.xlu0 %3377
        %3379 = vrot.lane.b32.xlu0 %v3374, 1
        %v3380 = vpop.permute.xlu0 %3379
        %3381 = vrot.lane.b32.xlu0 %v3375, 1
        %v3382 = vpop.permute.xlu0 %3381
        %v3383 = vsel %vm257, %v3380, %v3382
        %v3384 = vsel %vm257, %v3378, %v3380
        %v3385 = vsel %vm257, %v3382, %v3378
        %3386 = vst [vmem:[#allocation2] sm:$0xff] %v3385
        %3387 = vst [vmem:[#allocation2 + $0x8] sm:$0xff] %v3384
        %3388 = vst [vmem:[#allocation2 + $0x10] sm:$0xff] %v3383
        %3389 = vst [vmem:[#allocation2 + $0x18] sm:$0xff] %v3373
        %3390 = vst [vmem:[#allocation2 + $0x20] sm:$0xff] %v3374
        %3391 = vst [vmem:[#allocation2 + $0x28] sm:$0xff] %v3375
        %3392 = vrot.lane.b32.xlu0 %v3373, 127
        %v3393 = vpop.permute.xlu0 %3392
        %3394 = vrot.lane.b32.xlu0 %v3374, 127
        %v3395 = vpop.permute.xlu0 %3394
        %3396 = vrot.lane.b32.xlu0 %v3375, 127
        %v3397 = vpop.permute.xlu0 %3396
        %v3398 = vsel %vm273, %v3395, %v3397
        %v3399 = vsel %vm273, %v3393, %v3395
        %v3400 = vsel %vm273, %v3397, %v3393
        %3401 = vst [vmem:[#allocation2 + $0x30] sm:$0xff] %v3399
        %3402 = vst [vmem:[#allocation2 + $0x38] sm:$0xff] %v3398
        %3403 = vst [vmem:[#allocation2 + $0x40] sm:$0xff] %v3400
        %v3404 = vld [vmem:[#allocation2] sm:$0xff]
        %v3405 = vld [vmem:[#allocation2 + $0x8] sm:$0xff]
        %v3406 = vld [vmem:[#allocation2 + $0x10] sm:$0xff]
        %v3407 = vld [vmem:[#allocation2 + $0x18] sm:$0xff]
        %v3408 = vld [vmem:[#allocation2 + $0x20] sm:$0xff]
        %v3409 = vld [vmem:[#allocation2 + $0x28] sm:$0xff]
        %v3410 = vld [vmem:[#allocation2 + $0x30] sm:$0xff]
        %v3411 = vld [vmem:[#allocation2 + $0x38] sm:$0xff]
        %v3412 = vld [vmem:[#allocation2 + $0x40] sm:$0xff]
        %s3413 = scalar_lea.vmem %s0, 144
        %v3414 = vld [vmem:[%s3413] sm:$0xff]
        %v3415 = vld [vmem:[%s3413 + $0x8] sm:$0xff]
        %v3416 = vld [vmem:[%s3413 + $0x10] sm:$0xff]
        %v3418 = vsel %vm292, %v3414, 0
        %3420 = vmatprep.subr.mxu0 %v3405
        %3421 = vmatpush1.msra.mxu0 %v3404
        %3422 = vmatprep.subr.mxu0 %v3408
        %3423 = vmatpush1.msra.mxu0 %v3407
        %3424 = vmatprep.subr.mxu0 %v3411
        %3425 = vmatpush1.msra.mxu0 %v3410
        %3426 = vmatprep.subr.mxu0 0.0
        %3427 = vmatpush1.msra.mxu0 0.0
        %3428 = vmatprep.subr.mxu0 0.0
        %3429 = vmatpush1.msra.mxu0 0.0
        %3430 = vmatprep.subr.mxu0 0.0
        %3431 = vmatpush1.msra.mxu0 0.0
        %3432 = vmatprep.subr.mxu0 0.0
        %3433 = vmatpush1.msra.mxu0 0.0
        %3434 = vmatprep.subr.mxu0 0.0
        %3435 = vmatpush1.msra.mxu0 0.0
        %3436 = vmatprep.subr.mxu0 0.0
        %3437 = vmatpush1.msra.mxu0 0.0
        %3438 = vmatprep.subr.mxu0 0.0
        %3439 = vmatpush1.msra.mxu0 0.0
        %3440 = vmatprep.subr.mxu0 0.0
        %3441 = vmatpush1.msra.mxu0 0.0
        %3442 = vmatprep.subr.mxu0 0.0
        %3443 = vmatpush1.msra.mxu0 0.0
        %3444 = vmatprep.subr.mxu0 0.0
        %3445 = vmatpush1.msra.mxu0 0.0
        %3446 = vmatprep.subr.mxu0 0.0
        %3447 = vmatpush1.msra.mxu0 0.0
        %3448 = vmatprep.subr.mxu0 0.0
        %3449 = vmatpush1.msra.mxu0 0.0
        %3450 = vmatprep.subr.mxu0 0.0
        %3451 = vmatpush1.msra.mxu0 0.0
        %3452 = vmatprep.subr.mxu0 0.0
        %3453 = vmatpush1.msra.mxu0 0.0
        %3454 = vmatprep.subr.mxu0 0.0
        %3455 = vmatpush1.msra.mxu0 0.0
        %3456 = vmatprep.subr.mxu0 0.0
        %3457 = vmatpush1.msra.mxu0 0.0
        %3458 = vmatprep.subr.mxu0 0.0
        %3459 = vmatpush1.msra.mxu0 0.0
        %3460 = vmatprep.subr.mxu0 0.0
        %3461 = vmatpush1.msra.mxu0 0.0
        %3462 = vmatprep.subr.mxu0 0.0
        %3463 = vmatpush1.msra.mxu0 0.0
        %3464 = vmatprep.subr.mxu0 0.0
        %3465 = vmatpush1.msra.mxu0 0.0
        %3466 = vmatprep.subr.mxu0 0.0
        %3467 = vmatpush1.msra.mxu0 0.0
        %3468 = vmatprep.subr.mxu0 0.0
        %3469 = vmatpush1.msra.mxu0 0.0
        %3470 = vmatprep.subr.mxu0 0.0
        %3471 = vmatpush1.msra.mxu0 0.0
        %3472 = vmatprep.subr.mxu0 0.0
        %3473 = vmatpush1.msra.mxu0 0.0
        %3474 = vmatprep.subr.mxu0 0.0
        %3475 = vmatpush1.msra.mxu0 0.0
        %3476 = vmatprep.subr.mxu0 0.0
        %3477 = vmatpush1.msra.mxu0 0.0
        %3478 = vmatprep.subr.mxu0 0.0
        %3479 = vmatpush1.msra.mxu0 0.0
        %3480 = vmatprep.subr.mxu0 0.0
        %3481 = vmatpush1.msra.mxu0 0.0
        %3482 = vmatprep.subr.mxu0 0.0
        %3483 = vmatpush1.msra.mxu0 0.0
        %3484 = vmatprep.mubr.f32.mxu0 0.0
        %3485 = vmatmul.mubr.f32.gmra.mrb[0].mxu0 %v3418
        %v3486 = vpop.f32.mrb[0].mxu0
        %v3487 = vadd.f32 0.0, %v3486
        %v3488 = vpop.f32.mrb[0].mxu0
        %v3489 = vadd.f32 0.0, %v3488
        %3490 = vdwg.mxu0
        %3491 = vmatprep.subr.mxu0 0.0
        %3492 = vmatpush1.msra.mxu0 %v3406
        %3493 = vmatprep.subr.mxu0 0.0
        %3494 = vmatpush1.msra.mxu0 %v3409
        %3495 = vmatprep.subr.mxu0 0.0
        %3496 = vmatpush1.msra.mxu0 %v3412
        %3497 = vmatprep.subr.mxu0 0.0
        %3498 = vmatpush1.msra.mxu0 0.0
        %3499 = vmatprep.subr.mxu0 0.0
        %3500 = vmatpush1.msra.mxu0 0.0
        %3501 = vmatprep.subr.mxu0 0.0
        %3502 = vmatpush1.msra.mxu0 0.0
        %3503 = vmatprep.subr.mxu0 0.0
        %3504 = vmatpush1.msra.mxu0 0.0
        %3505 = vmatprep.subr.mxu0 0.0
        %3506 = vmatpush1.msra.mxu0 0.0
        %3507 = vmatprep.subr.mxu0 0.0
        %3508 = vmatpush1.msra.mxu0 0.0
        %3509 = vmatprep.subr.mxu0 0.0
        %3510 = vmatpush1.msra.mxu0 0.0
        %3511 = vmatprep.subr.mxu0 0.0
        %3512 = vmatpush1.msra.mxu0 0.0
        %3513 = vmatprep.subr.mxu0 0.0
        %3514 = vmatpush1.msra.mxu0 0.0
        %3515 = vmatprep.subr.mxu0 0.0
        %3516 = vmatpush1.msra.mxu0 0.0
        %3517 = vmatprep.subr.mxu0 0.0
        %3518 = vmatpush1.msra.mxu0 0.0
        %3519 = vmatprep.subr.mxu0 0.0
        %3520 = vmatpush1.msra.mxu0 0.0
        %3521 = vmatprep.subr.mxu0 0.0
        %3522 = vmatpush1.msra.mxu0 0.0
        %3523 = vmatprep.subr.mxu0 0.0
        %3524 = vmatpush1.msra.mxu0 0.0
        %3525 = vmatprep.subr.mxu0 0.0
        %3526 = vmatpush1.msra.mxu0 0.0
        %3527 = vmatprep.subr.mxu0 0.0
        %3528 = vmatpush1.msra.mxu0 0.0
        %3529 = vmatprep.subr.mxu0 0.0
        %3530 = vmatpush1.msra.mxu0 0.0
        %3531 = vmatprep.subr.mxu0 0.0
        %3532 = vmatpush1.msra.mxu0 0.0
        %3533 = vmatprep.subr.mxu0 0.0
        %3534 = vmatpush1.msra.mxu0 0.0
        %3535 = vmatprep.subr.mxu0 0.0
        %3536 = vmatpush1.msra.mxu0 0.0
        %3537 = vmatprep.subr.mxu0 0.0
        %3538 = vmatpush1.msra.mxu0 0.0
        %3539 = vmatprep.subr.mxu0 0.0
        %3540 = vmatpush1.msra.mxu0 0.0
        %3541 = vmatprep.subr.mxu0 0.0
        %3542 = vmatpush1.msra.mxu0 0.0
        %3543 = vmatprep.subr.mxu0 0.0
        %3544 = vmatpush1.msra.mxu0 0.0
        %3545 = vmatprep.subr.mxu0 0.0
        %3546 = vmatpush1.msra.mxu0 0.0
        %3547 = vmatprep.subr.mxu0 0.0
        %3548 = vmatpush1.msra.mxu0 0.0
        %3549 = vmatprep.subr.mxu0 0.0
        %3550 = vmatpush1.msra.mxu0 0.0
        %3551 = vmatprep.subr.mxu0 0.0
        %3552 = vmatpush1.msra.mxu0 0.0
        %3553 = vmatprep.subr.mxu0 0.0
        %3554 = vmatpush1.msra.mxu0 0.0
        %3555 = vmatprep.mubr.f32.mxu0 0.0
        %3556 = vmatmul.mubr.f32.gmra.mrb[0].mxu0 %v3418
        %v3557 = vpop.f32.mrb[0].mxu0
        %v3558 = vadd.f32 0.0, %v3557
        %v3559 = vpop.f32.mrb[0].mxu0
        %3560 = vdwg.mxu0
        %v3562 = vsel %vm292, %v3415, 0
        %3564 = vmatprep.subr.mxu0 %v3405
        %3565 = vmatpush1.msra.mxu0 %v3404
        %3566 = vmatprep.subr.mxu0 %v3408
        %3567 = vmatpush1.msra.mxu0 %v3407
        %3568 = vmatprep.subr.mxu0 %v3411
        %3569 = vmatpush1.msra.mxu0 %v3410
        %3570 = vmatprep.subr.mxu0 0.0
        %3571 = vmatpush1.msra.mxu0 0.0
        %3572 = vmatprep.subr.mxu0 0.0
        %3573 = vmatpush1.msra.mxu0 0.0
        %3574 = vmatprep.subr.mxu0 0.0
        %3575 = vmatpush1.msra.mxu0 0.0
        %3576 = vmatprep.subr.mxu0 0.0
        %3577 = vmatpush1.msra.mxu0 0.0
        %3578 = vmatprep.subr.mxu0 0.0
        %3579 = vmatpush1.msra.mxu0 0.0
        %3580 = vmatprep.subr.mxu0 0.0
        %3581 = vmatpush1.msra.mxu0 0.0
        %3582 = vmatprep.subr.mxu0 0.0
        %3583 = vmatpush1.msra.mxu0 0.0
        %3584 = vmatprep.subr.mxu0 0.0
        %3585 = vmatpush1.msra.mxu0 0.0
        %3586 = vmatprep.subr.mxu0 0.0
        %3587 = vmatpush1.msra.mxu0 0.0
        %3588 = vmatprep.subr.mxu0 0.0
        %3589 = vmatpush1.msra.mxu0 0.0
        %3590 = vmatprep.subr.mxu0 0.0
        %3591 = vmatpush1.msra.mxu0 0.0
        %3592 = vmatprep.subr.mxu0 0.0
        %3593 = vmatpush1.msra.mxu0 0.0
        %3594 = vmatprep.subr.mxu0 0.0
        %3595 = vmatpush1.msra.mxu0 0.0
        %3596 = vmatprep.subr.mxu0 0.0
        %3597 = vmatpush1.msra.mxu0 0.0
        %3598 = vmatprep.subr.mxu0 0.0
        %3599 = vmatpush1.msra.mxu0 0.0
        %3600 = vmatprep.subr.mxu0 0.0
        %3601 = vmatpush1.msra.mxu0 0.0
        %3602 = vmatprep.subr.mxu0 0.0
        %3603 = vmatpush1.msra.mxu0 0.0
        %3604 = vmatprep.subr.mxu0 0.0
        %3605 = vmatpush1.msra.mxu0 0.0
        %3606 = vmatprep.subr.mxu0 0.0
        %3607 = vmatpush1.msra.mxu0 0.0
        %3608 = vmatprep.subr.mxu0 0.0
        %3609 = vmatpush1.msra.mxu0 0.0
        %3610 = vmatprep.subr.mxu0 0.0
        %3611 = vmatpush1.msra.mxu0 0.0
        %3612 = vmatprep.subr.mxu0 0.0
        %3613 = vmatpush1.msra.mxu0 0.0
        %3614 = vmatprep.subr.mxu0 0.0
        %3615 = vmatpush1.msra.mxu0 0.0
        %3616 = vmatprep.subr.mxu0 0.0
        %3617 = vmatpush1.msra.mxu0 0.0
        %3618 = vmatprep.subr.mxu0 0.0
        %3619 = vmatpush1.msra.mxu0 0.0
        %3620 = vmatprep.subr.mxu0 0.0
        %3621 = vmatpush1.msra.mxu0 0.0
        %3622 = vmatprep.subr.mxu0 0.0
        %3623 = vmatpush1.msra.mxu0 0.0
        %3624 = vmatprep.subr.mxu0 0.0
        %3625 = vmatpush1.msra.mxu0 0.0
        %3626 = vmatprep.subr.mxu0 0.0
        %3627 = vmatpush1.msra.mxu0 0.0
        %3628 = vmatprep.mubr.f32.mxu0 0.0
        %3629 = vmatmul.mubr.f32.gmra.mrb[0].mxu0 %v3562
        %v3630 = vpop.f32.mrb[0].mxu0
        %v3631 = vadd.f32 0.0, %v3630
        %v3632 = vpop.f32.mrb[0].mxu0
        %v3633 = vadd.f32 0.0, %v3632
        %3634 = vdwg.mxu0
        %3635 = vmatprep.subr.mxu0 0.0
        %3636 = vmatpush1.msra.mxu0 %v3406
        %3637 = vmatprep.subr.mxu0 0.0
        %3638 = vmatpush1.msra.mxu0 %v3409
        %3639 = vmatprep.subr.mxu0 0.0
        %3640 = vmatpush1.msra.mxu0 %v3412
        %3641 = vmatprep.subr.mxu0 0.0
        %3642 = vmatpush1.msra.mxu0 0.0
        %3643 = vmatprep.subr.mxu0 0.0
        %3644 = vmatpush1.msra.mxu0 0.0
        %3645 = vmatprep.subr.mxu0 0.0
        %3646 = vmatpush1.msra.mxu0 0.0
        %3647 = vmatprep.subr.mxu0 0.0
        %3648 = vmatpush1.msra.mxu0 0.0
        %3649 = vmatprep.subr.mxu0 0.0
        %3650 = vmatpush1.msra.mxu0 0.0
        %3651 = vmatprep.subr.mxu0 0.0
        %3652 = vmatpush1.msra.mxu0 0.0
        %3653 = vmatprep.subr.mxu0 0.0
        %3654 = vmatpush1.msra.mxu0 0.0
        %3655 = vmatprep.subr.mxu0 0.0
        %3656 = vmatpush1.msra.mxu0 0.0
        %3657 = vmatprep.subr.mxu0 0.0
        %3658 = vmatpush1.msra.mxu0 0.0
        %3659 = vmatprep.subr.mxu0 0.0
        %3660 = vmatpush1.msra.mxu0 0.0
        %3661 = vmatprep.subr.mxu0 0.0
        %3662 = vmatpush1.msra.mxu0 0.0
        %3663 = vmatprep.subr.mxu0 0.0
        %3664 = vmatpush1.msra.mxu0 0.0
        %3665 = vmatprep.subr.mxu0 0.0
        %3666 = vmatpush1.msra.mxu0 0.0
        %3667 = vmatprep.subr.mxu0 0.0
        %3668 = vmatpush1.msra.mxu0 0.0
        %3669 = vmatprep.subr.mxu0 0.0
        %3670 = vmatpush1.msra.mxu0 0.0
        %3671 = vmatprep.subr.mxu0 0.0
        %3672 = vmatpush1.msra.mxu0 0.0
        %3673 = vmatprep.subr.mxu0 0.0
        %3674 = vmatpush1.msra.mxu0 0.0
        %3675 = vmatprep.subr.mxu0 0.0
        %3676 = vmatpush1.msra.mxu0 0.0
        %3677 = vmatprep.subr.mxu0 0.0
        %3678 = vmatpush1.msra.mxu0 0.0
        %3679 = vmatprep.subr.mxu0 0.0
        %3680 = vmatpush1.msra.mxu0 0.0
        %3681 = vmatprep.subr.mxu0 0.0
        %3682 = vmatpush1.msra.mxu0 0.0
        %3683 = vmatprep.subr.mxu0 0.0
        %3684 = vmatpush1.msra.mxu0 0.0
        %3685 = vmatprep.subr.mxu0 0.0
        %3686 = vmatpush1.msra.mxu0 0.0
        %3687 = vmatprep.subr.mxu0 0.0
        %3688 = vmatpush1.msra.mxu0 0.0
        %3689 = vmatprep.subr.mxu0 0.0
        %3690 = vmatpush1.msra.mxu0 0.0
        %3691 = vmatprep.subr.mxu0 0.0
        %3692 = vmatpush1.msra.mxu0 0.0
        %3693 = vmatprep.subr.mxu0 0.0
        %3694 = vmatpush1.msra.mxu0 0.0
        %3695 = vmatprep.subr.mxu0 0.0
        %3696 = vmatpush1.msra.mxu0 0.0
        %3697 = vmatprep.subr.mxu0 0.0
        %3698 = vmatpush1.msra.mxu0 0.0
        %3699 = vmatprep.mubr.f32.mxu0 0.0
        %3700 = vmatmul.mubr.f32.gmra.mrb[0].mxu0 %v3562
        %v3701 = vpop.f32.mrb[0].mxu0
        %v3702 = vadd.f32 0.0, %v3701
        %v3703 = vpop.f32.mrb[0].mxu0
        %3704 = vdwg.mxu0
        %v3706 = vsel %vm292, %v3416, 0
        %3708 = vmatprep.subr.mxu0 %v3405
        %3709 = vmatpush1.msra.mxu0 %v3404
        %3710 = vmatprep.subr.mxu0 %v3408
        %3711 = vmatpush1.msra.mxu0 %v3407
        %3712 = vmatprep.subr.mxu0 %v3411
        %3713 = vmatpush1.msra.mxu0 %v3410
        %3714 = vmatprep.subr.mxu0 0.0
        %3715 = vmatpush1.msra.mxu0 0.0
        %3716 = vmatprep.subr.mxu0 0.0
        %3717 = vmatpush1.msra.mxu0 0.0
        %3718 = vmatprep.subr.mxu0 0.0
        %3719 = vmatpush1.msra.mxu0 0.0
        %3720 = vmatprep.subr.mxu0 0.0
        %3721 = vmatpush1.msra.mxu0 0.0
        %3722 = vmatprep.subr.mxu0 0.0
        %3723 = vmatpush1.msra.mxu0 0.0
        %3724 = vmatprep.subr.mxu0 0.0
        %3725 = vmatpush1.msra.mxu0 0.0
        %3726 = vmatprep.subr.mxu0 0.0
        %3727 = vmatpush1.msra.mxu0 0.0
        %3728 = vmatprep.subr.mxu0 0.0
        %3729 = vmatpush1.msra.mxu0 0.0
        %3730 = vmatprep.subr.mxu0 0.0
        %3731 = vmatpush1.msra.mxu0 0.0
        %3732 = vmatprep.subr.mxu0 0.0
        %3733 = vmatpush1.msra.mxu0 0.0
        %3734 = vmatprep.subr.mxu0 0.0
        %3735 = vmatpush1.msra.mxu0 0.0
        %3736 = vmatprep.subr.mxu0 0.0
        %3737 = vmatpush1.msra.mxu0 0.0
        %3738 = vmatprep.subr.mxu0 0.0
        %3739 = vmatpush1.msra.mxu0 0.0
        %3740 = vmatprep.subr.mxu0 0.0
        %3741 = vmatpush1.msra.mxu0 0.0
        %3742 = vmatprep.subr.mxu0 0.0
        %3743 = vmatpush1.msra.mxu0 0.0
        %3744 = vmatprep.subr.mxu0 0.0
        %3745 = vmatpush1.msra.mxu0 0.0
        %3746 = vmatprep.subr.mxu0 0.0
        %3747 = vmatpush1.msra.mxu0 0.0
        %3748 = vmatprep.subr.mxu0 0.0
        %3749 = vmatpush1.msra.mxu0 0.0
        %3750 = vmatprep.subr.mxu0 0.0
        %3751 = vmatpush1.msra.mxu0 0.0
        %3752 = vmatprep.subr.mxu0 0.0
        %3753 = vmatpush1.msra.mxu0 0.0
        %3754 = vmatprep.subr.mxu0 0.0
        %3755 = vmatpush1.msra.mxu0 0.0
        %3756 = vmatprep.subr.mxu0 0.0
        %3757 = vmatpush1.msra.mxu0 0.0
        %3758 = vmatprep.subr.mxu0 0.0
        %3759 = vmatpush1.msra.mxu0 0.0
        %3760 = vmatprep.subr.mxu0 0.0
        %3761 = vmatpush1.msra.mxu0 0.0
        %3762 = vmatprep.subr.mxu0 0.0
        %3763 = vmatpush1.msra.mxu0 0.0
        %3764 = vmatprep.subr.mxu0 0.0
        %3765 = vmatpush1.msra.mxu0 0.0
        %3766 = vmatprep.subr.mxu0 0.0
        %3767 = vmatpush1.msra.mxu0 0.0
        %3768 = vmatprep.subr.mxu0 0.0
        %3769 = vmatpush1.msra.mxu0 0.0
        %3770 = vmatprep.subr.mxu0 0.0
        %3771 = vmatpush1.msra.mxu0 0.0
        %3772 = vmatprep.mubr.f32.mxu0 0.0
        %3773 = vmatmul.mubr.f32.gmra.mrb[0].mxu0 %v3706
        %v3774 = vpop.f32.mrb[0].mxu0
        %v3775 = vadd.f32 0.0, %v3774
        %v3776 = vpop.f32.mrb[0].mxu0
        %v3777 = vadd.f32 0.0, %v3776
        %3778 = vdwg.mxu0
        %3779 = vmatprep.subr.mxu0 0.0
        %3780 = vmatpush1.msra.mxu0 %v3406
        %3781 = vmatprep.subr.mxu0 0.0
        %3782 = vmatpush1.msra.mxu0 %v3409
        %3783 = vmatprep.subr.mxu0 0.0
        %3784 = vmatpush1.msra.mxu0 %v3412
        %3785 = vmatprep.subr.mxu0 0.0
        %3786 = vmatpush1.msra.mxu0 0.0
        %3787 = vmatprep.subr.mxu0 0.0
        %3788 = vmatpush1.msra.mxu0 0.0
        %3789 = vmatprep.subr.mxu0 0.0
        %3790 = vmatpush1.msra.mxu0 0.0
        %3791 = vmatprep.subr.mxu0 0.0
        %3792 = vmatpush1.msra.mxu0 0.0
        %3793 = vmatprep.subr.mxu0 0.0
        %3794 = vmatpush1.msra.mxu0 0.0
        %3795 = vmatprep.subr.mxu0 0.0
        %3796 = vmatpush1.msra.mxu0 0.0
        %3797 = vmatprep.subr.mxu0 0.0
        %3798 = vmatpush1.msra.mxu0 0.0
        %3799 = vmatprep.subr.mxu0 0.0
        %3800 = vmatpush1.msra.mxu0 0.0
        %3801 = vmatprep.subr.mxu0 0.0
        %3802 = vmatpush1.msra.mxu0 0.0
        %3803 = vmatprep.subr.mxu0 0.0
        %3804 = vmatpush1.msra.mxu0 0.0
        %3805 = vmatprep.subr.mxu0 0.0
        %3806 = vmatpush1.msra.mxu0 0.0
        %3807 = vmatprep.subr.mxu0 0.0
        %3808 = vmatpush1.msra.mxu0 0.0
        %3809 = vmatprep.subr.mxu0 0.0
        %3810 = vmatpush1.msra.mxu0 0.0
        %3811 = vmatprep.subr.mxu0 0.0
        %3812 = vmatpush1.msra.mxu0 0.0
        %3813 = vmatprep.subr.mxu0 0.0
        %3814 = vmatpush1.msra.mxu0 0.0
        %3815 = vmatprep.subr.mxu0 0.0
        %3816 = vmatpush1.msra.mxu0 0.0
        %3817 = vmatprep.subr.mxu0 0.0
        %3818 = vmatpush1.msra.mxu0 0.0
        %3819 = vmatprep.subr.mxu0 0.0
        %3820 = vmatpush1.msra.mxu0 0.0
        %3821 = vmatprep.subr.mxu0 0.0
        %3822 = vmatpush1.msra.mxu0 0.0
        %3823 = vmatprep.subr.mxu0 0.0
        %3824 = vmatpush1.msra.mxu0 0.0
        %3825 = vmatprep.subr.mxu0 0.0
        %3826 = vmatpush1.msra.mxu0 0.0
        %3827 = vmatprep.subr.mxu0 0.0
        %3828 = vmatpush1.msra.mxu0 0.0
        %3829 = vmatprep.subr.mxu0 0.0
        %3830 = vmatpush1.msra.mxu0 0.0
        %3831 = vmatprep.subr.mxu0 0.0
        %3832 = vmatpush1.msra.mxu0 0.0
        %3833 = vmatprep.subr.mxu0 0.0
        %3834 = vmatpush1.msra.mxu0 0.0
        %3835 = vmatprep.subr.mxu0 0.0
        %3836 = vmatpush1.msra.mxu0 0.0
        %3837 = vmatprep.subr.mxu0 0.0
        %3838 = vmatpush1.msra.mxu0 0.0
        %3839 = vmatprep.subr.mxu0 0.0
        %3840 = vmatpush1.msra.mxu0 0.0
        %3841 = vmatprep.subr.mxu0 0.0
        %3842 = vmatpush1.msra.mxu0 0.0
        %3843 = vmatprep.mubr.f32.mxu0 0.0
        %3844 = vmatmul.mubr.f32.gmra.mrb[0].mxu0 %v3706
        %v3845 = vpop.f32.mrb[0].mxu0
        %v3846 = vadd.f32 0.0, %v3845
        %v3847 = vpop.f32.mrb[0].mxu0
        %3848 = vdwg.mxu0
        %3849 = vrot.lane.b32.xlu0 %v3487, 18
        %v3850 = vpop.permute.xlu0 %3849
        %3851 = vrot.lane.b32.xlu0 %v3489, 18
        %v3852 = vpop.permute.xlu0 %3851
        %3853 = vrot.lane.b32.xlu0 %v3558, 18
        %v3854 = vpop.permute.xlu0 %3853
        %v3855 = vsel %vm731, %v3852, %v3854
        %v3856 = vsel %vm731, %v3850, %v3852
        %v3857 = vsel %vm731, %v3854, %v3850
        %v3858 = vadd.f32 %v3857, %v3631
        %v3859 = vadd.f32 %v3856, %v3633
        %v3860 = vadd.f32 %v3855, %v3702
        %3861 = vrot.lane.b32.xlu0 %v3775, 110
        %v3862 = vpop.permute.xlu0 %3861
        %3863 = vrot.lane.b32.xlu0 %v3777, 110
        %v3864 = vpop.permute.xlu0 %3863
        %3865 = vrot.lane.b32.xlu0 %v3846, 110
        %v3866 = vpop.permute.xlu0 %3865
        %v3867 = vsel %vm744, %v3864, %v3866
        %v3868 = vsel %vm744, %v3862, %v3864
        %v3869 = vsel %vm744, %v3866, %v3862
        %v3870 = vadd.f32 %v3858, %v3868
        %v3871 = vadd.f32 %v3859, %v3867
        %v3872 = vadd.f32 %v3860, %v3869
        %s3873 = scalar_lea.vmem %s1, 48
        %v3874 = vld [vmem:[%s3873] sm:$0xff]
        %3876 = vset.pattern.permute.xlu0 0
        %3877 = vperm.xlu0 %3876, %v3874
        %v3878 = vpop.permute.xlu0 %3877
        %v3880 = vadd.f32 %v3870, %v3878
        %v3881 = vadd.f32 %v3871, %v3878
        %v3882 = vadd.f32 %v3872, %v3878
        %v3883 = vsel %vm242, %v3880, 0.0
        %v3884 = vsel %vm243, %v3881, 0.0
        %v3885 = vsel %vm244, %v3882, 0.0
        %vm3886 = vcmp.ge.f32.partialorder %v3883, 0.0
        %vm3887 = vcmp.ge.f32.partialorder %v3884, 0.0
        %vm3888 = vcmp.ge.f32.partialorder %v3885, 0.0
        %v3889 = vstv %s3376
        %v3890 = vmul.f32 %v3889, %v3883
        %v3891 = vmul.f32 %v3889, %v3884
        %v3892 = vmul.f32 %v3889, %v3885
        %v3893 = vsel %vm3886, %v3883, %v3890
        %v3894 = vsel %vm3887, %v3884, %v3891
        %v3895 = vsel %vm3888, %v3885, %v3892
        %3896 = vrot.lane.b32.xlu0 %v3893, 1
        %v3897 = vpop.permute.xlu0 %3896
        %3898 = vrot.lane.b32.xlu0 %v3894, 1
        %v3899 = vpop.permute.xlu0 %3898
        %3900 = vrot.lane.b32.xlu0 %v3895, 1
        %v3901 = vpop.permute.xlu0 %3900
        %v3902 = vsel %vm257, %v3899, %v3901
        %v3903 = vsel %vm257, %v3897, %v3899
        %v3904 = vsel %vm257, %v3901, %v3897
        %3905 = vst [vmem:[#allocation2] sm:$0xff] %v3904
        %3906 = vst [vmem:[#allocation2 + $0x8] sm:$0xff] %v3903
        %3907 = vst [vmem:[#allocation2 + $0x10] sm:$0xff] %v3902
        %3908 = vst [vmem:[#allocation2 + $0x18] sm:$0xff] %v3893
        %3909 = vst [vmem:[#allocation2 + $0x20] sm:$0xff] %v3894
        %3910 = vst [vmem:[#allocation2 + $0x28] sm:$0xff] %v3895
        %3911 = vrot.lane.b32.xlu0 %v3893, 127
        %v3912 = vpop.permute.xlu0 %3911
        %3913 = vrot.lane.b32.xlu0 %v3894, 127
        %v3914 = vpop.permute.xlu0 %3913
        %3915 = vrot.lane.b32.xlu0 %v3895, 127
        %v3916 = vpop.permute.xlu0 %3915
        %v3917 = vsel %vm273, %v3914, %v3916
        %v3918 = vsel %vm273, %v3912, %v3914
        %v3919 = vsel %vm273, %v3916, %v3912
        %3920 = vst [vmem:[#allocation2 + $0x30] sm:$0xff] %v3918
        %3921 = vst [vmem:[#allocation2 + $0x38] sm:$0xff] %v3917
        %3922 = vst [vmem:[#allocation2 + $0x40] sm:$0xff] %v3919
        %v3923 = vld [vmem:[#allocation2] sm:$0xff]
        %v3924 = vld [vmem:[#allocation2 + $0x8] sm:$0xff]
        %v3925 = vld [vmem:[#allocation2 + $0x10] sm:$0xff]
        %v3926 = vld [vmem:[#allocation2 + $0x18] sm:$0xff]
        %v3927 = vld [vmem:[#allocation2 + $0x20] sm:$0xff]
        %v3928 = vld [vmem:[#allocation2 + $0x28] sm:$0xff]
        %v3929 = vld [vmem:[#allocation2 + $0x30] sm:$0xff]
        %v3930 = vld [vmem:[#allocation2 + $0x38] sm:$0xff]
        %v3931 = vld [vmem:[#allocation2 + $0x40] sm:$0xff]
        %s3932 = scalar_lea.vmem %s0, 168
        %v3933 = vld [vmem:[%s3932] sm:$0xff]
        %v3934 = vld [vmem:[%s3932 + $0x8] sm:$0xff]
        %v3935 = vld [vmem:[%s3932 + $0x10] sm:$0xff]
        %v3937 = vsel %vm292, %v3933, 0
        %3939 = vmatprep.subr.mxu0 %v3924
        %3940 = vmatpush1.msra.mxu0 %v3923
        %3941 = vmatprep.subr.mxu0 %v3927
        %3942 = vmatpush1.msra.mxu0 %v3926
        %3943 = vmatprep.subr.mxu0 %v3930
        %3944 = vmatpush1.msra.mxu0 %v3929
        %3945 = vmatprep.subr.mxu0 0.0
        %3946 = vmatpush1.msra.mxu0 0.0
        %3947 = vmatprep.subr.mxu0 0.0
        %3948 = vmatpush1.msra.mxu0 0.0
        %3949 = vmatprep.subr.mxu0 0.0
        %3950 = vmatpush1.msra.mxu0 0.0
        %3951 = vmatprep.subr.mxu0 0.0
        %3952 = vmatpush1.msra.mxu0 0.0
        %3953 = vmatprep.subr.mxu0 0.0
        %3954 = vmatpush1.msra.mxu0 0.0
        %3955 = vmatprep.subr.mxu0 0.0
        %3956 = vmatpush1.msra.mxu0 0.0
        %3957 = vmatprep.subr.mxu0 0.0
        %3958 = vmatpush1.msra.mxu0 0.0
        %3959 = vmatprep.subr.mxu0 0.0
        %3960 = vmatpush1.msra.mxu0 0.0
        %3961 = vmatprep.subr.mxu0 0.0
        %3962 = vmatpush1.msra.mxu0 0.0
        %3963 = vmatprep.subr.mxu0 0.0
        %3964 = vmatpush1.msra.mxu0 0.0
        %3965 = vmatprep.subr.mxu0 0.0
        %3966 = vmatpush1.msra.mxu0 0.0
        %3967 = vmatprep.subr.mxu0 0.0
        %3968 = vmatpush1.msra.mxu0 0.0
        %3969 = vmatprep.subr.mxu0 0.0
        %3970 = vmatpush1.msra.mxu0 0.0
        %3971 = vmatprep.subr.mxu0 0.0
        %3972 = vmatpush1.msra.mxu0 0.0
        %3973 = vmatprep.subr.mxu0 0.0
        %3974 = vmatpush1.msra.mxu0 0.0
        %3975 = vmatprep.subr.mxu0 0.0
        %3976 = vmatpush1.msra.mxu0 0.0
        %3977 = vmatprep.subr.mxu0 0.0
        %3978 = vmatpush1.msra.mxu0 0.0
        %3979 = vmatprep.subr.mxu0 0.0
        %3980 = vmatpush1.msra.mxu0 0.0
        %3981 = vmatprep.subr.mxu0 0.0
        %3982 = vmatpush1.msra.mxu0 0.0
        %3983 = vmatprep.subr.mxu0 0.0
        %3984 = vmatpush1.msra.mxu0 0.0
        %3985 = vmatprep.subr.mxu0 0.0
        %3986 = vmatpush1.msra.mxu0 0.0
        %3987 = vmatprep.subr.mxu0 0.0
        %3988 = vmatpush1.msra.mxu0 0.0
        %3989 = vmatprep.subr.mxu0 0.0
        %3990 = vmatpush1.msra.mxu0 0.0
        %3991 = vmatprep.subr.mxu0 0.0
        %3992 = vmatpush1.msra.mxu0 0.0
        %3993 = vmatprep.subr.mxu0 0.0
        %3994 = vmatpush1.msra.mxu0 0.0
        %3995 = vmatprep.subr.mxu0 0.0
        %3996 = vmatpush1.msra.mxu0 0.0
        %3997 = vmatprep.subr.mxu0 0.0
        %3998 = vmatpush1.msra.mxu0 0.0
        %3999 = vmatprep.subr.mxu0 0.0
        %4000 = vmatpush1.msra.mxu0 0.0
        %4001 = vmatprep.subr.mxu0 0.0
        %4002 = vmatpush1.msra.mxu0 0.0
        %4003 = vmatprep.mubr.f32.mxu0 0.0
        %4004 = vmatmul.mubr.f32.gmra.mrb[0].mxu0 %v3937
        %v4005 = vpop.f32.mrb[0].mxu0
        %v4006 = vadd.f32 0.0, %v4005
        %v4007 = vpop.f32.mrb[0].mxu0
        %v4008 = vadd.f32 0.0, %v4007
        %4009 = vdwg.mxu0
        %4010 = vmatprep.subr.mxu0 0.0
        %4011 = vmatpush1.msra.mxu0 %v3925
        %4012 = vmatprep.subr.mxu0 0.0
        %4013 = vmatpush1.msra.mxu0 %v3928
        %4014 = vmatprep.subr.mxu0 0.0
        %4015 = vmatpush1.msra.mxu0 %v3931
        %4016 = vmatprep.subr.mxu0 0.0
        %4017 = vmatpush1.msra.mxu0 0.0
        %4018 = vmatprep.subr.mxu0 0.0
        %4019 = vmatpush1.msra.mxu0 0.0
        %4020 = vmatprep.subr.mxu0 0.0
        %4021 = vmatpush1.msra.mxu0 0.0
        %4022 = vmatprep.subr.mxu0 0.0
        %4023 = vmatpush1.msra.mxu0 0.0
        %4024 = vmatprep.subr.mxu0 0.0
        %4025 = vmatpush1.msra.mxu0 0.0
        %4026 = vmatprep.subr.mxu0 0.0
        %4027 = vmatpush1.msra.mxu0 0.0
        %4028 = vmatprep.subr.mxu0 0.0
        %4029 = vmatpush1.msra.mxu0 0.0
        %4030 = vmatprep.subr.mxu0 0.0
        %4031 = vmatpush1.msra.mxu0 0.0
        %4032 = vmatprep.subr.mxu0 0.0
        %4033 = vmatpush1.msra.mxu0 0.0
        %4034 = vmatprep.subr.mxu0 0.0
        %4035 = vmatpush1.msra.mxu0 0.0
        %4036 = vmatprep.subr.mxu0 0.0
        %4037 = vmatpush1.msra.mxu0 0.0
        %4038 = vmatprep.subr.mxu0 0.0
        %4039 = vmatpush1.msra.mxu0 0.0
        %4040 = vmatprep.subr.mxu0 0.0
        %4041 = vmatpush1.msra.mxu0 0.0
        %4042 = vmatprep.subr.mxu0 0.0
        %4043 = vmatpush1.msra.mxu0 0.0
        %4044 = vmatprep.subr.mxu0 0.0
        %4045 = vmatpush1.msra.mxu0 0.0
        %4046 = vmatprep.subr.mxu0 0.0
        %4047 = vmatpush1.msra.mxu0 0.0
        %4048 = vmatprep.subr.mxu0 0.0
        %4049 = vmatpush1.msra.mxu0 0.0
        %4050 = vmatprep.subr.mxu0 0.0
        %4051 = vmatpush1.msra.mxu0 0.0
        %4052 = vmatprep.subr.mxu0 0.0
        %4053 = vmatpush1.msra.mxu0 0.0
        %4054 = vmatprep.subr.mxu0 0.0
        %4055 = vmatpush1.msra.mxu0 0.0
        %4056 = vmatprep.subr.mxu0 0.0
        %4057 = vmatpush1.msra.mxu0 0.0
        %4058 = vmatprep.subr.mxu0 0.0
        %4059 = vmatpush1.msra.mxu0 0.0
        %4060 = vmatprep.subr.mxu0 0.0
        %4061 = vmatpush1.msra.mxu0 0.0
        %4062 = vmatprep.subr.mxu0 0.0
        %4063 = vmatpush1.msra.mxu0 0.0
        %4064 = vmatprep.subr.mxu0 0.0
        %4065 = vmatpush1.msra.mxu0 0.0
        %4066 = vmatprep.subr.mxu0 0.0
        %4067 = vmatpush1.msra.mxu0 0.0
        %4068 = vmatprep.subr.mxu0 0.0
        %4069 = vmatpush1.msra.mxu0 0.0
        %4070 = vmatprep.subr.mxu0 0.0
        %4071 = vmatpush1.msra.mxu0 0.0
        %4072 = vmatprep.subr.mxu0 0.0
        %4073 = vmatpush1.msra.mxu0 0.0
        %4074 = vmatprep.mubr.f32.mxu0 0.0
        %4075 = vmatmul.mubr.f32.gmra.mrb[0].mxu0 %v3937
        %v4076 = vpop.f32.mrb[0].mxu0
        %v4077 = vadd.f32 0.0, %v4076
        %v4078 = vpop.f32.mrb[0].mxu0
        %4079 = vdwg.mxu0
        %v4081 = vsel %vm292, %v3934, 0
        %4083 = vmatprep.subr.mxu0 %v3924
        %4084 = vmatpush1.msra.mxu0 %v3923
        %4085 = vmatprep.subr.mxu0 %v3927
        %4086 = vmatpush1.msra.mxu0 %v3926
        %4087 = vmatprep.subr.mxu0 %v3930
        %4088 = vmatpush1.msra.mxu0 %v3929
        %4089 = vmatprep.subr.mxu0 0.0
        %4090 = vmatpush1.msra.mxu0 0.0
        %4091 = vmatprep.subr.mxu0 0.0
        %4092 = vmatpush1.msra.mxu0 0.0
        %4093 = vmatprep.subr.mxu0 0.0
        %4094 = vmatpush1.msra.mxu0 0.0
        %4095 = vmatprep.subr.mxu0 0.0
        %4096 = vmatpush1.msra.mxu0 0.0
        %4097 = vmatprep.subr.mxu0 0.0
        %4098 = vmatpush1.msra.mxu0 0.0
        %4099 = vmatprep.subr.mxu0 0.0
        %4100 = vmatpush1.msra.mxu0 0.0
        %4101 = vmatprep.subr.mxu0 0.0
        %4102 = vmatpush1.msra.mxu0 0.0
        %4103 = vmatprep.subr.mxu0 0.0
        %4104 = vmatpush1.msra.mxu0 0.0
        %4105 = vmatprep.subr.mxu0 0.0
        %4106 = vmatpush1.msra.mxu0 0.0
        %4107 = vmatprep.subr.mxu0 0.0
        %4108 = vmatpush1.msra.mxu0 0.0
        %4109 = vmatprep.subr.mxu0 0.0
        %4110 = vmatpush1.msra.mxu0 0.0
        %4111 = vmatprep.subr.mxu0 0.0
        %4112 = vmatpush1.msra.mxu0 0.0
        %4113 = vmatprep.subr.mxu0 0.0
        %4114 = vmatpush1.msra.mxu0 0.0
        %4115 = vmatprep.subr.mxu0 0.0
        %4116 = vmatpush1.msra.mxu0 0.0
        %4117 = vmatprep.subr.mxu0 0.0
        %4118 = vmatpush1.msra.mxu0 0.0
        %4119 = vmatprep.subr.mxu0 0.0
        %4120 = vmatpush1.msra.mxu0 0.0
        %4121 = vmatprep.subr.mxu0 0.0
        %4122 = vmatpush1.msra.mxu0 0.0
        %4123 = vmatprep.subr.mxu0 0.0
        %4124 = vmatpush1.msra.mxu0 0.0
        %4125 = vmatprep.subr.mxu0 0.0
        %4126 = vmatpush1.msra.mxu0 0.0
        %4127 = vmatprep.subr.mxu0 0.0
        %4128 = vmatpush1.msra.mxu0 0.0
        %4129 = vmatprep.subr.mxu0 0.0
        %4130 = vmatpush1.msra.mxu0 0.0
        %4131 = vmatprep.subr.mxu0 0.0
        %4132 = vmatpush1.msra.mxu0 0.0
        %4133 = vmatprep.subr.mxu0 0.0
        %4134 = vmatpush1.msra.mxu0 0.0
        %4135 = vmatprep.subr.mxu0 0.0
        %4136 = vmatpush1.msra.mxu0 0.0
        %4137 = vmatprep.subr.mxu0 0.0
        %4138 = vmatpush1.msra.mxu0 0.0
        %4139 = vmatprep.subr.mxu0 0.0
        %4140 = vmatpush1.msra.mxu0 0.0
        %4141 = vmatprep.subr.mxu0 0.0
        %4142 = vmatpush1.msra.mxu0 0.0
        %4143 = vmatprep.subr.mxu0 0.0
        %4144 = vmatpush1.msra.mxu0 0.0
        %4145 = vmatprep.subr.mxu0 0.0
        %4146 = vmatpush1.msra.mxu0 0.0
        %4147 = vmatprep.mubr.f32.mxu0 0.0
        %4148 = vmatmul.mubr.f32.gmra.mrb[0].mxu0 %v4081
        %v4149 = vpop.f32.mrb[0].mxu0
        %v4150 = vadd.f32 0.0, %v4149
        %v4151 = vpop.f32.mrb[0].mxu0
        %v4152 = vadd.f32 0.0, %v4151
        %4153 = vdwg.mxu0
        %4154 = vmatprep.subr.mxu0 0.0
        %4155 = vmatpush1.msra.mxu0 %v3925
        %4156 = vmatprep.subr.mxu0 0.0
        %4157 = vmatpush1.msra.mxu0 %v3928
        %4158 = vmatprep.subr.mxu0 0.0
        %4159 = vmatpush1.msra.mxu0 %v3931
        %4160 = vmatprep.subr.mxu0 0.0
        %4161 = vmatpush1.msra.mxu0 0.0
        %4162 = vmatprep.subr.mxu0 0.0
        %4163 = vmatpush1.msra.mxu0 0.0
        %4164 = vmatprep.subr.mxu0 0.0
        %4165 = vmatpush1.msra.mxu0 0.0
        %4166 = vmatprep.subr.mxu0 0.0
        %4167 = vmatpush1.msra.mxu0 0.0
        %4168 = vmatprep.subr.mxu0 0.0
        %4169 = vmatpush1.msra.mxu0 0.0
        %4170 = vmatprep.subr.mxu0 0.0
        %4171 = vmatpush1.msra.mxu0 0.0
        %4172 = vmatprep.subr.mxu0 0.0
        %4173 = vmatpush1.msra.mxu0 0.0
        %4174 = vmatprep.subr.mxu0 0.0
        %4175 = vmatpush1.msra.mxu0 0.0
        %4176 = vmatprep.subr.mxu0 0.0
        %4177 = vmatpush1.msra.mxu0 0.0
        %4178 = vmatprep.subr.mxu0 0.0
        %4179 = vmatpush1.msra.mxu0 0.0
        %4180 = vmatprep.subr.mxu0 0.0
        %4181 = vmatpush1.msra.mxu0 0.0
        %4182 = vmatprep.subr.mxu0 0.0
        %4183 = vmatpush1.msra.mxu0 0.0
        %4184 = vmatprep.subr.mxu0 0.0
        %4185 = vmatpush1.msra.mxu0 0.0
        %4186 = vmatprep.subr.mxu0 0.0
        %4187 = vmatpush1.msra.mxu0 0.0
        %4188 = vmatprep.subr.mxu0 0.0
        %4189 = vmatpush1.msra.mxu0 0.0
        %4190 = vmatprep.subr.mxu0 0.0
        %4191 = vmatpush1.msra.mxu0 0.0
        %4192 = vmatprep.subr.mxu0 0.0
        %4193 = vmatpush1.msra.mxu0 0.0
        %4194 = vmatprep.subr.mxu0 0.0
        %4195 = vmatpush1.msra.mxu0 0.0
        %4196 = vmatprep.subr.mxu0 0.0
        %4197 = vmatpush1.msra.mxu0 0.0
        %4198 = vmatprep.subr.mxu0 0.0
        %4199 = vmatpush1.msra.mxu0 0.0
        %4200 = vmatprep.subr.mxu0 0.0
        %4201 = vmatpush1.msra.mxu0 0.0
        %4202 = vmatprep.subr.mxu0 0.0
        %4203 = vmatpush1.msra.mxu0 0.0
        %4204 = vmatprep.subr.mxu0 0.0
        %4205 = vmatpush1.msra.mxu0 0.0
        %4206 = vmatprep.subr.mxu0 0.0
        %4207 = vmatpush1.msra.mxu0 0.0
        %4208 = vmatprep.subr.mxu0 0.0
        %4209 = vmatpush1.msra.mxu0 0.0
        %4210 = vmatprep.subr.mxu0 0.0
        %4211 = vmatpush1.msra.mxu0 0.0
        %4212 = vmatprep.subr.mxu0 0.0
        %4213 = vmatpush1.msra.mxu0 0.0
        %4214 = vmatprep.subr.mxu0 0.0
        %4215 = vmatpush1.msra.mxu0 0.0
        %4216 = vmatprep.subr.mxu0 0.0
        %4217 = vmatpush1.msra.mxu0 0.0
        %4218 = vmatprep.mubr.f32.mxu0 0.0
        %4219 = vmatmul.mubr.f32.gmra.mrb[0].mxu0 %v4081
        %v4220 = vpop.f32.mrb[0].mxu0
        %v4221 = vadd.f32 0.0, %v4220
        %v4222 = vpop.f32.mrb[0].mxu0
        %4223 = vdwg.mxu0
        %v4225 = vsel %vm292, %v3935, 0
        %4227 = vmatprep.subr.mxu0 %v3924
        %4228 = vmatpush1.msra.mxu0 %v3923
        %4229 = vmatprep.subr.mxu0 %v3927
        %4230 = vmatpush1.msra.mxu0 %v3926
        %4231 = vmatprep.subr.mxu0 %v3930
        %4232 = vmatpush1.msra.mxu0 %v3929
        %4233 = vmatprep.subr.mxu0 0.0
        %4234 = vmatpush1.msra.mxu0 0.0
        %4235 = vmatprep.subr.mxu0 0.0
        %4236 = vmatpush1.msra.mxu0 0.0
        %4237 = vmatprep.subr.mxu0 0.0
        %4238 = vmatpush1.msra.mxu0 0.0
        %4239 = vmatprep.subr.mxu0 0.0
        %4240 = vmatpush1.msra.mxu0 0.0
        %4241 = vmatprep.subr.mxu0 0.0
        %4242 = vmatpush1.msra.mxu0 0.0
        %4243 = vmatprep.subr.mxu0 0.0
        %4244 = vmatpush1.msra.mxu0 0.0
        %4245 = vmatprep.subr.mxu0 0.0
        %4246 = vmatpush1.msra.mxu0 0.0
        %4247 = vmatprep.subr.mxu0 0.0
        %4248 = vmatpush1.msra.mxu0 0.0
        %4249 = vmatprep.subr.mxu0 0.0
        %4250 = vmatpush1.msra.mxu0 0.0
        %4251 = vmatprep.subr.mxu0 0.0
        %4252 = vmatpush1.msra.mxu0 0.0
        %4253 = vmatprep.subr.mxu0 0.0
        %4254 = vmatpush1.msra.mxu0 0.0
        %4255 = vmatprep.subr.mxu0 0.0
        %4256 = vmatpush1.msra.mxu0 0.0
        %4257 = vmatprep.subr.mxu0 0.0
        %4258 = vmatpush1.msra.mxu0 0.0
        %4259 = vmatprep.subr.mxu0 0.0
        %4260 = vmatpush1.msra.mxu0 0.0
        %4261 = vmatprep.subr.mxu0 0.0
        %4262 = vmatpush1.msra.mxu0 0.0
        %4263 = vmatprep.subr.mxu0 0.0
        %4264 = vmatpush1.msra.mxu0 0.0
        %4265 = vmatprep.subr.mxu0 0.0
        %4266 = vmatpush1.msra.mxu0 0.0
        %4267 = vmatprep.subr.mxu0 0.0
        %4268 = vmatpush1.msra.mxu0 0.0
        %4269 = vmatprep.subr.mxu0 0.0
        %4270 = vmatpush1.msra.mxu0 0.0
        %4271 = vmatprep.subr.mxu0 0.0
        %4272 = vmatpush1.msra.mxu0 0.0
        %4273 = vmatprep.subr.mxu0 0.0
        %4274 = vmatpush1.msra.mxu0 0.0
        %4275 = vmatprep.subr.mxu0 0.0
        %4276 = vmatpush1.msra.mxu0 0.0
        %4277 = vmatprep.subr.mxu0 0.0
        %4278 = vmatpush1.msra.mxu0 0.0
        %4279 = vmatprep.subr.mxu0 0.0
        %4280 = vmatpush1.msra.mxu0 0.0
        %4281 = vmatprep.subr.mxu0 0.0
        %4282 = vmatpush1.msra.mxu0 0.0
        %4283 = vmatprep.subr.mxu0 0.0
        %4284 = vmatpush1.msra.mxu0 0.0
        %4285 = vmatprep.subr.mxu0 0.0
        %4286 = vmatpush1.msra.mxu0 0.0
        %4287 = vmatprep.subr.mxu0 0.0
        %4288 = vmatpush1.msra.mxu0 0.0
        %4289 = vmatprep.subr.mxu0 0.0
        %4290 = vmatpush1.msra.mxu0 0.0
        %4291 = vmatprep.mubr.f32.mxu0 0.0
        %4292 = vmatmul.mubr.f32.gmra.mrb[0].mxu0 %v4225
        %v4293 = vpop.f32.mrb[0].mxu0
        %v4294 = vadd.f32 0.0, %v4293
        %v4295 = vpop.f32.mrb[0].mxu0
        %v4296 = vadd.f32 0.0, %v4295
        %4297 = vdwg.mxu0
        %4298 = vmatprep.subr.mxu0 0.0
        %4299 = vmatpush1.msra.mxu0 %v3925
        %4300 = vmatprep.subr.mxu0 0.0
        %4301 = vmatpush1.msra.mxu0 %v3928
        %4302 = vmatprep.subr.mxu0 0.0
        %4303 = vmatpush1.msra.mxu0 %v3931
        %4304 = vmatprep.subr.mxu0 0.0
        %4305 = vmatpush1.msra.mxu0 0.0
        %4306 = vmatprep.subr.mxu0 0.0
        %4307 = vmatpush1.msra.mxu0 0.0
        %4308 = vmatprep.subr.mxu0 0.0
        %4309 = vmatpush1.msra.mxu0 0.0
        %4310 = vmatprep.subr.mxu0 0.0
        %4311 = vmatpush1.msra.mxu0 0.0
        %4312 = vmatprep.subr.mxu0 0.0
        %4313 = vmatpush1.msra.mxu0 0.0
        %4314 = vmatprep.subr.mxu0 0.0
        %4315 = vmatpush1.msra.mxu0 0.0
        %4316 = vmatprep.subr.mxu0 0.0
        %4317 = vmatpush1.msra.mxu0 0.0
        %4318 = vmatprep.subr.mxu0 0.0
        %4319 = vmatpush1.msra.mxu0 0.0
        %4320 = vmatprep.subr.mxu0 0.0
        %4321 = vmatpush1.msra.mxu0 0.0
        %4322 = vmatprep.subr.mxu0 0.0
        %4323 = vmatpush1.msra.mxu0 0.0
        %4324 = vmatprep.subr.mxu0 0.0
        %4325 = vmatpush1.msra.mxu0 0.0
        %4326 = vmatprep.subr.mxu0 0.0
        %4327 = vmatpush1.msra.mxu0 0.0
        %4328 = vmatprep.subr.mxu0 0.0
        %4329 = vmatpush1.msra.mxu0 0.0
        %4330 = vmatprep.subr.mxu0 0.0
        %4331 = vmatpush1.msra.mxu0 0.0
        %4332 = vmatprep.subr.mxu0 0.0
        %4333 = vmatpush1.msra.mxu0 0.0
        %4334 = vmatprep.subr.mxu0 0.0
        %4335 = vmatpush1.msra.mxu0 0.0
        %4336 = vmatprep.subr.mxu0 0.0
        %4337 = vmatpush1.msra.mxu0 0.0
        %4338 = vmatprep.subr.mxu0 0.0
        %4339 = vmatpush1.msra.mxu0 0.0
        %4340 = vmatprep.subr.mxu0 0.0
        %4341 = vmatpush1.msra.mxu0 0.0
        %4342 = vmatprep.subr.mxu0 0.0
        %4343 = vmatpush1.msra.mxu0 0.0
        %4344 = vmatprep.subr.mxu0 0.0
        %4345 = vmatpush1.msra.mxu0 0.0
        %4346 = vmatprep.subr.mxu0 0.0
        %4347 = vmatpush1.msra.mxu0 0.0
        %4348 = vmatprep.subr.mxu0 0.0
        %4349 = vmatpush1.msra.mxu0 0.0
        %4350 = vmatprep.subr.mxu0 0.0
        %4351 = vmatpush1.msra.mxu0 0.0
        %4352 = vmatprep.subr.mxu0 0.0
        %4353 = vmatpush1.msra.mxu0 0.0
        %4354 = vmatprep.subr.mxu0 0.0
        %4355 = vmatpush1.msra.mxu0 0.0
        %4356 = vmatprep.subr.mxu0 0.0
        %4357 = vmatpush1.msra.mxu0 0.0
        %4358 = vmatprep.subr.mxu0 0.0
        %4359 = vmatpush1.msra.mxu0 0.0
        %4360 = vmatprep.subr.mxu0 0.0
        %4361 = vmatpush1.msra.mxu0 0.0
        %4362 = vmatprep.mubr.f32.mxu0 0.0
        %4363 = vmatmul.mubr.f32.gmra.mrb[0].mxu0 %v4225
        %v4364 = vpop.f32.mrb[0].mxu0
        %v4365 = vadd.f32 0.0, %v4364
        %v4366 = vpop.f32.mrb[0].mxu0
        %4367 = vdwg.mxu0
        %4368 = vrot.lane.b32.xlu0 %v4006, 18
        %v4369 = vpop.permute.xlu0 %4368
        %4370 = vrot.lane.b32.xlu0 %v4008, 18
        %v4371 = vpop.permute.xlu0 %4370
        %4372 = vrot.lane.b32.xlu0 %v4077, 18
        %v4373 = vpop.permute.xlu0 %4372
        %v4374 = vsel %vm731, %v4371, %v4373
        %v4375 = vsel %vm731, %v4369, %v4371
        %v4376 = vsel %vm731, %v4373, %v4369
        %v4377 = vadd.f32 %v4376, %v4150
        %v4378 = vadd.f32 %v4375, %v4152
        %v4379 = vadd.f32 %v4374, %v4221
        %4380 = vrot.lane.b32.xlu0 %v4294, 110
        %v4381 = vpop.permute.xlu0 %4380
        %4382 = vrot.lane.b32.xlu0 %v4296, 110
        %v4383 = vpop.permute.xlu0 %4382
        %4384 = vrot.lane.b32.xlu0 %v4365, 110
        %v4385 = vpop.permute.xlu0 %4384
        %v4386 = vsel %vm744, %v4383, %v4385
        %v4387 = vsel %vm744, %v4381, %v4383
        %v4388 = vsel %vm744, %v4385, %v4381
        %v4389 = vadd.f32 %v4377, %v4387
        %v4390 = vadd.f32 %v4378, %v4386
        %v4391 = vadd.f32 %v4379, %v4388
        %s4392 = scalar_lea.vmem %s1, 56
        %v4393 = vld [vmem:[%s4392] sm:$0xff]
        %4395 = vset.pattern.permute.xlu0 0
        %4396 = vperm.xlu0 %4395, %v4393
        %v4397 = vpop.permute.xlu0 %4396
        %v4399 = vadd.f32 %v4389, %v4397
        %v4400 = vadd.f32 %v4390, %v4397
        %v4401 = vadd.f32 %v4391, %v4397
        %v4402 = vsel %vm242, %v4399, 0.0
        %v4403 = vsel %vm243, %v4400, 0.0
        %v4404 = vsel %vm244, %v4401, 0.0
        %v4405 = vadd.f32 %v4402, %v3373
        %v4406 = vadd.f32 %v4403, %v3374
        %v4407 = vadd.f32 %v4404, %v3375
        %vm4408 = vcmp.ge.f32.partialorder %v4405, 0.0
        %vm4409 = vcmp.ge.f32.partialorder %v4406, 0.0
        %vm4410 = vcmp.ge.f32.partialorder %v4407, 0.0
        %v4411 = vmul.f32 %v3889, %v4405
        %v4412 = vmul.f32 %v3889, %v4406
        %v4413 = vmul.f32 %v3889, %v4407
        %v4414 = vsel %vm4408, %v4405, %v4411
        %v4415 = vsel %vm4409, %v4406, %v4412
        %v4416 = vsel %vm4410, %v4407, %v4413
        %s4417 = sld [smem:[#allocation3 + $0x4]]
        %4418 = vrot.lane.b32.xlu0 %v4414, 1
        %v4419 = vpop.permute.xlu0 %4418
        %4420 = vrot.lane.b32.xlu0 %v4415, 1
        %v4421 = vpop.permute.xlu0 %4420
        %4422 = vrot.lane.b32.xlu0 %v4416, 1
        %v4423 = vpop.permute.xlu0 %4422
        %v4424 = vsel %vm257, %v4421, %v4423
        %v4425 = vsel %vm257, %v4419, %v4421
        %v4426 = vsel %vm257, %v4423, %v4419
        %4427 = vst [vmem:[#allocation2] sm:$0xff] %v4426
        %4428 = vst [vmem:[#allocation2 + $0x8] sm:$0xff] %v4425
        %4429 = vst [vmem:[#allocation2 + $0x10] sm:$0xff] %v4424
        %4430 = vst [vmem:[#allocation2 + $0x18] sm:$0xff] %v4414
        %4431 = vst [vmem:[#allocation2 + $0x20] sm:$0xff] %v4415
        %4432 = vst [vmem:[#allocation2 + $0x28] sm:$0xff] %v4416
        %4433 = vrot.lane.b32.xlu0 %v4414, 127
        %v4434 = vpop.permute.xlu0 %4433
        %4435 = vrot.lane.b32.xlu0 %v4415, 127
        %v4436 = vpop.permute.xlu0 %4435
        %4437 = vrot.lane.b32.xlu0 %v4416, 127
        %v4438 = vpop.permute.xlu0 %4437
        %v4439 = vsel %vm273, %v4436, %v4438
        %v4440 = vsel %vm273, %v4434, %v4436
        %v4441 = vsel %vm273, %v4438, %v4434
        %4442 = vst [vmem:[#allocation2 + $0x30] sm:$0xff] %v4440
        %4443 = vst [vmem:[#allocation2 + $0x38] sm:$0xff] %v4439
        %4444 = vst [vmem:[#allocation2 + $0x40] sm:$0xff] %v4441
        %v4445 = vld [vmem:[#allocation2] sm:$0xff]
        %v4446 = vld [vmem:[#allocation2 + $0x8] sm:$0xff]
        %v4447 = vld [vmem:[#allocation2 + $0x10] sm:$0xff]
        %v4448 = vld [vmem:[#allocation2 + $0x18] sm:$0xff]
        %v4449 = vld [vmem:[#allocation2 + $0x20] sm:$0xff]
        %v4450 = vld [vmem:[#allocation2 + $0x28] sm:$0xff]
        %v4451 = vld [vmem:[#allocation2 + $0x30] sm:$0xff]
        %v4452 = vld [vmem:[#allocation2 + $0x38] sm:$0xff]
        %v4453 = vld [vmem:[#allocation2 + $0x40] sm:$0xff]
        %s4454 = scalar_lea.vmem %s0, 192
        %v4455 = vld [vmem:[%s4454] sm:$0xff]
        %v4456 = vld [vmem:[%s4454 + $0x8] sm:$0xff]
        %v4457 = vld [vmem:[%s4454 + $0x10] sm:$0xff]
        %v4459 = vsel %vm292, %v4455, 0
        %4461 = vmatprep.subr.mxu0 %v4446
        %4462 = vmatpush1.msra.mxu0 %v4445
        %4463 = vmatprep.subr.mxu0 %v4449
        %4464 = vmatpush1.msra.mxu0 %v4448
        %4465 = vmatprep.subr.mxu0 %v4452
        %4466 = vmatpush1.msra.mxu0 %v4451
        %4467 = vmatprep.subr.mxu0 0.0
        %4468 = vmatpush1.msra.mxu0 0.0
        %4469 = vmatprep.subr.mxu0 0.0
        %4470 = vmatpush1.msra.mxu0 0.0
        %4471 = vmatprep.subr.mxu0 0.0
        %4472 = vmatpush1.msra.mxu0 0.0
        %4473 = vmatprep.subr.mxu0 0.0
        %4474 = vmatpush1.msra.mxu0 0.0
        %4475 = vmatprep.subr.mxu0 0.0
        %4476 = vmatpush1.msra.mxu0 0.0
        %4477 = vmatprep.subr.mxu0 0.0
        %4478 = vmatpush1.msra.mxu0 0.0
        %4479 = vmatprep.subr.mxu0 0.0
        %4480 = vmatpush1.msra.mxu0 0.0
        %4481 = vmatprep.subr.mxu0 0.0
        %4482 = vmatpush1.msra.mxu0 0.0
        %4483 = vmatprep.subr.mxu0 0.0
        %4484 = vmatpush1.msra.mxu0 0.0
        %4485 = vmatprep.subr.mxu0 0.0
        %4486 = vmatpush1.msra.mxu0 0.0
        %4487 = vmatprep.subr.mxu0 0.0
        %4488 = vmatpush1.msra.mxu0 0.0
        %4489 = vmatprep.subr.mxu0 0.0
        %4490 = vmatpush1.msra.mxu0 0.0
        %4491 = vmatprep.subr.mxu0 0.0
        %4492 = vmatpush1.msra.mxu0 0.0
        %4493 = vmatprep.subr.mxu0 0.0
        %4494 = vmatpush1.msra.mxu0 0.0
        %4495 = vmatprep.subr.mxu0 0.0
        %4496 = vmatpush1.msra.mxu0 0.0
        %4497 = vmatprep.subr.mxu0 0.0
        %4498 = vmatpush1.msra.mxu0 0.0
        %4499 = vmatprep.subr.mxu0 0.0
        %4500 = vmatpush1.msra.mxu0 0.0
        %4501 = vmatprep.subr.mxu0 0.0
        %4502 = vmatpush1.msra.mxu0 0.0
        %4503 = vmatprep.subr.mxu0 0.0
        %4504 = vmatpush1.msra.mxu0 0.0
        %4505 = vmatprep.subr.mxu0 0.0
        %4506 = vmatpush1.msra.mxu0 0.0
        %4507 = vmatprep.subr.mxu0 0.0
        %4508 = vmatpush1.msra.mxu0 0.0
        %4509 = vmatprep.subr.mxu0 0.0
        %4510 = vmatpush1.msra.mxu0 0.0
        %4511 = vmatprep.subr.mxu0 0.0
        %4512 = vmatpush1.msra.mxu0 0.0
        %4513 = vmatprep.subr.mxu0 0.0
        %4514 = vmatpush1.msra.mxu0 0.0
        %4515 = vmatprep.subr.mxu0 0.0
        %4516 = vmatpush1.msra.mxu0 0.0
        %4517 = vmatprep.subr.mxu0 0.0
        %4518 = vmatpush1.msra.mxu0 0.0
        %4519 = vmatprep.subr.mxu0 0.0
        %4520 = vmatpush1.msra.mxu0 0.0
        %4521 = vmatprep.subr.mxu0 0.0
        %4522 = vmatpush1.msra.mxu0 0.0
        %4523 = vmatprep.subr.mxu0 0.0
        %4524 = vmatpush1.msra.mxu0 0.0
        %4525 = vmatprep.mubr.f32.mxu0 0.0
        %4526 = vmatmul.mubr.f32.gmra.mrb[0].mxu0 %v4459
        %v4527 = vpop.f32.mrb[0].mxu0
        %v4528 = vadd.f32 0.0, %v4527
        %v4529 = vpop.f32.mrb[0].mxu0
        %v4530 = vadd.f32 0.0, %v4529
        %4531 = vdwg.mxu0
        %4532 = vmatprep.subr.mxu0 0.0
        %4533 = vmatpush1.msra.mxu0 %v4447
        %4534 = vmatprep.subr.mxu0 0.0
        %4535 = vmatpush1.msra.mxu0 %v4450
        %4536 = vmatprep.subr.mxu0 0.0
        %4537 = vmatpush1.msra.mxu0 %v4453
        %4538 = vmatprep.subr.mxu0 0.0
        %4539 = vmatpush1.msra.mxu0 0.0
        %4540 = vmatprep.subr.mxu0 0.0
        %4541 = vmatpush1.msra.mxu0 0.0
        %4542 = vmatprep.subr.mxu0 0.0
        %4543 = vmatpush1.msra.mxu0 0.0
        %4544 = vmatprep.subr.mxu0 0.0
        %4545 = vmatpush1.msra.mxu0 0.0
        %4546 = vmatprep.subr.mxu0 0.0
        %4547 = vmatpush1.msra.mxu0 0.0
        %4548 = vmatprep.subr.mxu0 0.0
        %4549 = vmatpush1.msra.mxu0 0.0
        %4550 = vmatprep.subr.mxu0 0.0
        %4551 = vmatpush1.msra.mxu0 0.0
        %4552 = vmatprep.subr.mxu0 0.0
        %4553 = vmatpush1.msra.mxu0 0.0
        %4554 = vmatprep.subr.mxu0 0.0
        %4555 = vmatpush1.msra.mxu0 0.0
        %4556 = vmatprep.subr.mxu0 0.0
        %4557 = vmatpush1.msra.mxu0 0.0
        %4558 = vmatprep.subr.mxu0 0.0
        %4559 = vmatpush1.msra.mxu0 0.0
        %4560 = vmatprep.subr.mxu0 0.0
        %4561 = vmatpush1.msra.mxu0 0.0
        %4562 = vmatprep.subr.mxu0 0.0
        %4563 = vmatpush1.msra.mxu0 0.0
        %4564 = vmatprep.subr.mxu0 0.0
        %4565 = vmatpush1.msra.mxu0 0.0
        %4566 = vmatprep.subr.mxu0 0.0
        %4567 = vmatpush1.msra.mxu0 0.0
        %4568 = vmatprep.subr.mxu0 0.0
        %4569 = vmatpush1.msra.mxu0 0.0
        %4570 = vmatprep.subr.mxu0 0.0
        %4571 = vmatpush1.msra.mxu0 0.0
        %4572 = vmatprep.subr.mxu0 0.0
        %4573 = vmatpush1.msra.mxu0 0.0
        %4574 = vmatprep.subr.mxu0 0.0
        %4575 = vmatpush1.msra.mxu0 0.0
        %4576 = vmatprep.subr.mxu0 0.0
        %4577 = vmatpush1.msra.mxu0 0.0
        %4578 = vmatprep.subr.mxu0 0.0
        %4579 = vmatpush1.msra.mxu0 0.0
        %4580 = vmatprep.subr.mxu0 0.0
        %4581 = vmatpush1.msra.mxu0 0.0
        %4582 = vmatprep.subr.mxu0 0.0
        %4583 = vmatpush1.msra.mxu0 0.0
        %4584 = vmatprep.subr.mxu0 0.0
        %4585 = vmatpush1.msra.mxu0 0.0
        %4586 = vmatprep.subr.mxu0 0.0
        %4587 = vmatpush1.msra.mxu0 0.0
        %4588 = vmatprep.subr.mxu0 0.0
        %4589 = vmatpush1.msra.mxu0 0.0
        %4590 = vmatprep.subr.mxu0 0.0
        %4591 = vmatpush1.msra.mxu0 0.0
        %4592 = vmatprep.subr.mxu0 0.0
        %4593 = vmatpush1.msra.mxu0 0.0
        %4594 = vmatprep.subr.mxu0 0.0
        %4595 = vmatpush1.msra.mxu0 0.0
        %4596 = vmatprep.mubr.f32.mxu0 0.0
        %4597 = vmatmul.mubr.f32.gmra.mrb[0].mxu0 %v4459
        %v4598 = vpop.f32.mrb[0].mxu0
        %v4599 = vadd.f32 0.0, %v4598
        %v4600 = vpop.f32.mrb[0].mxu0
        %4601 = vdwg.mxu0
        %v4603 = vsel %vm292, %v4456, 0
        %4605 = vmatprep.subr.mxu0 %v4446
        %4606 = vmatpush1.msra.mxu0 %v4445
        %4607 = vmatprep.subr.mxu0 %v4449
        %4608 = vmatpush1.msra.mxu0 %v4448
        %4609 = vmatprep.subr.mxu0 %v4452
        %4610 = vmatpush1.msra.mxu0 %v4451
        %4611 = vmatprep.subr.mxu0 0.0
        %4612 = vmatpush1.msra.mxu0 0.0
        %4613 = vmatprep.subr.mxu0 0.0
        %4614 = vmatpush1.msra.mxu0 0.0
        %4615 = vmatprep.subr.mxu0 0.0
        %4616 = vmatpush1.msra.mxu0 0.0
        %4617 = vmatprep.subr.mxu0 0.0
        %4618 = vmatpush1.msra.mxu0 0.0
        %4619 = vmatprep.subr.mxu0 0.0
        %4620 = vmatpush1.msra.mxu0 0.0
        %4621 = vmatprep.subr.mxu0 0.0
        %4622 = vmatpush1.msra.mxu0 0.0
        %4623 = vmatprep.subr.mxu0 0.0
        %4624 = vmatpush1.msra.mxu0 0.0
        %4625 = vmatprep.subr.mxu0 0.0
        %4626 = vmatpush1.msra.mxu0 0.0
        %4627 = vmatprep.subr.mxu0 0.0
        %4628 = vmatpush1.msra.mxu0 0.0
        %4629 = vmatprep.subr.mxu0 0.0
        %4630 = vmatpush1.msra.mxu0 0.0
        %4631 = vmatprep.subr.mxu0 0.0
        %4632 = vmatpush1.msra.mxu0 0.0
        %4633 = vmatprep.subr.mxu0 0.0
        %4634 = vmatpush1.msra.mxu0 0.0
        %4635 = vmatprep.subr.mxu0 0.0
        %4636 = vmatpush1.msra.mxu0 0.0
        %4637 = vmatprep.subr.mxu0 0.0
        %4638 = vmatpush1.msra.mxu0 0.0
        %4639 = vmatprep.subr.mxu0 0.0
        %4640 = vmatpush1.msra.mxu0 0.0
        %4641 = vmatprep.subr.mxu0 0.0
        %4642 = vmatpush1.msra.mxu0 0.0
        %4643 = vmatprep.subr.mxu0 0.0
        %4644 = vmatpush1.msra.mxu0 0.0
        %4645 = vmatprep.subr.mxu0 0.0
        %4646 = vmatpush1.msra.mxu0 0.0
        %4647 = vmatprep.subr.mxu0 0.0
        %4648 = vmatpush1.msra.mxu0 0.0
        %4649 = vmatprep.subr.mxu0 0.0
        %4650 = vmatpush1.msra.mxu0 0.0
        %4651 = vmatprep.subr.mxu0 0.0
        %4652 = vmatpush1.msra.mxu0 0.0
        %4653 = vmatprep.subr.mxu0 0.0
        %4654 = vmatpush1.msra.mxu0 0.0
        %4655 = vmatprep.subr.mxu0 0.0
        %4656 = vmatpush1.msra.mxu0 0.0
        %4657 = vmatprep.subr.mxu0 0.0
        %4658 = vmatpush1.msra.mxu0 0.0
        %4659 = vmatprep.subr.mxu0 0.0
        %4660 = vmatpush1.msra.mxu0 0.0
        %4661 = vmatprep.subr.mxu0 0.0
        %4662 = vmatpush1.msra.mxu0 0.0
        %4663 = vmatprep.subr.mxu0 0.0
        %4664 = vmatpush1.msra.mxu0 0.0
        %4665 = vmatprep.subr.mxu0 0.0
        %4666 = vmatpush1.msra.mxu0 0.0
        %4667 = vmatprep.subr.mxu0 0.0
        %4668 = vmatpush1.msra.mxu0 0.0
        %4669 = vmatprep.mubr.f32.mxu0 0.0
        %4670 = vmatmul.mubr.f32.gmra.mrb[0].mxu0 %v4603
        %v4671 = vpop.f32.mrb[0].mxu0
        %v4672 = vadd.f32 0.0, %v4671
        %v4673 = vpop.f32.mrb[0].mxu0
        %v4674 = vadd.f32 0.0, %v4673
        %4675 = vdwg.mxu0
        %4676 = vmatprep.subr.mxu0 0.0
        %4677 = vmatpush1.msra.mxu0 %v4447
        %4678 = vmatprep.subr.mxu0 0.0
        %4679 = vmatpush1.msra.mxu0 %v4450
        %4680 = vmatprep.subr.mxu0 0.0
        %4681 = vmatpush1.msra.mxu0 %v4453
        %4682 = vmatprep.subr.mxu0 0.0
        %4683 = vmatpush1.msra.mxu0 0.0
        %4684 = vmatprep.subr.mxu0 0.0
        %4685 = vmatpush1.msra.mxu0 0.0
        %4686 = vmatprep.subr.mxu0 0.0
        %4687 = vmatpush1.msra.mxu0 0.0
        %4688 = vmatprep.subr.mxu0 0.0
        %4689 = vmatpush1.msra.mxu0 0.0
        %4690 = vmatprep.subr.mxu0 0.0
        %4691 = vmatpush1.msra.mxu0 0.0
        %4692 = vmatprep.subr.mxu0 0.0
        %4693 = vmatpush1.msra.mxu0 0.0
        %4694 = vmatprep.subr.mxu0 0.0
        %4695 = vmatpush1.msra.mxu0 0.0
        %4696 = vmatprep.subr.mxu0 0.0
        %4697 = vmatpush1.msra.mxu0 0.0
        %4698 = vmatprep.subr.mxu0 0.0
        %4699 = vmatpush1.msra.mxu0 0.0
        %4700 = vmatprep.subr.mxu0 0.0
        %4701 = vmatpush1.msra.mxu0 0.0
        %4702 = vmatprep.subr.mxu0 0.0
        %4703 = vmatpush1.msra.mxu0 0.0
        %4704 = vmatprep.subr.mxu0 0.0
        %4705 = vmatpush1.msra.mxu0 0.0
        %4706 = vmatprep.subr.mxu0 0.0
        %4707 = vmatpush1.msra.mxu0 0.0
        %4708 = vmatprep.subr.mxu0 0.0
        %4709 = vmatpush1.msra.mxu0 0.0
        %4710 = vmatprep.subr.mxu0 0.0
        %4711 = vmatpush1.msra.mxu0 0.0
        %4712 = vmatprep.subr.mxu0 0.0
        %4713 = vmatpush1.msra.mxu0 0.0
        %4714 = vmatprep.subr.mxu0 0.0
        %4715 = vmatpush1.msra.mxu0 0.0
        %4716 = vmatprep.subr.mxu0 0.0
        %4717 = vmatpush1.msra.mxu0 0.0
        %4718 = vmatprep.subr.mxu0 0.0
        %4719 = vmatpush1.msra.mxu0 0.0
        %4720 = vmatprep.subr.mxu0 0.0
        %4721 = vmatpush1.msra.mxu0 0.0
        %4722 = vmatprep.subr.mxu0 0.0
        %4723 = vmatpush1.msra.mxu0 0.0
        %4724 = vmatprep.subr.mxu0 0.0
        %4725 = vmatpush1.msra.mxu0 0.0
        %4726 = vmatprep.subr.mxu0 0.0
        %4727 = vmatpush1.msra.mxu0 0.0
        %4728 = vmatprep.subr.mxu0 0.0
        %4729 = vmatpush1.msra.mxu0 0.0
        %4730 = vmatprep.subr.mxu0 0.0
        %4731 = vmatpush1.msra.mxu0 0.0
        %4732 = vmatprep.subr.mxu0 0.0
        %4733 = vmatpush1.msra.mxu0 0.0
        %4734 = vmatprep.subr.mxu0 0.0
        %4735 = vmatpush1.msra.mxu0 0.0
        %4736 = vmatprep.subr.mxu0 0.0
        %4737 = vmatpush1.msra.mxu0 0.0
        %4738 = vmatprep.subr.mxu0 0.0
        %4739 = vmatpush1.msra.mxu0 0.0
        %4740 = vmatprep.mubr.f32.mxu0 0.0
        %4741 = vmatmul.mubr.f32.gmra.mrb[0].mxu0 %v4603
        %v4742 = vpop.f32.mrb[0].mxu0
        %v4743 = vadd.f32 0.0, %v4742
        %v4744 = vpop.f32.mrb[0].mxu0
        %4745 = vdwg.mxu0
        %v4747 = vsel %vm292, %v4457, 0
        %4749 = vmatprep.subr.mxu0 %v4446
        %4750 = vmatpush1.msra.mxu0 %v4445
        %4751 = vmatprep.subr.mxu0 %v4449
        %4752 = vmatpush1.msra.mxu0 %v4448
        %4753 = vmatprep.subr.mxu0 %v4452
        %4754 = vmatpush1.msra.mxu0 %v4451
        %4755 = vmatprep.subr.mxu0 0.0
        %4756 = vmatpush1.msra.mxu0 0.0
        %4757 = vmatprep.subr.mxu0 0.0
        %4758 = vmatpush1.msra.mxu0 0.0
        %4759 = vmatprep.subr.mxu0 0.0
        %4760 = vmatpush1.msra.mxu0 0.0
        %4761 = vmatprep.subr.mxu0 0.0
        %4762 = vmatpush1.msra.mxu0 0.0
        %4763 = vmatprep.subr.mxu0 0.0
        %4764 = vmatpush1.msra.mxu0 0.0
        %4765 = vmatprep.subr.mxu0 0.0
        %4766 = vmatpush1.msra.mxu0 0.0
        %4767 = vmatprep.subr.mxu0 0.0
        %4768 = vmatpush1.msra.mxu0 0.0
        %4769 = vmatprep.subr.mxu0 0.0
        %4770 = vmatpush1.msra.mxu0 0.0
        %4771 = vmatprep.subr.mxu0 0.0
        %4772 = vmatpush1.msra.mxu0 0.0
        %4773 = vmatprep.subr.mxu0 0.0
        %4774 = vmatpush1.msra.mxu0 0.0
        %4775 = vmatprep.subr.mxu0 0.0
        %4776 = vmatpush1.msra.mxu0 0.0
        %4777 = vmatprep.subr.mxu0 0.0
        %4778 = vmatpush1.msra.mxu0 0.0
        %4779 = vmatprep.subr.mxu0 0.0
        %4780 = vmatpush1.msra.mxu0 0.0
        %4781 = vmatprep.subr.mxu0 0.0
        %4782 = vmatpush1.msra.mxu0 0.0
        %4783 = vmatprep.subr.mxu0 0.0
        %4784 = vmatpush1.msra.mxu0 0.0
        %4785 = vmatprep.subr.mxu0 0.0
        %4786 = vmatpush1.msra.mxu0 0.0
        %4787 = vmatprep.subr.mxu0 0.0
        %4788 = vmatpush1.msra.mxu0 0.0
        %4789 = vmatprep.subr.mxu0 0.0
        %4790 = vmatpush1.msra.mxu0 0.0
        %4791 = vmatprep.subr.mxu0 0.0
        %4792 = vmatpush1.msra.mxu0 0.0
        %4793 = vmatprep.subr.mxu0 0.0
        %4794 = vmatpush1.msra.mxu0 0.0
        %4795 = vmatprep.subr.mxu0 0.0
        %4796 = vmatpush1.msra.mxu0 0.0
        %4797 = vmatprep.subr.mxu0 0.0
        %4798 = vmatpush1.msra.mxu0 0.0
        %4799 = vmatprep.subr.mxu0 0.0
        %4800 = vmatpush1.msra.mxu0 0.0
        %4801 = vmatprep.subr.mxu0 0.0
        %4802 = vmatpush1.msra.mxu0 0.0
        %4803 = vmatprep.subr.mxu0 0.0
        %4804 = vmatpush1.msra.mxu0 0.0
        %4805 = vmatprep.subr.mxu0 0.0
        %4806 = vmatpush1.msra.mxu0 0.0
        %4807 = vmatprep.subr.mxu0 0.0
        %4808 = vmatpush1.msra.mxu0 0.0
        %4809 = vmatprep.subr.mxu0 0.0
        %4810 = vmatpush1.msra.mxu0 0.0
        %4811 = vmatprep.subr.mxu0 0.0
        %4812 = vmatpush1.msra.mxu0 0.0
        %4813 = vmatprep.mubr.f32.mxu0 0.0
        %4814 = vmatmul.mubr.f32.gmra.mrb[0].mxu0 %v4747
        %v4815 = vpop.f32.mrb[0].mxu0
        %v4816 = vadd.f32 0.0, %v4815
        %v4817 = vpop.f32.mrb[0].mxu0
        %v4818 = vadd.f32 0.0, %v4817
        %4819 = vdwg.mxu0
        %4820 = vmatprep.subr.mxu0 0.0
        %4821 = vmatpush1.msra.mxu0 %v4447
        %4822 = vmatprep.subr.mxu0 0.0
        %4823 = vmatpush1.msra.mxu0 %v4450
        %4824 = vmatprep.subr.mxu0 0.0
        %4825 = vmatpush1.msra.mxu0 %v4453
        %4826 = vmatprep.subr.mxu0 0.0
        %4827 = vmatpush1.msra.mxu0 0.0
        %4828 = vmatprep.subr.mxu0 0.0
        %4829 = vmatpush1.msra.mxu0 0.0
        %4830 = vmatprep.subr.mxu0 0.0
        %4831 = vmatpush1.msra.mxu0 0.0
        %4832 = vmatprep.subr.mxu0 0.0
        %4833 = vmatpush1.msra.mxu0 0.0
        %4834 = vmatprep.subr.mxu0 0.0
        %4835 = vmatpush1.msra.mxu0 0.0
        %4836 = vmatprep.subr.mxu0 0.0
        %4837 = vmatpush1.msra.mxu0 0.0
        %4838 = vmatprep.subr.mxu0 0.0
        %4839 = vmatpush1.msra.mxu0 0.0
        %4840 = vmatprep.subr.mxu0 0.0
        %4841 = vmatpush1.msra.mxu0 0.0
        %4842 = vmatprep.subr.mxu0 0.0
        %4843 = vmatpush1.msra.mxu0 0.0
        %4844 = vmatprep.subr.mxu0 0.0
        %4845 = vmatpush1.msra.mxu0 0.0
        %4846 = vmatprep.subr.mxu0 0.0
        %4847 = vmatpush1.msra.mxu0 0.0
        %4848 = vmatprep.subr.mxu0 0.0
        %4849 = vmatpush1.msra.mxu0 0.0
        %4850 = vmatprep.subr.mxu0 0.0
        %4851 = vmatpush1.msra.mxu0 0.0
        %4852 = vmatprep.subr.mxu0 0.0
        %4853 = vmatpush1.msra.mxu0 0.0
        %4854 = vmatprep.subr.mxu0 0.0
        %4855 = vmatpush1.msra.mxu0 0.0
        %4856 = vmatprep.subr.mxu0 0.0
        %4857 = vmatpush1.msra.mxu0 0.0
        %4858 = vmatprep.subr.mxu0 0.0
        %4859 = vmatpush1.msra.mxu0 0.0
        %4860 = vmatprep.subr.mxu0 0.0
        %4861 = vmatpush1.msra.mxu0 0.0
        %4862 = vmatprep.subr.mxu0 0.0
        %4863 = vmatpush1.msra.mxu0 0.0
        %4864 = vmatprep.subr.mxu0 0.0
        %4865 = vmatpush1.msra.mxu0 0.0
        %4866 = vmatprep.subr.mxu0 0.0
        %4867 = vmatpush1.msra.mxu0 0.0
        %4868 = vmatprep.subr.mxu0 0.0
        %4869 = vmatpush1.msra.mxu0 0.0
        %4870 = vmatprep.subr.mxu0 0.0
        %4871 = vmatpush1.msra.mxu0 0.0
        %4872 = vmatprep.subr.mxu0 0.0
        %4873 = vmatpush1.msra.mxu0 0.0
        %4874 = vmatprep.subr.mxu0 0.0
        %4875 = vmatpush1.msra.mxu0 0.0
        %4876 = vmatprep.subr.mxu0 0.0
        %4877 = vmatpush1.msra.mxu0 0.0
        %4878 = vmatprep.subr.mxu0 0.0
        %4879 = vmatpush1.msra.mxu0 0.0
        %4880 = vmatprep.subr.mxu0 0.0
        %4881 = vmatpush1.msra.mxu0 0.0
        %4882 = vmatprep.subr.mxu0 0.0
        %4883 = vmatpush1.msra.mxu0 0.0
        %4884 = vmatprep.mubr.f32.mxu0 0.0
        %4885 = vmatmul.mubr.f32.gmra.mrb[0].mxu0 %v4747
        %v4886 = vpop.f32.mrb[0].mxu0
        %v4887 = vadd.f32 0.0, %v4886
        %v4888 = vpop.f32.mrb[0].mxu0
        %4889 = vdwg.mxu0
        %4890 = vrot.lane.b32.xlu0 %v4528, 18
        %v4891 = vpop.permute.xlu0 %4890
        %4892 = vrot.lane.b32.xlu0 %v4530, 18
        %v4893 = vpop.permute.xlu0 %4892
        %4894 = vrot.lane.b32.xlu0 %v4599, 18
        %v4895 = vpop.permute.xlu0 %4894
        %v4896 = vsel %vm731, %v4893, %v4895
        %v4897 = vsel %vm731, %v4891, %v4893
        %v4898 = vsel %vm731, %v4895, %v4891
        %v4899 = vadd.f32 %v4898, %v4672
        %v4900 = vadd.f32 %v4897, %v4674
        %v4901 = vadd.f32 %v4896, %v4743
        %4902 = vrot.lane.b32.xlu0 %v4816, 110
        %v4903 = vpop.permute.xlu0 %4902
        %4904 = vrot.lane.b32.xlu0 %v4818, 110
        %v4905 = vpop.permute.xlu0 %4904
        %4906 = vrot.lane.b32.xlu0 %v4887, 110
        %v4907 = vpop.permute.xlu0 %4906
        %v4908 = vsel %vm744, %v4905, %v4907
        %v4909 = vsel %vm744, %v4903, %v4905
        %v4910 = vsel %vm744, %v4907, %v4903
        %v4911 = vadd.f32 %v4899, %v4909
        %v4912 = vadd.f32 %v4900, %v4908
        %v4913 = vadd.f32 %v4901, %v4910
        %s4914 = scalar_lea.vmem %s1, 64
        %v4915 = vld [vmem:[%s4914] sm:$0xff]
        %4917 = vset.pattern.permute.xlu0 0
        %4918 = vperm.xlu0 %4917, %v4915
        %v4919 = vpop.permute.xlu0 %4918
        %v4921 = vadd.f32 %v4911, %v4919
        %v4922 = vadd.f32 %v4912, %v4919
        %v4923 = vadd.f32 %v4913, %v4919
        %v4924 = vsel %vm242, %v4921, 0.0
        %v4925 = vsel %vm243, %v4922, 0.0
        %v4926 = vsel %vm244, %v4923, 0.0
        %vm4927 = vcmp.ge.f32.partialorder %v4924, 0.0
        %vm4928 = vcmp.ge.f32.partialorder %v4925, 0.0
        %vm4929 = vcmp.ge.f32.partialorder %v4926, 0.0
        %v4930 = vstv %s4417
        %v4931 = vmul.f32 %v4930, %v4924
        %v4932 = vmul.f32 %v4930, %v4925
        %v4933 = vmul.f32 %v4930, %v4926
        %v4934 = vsel %vm4927, %v4924, %v4931
        %v4935 = vsel %vm4928, %v4925, %v4932
        %v4936 = vsel %vm4929, %v4926, %v4933
        %4937 = vrot.lane.b32.xlu0 %v4934, 1
        %v4938 = vpop.permute.xlu0 %4937
        %4939 = vrot.lane.b32.xlu0 %v4935, 1
        %v4940 = vpop.permute.xlu0 %4939
        %4941 = vrot.lane.b32.xlu0 %v4936, 1
        %v4942 = vpop.permute.xlu0 %4941
        %v4943 = vsel %vm257, %v4940, %v4942
        %v4944 = vsel %vm257, %v4938, %v4940
        %v4945 = vsel %vm257, %v4942, %v4938
        %4946 = vst [vmem:[#allocation2] sm:$0xff] %v4945
        %4947 = vst [vmem:[#allocation2 + $0x8] sm:$0xff] %v4944
        %4948 = vst [vmem:[#allocation2 + $0x10] sm:$0xff] %v4943
        %4949 = vst [vmem:[#allocation2 + $0x18] sm:$0xff] %v4934
        %4950 = vst [vmem:[#allocation2 + $0x20] sm:$0xff] %v4935
        %4951 = vst [vmem:[#allocation2 + $0x28] sm:$0xff] %v4936
        %4952 = vrot.lane.b32.xlu0 %v4934, 127
        %v4953 = vpop.permute.xlu0 %4952
        %4954 = vrot.lane.b32.xlu0 %v4935, 127
        %v4955 = vpop.permute.xlu0 %4954
        %4956 = vrot.lane.b32.xlu0 %v4936, 127
        %v4957 = vpop.permute.xlu0 %4956
        %v4958 = vsel %vm273, %v4955, %v4957
        %v4959 = vsel %vm273, %v4953, %v4955
        %v4960 = vsel %vm273, %v4957, %v4953
        %4961 = vst [vmem:[#allocation2 + $0x30] sm:$0xff] %v4959
        %4962 = vst [vmem:[#allocation2 + $0x38] sm:$0xff] %v4958
        %4963 = vst [vmem:[#allocation2 + $0x40] sm:$0xff] %v4960
        %v4964 = vld [vmem:[#allocation2] sm:$0xff]
        %v4965 = vld [vmem:[#allocation2 + $0x8] sm:$0xff]
        %v4966 = vld [vmem:[#allocation2 + $0x10] sm:$0xff]
        %v4967 = vld [vmem:[#allocation2 + $0x18] sm:$0xff]
        %v4968 = vld [vmem:[#allocation2 + $0x20] sm:$0xff]
        %v4969 = vld [vmem:[#allocation2 + $0x28] sm:$0xff]
        %v4970 = vld [vmem:[#allocation2 + $0x30] sm:$0xff]
        %v4971 = vld [vmem:[#allocation2 + $0x38] sm:$0xff]
        %v4972 = vld [vmem:[#allocation2 + $0x40] sm:$0xff]
        %s4973 = scalar_lea.vmem %s0, 216
        %v4974 = vld [vmem:[%s4973] sm:$0xff]
        %v4975 = vld [vmem:[%s4973 + $0x8] sm:$0xff]
        %v4976 = vld [vmem:[%s4973 + $0x10] sm:$0xff]
        %v4978 = vsel %vm292, %v4974, 0
        %4980 = vmatprep.subr.mxu0 %v4965
        %4981 = vmatpush1.msra.mxu0 %v4964
        %4982 = vmatprep.subr.mxu0 %v4968
        %4983 = vmatpush1.msra.mxu0 %v4967
        %4984 = vmatprep.subr.mxu0 %v4971
        %4985 = vmatpush1.msra.mxu0 %v4970
        %4986 = vmatprep.subr.mxu0 0.0
        %4987 = vmatpush1.msra.mxu0 0.0
        %4988 = vmatprep.subr.mxu0 0.0
        %4989 = vmatpush1.msra.mxu0 0.0
        %4990 = vmatprep.subr.mxu0 0.0
        %4991 = vmatpush1.msra.mxu0 0.0
        %4992 = vmatprep.subr.mxu0 0.0
        %4993 = vmatpush1.msra.mxu0 0.0
        %4994 = vmatprep.subr.mxu0 0.0
        %4995 = vmatpush1.msra.mxu0 0.0
        %4996 = vmatprep.subr.mxu0 0.0
        %4997 = vmatpush1.msra.mxu0 0.0
        %4998 = vmatprep.subr.mxu0 0.0
        %4999 = vmatpush1.msra.mxu0 0.0
        %5000 = vmatprep.subr.mxu0 0.0
        %5001 = vmatpush1.msra.mxu0 0.0
        %5002 = vmatprep.subr.mxu0 0.0
        %5003 = vmatpush1.msra.mxu0 0.0
        %5004 = vmatprep.subr.mxu0 0.0
        %5005 = vmatpush1.msra.mxu0 0.0
        %5006 = vmatprep.subr.mxu0 0.0
        %5007 = vmatpush1.msra.mxu0 0.0
        %5008 = vmatprep.subr.mxu0 0.0
        %5009 = vmatpush1.msra.mxu0 0.0
        %5010 = vmatprep.subr.mxu0 0.0
        %5011 = vmatpush1.msra.mxu0 0.0
        %5012 = vmatprep.subr.mxu0 0.0
        %5013 = vmatpush1.msra.mxu0 0.0
        %5014 = vmatprep.subr.mxu0 0.0
        %5015 = vmatpush1.msra.mxu0 0.0
        %5016 = vmatprep.subr.mxu0 0.0
        %5017 = vmatpush1.msra.mxu0 0.0
        %5018 = vmatprep.subr.mxu0 0.0
        %5019 = vmatpush1.msra.mxu0 0.0
        %5020 = vmatprep.subr.mxu0 0.0
        %5021 = vmatpush1.msra.mxu0 0.0
        %5022 = vmatprep.subr.mxu0 0.0
        %5023 = vmatpush1.msra.mxu0 0.0
        %5024 = vmatprep.subr.mxu0 0.0
        %5025 = vmatpush1.msra.mxu0 0.0
        %5026 = vmatprep.subr.mxu0 0.0
        %5027 = vmatpush1.msra.mxu0 0.0
        %5028 = vmatprep.subr.mxu0 0.0
        %5029 = vmatpush1.msra.mxu0 0.0
        %5030 = vmatprep.subr.mxu0 0.0
        %5031 = vmatpush1.msra.mxu0 0.0
        %5032 = vmatprep.subr.mxu0 0.0
        %5033 = vmatpush1.msra.mxu0 0.0
        %5034 = vmatprep.subr.mxu0 0.0
        %5035 = vmatpush1.msra.mxu0 0.0
        %5036 = vmatprep.subr.mxu0 0.0
        %5037 = vmatpush1.msra.mxu0 0.0
        %5038 = vmatprep.subr.mxu0 0.0
        %5039 = vmatpush1.msra.mxu0 0.0
        %5040 = vmatprep.subr.mxu0 0.0
        %5041 = vmatpush1.msra.mxu0 0.0
        %5042 = vmatprep.subr.mxu0 0.0
        %5043 = vmatpush1.msra.mxu0 0.0
        %5044 = vmatprep.mubr.f32.mxu0 0.0
        %5045 = vmatmul.mubr.f32.gmra.mrb[0].mxu0 %v4978
        %v5046 = vpop.f32.mrb[0].mxu0
        %v5047 = vadd.f32 0.0, %v5046
        %v5048 = vpop.f32.mrb[0].mxu0
        %v5049 = vadd.f32 0.0, %v5048
        %5050 = vdwg.mxu0
        %5051 = vmatprep.subr.mxu0 0.0
        %5052 = vmatpush1.msra.mxu0 %v4966
        %5053 = vmatprep.subr.mxu0 0.0
        %5054 = vmatpush1.msra.mxu0 %v4969
        %5055 = vmatprep.subr.mxu0 0.0
        %5056 = vmatpush1.msra.mxu0 %v4972
        %5057 = vmatprep.subr.mxu0 0.0
        %5058 = vmatpush1.msra.mxu0 0.0
        %5059 = vmatprep.subr.mxu0 0.0
        %5060 = vmatpush1.msra.mxu0 0.0
        %5061 = vmatprep.subr.mxu0 0.0
        %5062 = vmatpush1.msra.mxu0 0.0
        %5063 = vmatprep.subr.mxu0 0.0
        %5064 = vmatpush1.msra.mxu0 0.0
        %5065 = vmatprep.subr.mxu0 0.0
        %5066 = vmatpush1.msra.mxu0 0.0
        %5067 = vmatprep.subr.mxu0 0.0
        %5068 = vmatpush1.msra.mxu0 0.0
        %5069 = vmatprep.subr.mxu0 0.0
        %5070 = vmatpush1.msra.mxu0 0.0
        %5071 = vmatprep.subr.mxu0 0.0
        %5072 = vmatpush1.msra.mxu0 0.0
        %5073 = vmatprep.subr.mxu0 0.0
        %5074 = vmatpush1.msra.mxu0 0.0
        %5075 = vmatprep.subr.mxu0 0.0
        %5076 = vmatpush1.msra.mxu0 0.0
        %5077 = vmatprep.subr.mxu0 0.0
        %5078 = vmatpush1.msra.mxu0 0.0
        %5079 = vmatprep.subr.mxu0 0.0
        %5080 = vmatpush1.msra.mxu0 0.0
        %5081 = vmatprep.subr.mxu0 0.0
        %5082 = vmatpush1.msra.mxu0 0.0
        %5083 = vmatprep.subr.mxu0 0.0
        %5084 = vmatpush1.msra.mxu0 0.0
        %5085 = vmatprep.subr.mxu0 0.0
        %5086 = vmatpush1.msra.mxu0 0.0
        %5087 = vmatprep.subr.mxu0 0.0
        %5088 = vmatpush1.msra.mxu0 0.0
        %5089 = vmatprep.subr.mxu0 0.0
        %5090 = vmatpush1.msra.mxu0 0.0
        %5091 = vmatprep.subr.mxu0 0.0
        %5092 = vmatpush1.msra.mxu0 0.0
        %5093 = vmatprep.subr.mxu0 0.0
        %5094 = vmatpush1.msra.mxu0 0.0
        %5095 = vmatprep.subr.mxu0 0.0
        %5096 = vmatpush1.msra.mxu0 0.0
        %5097 = vmatprep.subr.mxu0 0.0
        %5098 = vmatpush1.msra.mxu0 0.0
        %5099 = vmatprep.subr.mxu0 0.0
        %5100 = vmatpush1.msra.mxu0 0.0
        %5101 = vmatprep.subr.mxu0 0.0
        %5102 = vmatpush1.msra.mxu0 0.0
        %5103 = vmatprep.subr.mxu0 0.0
        %5104 = vmatpush1.msra.mxu0 0.0
        %5105 = vmatprep.subr.mxu0 0.0
        %5106 = vmatpush1.msra.mxu0 0.0
        %5107 = vmatprep.subr.mxu0 0.0
        %5108 = vmatpush1.msra.mxu0 0.0
        %5109 = vmatprep.subr.mxu0 0.0
        %5110 = vmatpush1.msra.mxu0 0.0
        %5111 = vmatprep.subr.mxu0 0.0
        %5112 = vmatpush1.msra.mxu0 0.0
        %5113 = vmatprep.subr.mxu0 0.0
        %5114 = vmatpush1.msra.mxu0 0.0
        %5115 = vmatprep.mubr.f32.mxu0 0.0
        %5116 = vmatmul.mubr.f32.gmra.mrb[0].mxu0 %v4978
        %v5117 = vpop.f32.mrb[0].mxu0
        %v5118 = vadd.f32 0.0, %v5117
        %v5119 = vpop.f32.mrb[0].mxu0
        %5120 = vdwg.mxu0
        %v5122 = vsel %vm292, %v4975, 0
        %5124 = vmatprep.subr.mxu0 %v4965
        %5125 = vmatpush1.msra.mxu0 %v4964
        %5126 = vmatprep.subr.mxu0 %v4968
        %5127 = vmatpush1.msra.mxu0 %v4967
        %5128 = vmatprep.subr.mxu0 %v4971
        %5129 = vmatpush1.msra.mxu0 %v4970
        %5130 = vmatprep.subr.mxu0 0.0
        %5131 = vmatpush1.msra.mxu0 0.0
        %5132 = vmatprep.subr.mxu0 0.0
        %5133 = vmatpush1.msra.mxu0 0.0
        %5134 = vmatprep.subr.mxu0 0.0
        %5135 = vmatpush1.msra.mxu0 0.0
        %5136 = vmatprep.subr.mxu0 0.0
        %5137 = vmatpush1.msra.mxu0 0.0
        %5138 = vmatprep.subr.mxu0 0.0
        %5139 = vmatpush1.msra.mxu0 0.0
        %5140 = vmatprep.subr.mxu0 0.0
        %5141 = vmatpush1.msra.mxu0 0.0
        %5142 = vmatprep.subr.mxu0 0.0
        %5143 = vmatpush1.msra.mxu0 0.0
        %5144 = vmatprep.subr.mxu0 0.0
        %5145 = vmatpush1.msra.mxu0 0.0
        %5146 = vmatprep.subr.mxu0 0.0
        %5147 = vmatpush1.msra.mxu0 0.0
        %5148 = vmatprep.subr.mxu0 0.0
        %5149 = vmatpush1.msra.mxu0 0.0
        %5150 = vmatprep.subr.mxu0 0.0
        %5151 = vmatpush1.msra.mxu0 0.0
        %5152 = vmatprep.subr.mxu0 0.0
        %5153 = vmatpush1.msra.mxu0 0.0
        %5154 = vmatprep.subr.mxu0 0.0
        %5155 = vmatpush1.msra.mxu0 0.0
        %5156 = vmatprep.subr.mxu0 0.0
        %5157 = vmatpush1.msra.mxu0 0.0
        %5158 = vmatprep.subr.mxu0 0.0
        %5159 = vmatpush1.msra.mxu0 0.0
        %5160 = vmatprep.subr.mxu0 0.0
        %5161 = vmatpush1.msra.mxu0 0.0
        %5162 = vmatprep.subr.mxu0 0.0
        %5163 = vmatpush1.msra.mxu0 0.0
        %5164 = vmatprep.subr.mxu0 0.0
        %5165 = vmatpush1.msra.mxu0 0.0
        %5166 = vmatprep.subr.mxu0 0.0
        %5167 = vmatpush1.msra.mxu0 0.0
        %5168 = vmatprep.subr.mxu0 0.0
        %5169 = vmatpush1.msra.mxu0 0.0
        %5170 = vmatprep.subr.mxu0 0.0
        %5171 = vmatpush1.msra.mxu0 0.0
        %5172 = vmatprep.subr.mxu0 0.0
        %5173 = vmatpush1.msra.mxu0 0.0
        %5174 = vmatprep.subr.mxu0 0.0
        %5175 = vmatpush1.msra.mxu0 0.0
        %5176 = vmatprep.subr.mxu0 0.0
        %5177 = vmatpush1.msra.mxu0 0.0
        %5178 = vmatprep.subr.mxu0 0.0
        %5179 = vmatpush1.msra.mxu0 0.0
        %5180 = vmatprep.subr.mxu0 0.0
        %5181 = vmatpush1.msra.mxu0 0.0
        %5182 = vmatprep.subr.mxu0 0.0
        %5183 = vmatpush1.msra.mxu0 0.0
        %5184 = vmatprep.subr.mxu0 0.0
        %5185 = vmatpush1.msra.mxu0 0.0
        %5186 = vmatprep.subr.mxu0 0.0
        %5187 = vmatpush1.msra.mxu0 0.0
        %5188 = vmatprep.mubr.f32.mxu0 0.0
        %5189 = vmatmul.mubr.f32.gmra.mrb[0].mxu0 %v5122
        %v5190 = vpop.f32.mrb[0].mxu0
        %v5191 = vadd.f32 0.0, %v5190
        %v5192 = vpop.f32.mrb[0].mxu0
        %v5193 = vadd.f32 0.0, %v5192
        %5194 = vdwg.mxu0
        %5195 = vmatprep.subr.mxu0 0.0
        %5196 = vmatpush1.msra.mxu0 %v4966
        %5197 = vmatprep.subr.mxu0 0.0
        %5198 = vmatpush1.msra.mxu0 %v4969
        %5199 = vmatprep.subr.mxu0 0.0
        %5200 = vmatpush1.msra.mxu0 %v4972
        %5201 = vmatprep.subr.mxu0 0.0
        %5202 = vmatpush1.msra.mxu0 0.0
        %5203 = vmatprep.subr.mxu0 0.0
        %5204 = vmatpush1.msra.mxu0 0.0
        %5205 = vmatprep.subr.mxu0 0.0
        %5206 = vmatpush1.msra.mxu0 0.0
        %5207 = vmatprep.subr.mxu0 0.0
        %5208 = vmatpush1.msra.mxu0 0.0
        %5209 = vmatprep.subr.mxu0 0.0
        %5210 = vmatpush1.msra.mxu0 0.0
        %5211 = vmatprep.subr.mxu0 0.0
        %5212 = vmatpush1.msra.mxu0 0.0
        %5213 = vmatprep.subr.mxu0 0.0
        %5214 = vmatpush1.msra.mxu0 0.0
        %5215 = vmatprep.subr.mxu0 0.0
        %5216 = vmatpush1.msra.mxu0 0.0
        %5217 = vmatprep.subr.mxu0 0.0
        %5218 = vmatpush1.msra.mxu0 0.0
        %5219 = vmatprep.subr.mxu0 0.0
        %5220 = vmatpush1.msra.mxu0 0.0
        %5221 = vmatprep.subr.mxu0 0.0
        %5222 = vmatpush1.msra.mxu0 0.0
        %5223 = vmatprep.subr.mxu0 0.0
        %5224 = vmatpush1.msra.mxu0 0.0
        %5225 = vmatprep.subr.mxu0 0.0
        %5226 = vmatpush1.msra.mxu0 0.0
        %5227 = vmatprep.subr.mxu0 0.0
        %5228 = vmatpush1.msra.mxu0 0.0
        %5229 = vmatprep.subr.mxu0 0.0
        %5230 = vmatpush1.msra.mxu0 0.0
        %5231 = vmatprep.subr.mxu0 0.0
        %5232 = vmatpush1.msra.mxu0 0.0
        %5233 = vmatprep.subr.mxu0 0.0
        %5234 = vmatpush1.msra.mxu0 0.0
        %5235 = vmatprep.subr.mxu0 0.0
        %5236 = vmatpush1.msra.mxu0 0.0
        %5237 = vmatprep.subr.mxu0 0.0
        %5238 = vmatpush1.msra.mxu0 0.0
        %5239 = vmatprep.subr.mxu0 0.0
        %5240 = vmatpush1.msra.mxu0 0.0
        %5241 = vmatprep.subr.mxu0 0.0
        %5242 = vmatpush1.msra.mxu0 0.0
        %5243 = vmatprep.subr.mxu0 0.0
        %5244 = vmatpush1.msra.mxu0 0.0
        %5245 = vmatprep.subr.mxu0 0.0
        %5246 = vmatpush1.msra.mxu0 0.0
        %5247 = vmatprep.subr.mxu0 0.0
        %5248 = vmatpush1.msra.mxu0 0.0
        %5249 = vmatprep.subr.mxu0 0.0
        %5250 = vmatpush1.msra.mxu0 0.0
        %5251 = vmatprep.subr.mxu0 0.0
        %5252 = vmatpush1.msra.mxu0 0.0
        %5253 = vmatprep.subr.mxu0 0.0
        %5254 = vmatpush1.msra.mxu0 0.0
        %5255 = vmatprep.subr.mxu0 0.0
        %5256 = vmatpush1.msra.mxu0 0.0
        %5257 = vmatprep.subr.mxu0 0.0
        %5258 = vmatpush1.msra.mxu0 0.0
        %5259 = vmatprep.mubr.f32.mxu0 0.0
        %5260 = vmatmul.mubr.f32.gmra.mrb[0].mxu0 %v5122
        %v5261 = vpop.f32.mrb[0].mxu0
        %v5262 = vadd.f32 0.0, %v5261
        %v5263 = vpop.f32.mrb[0].mxu0
        %5264 = vdwg.mxu0
        %v5266 = vsel %vm292, %v4976, 0
        %5268 = vmatprep.subr.mxu0 %v4965
        %5269 = vmatpush1.msra.mxu0 %v4964
        %5270 = vmatprep.subr.mxu0 %v4968
        %5271 = vmatpush1.msra.mxu0 %v4967
        %5272 = vmatprep.subr.mxu0 %v4971
        %5273 = vmatpush1.msra.mxu0 %v4970
        %5274 = vmatprep.subr.mxu0 0.0
        %5275 = vmatpush1.msra.mxu0 0.0
        %5276 = vmatprep.subr.mxu0 0.0
        %5277 = vmatpush1.msra.mxu0 0.0
        %5278 = vmatprep.subr.mxu0 0.0
        %5279 = vmatpush1.msra.mxu0 0.0
        %5280 = vmatprep.subr.mxu0 0.0
        %5281 = vmatpush1.msra.mxu0 0.0
        %5282 = vmatprep.subr.mxu0 0.0
        %5283 = vmatpush1.msra.mxu0 0.0
        %5284 = vmatprep.subr.mxu0 0.0
        %5285 = vmatpush1.msra.mxu0 0.0
        %5286 = vmatprep.subr.mxu0 0.0
        %5287 = vmatpush1.msra.mxu0 0.0
        %5288 = vmatprep.subr.mxu0 0.0
        %5289 = vmatpush1.msra.mxu0 0.0
        %5290 = vmatprep.subr.mxu0 0.0
        %5291 = vmatpush1.msra.mxu0 0.0
        %5292 = vmatprep.subr.mxu0 0.0
        %5293 = vmatpush1.msra.mxu0 0.0
        %5294 = vmatprep.subr.mxu0 0.0
        %5295 = vmatpush1.msra.mxu0 0.0
        %5296 = vmatprep.subr.mxu0 0.0
        %5297 = vmatpush1.msra.mxu0 0.0
        %5298 = vmatprep.subr.mxu0 0.0
        %5299 = vmatpush1.msra.mxu0 0.0
        %5300 = vmatprep.subr.mxu0 0.0
        %5301 = vmatpush1.msra.mxu0 0.0
        %5302 = vmatprep.subr.mxu0 0.0
        %5303 = vmatpush1.msra.mxu0 0.0
        %5304 = vmatprep.subr.mxu0 0.0
        %5305 = vmatpush1.msra.mxu0 0.0
        %5306 = vmatprep.subr.mxu0 0.0
        %5307 = vmatpush1.msra.mxu0 0.0
        %5308 = vmatprep.subr.mxu0 0.0
        %5309 = vmatpush1.msra.mxu0 0.0
        %5310 = vmatprep.subr.mxu0 0.0
        %5311 = vmatpush1.msra.mxu0 0.0
        %5312 = vmatprep.subr.mxu0 0.0
        %5313 = vmatpush1.msra.mxu0 0.0
        %5314 = vmatprep.subr.mxu0 0.0
        %5315 = vmatpush1.msra.mxu0 0.0
        %5316 = vmatprep.subr.mxu0 0.0
        %5317 = vmatpush1.msra.mxu0 0.0
        %5318 = vmatprep.subr.mxu0 0.0
        %5319 = vmatpush1.msra.mxu0 0.0
        %5320 = vmatprep.subr.mxu0 0.0
        %5321 = vmatpush1.msra.mxu0 0.0
        %5322 = vmatprep.subr.mxu0 0.0
        %5323 = vmatpush1.msra.mxu0 0.0
        %5324 = vmatprep.subr.mxu0 0.0
        %5325 = vmatpush1.msra.mxu0 0.0
        %5326 = vmatprep.subr.mxu0 0.0
        %5327 = vmatpush1.msra.mxu0 0.0
        %5328 = vmatprep.subr.mxu0 0.0
        %5329 = vmatpush1.msra.mxu0 0.0
        %5330 = vmatprep.subr.mxu0 0.0
        %5331 = vmatpush1.msra.mxu0 0.0
        %5332 = vmatprep.mubr.f32.mxu0 0.0
        %5333 = vmatmul.mubr.f32.gmra.mrb[0].mxu0 %v5266
        %v5334 = vpop.f32.mrb[0].mxu0
        %v5335 = vadd.f32 0.0, %v5334
        %v5336 = vpop.f32.mrb[0].mxu0
        %v5337 = vadd.f32 0.0, %v5336
        %5338 = vdwg.mxu0
        %5339 = vmatprep.subr.mxu0 0.0
        %5340 = vmatpush1.msra.mxu0 %v4966
        %5341 = vmatprep.subr.mxu0 0.0
        %5342 = vmatpush1.msra.mxu0 %v4969
        %5343 = vmatprep.subr.mxu0 0.0
        %5344 = vmatpush1.msra.mxu0 %v4972
        %5345 = vmatprep.subr.mxu0 0.0
        %5346 = vmatpush1.msra.mxu0 0.0
        %5347 = vmatprep.subr.mxu0 0.0
        %5348 = vmatpush1.msra.mxu0 0.0
        %5349 = vmatprep.subr.mxu0 0.0
        %5350 = vmatpush1.msra.mxu0 0.0
        %5351 = vmatprep.subr.mxu0 0.0
        %5352 = vmatpush1.msra.mxu0 0.0
        %5353 = vmatprep.subr.mxu0 0.0
        %5354 = vmatpush1.msra.mxu0 0.0
        %5355 = vmatprep.subr.mxu0 0.0
        %5356 = vmatpush1.msra.mxu0 0.0
        %5357 = vmatprep.subr.mxu0 0.0
        %5358 = vmatpush1.msra.mxu0 0.0
        %5359 = vmatprep.subr.mxu0 0.0
        %5360 = vmatpush1.msra.mxu0 0.0
        %5361 = vmatprep.subr.mxu0 0.0
        %5362 = vmatpush1.msra.mxu0 0.0
        %5363 = vmatprep.subr.mxu0 0.0
        %5364 = vmatpush1.msra.mxu0 0.0
        %5365 = vmatprep.subr.mxu0 0.0
        %5366 = vmatpush1.msra.mxu0 0.0
        %5367 = vmatprep.subr.mxu0 0.0
        %5368 = vmatpush1.msra.mxu0 0.0
        %5369 = vmatprep.subr.mxu0 0.0
        %5370 = vmatpush1.msra.mxu0 0.0
        %5371 = vmatprep.subr.mxu0 0.0
        %5372 = vmatpush1.msra.mxu0 0.0
        %5373 = vmatprep.subr.mxu0 0.0
        %5374 = vmatpush1.msra.mxu0 0.0
        %5375 = vmatprep.subr.mxu0 0.0
        %5376 = vmatpush1.msra.mxu0 0.0
        %5377 = vmatprep.subr.mxu0 0.0
        %5378 = vmatpush1.msra.mxu0 0.0
        %5379 = vmatprep.subr.mxu0 0.0
        %5380 = vmatpush1.msra.mxu0 0.0
        %5381 = vmatprep.subr.mxu0 0.0
        %5382 = vmatpush1.msra.mxu0 0.0
        %5383 = vmatprep.subr.mxu0 0.0
        %5384 = vmatpush1.msra.mxu0 0.0
        %5385 = vmatprep.subr.mxu0 0.0
        %5386 = vmatpush1.msra.mxu0 0.0
        %5387 = vmatprep.subr.mxu0 0.0
        %5388 = vmatpush1.msra.mxu0 0.0
        %5389 = vmatprep.subr.mxu0 0.0
        %5390 = vmatpush1.msra.mxu0 0.0
        %5391 = vmatprep.subr.mxu0 0.0
        %5392 = vmatpush1.msra.mxu0 0.0
        %5393 = vmatprep.subr.mxu0 0.0
        %5394 = vmatpush1.msra.mxu0 0.0
        %5395 = vmatprep.subr.mxu0 0.0
        %5396 = vmatpush1.msra.mxu0 0.0
        %5397 = vmatprep.subr.mxu0 0.0
        %5398 = vmatpush1.msra.mxu0 0.0
        %5399 = vmatprep.subr.mxu0 0.0
        %5400 = vmatpush1.msra.mxu0 0.0
        %5401 = vmatprep.subr.mxu0 0.0
        %5402 = vmatpush1.msra.mxu0 0.0
        %5403 = vmatprep.mubr.f32.mxu0 0.0
        %5404 = vmatmul.mubr.f32.gmra.mrb[0].mxu0 %v5266
        %v5405 = vpop.f32.mrb[0].mxu0
        %v5406 = vadd.f32 0.0, %v5405
        %v5407 = vpop.f32.mrb[0].mxu0
        %5408 = vdwg.mxu0
        %5409 = vrot.lane.b32.xlu0 %v5047, 18
        %v5410 = vpop.permute.xlu0 %5409
        %5411 = vrot.lane.b32.xlu0 %v5049, 18
        %v5412 = vpop.permute.xlu0 %5411
        %5413 = vrot.lane.b32.xlu0 %v5118, 18
        %v5414 = vpop.permute.xlu0 %5413
        %v5415 = vsel %vm731, %v5412, %v5414
        %v5416 = vsel %vm731, %v5410, %v5412
        %v5417 = vsel %vm731, %v5414, %v5410
        %v5418 = vadd.f32 %v5417, %v5191
        %v5419 = vadd.f32 %v5416, %v5193
        %v5420 = vadd.f32 %v5415, %v5262
        %5421 = vrot.lane.b32.xlu0 %v5335, 110
        %v5422 = vpop.permute.xlu0 %5421
        %5423 = vrot.lane.b32.xlu0 %v5337, 110
        %v5424 = vpop.permute.xlu0 %5423
        %5425 = vrot.lane.b32.xlu0 %v5406, 110
        %v5426 = vpop.permute.xlu0 %5425
        %v5427 = vsel %vm744, %v5424, %v5426
        %v5428 = vsel %vm744, %v5422, %v5424
        %v5429 = vsel %vm744, %v5426, %v5422
        %v5430 = vadd.f32 %v5418, %v5428
        %v5431 = vadd.f32 %v5419, %v5427
        %v5432 = vadd.f32 %v5420, %v5429
        %s5433 = scalar_lea.vmem %s1, 72
        %v5434 = vld [vmem:[%s5433] sm:$0xff]
        %5436 = vset.pattern.permute.xlu0 0
        %5437 = vperm.xlu0 %5436, %v5434
        %v5438 = vpop.permute.xlu0 %5437
        %v5440 = vadd.f32 %v5430, %v5438
        %v5441 = vadd.f32 %v5431, %v5438
        %v5442 = vadd.f32 %v5432, %v5438
        %v5443 = vsel %vm242, %v5440, 0.0
        %v5444 = vsel %vm243, %v5441, 0.0
        %v5445 = vsel %vm244, %v5442, 0.0
        %v5446 = vadd.f32 %v5443, %v4414
        %v5447 = vadd.f32 %v5444, %v4415
        %v5448 = vadd.f32 %v5445, %v4416
        %vm5449 = vcmp.ge.f32.partialorder %v5446, 0.0
        %vm5450 = vcmp.ge.f32.partialorder %v5447, 0.0
        %vm5451 = vcmp.ge.f32.partialorder %v5448, 0.0
        %v5452 = vmul.f32 %v4930, %v5446
        %v5453 = vmul.f32 %v4930, %v5447
        %v5454 = vmul.f32 %v4930, %v5448
        %v5455 = vsel %vm5449, %v5446, %v5452
        %v5456 = vsel %vm5450, %v5447, %v5453
        %v5457 = vsel %vm5451, %v5448, %v5454
        %5458 = vrot.lane.b32.xlu0 %v5455, 1
        %v5459 = vpop.permute.xlu0 %5458
        %5460 = vrot.lane.b32.xlu0 %v5456, 1
        %v5461 = vpop.permute.xlu0 %5460
        %5462 = vrot.lane.b32.xlu0 %v5457, 1
        %v5463 = vpop.permute.xlu0 %5462
        %v5464 = vsel %vm257, %v5461, %v5463
        %v5465 = vsel %vm257, %v5459, %v5461
        %v5466 = vsel %vm257, %v5463, %v5459
        %5467 = vst [vmem:[#allocation2] sm:$0xff] %v5466
        %5468 = vst [vmem:[#allocation2 + $0x8] sm:$0xff] %v5465
        %5469 = vst [vmem:[#allocation2 + $0x10] sm:$0xff] %v5464
        %5470 = vst [vmem:[#allocation2 + $0x18] sm:$0xff] %v5455
        %5471 = vst [vmem:[#allocation2 + $0x20] sm:$0xff] %v5456
        %5472 = vst [vmem:[#allocation2 + $0x28] sm:$0xff] %v5457
        %5473 = vrot.lane.b32.xlu0 %v5455, 127
        %v5474 = vpop.permute.xlu0 %5473
        %5475 = vrot.lane.b32.xlu0 %v5456, 127
        %v5476 = vpop.permute.xlu0 %5475
        %5477 = vrot.lane.b32.xlu0 %v5457, 127
        %v5478 = vpop.permute.xlu0 %5477
        %v5479 = vsel %vm273, %v5476, %v5478
        %v5480 = vsel %vm273, %v5474, %v5476
        %v5481 = vsel %vm273, %v5478, %v5474
        %5482 = vst [vmem:[#allocation2 + $0x30] sm:$0xff] %v5480
        %5483 = vst [vmem:[#allocation2 + $0x38] sm:$0xff] %v5479
        %5484 = vst [vmem:[#allocation2 + $0x40] sm:$0xff] %v5481
        %v5485 = vld [vmem:[#allocation2] sm:$0xff]
        %v5486 = vld [vmem:[#allocation2 + $0x8] sm:$0xff]
        %v5487 = vld [vmem:[#allocation2 + $0x10] sm:$0xff]
        %v5488 = vld [vmem:[#allocation2 + $0x18] sm:$0xff]
        %v5489 = vld [vmem:[#allocation2 + $0x20] sm:$0xff]
        %v5490 = vld [vmem:[#allocation2 + $0x28] sm:$0xff]
        %v5491 = vld [vmem:[#allocation2 + $0x30] sm:$0xff]
        %v5492 = vld [vmem:[#allocation2 + $0x38] sm:$0xff]
        %v5493 = vld [vmem:[#allocation2 + $0x40] sm:$0xff]
        %s5494 = scalar_lea.vmem %s0, 240
        %v5495 = vld [vmem:[%s5494] sm:$0xff]
        %v5496 = vld [vmem:[%s5494 + $0x8] sm:$0xff]
        %v5497 = vld [vmem:[%s5494 + $0x10] sm:$0xff]
        %v5499 = vsel %vm292, %v5495, 0
        %5501 = vmatprep.subr.mxu0 %v5486
        %5502 = vmatpush1.msra.mxu0 %v5485
        %5503 = vmatprep.subr.mxu0 %v5489
        %5504 = vmatpush1.msra.mxu0 %v5488
        %5505 = vmatprep.subr.mxu0 %v5492
        %5506 = vmatpush1.msra.mxu0 %v5491
        %5507 = vmatprep.subr.mxu0 0.0
        %5508 = vmatpush1.msra.mxu0 0.0
        %5509 = vmatprep.subr.mxu0 0.0
        %5510 = vmatpush1.msra.mxu0 0.0
        %5511 = vmatprep.subr.mxu0 0.0
        %5512 = vmatpush1.msra.mxu0 0.0
        %5513 = vmatprep.subr.mxu0 0.0
        %5514 = vmatpush1.msra.mxu0 0.0
        %5515 = vmatprep.subr.mxu0 0.0
        %5516 = vmatpush1.msra.mxu0 0.0
        %5517 = vmatprep.subr.mxu0 0.0
        %5518 = vmatpush1.msra.mxu0 0.0
        %5519 = vmatprep.subr.mxu0 0.0
        %5520 = vmatpush1.msra.mxu0 0.0
        %5521 = vmatprep.subr.mxu0 0.0
        %5522 = vmatpush1.msra.mxu0 0.0
        %5523 = vmatprep.subr.mxu0 0.0
        %5524 = vmatpush1.msra.mxu0 0.0
        %5525 = vmatprep.subr.mxu0 0.0
        %5526 = vmatpush1.msra.mxu0 0.0
        %5527 = vmatprep.subr.mxu0 0.0
        %5528 = vmatpush1.msra.mxu0 0.0
        %5529 = vmatprep.subr.mxu0 0.0
        %5530 = vmatpush1.msra.mxu0 0.0
        %5531 = vmatprep.subr.mxu0 0.0
        %5532 = vmatpush1.msra.mxu0 0.0
        %5533 = vmatprep.subr.mxu0 0.0
        %5534 = vmatpush1.msra.mxu0 0.0
        %5535 = vmatprep.subr.mxu0 0.0
        %5536 = vmatpush1.msra.mxu0 0.0
        %5537 = vmatprep.subr.mxu0 0.0
        %5538 = vmatpush1.msra.mxu0 0.0
        %5539 = vmatprep.subr.mxu0 0.0
        %5540 = vmatpush1.msra.mxu0 0.0
        %5541 = vmatprep.subr.mxu0 0.0
        %5542 = vmatpush1.msra.mxu0 0.0
        %5543 = vmatprep.subr.mxu0 0.0
        %5544 = vmatpush1.msra.mxu0 0.0
        %5545 = vmatprep.subr.mxu0 0.0
        %5546 = vmatpush1.msra.mxu0 0.0
        %5547 = vmatprep.subr.mxu0 0.0
        %5548 = vmatpush1.msra.mxu0 0.0
        %5549 = vmatprep.subr.mxu0 0.0
        %5550 = vmatpush1.msra.mxu0 0.0
        %5551 = vmatprep.subr.mxu0 0.0
        %5552 = vmatpush1.msra.mxu0 0.0
        %5553 = vmatprep.subr.mxu0 0.0
        %5554 = vmatpush1.msra.mxu0 0.0
        %5555 = vmatprep.subr.mxu0 0.0
        %5556 = vmatpush1.msra.mxu0 0.0
        %5557 = vmatprep.subr.mxu0 0.0
        %5558 = vmatpush1.msra.mxu0 0.0
        %5559 = vmatprep.subr.mxu0 0.0
        %5560 = vmatpush1.msra.mxu0 0.0
        %5561 = vmatprep.subr.mxu0 0.0
        %5562 = vmatpush1.msra.mxu0 0.0
        %5563 = vmatprep.subr.mxu0 0.0
        %5564 = vmatpush1.msra.mxu0 0.0
        %5565 = vmatprep.mubr.f32.mxu0 0.0
        %5566 = vmatmul.mubr.f32.gmra.mrb[0].mxu0 %v5499
        %v5567 = vpop.f32.mrb[0].mxu0
        %v5568 = vadd.f32 0.0, %v5567
        %v5569 = vpop.f32.mrb[0].mxu0
        %v5570 = vadd.f32 0.0, %v5569
        %5571 = vdwg.mxu0
        %5572 = vmatprep.subr.mxu0 0.0
        %5573 = vmatpush1.msra.mxu0 %v5487
        %5574 = vmatprep.subr.mxu0 0.0
        %5575 = vmatpush1.msra.mxu0 %v5490
        %5576 = vmatprep.subr.mxu0 0.0
        %5577 = vmatpush1.msra.mxu0 %v5493
        %5578 = vmatprep.subr.mxu0 0.0
        %5579 = vmatpush1.msra.mxu0 0.0
        %5580 = vmatprep.subr.mxu0 0.0
        %5581 = vmatpush1.msra.mxu0 0.0
        %5582 = vmatprep.subr.mxu0 0.0
        %5583 = vmatpush1.msra.mxu0 0.0
        %5584 = vmatprep.subr.mxu0 0.0
        %5585 = vmatpush1.msra.mxu0 0.0
        %5586 = vmatprep.subr.mxu0 0.0
        %5587 = vmatpush1.msra.mxu0 0.0
        %5588 = vmatprep.subr.mxu0 0.0
        %5589 = vmatpush1.msra.mxu0 0.0
        %5590 = vmatprep.subr.mxu0 0.0
        %5591 = vmatpush1.msra.mxu0 0.0
        %5592 = vmatprep.subr.mxu0 0.0
        %5593 = vmatpush1.msra.mxu0 0.0
        %5594 = vmatprep.subr.mxu0 0.0
        %5595 = vmatpush1.msra.mxu0 0.0
        %5596 = vmatprep.subr.mxu0 0.0
        %5597 = vmatpush1.msra.mxu0 0.0
        %5598 = vmatprep.subr.mxu0 0.0
        %5599 = vmatpush1.msra.mxu0 0.0
        %5600 = vmatprep.subr.mxu0 0.0
        %5601 = vmatpush1.msra.mxu0 0.0
        %5602 = vmatprep.subr.mxu0 0.0
        %5603 = vmatpush1.msra.mxu0 0.0
        %5604 = vmatprep.subr.mxu0 0.0
        %5605 = vmatpush1.msra.mxu0 0.0
        %5606 = vmatprep.subr.mxu0 0.0
        %5607 = vmatpush1.msra.mxu0 0.0
        %5608 = vmatprep.subr.mxu0 0.0
        %5609 = vmatpush1.msra.mxu0 0.0
        %5610 = vmatprep.subr.mxu0 0.0
        %5611 = vmatpush1.msra.mxu0 0.0
        %5612 = vmatprep.subr.mxu0 0.0
        %5613 = vmatpush1.msra.mxu0 0.0
        %5614 = vmatprep.subr.mxu0 0.0
        %5615 = vmatpush1.msra.mxu0 0.0
        %5616 = vmatprep.subr.mxu0 0.0
        %5617 = vmatpush1.msra.mxu0 0.0
        %5618 = vmatprep.subr.mxu0 0.0
        %5619 = vmatpush1.msra.mxu0 0.0
        %5620 = vmatprep.subr.mxu0 0.0
        %5621 = vmatpush1.msra.mxu0 0.0
        %5622 = vmatprep.subr.mxu0 0.0
        %5623 = vmatpush1.msra.mxu0 0.0
        %5624 = vmatprep.subr.mxu0 0.0
        %5625 = vmatpush1.msra.mxu0 0.0
        %5626 = vmatprep.subr.mxu0 0.0
        %5627 = vmatpush1.msra.mxu0 0.0
        %5628 = vmatprep.subr.mxu0 0.0
        %5629 = vmatpush1.msra.mxu0 0.0
        %5630 = vmatprep.subr.mxu0 0.0
        %5631 = vmatpush1.msra.mxu0 0.0
        %5632 = vmatprep.subr.mxu0 0.0
        %5633 = vmatpush1.msra.mxu0 0.0
        %5634 = vmatprep.subr.mxu0 0.0
        %5635 = vmatpush1.msra.mxu0 0.0
        %5636 = vmatprep.mubr.f32.mxu0 0.0
        %5637 = vmatmul.mubr.f32.gmra.mrb[0].mxu0 %v5499
        %v5638 = vpop.f32.mrb[0].mxu0
        %v5639 = vadd.f32 0.0, %v5638
        %v5640 = vpop.f32.mrb[0].mxu0
        %5641 = vdwg.mxu0
        %v5643 = vsel %vm292, %v5496, 0
        %5645 = vmatprep.subr.mxu0 %v5486
        %5646 = vmatpush1.msra.mxu0 %v5485
        %5647 = vmatprep.subr.mxu0 %v5489
        %5648 = vmatpush1.msra.mxu0 %v5488
        %5649 = vmatprep.subr.mxu0 %v5492
        %5650 = vmatpush1.msra.mxu0 %v5491
        %5651 = vmatprep.subr.mxu0 0.0
        %5652 = vmatpush1.msra.mxu0 0.0
        %5653 = vmatprep.subr.mxu0 0.0
        %5654 = vmatpush1.msra.mxu0 0.0
        %5655 = vmatprep.subr.mxu0 0.0
        %5656 = vmatpush1.msra.mxu0 0.0
        %5657 = vmatprep.subr.mxu0 0.0
        %5658 = vmatpush1.msra.mxu0 0.0
        %5659 = vmatprep.subr.mxu0 0.0
        %5660 = vmatpush1.msra.mxu0 0.0
        %5661 = vmatprep.subr.mxu0 0.0
        %5662 = vmatpush1.msra.mxu0 0.0
        %5663 = vmatprep.subr.mxu0 0.0
        %5664 = vmatpush1.msra.mxu0 0.0
        %5665 = vmatprep.subr.mxu0 0.0
        %5666 = vmatpush1.msra.mxu0 0.0
        %5667 = vmatprep.subr.mxu0 0.0
        %5668 = vmatpush1.msra.mxu0 0.0
        %5669 = vmatprep.subr.mxu0 0.0
        %5670 = vmatpush1.msra.mxu0 0.0
        %5671 = vmatprep.subr.mxu0 0.0
        %5672 = vmatpush1.msra.mxu0 0.0
        %5673 = vmatprep.subr.mxu0 0.0
        %5674 = vmatpush1.msra.mxu0 0.0
        %5675 = vmatprep.subr.mxu0 0.0
        %5676 = vmatpush1.msra.mxu0 0.0
        %5677 = vmatprep.subr.mxu0 0.0
        %5678 = vmatpush1.msra.mxu0 0.0
        %5679 = vmatprep.subr.mxu0 0.0
        %5680 = vmatpush1.msra.mxu0 0.0
        %5681 = vmatprep.subr.mxu0 0.0
        %5682 = vmatpush1.msra.mxu0 0.0
        %5683 = vmatprep.subr.mxu0 0.0
        %5684 = vmatpush1.msra.mxu0 0.0
        %5685 = vmatprep.subr.mxu0 0.0
        %5686 = vmatpush1.msra.mxu0 0.0
        %5687 = vmatprep.subr.mxu0 0.0
        %5688 = vmatpush1.msra.mxu0 0.0
        %5689 = vmatprep.subr.mxu0 0.0
        %5690 = vmatpush1.msra.mxu0 0.0
        %5691 = vmatprep.subr.mxu0 0.0
        %5692 = vmatpush1.msra.mxu0 0.0
        %5693 = vmatprep.subr.mxu0 0.0
        %5694 = vmatpush1.msra.mxu0 0.0
        %5695 = vmatprep.subr.mxu0 0.0
        %5696 = vmatpush1.msra.mxu0 0.0
        %5697 = vmatprep.subr.mxu0 0.0
        %5698 = vmatpush1.msra.mxu0 0.0
        %5699 = vmatprep.subr.mxu0 0.0
        %5700 = vmatpush1.msra.mxu0 0.0
        %5701 = vmatprep.subr.mxu0 0.0
        %5702 = vmatpush1.msra.mxu0 0.0
        %5703 = vmatprep.subr.mxu0 0.0
        %5704 = vmatpush1.msra.mxu0 0.0
        %5705 = vmatprep.subr.mxu0 0.0
        %5706 = vmatpush1.msra.mxu0 0.0
        %5707 = vmatprep.subr.mxu0 0.0
        %5708 = vmatpush1.msra.mxu0 0.0
        %5709 = vmatprep.mubr.f32.mxu0 0.0
        %5710 = vmatmul.mubr.f32.gmra.mrb[0].mxu0 %v5643
        %v5711 = vpop.f32.mrb[0].mxu0
        %v5712 = vadd.f32 0.0, %v5711
        %v5713 = vpop.f32.mrb[0].mxu0
        %v5714 = vadd.f32 0.0, %v5713
        %5715 = vdwg.mxu0
        %5716 = vmatprep.subr.mxu0 0.0
        %5717 = vmatpush1.msra.mxu0 %v5487
        %5718 = vmatprep.subr.mxu0 0.0
        %5719 = vmatpush1.msra.mxu0 %v5490
        %5720 = vmatprep.subr.mxu0 0.0
        %5721 = vmatpush1.msra.mxu0 %v5493
        %5722 = vmatprep.subr.mxu0 0.0
        %5723 = vmatpush1.msra.mxu0 0.0
        %5724 = vmatprep.subr.mxu0 0.0
        %5725 = vmatpush1.msra.mxu0 0.0
        %5726 = vmatprep.subr.mxu0 0.0
        %5727 = vmatpush1.msra.mxu0 0.0
        %5728 = vmatprep.subr.mxu0 0.0
        %5729 = vmatpush1.msra.mxu0 0.0
        %5730 = vmatprep.subr.mxu0 0.0
        %5731 = vmatpush1.msra.mxu0 0.0
        %5732 = vmatprep.subr.mxu0 0.0
        %5733 = vmatpush1.msra.mxu0 0.0
        %5734 = vmatprep.subr.mxu0 0.0
        %5735 = vmatpush1.msra.mxu0 0.0
        %5736 = vmatprep.subr.mxu0 0.0
        %5737 = vmatpush1.msra.mxu0 0.0
        %5738 = vmatprep.subr.mxu0 0.0
        %5739 = vmatpush1.msra.mxu0 0.0
        %5740 = vmatprep.subr.mxu0 0.0
        %5741 = vmatpush1.msra.mxu0 0.0
        %5742 = vmatprep.subr.mxu0 0.0
        %5743 = vmatpush1.msra.mxu0 0.0
        %5744 = vmatprep.subr.mxu0 0.0
        %5745 = vmatpush1.msra.mxu0 0.0
        %5746 = vmatprep.subr.mxu0 0.0
        %5747 = vmatpush1.msra.mxu0 0.0
        %5748 = vmatprep.subr.mxu0 0.0
        %5749 = vmatpush1.msra.mxu0 0.0
        %5750 = vmatprep.subr.mxu0 0.0
        %5751 = vmatpush1.msra.mxu0 0.0
        %5752 = vmatprep.subr.mxu0 0.0
        %5753 = vmatpush1.msra.mxu0 0.0
        %5754 = vmatprep.subr.mxu0 0.0
        %5755 = vmatpush1.msra.mxu0 0.0
        %5756 = vmatprep.subr.mxu0 0.0
        %5757 = vmatpush1.msra.mxu0 0.0
        %5758 = vmatprep.subr.mxu0 0.0
        %5759 = vmatpush1.msra.mxu0 0.0
        %5760 = vmatprep.subr.mxu0 0.0
        %5761 = vmatpush1.msra.mxu0 0.0
        %5762 = vmatprep.subr.mxu0 0.0
        %5763 = vmatpush1.msra.mxu0 0.0
        %5764 = vmatprep.subr.mxu0 0.0
        %5765 = vmatpush1.msra.mxu0 0.0
        %5766 = vmatprep.subr.mxu0 0.0
        %5767 = vmatpush1.msra.mxu0 0.0
        %5768 = vmatprep.subr.mxu0 0.0
        %5769 = vmatpush1.msra.mxu0 0.0
        %5770 = vmatprep.subr.mxu0 0.0
        %5771 = vmatpush1.msra.mxu0 0.0
        %5772 = vmatprep.subr.mxu0 0.0
        %5773 = vmatpush1.msra.mxu0 0.0
        %5774 = vmatprep.subr.mxu0 0.0
        %5775 = vmatpush1.msra.mxu0 0.0
        %5776 = vmatprep.subr.mxu0 0.0
        %5777 = vmatpush1.msra.mxu0 0.0
        %5778 = vmatprep.subr.mxu0 0.0
        %5779 = vmatpush1.msra.mxu0 0.0
        %5780 = vmatprep.mubr.f32.mxu0 0.0
        %5781 = vmatmul.mubr.f32.gmra.mrb[0].mxu0 %v5643
        %v5782 = vpop.f32.mrb[0].mxu0
        %v5783 = vadd.f32 0.0, %v5782
        %v5784 = vpop.f32.mrb[0].mxu0
        %5785 = vdwg.mxu0
        %v5787 = vsel %vm292, %v5497, 0
        %5789 = vmatprep.subr.mxu0 %v5486
        %5790 = vmatpush1.msra.mxu0 %v5485
        %5791 = vmatprep.subr.mxu0 %v5489
        %5792 = vmatpush1.msra.mxu0 %v5488
        %5793 = vmatprep.subr.mxu0 %v5492
        %5794 = vmatpush1.msra.mxu0 %v5491
        %5795 = vmatprep.subr.mxu0 0.0
        %5796 = vmatpush1.msra.mxu0 0.0
        %5797 = vmatprep.subr.mxu0 0.0
        %5798 = vmatpush1.msra.mxu0 0.0
        %5799 = vmatprep.subr.mxu0 0.0
        %5800 = vmatpush1.msra.mxu0 0.0
        %5801 = vmatprep.subr.mxu0 0.0
        %5802 = vmatpush1.msra.mxu0 0.0
        %5803 = vmatprep.subr.mxu0 0.0
        %5804 = vmatpush1.msra.mxu0 0.0
        %5805 = vmatprep.subr.mxu0 0.0
        %5806 = vmatpush1.msra.mxu0 0.0
        %5807 = vmatprep.subr.mxu0 0.0
        %5808 = vmatpush1.msra.mxu0 0.0
        %5809 = vmatprep.subr.mxu0 0.0
        %5810 = vmatpush1.msra.mxu0 0.0
        %5811 = vmatprep.subr.mxu0 0.0
        %5812 = vmatpush1.msra.mxu0 0.0
        %5813 = vmatprep.subr.mxu0 0.0
        %5814 = vmatpush1.msra.mxu0 0.0
        %5815 = vmatprep.subr.mxu0 0.0
        %5816 = vmatpush1.msra.mxu0 0.0
        %5817 = vmatprep.subr.mxu0 0.0
        %5818 = vmatpush1.msra.mxu0 0.0
        %5819 = vmatprep.subr.mxu0 0.0
        %5820 = vmatpush1.msra.mxu0 0.0
        %5821 = vmatprep.subr.mxu0 0.0
        %5822 = vmatpush1.msra.mxu0 0.0
        %5823 = vmatprep.subr.mxu0 0.0
        %5824 = vmatpush1.msra.mxu0 0.0
        %5825 = vmatprep.subr.mxu0 0.0
        %5826 = vmatpush1.msra.mxu0 0.0
        %5827 = vmatprep.subr.mxu0 0.0
        %5828 = vmatpush1.msra.mxu0 0.0
        %5829 = vmatprep.subr.mxu0 0.0
        %5830 = vmatpush1.msra.mxu0 0.0
        %5831 = vmatprep.subr.mxu0 0.0
        %5832 = vmatpush1.msra.mxu0 0.0
        %5833 = vmatprep.subr.mxu0 0.0
        %5834 = vmatpush1.msra.mxu0 0.0
        %5835 = vmatprep.subr.mxu0 0.0
        %5836 = vmatpush1.msra.mxu0 0.0
        %5837 = vmatprep.subr.mxu0 0.0
        %5838 = vmatpush1.msra.mxu0 0.0
        %5839 = vmatprep.subr.mxu0 0.0
        %5840 = vmatpush1.msra.mxu0 0.0
        %5841 = vmatprep.subr.mxu0 0.0
        %5842 = vmatpush1.msra.mxu0 0.0
        %5843 = vmatprep.subr.mxu0 0.0
        %5844 = vmatpush1.msra.mxu0 0.0
        %5845 = vmatprep.subr.mxu0 0.0
        %5846 = vmatpush1.msra.mxu0 0.0
        %5847 = vmatprep.subr.mxu0 0.0
        %5848 = vmatpush1.msra.mxu0 0.0
        %5849 = vmatprep.subr.mxu0 0.0
        %5850 = vmatpush1.msra.mxu0 0.0
        %5851 = vmatprep.subr.mxu0 0.0
        %5852 = vmatpush1.msra.mxu0 0.0
        %5853 = vmatprep.mubr.f32.mxu0 0.0
        %5854 = vmatmul.mubr.f32.gmra.mrb[0].mxu0 %v5787
        %v5855 = vpop.f32.mrb[0].mxu0
        %v5856 = vadd.f32 0.0, %v5855
        %v5857 = vpop.f32.mrb[0].mxu0
        %v5858 = vadd.f32 0.0, %v5857
        %5859 = vdwg.mxu0
        %5860 = vmatprep.subr.mxu0 0.0
        %5861 = vmatpush1.msra.mxu0 %v5487
        %5862 = vmatprep.subr.mxu0 0.0
        %5863 = vmatpush1.msra.mxu0 %v5490
        %5864 = vmatprep.subr.mxu0 0.0
        %5865 = vmatpush1.msra.mxu0 %v5493
        %5866 = vmatprep.subr.mxu0 0.0
        %5867 = vmatpush1.msra.mxu0 0.0
        %5868 = vmatprep.subr.mxu0 0.0
        %5869 = vmatpush1.msra.mxu0 0.0
        %5870 = vmatprep.subr.mxu0 0.0
        %5871 = vmatpush1.msra.mxu0 0.0
        %5872 = vmatprep.subr.mxu0 0.0
        %5873 = vmatpush1.msra.mxu0 0.0
        %5874 = vmatprep.subr.mxu0 0.0
        %5875 = vmatpush1.msra.mxu0 0.0
        %5876 = vmatprep.subr.mxu0 0.0
        %5877 = vmatpush1.msra.mxu0 0.0
        %5878 = vmatprep.subr.mxu0 0.0
        %5879 = vmatpush1.msra.mxu0 0.0
        %5880 = vmatprep.subr.mxu0 0.0
        %5881 = vmatpush1.msra.mxu0 0.0
        %5882 = vmatprep.subr.mxu0 0.0
        %5883 = vmatpush1.msra.mxu0 0.0
        %5884 = vmatprep.subr.mxu0 0.0
        %5885 = vmatpush1.msra.mxu0 0.0
        %5886 = vmatprep.subr.mxu0 0.0
        %5887 = vmatpush1.msra.mxu0 0.0
        %5888 = vmatprep.subr.mxu0 0.0
        %5889 = vmatpush1.msra.mxu0 0.0
        %5890 = vmatprep.subr.mxu0 0.0
        %5891 = vmatpush1.msra.mxu0 0.0
        %5892 = vmatprep.subr.mxu0 0.0
        %5893 = vmatpush1.msra.mxu0 0.0
        %5894 = vmatprep.subr.mxu0 0.0
        %5895 = vmatpush1.msra.mxu0 0.0
        %5896 = vmatprep.subr.mxu0 0.0
        %5897 = vmatpush1.msra.mxu0 0.0
        %5898 = vmatprep.subr.mxu0 0.0
        %5899 = vmatpush1.msra.mxu0 0.0
        %5900 = vmatprep.subr.mxu0 0.0
        %5901 = vmatpush1.msra.mxu0 0.0
        %5902 = vmatprep.subr.mxu0 0.0
        %5903 = vmatpush1.msra.mxu0 0.0
        %5904 = vmatprep.subr.mxu0 0.0
        %5905 = vmatpush1.msra.mxu0 0.0
        %5906 = vmatprep.subr.mxu0 0.0
        %5907 = vmatpush1.msra.mxu0 0.0
        %5908 = vmatprep.subr.mxu0 0.0
        %5909 = vmatpush1.msra.mxu0 0.0
        %5910 = vmatprep.subr.mxu0 0.0
        %5911 = vmatpush1.msra.mxu0 0.0
        %5912 = vmatprep.subr.mxu0 0.0
        %5913 = vmatpush1.msra.mxu0 0.0
        %5914 = vmatprep.subr.mxu0 0.0
        %5915 = vmatpush1.msra.mxu0 0.0
        %5916 = vmatprep.subr.mxu0 0.0
        %5917 = vmatpush1.msra.mxu0 0.0
        %5918 = vmatprep.subr.mxu0 0.0
        %5919 = vmatpush1.msra.mxu0 0.0
        %5920 = vmatprep.subr.mxu0 0.0
        %5921 = vmatpush1.msra.mxu0 0.0
        %5922 = vmatprep.subr.mxu0 0.0
        %5923 = vmatpush1.msra.mxu0 0.0
        %5924 = vmatprep.mubr.f32.mxu0 0.0
        %5925 = vmatmul.mubr.f32.gmra.mrb[0].mxu0 %v5787
        %v5926 = vpop.f32.mrb[0].mxu0
        %v5927 = vadd.f32 0.0, %v5926
        %v5928 = vpop.f32.mrb[0].mxu0
        %5929 = vdwg.mxu0
        %5930 = vrot.lane.b32.xlu0 %v5568, 18
        %v5931 = vpop.permute.xlu0 %5930
        %5932 = vrot.lane.b32.xlu0 %v5570, 18
        %v5933 = vpop.permute.xlu0 %5932
        %5934 = vrot.lane.b32.xlu0 %v5639, 18
        %v5935 = vpop.permute.xlu0 %5934
        %v5936 = vsel %vm731, %v5933, %v5935
        %v5937 = vsel %vm731, %v5931, %v5933
        %v5938 = vsel %vm731, %v5935, %v5931
        %v5939 = vadd.f32 %v5938, %v5712
        %v5940 = vadd.f32 %v5937, %v5714
        %v5941 = vadd.f32 %v5936, %v5783
        %5942 = vrot.lane.b32.xlu0 %v5856, 110
        %v5943 = vpop.permute.xlu0 %5942
        %5944 = vrot.lane.b32.xlu0 %v5858, 110
        %v5945 = vpop.permute.xlu0 %5944
        %5946 = vrot.lane.b32.xlu0 %v5927, 110
        %v5947 = vpop.permute.xlu0 %5946
        %v5948 = vsel %vm744, %v5945, %v5947
        %v5949 = vsel %vm744, %v5943, %v5945
        %v5950 = vsel %vm744, %v5947, %v5943
        %v5951 = vadd.f32 %v5939, %v5949
        %v5952 = vadd.f32 %v5940, %v5948
        %v5953 = vadd.f32 %v5941, %v5950
        %s5954 = scalar_lea.vmem %s1, 80
        %v5955 = vld [vmem:[%s5954] sm:$0xff]
        %5957 = vset.pattern.permute.xlu0 0
        %5958 = vperm.xlu0 %5957, %v5955
        %v5959 = vpop.permute.xlu0 %5958
        %v5961 = vadd.f32 %v5951, %v5959
        %v5962 = vadd.f32 %v5952, %v5959
        %v5963 = vadd.f32 %v5953, %v5959
        %s5964 = sld [smem:[#allocation3 + $0x5]]
        %vm5965 = vcmp.ge.f32.partialorder %v5961, 0.0
        %vm5966 = vcmp.ge.f32.partialorder %v5962, 0.0
        %vm5967 = vcmp.ge.f32.partialorder %v5963, 0.0
        %v5968 = vstv %s5964
        %v5969 = vmul.f32 %v5968, %v5961
        %v5970 = vmul.f32 %v5968, %v5962
        %v5971 = vmul.f32 %v5968, %v5963
        %v5972 = vsel %vm5965, %v5961, %v5969
        %v5973 = vsel %vm5966, %v5962, %v5970
        %v5974 = vsel %vm5967, %v5963, %v5971
        %5975 = vst [vmem:[%s238] sm:$0xff] %v5972
        %5976 = vst [vmem:[%s238 + $0x8] sm:$0xff] %v5973
        %5977 = vst [vmem:[%s238 + $0x10] sm:$0xff] %v5974
        %p5978 = scmp.lt.s32.totalorder %s17, 1
        %s5979 = scalar_select %p5978, %s17, 1
        %s5980 = smul.addr %s5979, 3
        %s5981 = smul.addr %s5980, 8
        %s5982 = scalar_lea.vmem %s5, %s5981
        // Predicated region
        $region45: #{rnet_b_pallas.1} parent=39 // pred_check
          %p5983 = pneg %p145
        $region46: #{rnet_b_pallas.1} parent=39 // pred_check_branch
          %5985 = sbr.rel (%p5983) target = $region48
        $region47: #{rnet_b_pallas.1} parent=39 // pred_region
          _
        $region48: #{rnet_b_pallas.1} parent=39 // pred_fallthru
          _
      $region40: #{rnet_b_pallas.1} parent=5 // pred_fallthru
        _
      %p5986 = scmp.le.s32.totalorder 2, %s12
      // Predicated region
      $region49: #{rnet_b_pallas.1} parent=5 // pred_check
        %p5987 = pneg %p5986
      $region50: #{rnet_b_pallas.1} parent=5 // pred_check_branch
        %5989 = sbr.rel (%p5987) target = $region52
      $region51: #{rnet_b_pallas.1} parent=5 // pred_region
        %s5990 = ssub.s32 %s12, 2
        // Predicated region
        $region53: #{rnet_b_pallas.1} parent=51 // pred_check
          %p5991 = pneg %p151
        $region54: #{rnet_b_pallas.1} parent=51 // pred_check_branch
          %5993 = sbr.rel (%p5991) target = $region56
        $region55: #{rnet_b_pallas.1} parent=51 // pred_region
          %p5994 = scmp.lt.s32.totalorder %s18, 1
          %s5995 = scalar_select %p5994, %s18, 1
          %s5996 = smul.addr %s5995, 3
          %s5997 = smul.addr %s5996, 8
          %s5998 = scalar_lea.vmem %s5, %s5997
        $region56: #{rnet_b_pallas.1} parent=51 // pred_fallthru
          _
      $region52: #{rnet_b_pallas.1} parent=5 // pred_fallthru
        _
    $region6: #{rnet_b_pallas.1} parent=1 // loop_footer
      %s16 = sadd.s32 1, %s12
    $region7: #{rnet_b_pallas.1} parent=1 // loop_footer_branch
      %11 = sbr.rel target = $region3
    $region8: #{rnet_b_pallas.1} parent=1 // loop_exit
      _
    %5999 = vsyncpa [#allocation4], 1
    %s6000 = scalar_lea.sflag [#allocation4], 1
    %6001 = vsyncpa %s6000, 1

</llo_original>
